<compile_context>
chip_gen: v7x
topology: tpu7x:2x2x1
jax: 0.10.0
libtpu: 0.0.40
codegen_flags: <defaults>
</compile_context>

<pallas_src>
import functools

import jax
import jax.numpy as jnp
from jax import lax
from jax.experimental import pallas as pl
from jax.experimental.pallas import tpu as pltpu


def _round_up(x, m):
    return (x + m - 1) // m * m


def _cdiv(a, b):
    return -(-a // b)


def _lstm_gen_kernel(x_ref, wih_ref, whh_ref, b_ref, wlin_ref, blin_ref,
                     out_ref, gates_ref, hist_ref, h_ref, c_ref, *, unroll):
    """One (batch_chunk, seq_chunk) grid step.

    x_ref    : (Ts*Bc, in_dim)   compute dtype  (row = local_t * Bc + local_b)
    wih_ref  : (in_dim, 4*Hp)    compute dtype  (gate-padded W_ih^T)
    whh_ref  : (Hp, 4*Hp)        compute dtype  (gate-padded W_hh^T)
    b_ref    : (1, 4*Hp)         f32            (b_ih + b_hh, gate-padded)
    wlin_ref : (Hp, OUTp)        compute dtype
    blin_ref : (1, OUTp)         f32
    out_ref  : (Ts*Bc, OUTp)     f32            (lane-dense output slab)
    gates_ref: (Ts*Bc, 4*Hp)     compute dtype scratch (hoisted input proj.)
    hist_ref : (Ts*Bc, Hp)       compute dtype scratch (h_t history for head)
    h_ref    : (Bc, Hp)          compute dtype scratch (carried hidden state)
    c_ref    : (Bc, Hp)          f32  scratch   (carried cell state)
    """
    bc, hp = h_ref.shape
    ts = hist_ref.shape[0] // bc

    # Reset the recurrent state at the first sequence chunk of each batch chunk.
    @pl.when(pl.program_id(1) == 0)
    def _():
        h_ref[...] = jnp.zeros_like(h_ref)
        c_ref[...] = jnp.zeros_like(c_ref)

    # Hoisted input projection: one full-tile MXU matmul + ONE bias broadcast
    # per chunk.  Stored in the compute dtype (bf16 on the perf path) to halve
    # the largest scratch and the per-step VMEM load traffic.
    gates_ref[...] = (
        jnp.dot(x_ref[...], wih_ref[...], preferred_element_type=jnp.float32)
        + b_ref[...]
    ).astype(gates_ref.dtype)

    def gate_pre(h, row, g):
        # Per-gate slices are lane-aligned (Hp % 128 == 0).
        g_in = gates_ref[pl.ds(row, bc), g * hp:(g + 1) * hp].astype(jnp.float32)
        return g_in + jnp.dot(h, whh_ref[:, g * hp:(g + 1) * hp],
                              preferred_element_type=jnp.float32)

    def step(t, carry):
        h, c = carry                                 # h: compute dtype, c: f32
        row = pl.multiple_of(t * bc, bc)
        # Per-gate matmuls + immediate consumption (PyTorch gate order i,f,g,o;
        # computed f -> i,g -> o) so only ~(Bc, Hp) fp32 gate data is live at
        # a time instead of (Bc, 4Hp) -> no vreg spills in the serial loop.
        f_s = jax.nn.sigmoid(gate_pre(h, row, 1))
        c_acc = f_s * c
        i_s = jax.nn.sigmoid(gate_pre(h, row, 0))
        g_t = jnp.tanh(gate_pre(h, row, 2))
        c_new = c_acc + i_s * g_t                    # fp32 cell state
        o_s = jax.nn.sigmoid(gate_pre(h, row, 3))
        h_new = (o_s * jnp.tanh(c_new)).astype(h_ref.dtype)

        hist_ref[pl.ds(row, bc), :] = h_new          # single vst per step (v5e)
        return (h_new, c_new)

    # Shallow unroll (2): enough for MXU-drain overlap without inflating the
    # live ranges of the per-step values.  (Sweep {2,4} if re-tuning.)
    h_fin, c_fin = lax.fori_loop(0, ts, step, (h_ref[...], c_ref[...]),
                                 unroll=unroll)
    h_ref[...] = h_fin
    c_ref[...] = c_fin

    # Hoisted Linear + Tanh head: one MXU matmul, one lane-dense (128) store.
    y = jnp.dot(hist_ref[...], wlin_ref[...], preferred_element_type=jnp.float32)
    out_ref[...] = jnp.tanh(y + blin_ref[...]).astype(out_ref.dtype)


def lstm_generator_forward(x, params, *, compute_dtype=jnp.bfloat16,
                           seq_tile=None, batch_tile=None):
    """x: (batch, seq, latent_dim) float32 -> (batch, seq, out_dim) float32."""
    w_ih, w_hh, b_ih, b_hh, w_lin, b_lin = (
        params["w_ih"], params["w_hh"], params["b_ih"],
        params["b_hh"], params["w_lin"], params["b_lin"],
    )
    B, S, in_dim = x.shape
    H = w_hh.shape[1]            # w_hh is (4H, H) PyTorch-style
    out_dim = w_lin.shape[0]     # w_lin is (out_dim, H)
    cdt = compute_dtype
    isz = jnp.dtype(cdt).itemsize

    # Padded sizes: lane-aligned gate blocks, lane-dense output store.
    Hp = max(_round_up(H, 128), 128)
    OUTp = max(_round_up(out_dim, 128), 128)

    # --- Batch tiling: guarantee >= 2 batch chunks whenever the padded batch
    # allows it, so the "parallel" grid axis feeds both v7x TensorCores. ---
    Bp = _round_up(B, 8)
    if batch_tile is not None:
        Bc = _round_up(batch_tile, 8)
    else:
        Bc = min(Bp, 128)
        if Bp >= 16:
            Bc = min(Bc, max(8, (Bp // 2) // 8 * 8))
    Bp = _round_up(Bp, Bc)
    n_bc = Bp // Bc

    # --- Generation-aware VMEM budget (v5e/v6e: 128 MiB, v7x: 64 MiB/TC). ---
    try:
        vmem_cap = int(getattr(pltpu.get_tpu_info(), "vmem_capacity_bytes",
                               64 * 1024 * 1024))
    except Exception:  # conservative fallback works on every generation
        vmem_cap = 64 * 1024 * 1024
    if vmem_cap >= 128 * 1024 * 1024:
        vmem_target = 100 * 1024 * 1024                  # v5e / v6e
    else:
        vmem_target = max(vmem_cap - 8 * 1024 * 1024,    # v7x: leave headroom
                          32 * 1024 * 1024)

    # --- Seq tiling derived from the VMEM budget (shape-aware Ts). ---
    w_bytes = ((in_dim + Hp) * 4 * Hp + Hp * OUTp) * isz + (4 * Hp + OUTp) * 4
    fixed = 2 * w_bytes + Bc * Hp * (isz + 4) + 4 * 1024 * 1024
    bytes_per_row = (4 * Hp) * isz + Hp * isz + 2 * in_dim * isz + 2 * OUTp * 4
    budget = max(vmem_target - fixed, bytes_per_row * Bc)
    ts_cap = max(budget // (bytes_per_row * Bc), 1)
    ts_cap = int(min(ts_cap, 256, S))
    if seq_tile is not None:
        ts_cap = max(min(int(seq_tile), S), 1)
    n_sc = _cdiv(S, ts_cap)
    Ts = _cdiv(S, n_sc)          # balanced chunks -> minimal seq-padding waste
    Sp = n_sc * Ts
    rows = Ts * Bc
    unroll = True if Ts <= 8 else 2

    # --- Weights: transpose, pad each gate's H block up to Hp, cast. ---
    wih_t = jnp.transpose(w_ih).reshape(in_dim, 4, H)
    wih_p = jnp.pad(wih_t, ((0, 0), (0, 0), (0, Hp - H)))
    wih_p = wih_p.reshape(in_dim, 4 * Hp).astype(cdt)

    whh_t = jnp.transpose(w_hh).reshape(H, 4, H)
    whh_p = jnp.pad(whh_t, ((0, Hp - H), (0, 0), (0, Hp - H)))
    whh_p = whh_p.reshape(Hp, 4 * Hp).astype(cdt)

    b = (b_ih + b_hh).reshape(4, H)
    b_p = jnp.pad(b, ((0, 0), (0, Hp - H))).reshape(1, 4 * Hp).astype(jnp.float32)

    wlin_p = jnp.pad(jnp.transpose(w_lin),
                     ((0, Hp - H), (0, OUTp - out_dim))).astype(cdt)
    blin_p = jnp.pad(b_lin, (0, OUTp - out_dim)).reshape(1, OUTp).astype(jnp.float32)

    # --- Inputs: pad batch/seq, reorder to (n_bc, Sp*Bc, in) time-major slabs.
    # in_dim is small, so this extra XLA pass is negligible HBM traffic. ---
    x_p = jnp.pad(x, ((0, Bp - B), (0, Sp - S), (0, 0)))      # (Bp, Sp, in)
    x_p = x_p.reshape(n_bc, Bc, Sp, in_dim)
    x_p = jnp.transpose(x_p, (0, 2, 1, 3)).reshape(n_bc, Sp * Bc, in_dim)
    x_p = x_p.astype(cdt)

    # --- Scoped VMEM limit: actual need (+50% slack), capped per-generation. --
    need = (2 * w_bytes
            + 2 * rows * (in_dim * isz + OUTp * 4)            # x / out pipeline
            + rows * (4 * Hp + Hp) * isz                      # gates / hist
            + Bc * Hp * (isz + 4))                            # carried h / c
    vmem_limit = int(min(max(need + need // 2 + 4 * 1024 * 1024,
                             32 * 1024 * 1024), vmem_target))

    kernel = functools.partial(_lstm_gen_kernel, unroll=unroll)

    def _const_spec(shape, single_buffer):
        idx = lambda bi, si: (0,) * len(shape)
        if single_buffer:
            # Constant weights: index_map is (0,0) for every grid step, so the
            # second pipeline buffer is pure VMEM waste -> single-buffer them.
            return pl.BlockSpec(shape, idx, pipeline_mode=pl.Buffered(1))
        return pl.BlockSpec(shape, idx)

    def _run(single_buffer_weights):
        grid_spec = pltpu.PrefetchScalarGridSpec(
            num_scalar_prefetch=0,
            grid=(n_bc, n_sc),
            in_specs=[
                pl.BlockSpec((None, rows, in_dim), lambda bi, si: (bi, si, 0)),
                _const_spec((in_dim, 4 * Hp), single_buffer_weights),   # W_ih^T
                _const_spec((Hp, 4 * Hp), single_buffer_weights),       # W_hh^T
                _const_spec((1, 4 * Hp), single_buffer_weights),        # bias
                _const_spec((Hp, OUTp), single_buffer_weights),         # W_lin^T
                _const_spec((1, OUTp), single_buffer_weights),          # b_lin
            ],
            out_specs=pl.BlockSpec((None, rows, OUTp), lambda bi, si: (bi, si, 0)),
            scratch_shapes=[
                pltpu.VMEM((rows, 4 * Hp), cdt),           # hoisted input gates
                pltpu.VMEM((rows, Hp), cdt),               # h_t history (head)
                pltpu.VMEM((Bc, Hp), cdt),                 # carried h
                pltpu.VMEM((Bc, Hp), jnp.float32),         # carried c (fp32)
            ],
        )
        return pl.pallas_call(
            kernel,
            out_shape=jax.ShapeDtypeStruct((n_bc, Sp * Bc, OUTp), jnp.float32),
            grid_spec=grid_spec,
            compiler_params=pltpu.CompilerParams(
                dimension_semantics=("parallel", "arbitrary"),
                vmem_limit_bytes=vmem_limit,
            ),
        )(x_p, wih_p, whh_p, b_p, wlin_p, blin_p)

    try:
        out_p = _run(True)
    except Exception:
        # Fallback for JAX builds without BlockSpec pipeline_mode / Buffered(1).
        out_p = _run(False)

    # Undo padding / layout plumbing outside the kernel.  Slice BEFORE the
    # transpose so the extra XLA pass only touches (B, S, out_dim), not the
    # OUTp-padded slab (~32x less HBM traffic for small out_dim).
    out = out_p.reshape(n_bc, Sp, Bc, OUTp)
    out = out[:, :S, :, :out_dim]
    out = jnp.transpose(out, (0, 2, 1, 3)).reshape(Bp, S, out_dim)
    return out[:B]


def _reference_forward(x, params):
    """Pure-JAX fp32 reference (mirrors nn.LSTM + Linear + Tanh, eval dropout)."""
    w_ih, w_hh, b_ih, b_hh, w_lin, b_lin = (
        params["w_ih"], params["w_hh"], params["b_ih"],
        params["b_hh"], params["w_lin"], params["b_lin"],
    )
    B, S, _ = x.shape
    H = w_hh.shape[1]

    def cell(carry, x_t):
        h, c = carry
        gates = x_t @ w_ih.T + b_ih + h @ w_hh.T + b_hh
        i, f, g, o = jnp.split(gates, 4, axis=-1)
        c = jax.nn.sigmoid(f) * c + jax.nn.sigmoid(i) * jnp.tanh(g)
        h = jax.nn.sigmoid(o) * jnp.tanh(c)
        return (h, c), h

    h0 = jnp.zeros((B, H), jnp.float32)
    c0 = jnp.zeros((B, H), jnp.float32)
    _, hs = lax.scan(cell, (h0, c0), jnp.transpose(x, (1, 0, 2)))  # (S, B, H)
    hs = jnp.transpose(hs, (1, 0, 2))                              # (B, S, H)
    return jnp.tanh(hs @ w_lin.T + b_lin)


def init_params(key, latent_dim, hidden_dim, out_dim):
    """Deterministic init mimicking PyTorch's U(-1/sqrt(H), 1/sqrt(H)) default."""
    ks = jax.random.split(key, 6)
    k_lstm = 1.0 / jnp.sqrt(hidden_dim)
    k_lin = 1.0 / jnp.sqrt(hidden_dim)
    u = lambda k, shape, s: jax.random.uniform(k, shape, jnp.float32, -s, s)
    return {
        "w_ih": u(ks[0], (4 * hidden_dim, latent_dim), k_lstm),
        "w_hh": u(ks[1], (4 * hidden_dim, hidden_dim), k_lstm),
        "b_ih": u(ks[2], (4 * hidden_dim,), k_lstm),
        "b_hh": u(ks[3], (4 * hidden_dim,), k_lstm),
        "w_lin": u(ks[4], (out_dim, hidden_dim), k_lin),
        "b_lin": u(ks[5], (out_dim,), k_lin),
    }


if __name__ == "__main__":
    # Shapes consistent with the module's forward:
    #   input noise: (batch, seq, latent_dim); output: (batch, seq, ts_dim - condition)
    batch, seq_len = 2, 8
    latent_dim, hidden_dim = 8, 32
    ts_dim, condition = 6, 2
    out_dim = ts_dim - condition

    key = jax.random.PRNGKey(0)
    k_x, k_p, k_x2 = jax.random.split(key, 3)
    x = jax.random.normal(k_x, (batch, seq_len, latent_dim), dtype=jnp.float32)
    params = init_params(k_p, latent_dim, hidden_dim, out_dim)

    ref = jax.block_until_ready(_reference_forward(x, params))

    # Exactness check: fp32 compute path (fp32 gates scratch) vs pure-JAX reference.
    out_f32 = jax.block_until_ready(
        lstm_generator_forward(x, params, compute_dtype=jnp.float32))
    assert out_f32.shape == (batch, seq_len, out_dim), out_f32.shape
    assert jnp.allclose(out_f32, ref, rtol=1e-4, atol=1e-5), \
        float(jnp.max(jnp.abs(out_f32 - ref)))

    # Perf path: bf16 MXU operands + bf16 gates scratch, fp32 accumulation /
    # gate math / cell state.
    out_bf16 = jax.block_until_ready(
        lstm_generator_forward(x, params, compute_dtype=jnp.bfloat16))
    assert out_bf16.shape == (batch, seq_len, out_dim), out_bf16.shape
    assert jnp.allclose(out_bf16, ref, rtol=5e-2, atol=5e-2), \
        float(jnp.max(jnp.abs(out_bf16 - ref)))

    # Second config: exercises multiple batch chunks (parallel grid axis),
    # multiple seq chunks with carried (h, c) state, and seq padding.
    b2, s2 = 10, 13
    x2 = jax.random.normal(k_x2, (b2, s2, latent_dim), dtype=jnp.float32)
    ref2 = jax.block_until_ready(_reference_forward(x2, params))
    out2 = jax.block_until_ready(
        lstm_generator_forward(x2, params, compute_dtype=jnp.float32, seq_tile=4))
    assert out2.shape == (b2, s2, out_dim), out2.shape
    assert jnp.allclose(out2, ref2, rtol=1e-4, atol=1e-4), \
        float(jnp.max(jnp.abs(out2 - ref2)))

    print("KERNEL_OK")
</pallas_src>

<mosaic_0001>
module attributes {stable_mosaic.version = 11 : i64} {
  func.func @_lstm_gen_kernel(%arg0: i32, %arg1: i32, %arg2: memref<1x64x8xf32, #tpu.memory_space<vmem>>, %arg3: memref<8x512xf32, #tpu.memory_space<vmem>>, %arg4: memref<128x512xf32, #tpu.memory_space<vmem>>, %arg5: memref<1x512xf32, #tpu.memory_space<vmem>>, %arg6: memref<128x128xf32, #tpu.memory_space<vmem>>, %arg7: memref<1x128xf32, #tpu.memory_space<vmem>>, %arg8: memref<1x64x128xf32, #tpu.memory_space<vmem>>, %arg9: memref<64x512xf32, #tpu.memory_space<vmem>>, %arg10: memref<64x128xf32, #tpu.memory_space<vmem>>, %arg11: memref<8x128xf32, #tpu.memory_space<vmem>>, %arg12: memref<8x128xf32, #tpu.memory_space<vmem>>) attributes {dimension_semantics = [#tpu.dimension_semantics<parallel>, #tpu.dimension_semantics<arbitrary>], iteration_bounds = array<i64: 1, 1>, scalar_prefetch = 0 : i64, scratch_operands = 4 : i64, tpu.core_type = #tpu.core_type<tc>, window_params = [{transform_indices = @transform_0, window_bounds = array<i64: 1, 64, 8>}, {pipeline_mode = #tpu.pipeline_mode<synchronous>, transform_indices = @transform_1, window_bounds = array<i64: 8, 512>}, {pipeline_mode = #tpu.pipeline_mode<synchronous>, transform_indices = @transform_2, window_bounds = array<i64: 128, 512>}, {pipeline_mode = #tpu.pipeline_mode<synchronous>, transform_indices = @transform_3, window_bounds = array<i64: 1, 512>}, {pipeline_mode = #tpu.pipeline_mode<synchronous>, transform_indices = @transform_4, window_bounds = array<i64: 128, 128>}, {pipeline_mode = #tpu.pipeline_mode<synchronous>, transform_indices = @transform_5, window_bounds = array<i64: 1, 128>}, {transform_indices = @transform_6, window_bounds = array<i64: 1, 64, 128>}]} {
    %c0_i32 = arith.constant 0 : i32
    %0 = arith.cmpi eq, %arg1, %c0_i32 : i32
    %1 = arith.extui %0 : i1 to i32
    %c0_i32_0 = arith.constant 0 : i32
    %2 = arith.cmpi ne, %1, %c0_i32_0 : i32
    scf.if %2 {
      %cst_193 = arith.constant 0.000000e+00 : f32
      %385 = vector.broadcast %cst_193 : f32 to vector<8x128xf32>
      %c0_194 = arith.constant 0 : index
      %c0_195 = arith.constant 0 : index
      %386 = vector.load %arg11[%c0_194, %c0_195] : memref<8x128xf32, #tpu.memory_space<vmem>>, vector<8x128xf32>
      tpu.vector_store %arg11[%c0_194, %c0_195], %385 {strides = array<i32>} : memref<8x128xf32, #tpu.memory_space<vmem>>, vector<8x128xf32>,
      %cst_196 = arith.constant 0.000000e+00 : f32
      %387 = vector.broadcast %cst_196 : f32 to vector<8x128xf32>
      %c0_197 = arith.constant 0 : index
      %c0_198 = arith.constant 0 : index
      %388 = vector.load %arg12[%c0_197, %c0_198] : memref<8x128xf32, #tpu.memory_space<vmem>>, vector<8x128xf32>
      tpu.vector_store %arg12[%c0_197, %c0_198], %387 {strides = array<i32>} : memref<8x128xf32, #tpu.memory_space<vmem>>, vector<8x128xf32>,
    } else {
    }
    %c0 = arith.constant 0 : index
    %c0_1 = arith.constant 0 : index
    %c0_2 = arith.constant 0 : index
    %3 = vector.load %arg2[%c0, %c0_1, %c0_2] : memref<1x64x8xf32, #tpu.memory_space<vmem>>, vector<1x64x8xf32>
    %4 = vector.shape_cast %3 : vector<1x64x8xf32> to vector<64x8xf32>
    %c0_3 = arith.constant 0 : index
    %c0_4 = arith.constant 0 : index
    %5 = vector.load %arg3[%c0_3, %c0_4] : memref<8x512xf32, #tpu.memory_space<vmem>>, vector<8x512xf32>
    %cst = arith.constant dense<0.000000e+00> : vector<64x512xf32>
    %6 = tpu.matmul %4, %5, %cst {dimension_numbers = #tpu.dot_dimension_numbers<[1], [0], [0], [1], [0, 0, 1, 1], [], []>} : vector<64x8xf32>, vector<8x512xf32>, vector<64x512xf32> -> vector<64x512xf32>
    %c0_5 = arith.constant 0 : index
    %c0_6 = arith.constant 0 : index
    %7 = vector.load %arg5[%c0_5, %c0_6] : memref<1x512xf32, #tpu.memory_space<vmem>>, vector<1x512xf32>
    %8 = vector.broadcast %7 : vector<1x512xf32> to vector<64x512xf32>
    %9 = arith.addf %6, %8 : vector<64x512xf32>
    %c0_7 = arith.constant 0 : index
    %c0_8 = arith.constant 0 : index
    %10 = vector.load %arg9[%c0_7, %c0_8] : memref<64x512xf32, #tpu.memory_space<vmem>>, vector<64x512xf32>
    tpu.vector_store %arg9[%c0_7, %c0_8], %9 {strides = array<i32>} : memref<64x512xf32, #tpu.memory_space<vmem>>, vector<64x512xf32>,
    %c0_9 = arith.constant 0 : index
    %c0_10 = arith.constant 0 : index
    %11 = vector.load %arg11[%c0_9, %c0_10] : memref<8x128xf32, #tpu.memory_space<vmem>>, vector<8x128xf32>
    %c0_11 = arith.constant 0 : index
    %c0_12 = arith.constant 0 : index
    %12 = vector.load %arg12[%c0_11, %c0_12] : memref<8x128xf32, #tpu.memory_space<vmem>>, vector<8x128xf32>
    %c0_i32_13 = arith.constant 0 : i32
    %c8_i32 = arith.constant 8 : i32
    %13 = arith.muli %c0_i32_13, %c8_i32 : i32
    %14 = tpu.assume_multiple %13, 8 : i32
    %15 = arith.index_cast %14 : i32 to index
    %c128 = arith.constant 128 : index
    %16 = vector.load %arg9[%15, %c128] : memref<64x512xf32, #tpu.memory_space<vmem>>, vector<8x128xf32>
    %c0_14 = arith.constant 0 : index
    %c128_15 = arith.constant 128 : index
    %17 = vector.load %arg4[%c0_14, %c128_15] : memref<128x512xf32, #tpu.memory_space<vmem>>, vector<128x128xf32>
    %cst_16 = arith.constant dense<0.000000e+00> : vector<8x128xf32>
    %18 = tpu.matmul %11, %17, %cst_16 {dimension_numbers = #tpu.dot_dimension_numbers<[1], [0], [0], [1], [0, 0, 1, 1], [], []>} : vector<8x128xf32>, vector<128x128xf32>, vector<8x128xf32> -> vector<8x128xf32>
    %19 = arith.addf %16, %18 : vector<8x128xf32>
    %20 = arith.negf %19 : vector<8x128xf32>
    %21 = math.exp %20 : vector<8x128xf32>
    %cst_17 = arith.constant 1.000000e+00 : f32
    %22 = vector.broadcast %cst_17 : f32 to vector<8x128xf32>
    %23 = arith.addf %22, %21 : vector<8x128xf32>
    %24 = arith.divf %22, %23 : vector<8x128xf32>
    %25 = arith.mulf %24, %12 : vector<8x128xf32>
    %26 = arith.index_cast %14 : i32 to index
    %c0_18 = arith.constant 0 : index
    %27 = vector.load %arg9[%26, %c0_18] : memref<64x512xf32, #tpu.memory_space<vmem>>, vector<8x128xf32>
    %c0_19 = arith.constant 0 : index
    %c0_20 = arith.constant 0 : index
    %28 = vector.load %arg4[%c0_19, %c0_20] : memref<128x512xf32, #tpu.memory_space<vmem>>, vector<128x128xf32>
    %cst_21 = arith.constant dense<0.000000e+00> : vector<8x128xf32>
    %29 = tpu.matmul %11, %28, %cst_21 {dimension_numbers = #tpu.dot_dimension_numbers<[1], [0], [0], [1], [0, 0, 1, 1], [], []>} : vector<8x128xf32>, vector<128x128xf32>, vector<8x128xf32> -> vector<8x128xf32>
    %30 = arith.addf %27, %29 : vector<8x128xf32>
    %31 = arith.negf %30 : vector<8x128xf32>
    %32 = math.exp %31 : vector<8x128xf32>
    %cst_22 = arith.constant 1.000000e+00 : f32
    %33 = vector.broadcast %cst_22 : f32 to vector<8x128xf32>
    %34 = arith.addf %33, %32 : vector<8x128xf32>
    %35 = arith.divf %33, %34 : vector<8x128xf32>
    %36 = arith.index_cast %14 : i32 to index
    %c256 = arith.constant 256 : index
    %37 = vector.load %arg9[%36, %c256] : memref<64x512xf32, #tpu.memory_space<vmem>>, vector<8x128xf32>
    %c0_23 = arith.constant 0 : index
    %c256_24 = arith.constant 256 : index
    %38 = vector.load %arg4[%c0_23, %c256_24] : memref<128x512xf32, #tpu.memory_space<vmem>>, vector<128x128xf32>
    %cst_25 = arith.constant dense<0.000000e+00> : vector<8x128xf32>
    %39 = tpu.matmul %11, %38, %cst_25 {dimension_numbers = #tpu.dot_dimension_numbers<[1], [0], [0], [1], [0, 0, 1, 1], [], []>} : vector<8x128xf32>, vector<128x128xf32>, vector<8x128xf32> -> vector<8x128xf32>
    %40 = arith.addf %37, %39 : vector<8x128xf32>
    %41 = math.tanh %40 : vector<8x128xf32>
    %42 = arith.mulf %35, %41 : vector<8x128xf32>
    %43 = arith.addf %25, %42 : vector<8x128xf32>
    %44 = arith.index_cast %14 : i32 to index
    %c384 = arith.constant 384 : index
    %45 = vector.load %arg9[%44, %c384] : memref<64x512xf32, #tpu.memory_space<vmem>>, vector<8x128xf32>
    %c0_26 = arith.constant 0 : index
    %c384_27 = arith.constant 384 : index
    %46 = vector.load %arg4[%c0_26, %c384_27] : memref<128x512xf32, #tpu.memory_space<vmem>>, vector<128x128xf32>
    %cst_28 = arith.constant dense<0.000000e+00> : vector<8x128xf32>
    %47 = tpu.matmul %11, %46, %cst_28 {dimension_numbers = #tpu.dot_dimension_numbers<[1], [0], [0], [1], [0, 0, 1, 1], [], []>} : vector<8x128xf32>, vector<128x128xf32>, vector<8x128xf32> -> vector<8x128xf32>
    %48 = arith.addf %45, %47 : vector<8x128xf32>
    %49 = arith.negf %48 : vector<8x128xf32>
    %50 = math.exp %49 : vector<8x128xf32>
    %cst_29 = arith.constant 1.000000e+00 : f32
    %51 = vector.broadcast %cst_29 : f32 to vector<8x128xf32>
    %52 = arith.addf %51, %50 : vector<8x128xf32>
    %53 = arith.divf %51, %52 : vector<8x128xf32>
    %54 = math.tanh %43 : vector<8x128xf32>
    %55 = arith.mulf %53, %54 : vector<8x128xf32>
    %56 = arith.index_cast %14 : i32 to index
    %c0_30 = arith.constant 0 : index
    %57 = vector.load %arg10[%56, %c0_30] : memref<64x128xf32, #tpu.memory_space<vmem>>, vector<8x128xf32>
    tpu.vector_store %arg10[%56, %c0_30], %55 {strides = array<i32>} : memref<64x128xf32, #tpu.memory_space<vmem>>, vector<8x128xf32>,
    %c1_i32 = arith.constant 1 : i32
    %c8_i32_31 = arith.constant 8 : i32
    %58 = arith.muli %c1_i32, %c8_i32_31 : i32
    %59 = tpu.assume_multiple %58, 8 : i32
    %60 = arith.index_cast %59 : i32 to index
    %c128_32 = arith.constant 128 : index
    %61 = vector.load %arg9[%60, %c128_32] : memref<64x512xf32, #tpu.memory_space<vmem>>, vector<8x128xf32>
    %c0_33 = arith.constant 0 : index
    %c128_34 = arith.constant 128 : index
    %62 = vector.load %arg4[%c0_33, %c128_34] : memref<128x512xf32, #tpu.memory_space<vmem>>, vector<128x128xf32>
    %cst_35 = arith.constant dense<0.000000e+00> : vector<8x128xf32>
    %63 = tpu.matmul %55, %62, %cst_35 {dimension_numbers = #tpu.dot_dimension_numbers<[1], [0], [0], [1], [0, 0, 1, 1], [], []>} : vector<8x128xf32>, vector<128x128xf32>, vector<8x128xf32> -> vector<8x128xf32>
    %64 = arith.addf %61, %63 : vector<8x128xf32>
    %65 = arith.negf %64 : vector<8x128xf32>
    %66 = math.exp %65 : vector<8x128xf32>
    %cst_36 = arith.constant 1.000000e+00 : f32
    %67 = vector.broadcast %cst_36 : f32 to vector<8x128xf32>
    %68 = arith.addf %67, %66 : vector<8x128xf32>
    %69 = arith.divf %67, %68 : vector<8x128xf32>
    %70 = arith.mulf %69, %43 : vector<8x128xf32>
    %71 = arith.index_cast %59 : i32 to index
    %c0_37 = arith.constant 0 : index
    %72 = vector.load %arg9[%71, %c0_37] : memref<64x512xf32, #tpu.memory_space<vmem>>, vector<8x128xf32>
    %c0_38 = arith.constant 0 : index
    %c0_39 = arith.constant 0 : index
    %73 = vector.load %arg4[%c0_38, %c0_39] : memref<128x512xf32, #tpu.memory_space<vmem>>, vector<128x128xf32>
    %cst_40 = arith.constant dense<0.000000e+00> : vector<8x128xf32>
    %74 = tpu.matmul %55, %73, %cst_40 {dimension_numbers = #tpu.dot_dimension_numbers<[1], [0], [0], [1], [0, 0, 1, 1], [], []>} : vector<8x128xf32>, vector<128x128xf32>, vector<8x128xf32> -> vector<8x128xf32>
    %75 = arith.addf %72, %74 : vector<8x128xf32>
    %76 = arith.negf %75 : vector<8x128xf32>
    %77 = math.exp %76 : vector<8x128xf32>
    %cst_41 = arith.constant 1.000000e+00 : f32
    %78 = vector.broadcast %cst_41 : f32 to vector<8x128xf32>
    %79 = arith.addf %78, %77 : vector<8x128xf32>
    %80 = arith.divf %78, %79 : vector<8x128xf32>
    %81 = arith.index_cast %59 : i32 to index
    %c256_42 = arith.constant 256 : index
    %82 = vector.load %arg9[%81, %c256_42] : memref<64x512xf32, #tpu.memory_space<vmem>>, vector<8x128xf32>
    %c0_43 = arith.constant 0 : index
    %c256_44 = arith.constant 256 : index
    %83 = vector.load %arg4[%c0_43, %c256_44] : memref<128x512xf32, #tpu.memory_space<vmem>>, vector<128x128xf32>
    %cst_45 = arith.constant dense<0.000000e+00> : vector<8x128xf32>
    %84 = tpu.matmul %55, %83, %cst_45 {dimension_numbers = #tpu.dot_dimension_numbers<[1], [0], [0], [1], [0, 0, 1, 1], [], []>} : vector<8x128xf32>, vector<128x128xf32>, vector<8x128xf32> -> vector<8x128xf32>
    %85 = arith.addf %82, %84 : vector<8x128xf32>
    %86 = math.tanh %85 : vector<8x128xf32>
    %87 = arith.mulf %80, %86 : vector<8x128xf32>
    %88 = arith.addf %70, %87 : vector<8x128xf32>
    %89 = arith.index_cast %59 : i32 to index
    %c384_46 = arith.constant 384 : index
    %90 = vector.load %arg9[%89, %c384_46] : memref<64x512xf32, #tpu.memory_space<vmem>>, vector<8x128xf32>
    %c0_47 = arith.constant 0 : index
    %c384_48 = arith.constant 384 : index
    %91 = vector.load %arg4[%c0_47, %c384_48] : memref<128x512xf32, #tpu.memory_space<vmem>>, vector<128x128xf32>
    %cst_49 = arith.constant dense<0.000000e+00> : vector<8x128xf32>
    %92 = tpu.matmul %55, %91, %cst_49 {dimension_numbers = #tpu.dot_dimension_numbers<[1], [0], [0], [1], [0, 0, 1, 1], [], []>} : vector<8x128xf32>, vector<128x128xf32>, vector<8x128xf32> -> vector<8x128xf32>
    %93 = arith.addf %90, %92 : vector<8x128xf32>
    %94 = arith.negf %93 : vector<8x128xf32>
    %95 = math.exp %94 : vector<8x128xf32>
    %cst_50 = arith.constant 1.000000e+00 : f32
    %96 = vector.broadcast %cst_50 : f32 to vector<8x128xf32>
    %97 = arith.addf %96, %95 : vector<8x128xf32>
    %98 = arith.divf %96, %97 : vector<8x128xf32>
    %99 = math.tanh %88 : vector<8x128xf32>
    %100 = arith.mulf %98, %99 : vector<8x128xf32>
    %101 = arith.index_cast %59 : i32 to index
    %c0_51 = arith.constant 0 : index
    %102 = vector.load %arg10[%101, %c0_51] : memref<64x128xf32, #tpu.memory_space<vmem>>, vector<8x128xf32>
    tpu.vector_store %arg10[%101, %c0_51], %100 {strides = array<i32>} : memref<64x128xf32, #tpu.memory_space<vmem>>, vector<8x128xf32>,
    %c2_i32 = arith.constant 2 : i32
    %c8_i32_52 = arith.constant 8 : i32
    %103 = arith.muli %c2_i32, %c8_i32_52 : i32
    %104 = tpu.assume_multiple %103, 8 : i32
    %105 = arith.index_cast %104 : i32 to index
    %c128_53 = arith.constant 128 : index
    %106 = vector.load %arg9[%105, %c128_53] : memref<64x512xf32, #tpu.memory_space<vmem>>, vector<8x128xf32>
    %c0_54 = arith.constant 0 : index
    %c128_55 = arith.constant 128 : index
    %107 = vector.load %arg4[%c0_54, %c128_55] : memref<128x512xf32, #tpu.memory_space<vmem>>, vector<128x128xf32>
    %cst_56 = arith.constant dense<0.000000e+00> : vector<8x128xf32>
    %108 = tpu.matmul %100, %107, %cst_56 {dimension_numbers = #tpu.dot_dimension_numbers<[1], [0], [0], [1], [0, 0, 1, 1], [], []>} : vector<8x128xf32>, vector<128x128xf32>, vector<8x128xf32> -> vector<8x128xf32>
    %109 = arith.addf %106, %108 : vector<8x128xf32>
    %110 = arith.negf %109 : vector<8x128xf32>
    %111 = math.exp %110 : vector<8x128xf32>
    %cst_57 = arith.constant 1.000000e+00 : f32
    %112 = vector.broadcast %cst_57 : f32 to vector<8x128xf32>
    %113 = arith.addf %112, %111 : vector<8x128xf32>
    %114 = arith.divf %112, %113 : vector<8x128xf32>
    %115 = arith.mulf %114, %88 : vector<8x128xf32>
    %116 = arith.index_cast %104 : i32 to index
    %c0_58 = arith.constant 0 : index
    %117 = vector.load %arg9[%116, %c0_58] : memref<64x512xf32, #tpu.memory_space<vmem>>, vector<8x128xf32>
    %c0_59 = arith.constant 0 : index
    %c0_60 = arith.constant 0 : index
    %118 = vector.load %arg4[%c0_59, %c0_60] : memref<128x512xf32, #tpu.memory_space<vmem>>, vector<128x128xf32>
    %cst_61 = arith.constant dense<0.000000e+00> : vector<8x128xf32>
    %119 = tpu.matmul %100, %118, %cst_61 {dimension_numbers = #tpu.dot_dimension_numbers<[1], [0], [0], [1], [0, 0, 1, 1], [], []>} : vector<8x128xf32>, vector<128x128xf32>, vector<8x128xf32> -> vector<8x128xf32>
    %120 = arith.addf %117, %119 : vector<8x128xf32>
    %121 = arith.negf %120 : vector<8x128xf32>
    %122 = math.exp %121 : vector<8x128xf32>
    %cst_62 = arith.constant 1.000000e+00 : f32
    %123 = vector.broadcast %cst_62 : f32 to vector<8x128xf32>
    %124 = arith.addf %123, %122 : vector<8x128xf32>
    %125 = arith.divf %123, %124 : vector<8x128xf32>
    %126 = arith.index_cast %104 : i32 to index
    %c256_63 = arith.constant 256 : index
    %127 = vector.load %arg9[%126, %c256_63] : memref<64x512xf32, #tpu.memory_space<vmem>>, vector<8x128xf32>
    %c0_64 = arith.constant 0 : index
    %c256_65 = arith.constant 256 : index
    %128 = vector.load %arg4[%c0_64, %c256_65] : memref<128x512xf32, #tpu.memory_space<vmem>>, vector<128x128xf32>
    %cst_66 = arith.constant dense<0.000000e+00> : vector<8x128xf32>
    %129 = tpu.matmul %100, %128, %cst_66 {dimension_numbers = #tpu.dot_dimension_numbers<[1], [0], [0], [1], [0, 0, 1, 1], [], []>} : vector<8x128xf32>, vector<128x128xf32>, vector<8x128xf32> -> vector<8x128xf32>
    %130 = arith.addf %127, %129 : vector<8x128xf32>
    %131 = math.tanh %130 : vector<8x128xf32>
    %132 = arith.mulf %125, %131 : vector<8x128xf32>
    %133 = arith.addf %115, %132 : vector<8x128xf32>
    %134 = arith.index_cast %104 : i32 to index
    %c384_67 = arith.constant 384 : index
    %135 = vector.load %arg9[%134, %c384_67] : memref<64x512xf32, #tpu.memory_space<vmem>>, vector<8x128xf32>
    %c0_68 = arith.constant 0 : index
    %c384_69 = arith.constant 384 : index
    %136 = vector.load %arg4[%c0_68, %c384_69] : memref<128x512xf32, #tpu.memory_space<vmem>>, vector<128x128xf32>
    %cst_70 = arith.constant dense<0.000000e+00> : vector<8x128xf32>
    %137 = tpu.matmul %100, %136, %cst_70 {dimension_numbers = #tpu.dot_dimension_numbers<[1], [0], [0], [1], [0, 0, 1, 1], [], []>} : vector<8x128xf32>, vector<128x128xf32>, vector<8x128xf32> -> vector<8x128xf32>
    %138 = arith.addf %135, %137 : vector<8x128xf32>
    %139 = arith.negf %138 : vector<8x128xf32>
    %140 = math.exp %139 : vector<8x128xf32>
    %cst_71 = arith.constant 1.000000e+00 : f32
    %141 = vector.broadcast %cst_71 : f32 to vector<8x128xf32>
    %142 = arith.addf %141, %140 : vector<8x128xf32>
    %143 = arith.divf %141, %142 : vector<8x128xf32>
    %144 = math.tanh %133 : vector<8x128xf32>
    %145 = arith.mulf %143, %144 : vector<8x128xf32>
    %146 = arith.index_cast %104 : i32 to index
    %c0_72 = arith.constant 0 : index
    %147 = vector.load %arg10[%146, %c0_72] : memref<64x128xf32, #tpu.memory_space<vmem>>, vector<8x128xf32>
    tpu.vector_store %arg10[%146, %c0_72], %145 {strides = array<i32>} : memref<64x128xf32, #tpu.memory_space<vmem>>, vector<8x128xf32>,
    %c3_i32 = arith.constant 3 : i32
    %c8_i32_73 = arith.constant 8 : i32
    %148 = arith.muli %c3_i32, %c8_i32_73 : i32
    %149 = tpu.assume_multiple %148, 8 : i32
    %150 = arith.index_cast %149 : i32 to index
    %c128_74 = arith.constant 128 : index
    %151 = vector.load %arg9[%150, %c128_74] : memref<64x512xf32, #tpu.memory_space<vmem>>, vector<8x128xf32>
    %c0_75 = arith.constant 0 : index
    %c128_76 = arith.constant 128 : index
    %152 = vector.load %arg4[%c0_75, %c128_76] : memref<128x512xf32, #tpu.memory_space<vmem>>, vector<128x128xf32>
    %cst_77 = arith.constant dense<0.000000e+00> : vector<8x128xf32>
    %153 = tpu.matmul %145, %152, %cst_77 {dimension_numbers = #tpu.dot_dimension_numbers<[1], [0], [0], [1], [0, 0, 1, 1], [], []>} : vector<8x128xf32>, vector<128x128xf32>, vector<8x128xf32> -> vector<8x128xf32>
    %154 = arith.addf %151, %153 : vector<8x128xf32>
    %155 = arith.negf %154 : vector<8x128xf32>
    %156 = math.exp %155 : vector<8x128xf32>
    %cst_78 = arith.constant 1.000000e+00 : f32
    %157 = vector.broadcast %cst_78 : f32 to vector<8x128xf32>
    %158 = arith.addf %157, %156 : vector<8x128xf32>
    %159 = arith.divf %157, %158 : vector<8x128xf32>
    %160 = arith.mulf %159, %133 : vector<8x128xf32>
    %161 = arith.index_cast %149 : i32 to index
    %c0_79 = arith.constant 0 : index
    %162 = vector.load %arg9[%161, %c0_79] : memref<64x512xf32, #tpu.memory_space<vmem>>, vector<8x128xf32>
    %c0_80 = arith.constant 0 : index
    %c0_81 = arith.constant 0 : index
    %163 = vector.load %arg4[%c0_80, %c0_81] : memref<128x512xf32, #tpu.memory_space<vmem>>, vector<128x128xf32>
    %cst_82 = arith.constant dense<0.000000e+00> : vector<8x128xf32>
    %164 = tpu.matmul %145, %163, %cst_82 {dimension_numbers = #tpu.dot_dimension_numbers<[1], [0], [0], [1], [0, 0, 1, 1], [], []>} : vector<8x128xf32>, vector<128x128xf32>, vector<8x128xf32> -> vector<8x128xf32>
    %165 = arith.addf %162, %164 : vector<8x128xf32>
    %166 = arith.negf %165 : vector<8x128xf32>
    %167 = math.exp %166 : vector<8x128xf32>
    %cst_83 = arith.constant 1.000000e+00 : f32
    %168 = vector.broadcast %cst_83 : f32 to vector<8x128xf32>
    %169 = arith.addf %168, %167 : vector<8x128xf32>
    %170 = arith.divf %168, %169 : vector<8x128xf32>
    %171 = arith.index_cast %149 : i32 to index
    %c256_84 = arith.constant 256 : index
    %172 = vector.load %arg9[%171, %c256_84] : memref<64x512xf32, #tpu.memory_space<vmem>>, vector<8x128xf32>
    %c0_85 = arith.constant 0 : index
    %c256_86 = arith.constant 256 : index
    %173 = vector.load %arg4[%c0_85, %c256_86] : memref<128x512xf32, #tpu.memory_space<vmem>>, vector<128x128xf32>
    %cst_87 = arith.constant dense<0.000000e+00> : vector<8x128xf32>
    %174 = tpu.matmul %145, %173, %cst_87 {dimension_numbers = #tpu.dot_dimension_numbers<[1], [0], [0], [1], [0, 0, 1, 1], [], []>} : vector<8x128xf32>, vector<128x128xf32>, vector<8x128xf32> -> vector<8x128xf32>
    %175 = arith.addf %172, %174 : vector<8x128xf32>
    %176 = math.tanh %175 : vector<8x128xf32>
    %177 = arith.mulf %170, %176 : vector<8x128xf32>
    %178 = arith.addf %160, %177 : vector<8x128xf32>
    %179 = arith.index_cast %149 : i32 to index
    %c384_88 = arith.constant 384 : index
    %180 = vector.load %arg9[%179, %c384_88] : memref<64x512xf32, #tpu.memory_space<vmem>>, vector<8x128xf32>
    %c0_89 = arith.constant 0 : index
    %c384_90 = arith.constant 384 : index
    %181 = vector.load %arg4[%c0_89, %c384_90] : memref<128x512xf32, #tpu.memory_space<vmem>>, vector<128x128xf32>
    %cst_91 = arith.constant dense<0.000000e+00> : vector<8x128xf32>
    %182 = tpu.matmul %145, %181, %cst_91 {dimension_numbers = #tpu.dot_dimension_numbers<[1], [0], [0], [1], [0, 0, 1, 1], [], []>} : vector<8x128xf32>, vector<128x128xf32>, vector<8x128xf32> -> vector<8x128xf32>
    %183 = arith.addf %180, %182 : vector<8x128xf32>
    %184 = arith.negf %183 : vector<8x128xf32>
    %185 = math.exp %184 : vector<8x128xf32>
    %cst_92 = arith.constant 1.000000e+00 : f32
    %186 = vector.broadcast %cst_92 : f32 to vector<8x128xf32>
    %187 = arith.addf %186, %185 : vector<8x128xf32>
    %188 = arith.divf %186, %187 : vector<8x128xf32>
    %189 = math.tanh %178 : vector<8x128xf32>
    %190 = arith.mulf %188, %189 : vector<8x128xf32>
    %191 = arith.index_cast %149 : i32 to index
    %c0_93 = arith.constant 0 : index
    %192 = vector.load %arg10[%191, %c0_93] : memref<64x128xf32, #tpu.memory_space<vmem>>, vector<8x128xf32>
    tpu.vector_store %arg10[%191, %c0_93], %190 {strides = array<i32>} : memref<64x128xf32, #tpu.memory_space<vmem>>, vector<8x128xf32>,
    %c4_i32 = arith.constant 4 : i32
    %c8_i32_94 = arith.constant 8 : i32
    %193 = arith.muli %c4_i32, %c8_i32_94 : i32
    %194 = tpu.assume_multiple %193, 8 : i32
    %195 = arith.index_cast %194 : i32 to index
    %c128_95 = arith.constant 128 : index
    %196 = vector.load %arg9[%195, %c128_95] : memref<64x512xf32, #tpu.memory_space<vmem>>, vector<8x128xf32>
    %c0_96 = arith.constant 0 : index
    %c128_97 = arith.constant 128 : index
    %197 = vector.load %arg4[%c0_96, %c128_97] : memref<128x512xf32, #tpu.memory_space<vmem>>, vector<128x128xf32>
    %cst_98 = arith.constant dense<0.000000e+00> : vector<8x128xf32>
    %198 = tpu.matmul %190, %197, %cst_98 {dimension_numbers = #tpu.dot_dimension_numbers<[1], [0], [0], [1], [0, 0, 1, 1], [], []>} : vector<8x128xf32>, vector<128x128xf32>, vector<8x128xf32> -> vector<8x128xf32>
    %199 = arith.addf %196, %198 : vector<8x128xf32>
    %200 = arith.negf %199 : vector<8x128xf32>
    %201 = math.exp %200 : vector<8x128xf32>
    %cst_99 = arith.constant 1.000000e+00 : f32
    %202 = vector.broadcast %cst_99 : f32 to vector<8x128xf32>
    %203 = arith.addf %202, %201 : vector<8x128xf32>
    %204 = arith.divf %202, %203 : vector<8x128xf32>
    %205 = arith.mulf %204, %178 : vector<8x128xf32>
    %206 = arith.index_cast %194 : i32 to index
    %c0_100 = arith.constant 0 : index
    %207 = vector.load %arg9[%206, %c0_100] : memref<64x512xf32, #tpu.memory_space<vmem>>, vector<8x128xf32>
    %c0_101 = arith.constant 0 : index
    %c0_102 = arith.constant 0 : index
    %208 = vector.load %arg4[%c0_101, %c0_102] : memref<128x512xf32, #tpu.memory_space<vmem>>, vector<128x128xf32>
    %cst_103 = arith.constant dense<0.000000e+00> : vector<8x128xf32>
    %209 = tpu.matmul %190, %208, %cst_103 {dimension_numbers = #tpu.dot_dimension_numbers<[1], [0], [0], [1], [0, 0, 1, 1], [], []>} : vector<8x128xf32>, vector<128x128xf32>, vector<8x128xf32> -> vector<8x128xf32>
    %210 = arith.addf %207, %209 : vector<8x128xf32>
    %211 = arith.negf %210 : vector<8x128xf32>
    %212 = math.exp %211 : vector<8x128xf32>
    %cst_104 = arith.constant 1.000000e+00 : f32
    %213 = vector.broadcast %cst_104 : f32 to vector<8x128xf32>
    %214 = arith.addf %213, %212 : vector<8x128xf32>
    %215 = arith.divf %213, %214 : vector<8x128xf32>
    %216 = arith.index_cast %194 : i32 to index
    %c256_105 = arith.constant 256 : index
    %217 = vector.load %arg9[%216, %c256_105] : memref<64x512xf32, #tpu.memory_space<vmem>>, vector<8x128xf32>
    %c0_106 = arith.constant 0 : index
    %c256_107 = arith.constant 256 : index
    %218 = vector.load %arg4[%c0_106, %c256_107] : memref<128x512xf32, #tpu.memory_space<vmem>>, vector<128x128xf32>
    %cst_108 = arith.constant dense<0.000000e+00> : vector<8x128xf32>
    %219 = tpu.matmul %190, %218, %cst_108 {dimension_numbers = #tpu.dot_dimension_numbers<[1], [0], [0], [1], [0, 0, 1, 1], [], []>} : vector<8x128xf32>, vector<128x128xf32>, vector<8x128xf32> -> vector<8x128xf32>
    %220 = arith.addf %217, %219 : vector<8x128xf32>
    %221 = math.tanh %220 : vector<8x128xf32>
    %222 = arith.mulf %215, %221 : vector<8x128xf32>
    %223 = arith.addf %205, %222 : vector<8x128xf32>
    %224 = arith.index_cast %194 : i32 to index
    %c384_109 = arith.constant 384 : index
    %225 = vector.load %arg9[%224, %c384_109] : memref<64x512xf32, #tpu.memory_space<vmem>>, vector<8x128xf32>
    %c0_110 = arith.constant 0 : index
    %c384_111 = arith.constant 384 : index
    %226 = vector.load %arg4[%c0_110, %c384_111] : memref<128x512xf32, #tpu.memory_space<vmem>>, vector<128x128xf32>
    %cst_112 = arith.constant dense<0.000000e+00> : vector<8x128xf32>
    %227 = tpu.matmul %190, %226, %cst_112 {dimension_numbers = #tpu.dot_dimension_numbers<[1], [0], [0], [1], [0, 0, 1, 1], [], []>} : vector<8x128xf32>, vector<128x128xf32>, vector<8x128xf32> -> vector<8x128xf32>
    %228 = arith.addf %225, %227 : vector<8x128xf32>
    %229 = arith.negf %228 : vector<8x128xf32>
    %230 = math.exp %229 : vector<8x128xf32>
    %cst_113 = arith.constant 1.000000e+00 : f32
    %231 = vector.broadcast %cst_113 : f32 to vector<8x128xf32>
    %232 = arith.addf %231, %230 : vector<8x128xf32>
    %233 = arith.divf %231, %232 : vector<8x128xf32>
    %234 = math.tanh %223 : vector<8x128xf32>
    %235 = arith.mulf %233, %234 : vector<8x128xf32>
    %236 = arith.index_cast %194 : i32 to index
    %c0_114 = arith.constant 0 : index
    %237 = vector.load %arg10[%236, %c0_114] : memref<64x128xf32, #tpu.memory_space<vmem>>, vector<8x128xf32>
    tpu.vector_store %arg10[%236, %c0_114], %235 {strides = array<i32>} : memref<64x128xf32, #tpu.memory_space<vmem>>, vector<8x128xf32>,
    %c5_i32 = arith.constant 5 : i32
    %c8_i32_115 = arith.constant 8 : i32
    %238 = arith.muli %c5_i32, %c8_i32_115 : i32
    %239 = tpu.assume_multiple %238, 8 : i32
    %240 = arith.index_cast %239 : i32 to index
    %c128_116 = arith.constant 128 : index
    %241 = vector.load %arg9[%240, %c128_116] : memref<64x512xf32, #tpu.memory_space<vmem>>, vector<8x128xf32>
    %c0_117 = arith.constant 0 : index
    %c128_118 = arith.constant 128 : index
    %242 = vector.load %arg4[%c0_117, %c128_118] : memref<128x512xf32, #tpu.memory_space<vmem>>, vector<128x128xf32>
    %cst_119 = arith.constant dense<0.000000e+00> : vector<8x128xf32>
    %243 = tpu.matmul %235, %242, %cst_119 {dimension_numbers = #tpu.dot_dimension_numbers<[1], [0], [0], [1], [0, 0, 1, 1], [], []>} : vector<8x128xf32>, vector<128x128xf32>, vector<8x128xf32> -> vector<8x128xf32>
    %244 = arith.addf %241, %243 : vector<8x128xf32>
    %245 = arith.negf %244 : vector<8x128xf32>
    %246 = math.exp %245 : vector<8x128xf32>
    %cst_120 = arith.constant 1.000000e+00 : f32
    %247 = vector.broadcast %cst_120 : f32 to vector<8x128xf32>
    %248 = arith.addf %247, %246 : vector<8x128xf32>
    %249 = arith.divf %247, %248 : vector<8x128xf32>
    %250 = arith.mulf %249, %223 : vector<8x128xf32>
    %251 = arith.index_cast %239 : i32 to index
    %c0_121 = arith.constant 0 : index
    %252 = vector.load %arg9[%251, %c0_121] : memref<64x512xf32, #tpu.memory_space<vmem>>, vector<8x128xf32>
    %c0_122 = arith.constant 0 : index
    %c0_123 = arith.constant 0 : index
    %253 = vector.load %arg4[%c0_122, %c0_123] : memref<128x512xf32, #tpu.memory_space<vmem>>, vector<128x128xf32>
    %cst_124 = arith.constant dense<0.000000e+00> : vector<8x128xf32>
    %254 = tpu.matmul %235, %253, %cst_124 {dimension_numbers = #tpu.dot_dimension_numbers<[1], [0], [0], [1], [0, 0, 1, 1], [], []>} : vector<8x128xf32>, vector<128x128xf32>, vector<8x128xf32> -> vector<8x128xf32>
    %255 = arith.addf %252, %254 : vector<8x128xf32>
    %256 = arith.negf %255 : vector<8x128xf32>
    %257 = math.exp %256 : vector<8x128xf32>
    %cst_125 = arith.constant 1.000000e+00 : f32
    %258 = vector.broadcast %cst_125 : f32 to vector<8x128xf32>
    %259 = arith.addf %258, %257 : vector<8x128xf32>
    %260 = arith.divf %258, %259 : vector<8x128xf32>
    %261 = arith.index_cast %239 : i32 to index
    %c256_126 = arith.constant 256 : index
    %262 = vector.load %arg9[%261, %c256_126] : memref<64x512xf32, #tpu.memory_space<vmem>>, vector<8x128xf32>
    %c0_127 = arith.constant 0 : index
    %c256_128 = arith.constant 256 : index
    %263 = vector.load %arg4[%c0_127, %c256_128] : memref<128x512xf32, #tpu.memory_space<vmem>>, vector<128x128xf32>
    %cst_129 = arith.constant dense<0.000000e+00> : vector<8x128xf32>
    %264 = tpu.matmul %235, %263, %cst_129 {dimension_numbers = #tpu.dot_dimension_numbers<[1], [0], [0], [1], [0, 0, 1, 1], [], []>} : vector<8x128xf32>, vector<128x128xf32>, vector<8x128xf32> -> vector<8x128xf32>
    %265 = arith.addf %262, %264 : vector<8x128xf32>
    %266 = math.tanh %265 : vector<8x128xf32>
    %267 = arith.mulf %260, %266 : vector<8x128xf32>
    %268 = arith.addf %250, %267 : vector<8x128xf32>
    %269 = arith.index_cast %239 : i32 to index
    %c384_130 = arith.constant 384 : index
    %270 = vector.load %arg9[%269, %c384_130] : memref<64x512xf32, #tpu.memory_space<vmem>>, vector<8x128xf32>
    %c0_131 = arith.constant 0 : index
    %c384_132 = arith.constant 384 : index
    %271 = vector.load %arg4[%c0_131, %c384_132] : memref<128x512xf32, #tpu.memory_space<vmem>>, vector<128x128xf32>
    %cst_133 = arith.constant dense<0.000000e+00> : vector<8x128xf32>
    %272 = tpu.matmul %235, %271, %cst_133 {dimension_numbers = #tpu.dot_dimension_numbers<[1], [0], [0], [1], [0, 0, 1, 1], [], []>} : vector<8x128xf32>, vector<128x128xf32>, vector<8x128xf32> -> vector<8x128xf32>
    %273 = arith.addf %270, %272 : vector<8x128xf32>
    %274 = arith.negf %273 : vector<8x128xf32>
    %275 = math.exp %274 : vector<8x128xf32>
    %cst_134 = arith.constant 1.000000e+00 : f32
    %276 = vector.broadcast %cst_134 : f32 to vector<8x128xf32>
    %277 = arith.addf %276, %275 : vector<8x128xf32>
    %278 = arith.divf %276, %277 : vector<8x128xf32>
    %279 = math.tanh %268 : vector<8x128xf32>
    %280 = arith.mulf %278, %279 : vector<8x128xf32>
    %281 = arith.index_cast %239 : i32 to index
    %c0_135 = arith.constant 0 : index
    %282 = vector.load %arg10[%281, %c0_135] : memref<64x128xf32, #tpu.memory_space<vmem>>, vector<8x128xf32>
    tpu.vector_store %arg10[%281, %c0_135], %280 {strides = array<i32>} : memref<64x128xf32, #tpu.memory_space<vmem>>, vector<8x128xf32>,
    %c6_i32 = arith.constant 6 : i32
    %c8_i32_136 = arith.constant 8 : i32
    %283 = arith.muli %c6_i32, %c8_i32_136 : i32
    %284 = tpu.assume_multiple %283, 8 : i32
    %285 = arith.index_cast %284 : i32 to index
    %c128_137 = arith.constant 128 : index
    %286 = vector.load %arg9[%285, %c128_137] : memref<64x512xf32, #tpu.memory_space<vmem>>, vector<8x128xf32>
    %c0_138 = arith.constant 0 : index
    %c128_139 = arith.constant 128 : index
    %287 = vector.load %arg4[%c0_138, %c128_139] : memref<128x512xf32, #tpu.memory_space<vmem>>, vector<128x128xf32>
    %cst_140 = arith.constant dense<0.000000e+00> : vector<8x128xf32>
    %288 = tpu.matmul %280, %287, %cst_140 {dimension_numbers = #tpu.dot_dimension_numbers<[1], [0], [0], [1], [0, 0, 1, 1], [], []>} : vector<8x128xf32>, vector<128x128xf32>, vector<8x128xf32> -> vector<8x128xf32>
    %289 = arith.addf %286, %288 : vector<8x128xf32>
    %290 = arith.negf %289 : vector<8x128xf32>
    %291 = math.exp %290 : vector<8x128xf32>
    %cst_141 = arith.constant 1.000000e+00 : f32
    %292 = vector.broadcast %cst_141 : f32 to vector<8x128xf32>
    %293 = arith.addf %292, %291 : vector<8x128xf32>
    %294 = arith.divf %292, %293 : vector<8x128xf32>
    %295 = arith.mulf %294, %268 : vector<8x128xf32>
    %296 = arith.index_cast %284 : i32 to index
    %c0_142 = arith.constant 0 : index
    %297 = vector.load %arg9[%296, %c0_142] : memref<64x512xf32, #tpu.memory_space<vmem>>, vector<8x128xf32>
    %c0_143 = arith.constant 0 : index
    %c0_144 = arith.constant 0 : index
    %298 = vector.load %arg4[%c0_143, %c0_144] : memref<128x512xf32, #tpu.memory_space<vmem>>, vector<128x128xf32>
    %cst_145 = arith.constant dense<0.000000e+00> : vector<8x128xf32>
    %299 = tpu.matmul %280, %298, %cst_145 {dimension_numbers = #tpu.dot_dimension_numbers<[1], [0], [0], [1], [0, 0, 1, 1], [], []>} : vector<8x128xf32>, vector<128x128xf32>, vector<8x128xf32> -> vector<8x128xf32>
    %300 = arith.addf %297, %299 : vector<8x128xf32>
    %301 = arith.negf %300 : vector<8x128xf32>
    %302 = math.exp %301 : vector<8x128xf32>
    %cst_146 = arith.constant 1.000000e+00 : f32
    %303 = vector.broadcast %cst_146 : f32 to vector<8x128xf32>
    %304 = arith.addf %303, %302 : vector<8x128xf32>
    %305 = arith.divf %303, %304 : vector<8x128xf32>
    %306 = arith.index_cast %284 : i32 to index
    %c256_147 = arith.constant 256 : index
    %307 = vector.load %arg9[%306, %c256_147] : memref<64x512xf32, #tpu.memory_space<vmem>>, vector<8x128xf32>
    %c0_148 = arith.constant 0 : index
    %c256_149 = arith.constant 256 : index
    %308 = vector.load %arg4[%c0_148, %c256_149] : memref<128x512xf32, #tpu.memory_space<vmem>>, vector<128x128xf32>
    %cst_150 = arith.constant dense<0.000000e+00> : vector<8x128xf32>
    %309 = tpu.matmul %280, %308, %cst_150 {dimension_numbers = #tpu.dot_dimension_numbers<[1], [0], [0], [1], [0, 0, 1, 1], [], []>} : vector<8x128xf32>, vector<128x128xf32>, vector<8x128xf32> -> vector<8x128xf32>
    %310 = arith.addf %307, %309 : vector<8x128xf32>
    %311 = math.tanh %310 : vector<8x128xf32>
    %312 = arith.mulf %305, %311 : vector<8x128xf32>
    %313 = arith.addf %295, %312 : vector<8x128xf32>
    %314 = arith.index_cast %284 : i32 to index
    %c384_151 = arith.constant 384 : index
    %315 = vector.load %arg9[%314, %c384_151] : memref<64x512xf32, #tpu.memory_space<vmem>>, vector<8x128xf32>
    %c0_152 = arith.constant 0 : index
    %c384_153 = arith.constant 384 : index
    %316 = vector.load %arg4[%c0_152, %c384_153] : memref<128x512xf32, #tpu.memory_space<vmem>>, vector<128x128xf32>
    %cst_154 = arith.constant dense<0.000000e+00> : vector<8x128xf32>
    %317 = tpu.matmul %280, %316, %cst_154 {dimension_numbers = #tpu.dot_dimension_numbers<[1], [0], [0], [1], [0, 0, 1, 1], [], []>} : vector<8x128xf32>, vector<128x128xf32>, vector<8x128xf32> -> vector<8x128xf32>
    %318 = arith.addf %315, %317 : vector<8x128xf32>
    %319 = arith.negf %318 : vector<8x128xf32>
    %320 = math.exp %319 : vector<8x128xf32>
    %cst_155 = arith.constant 1.000000e+00 : f32
    %321 = vector.broadcast %cst_155 : f32 to vector<8x128xf32>
    %322 = arith.addf %321, %320 : vector<8x128xf32>
    %323 = arith.divf %321, %322 : vector<8x128xf32>
    %324 = math.tanh %313 : vector<8x128xf32>
    %325 = arith.mulf %323, %324 : vector<8x128xf32>
    %326 = arith.index_cast %284 : i32 to index
    %c0_156 = arith.constant 0 : index
    %327 = vector.load %arg10[%326, %c0_156] : memref<64x128xf32, #tpu.memory_space<vmem>>, vector<8x128xf32>
    tpu.vector_store %arg10[%326, %c0_156], %325 {strides = array<i32>} : memref<64x128xf32, #tpu.memory_space<vmem>>, vector<8x128xf32>,
    %c7_i32 = arith.constant 7 : i32
    %c8_i32_157 = arith.constant 8 : i32
    %328 = arith.muli %c7_i32, %c8_i32_157 : i32
    %329 = tpu.assume_multiple %328, 8 : i32
    %330 = arith.index_cast %329 : i32 to index
    %c128_158 = arith.constant 128 : index
    %331 = vector.load %arg9[%330, %c128_158] : memref<64x512xf32, #tpu.memory_space<vmem>>, vector<8x128xf32>
    %c0_159 = arith.constant 0 : index
    %c128_160 = arith.constant 128 : index
    %332 = vector.load %arg4[%c0_159, %c128_160] : memref<128x512xf32, #tpu.memory_space<vmem>>, vector<128x128xf32>
    %cst_161 = arith.constant dense<0.000000e+00> : vector<8x128xf32>
    %333 = tpu.matmul %325, %332, %cst_161 {dimension_numbers = #tpu.dot_dimension_numbers<[1], [0], [0], [1], [0, 0, 1, 1], [], []>} : vector<8x128xf32>, vector<128x128xf32>, vector<8x128xf32> -> vector<8x128xf32>
    %334 = arith.addf %331, %333 : vector<8x128xf32>
    %335 = arith.negf %334 : vector<8x128xf32>
    %336 = math.exp %335 : vector<8x128xf32>
    %cst_162 = arith.constant 1.000000e+00 : f32
    %337 = vector.broadcast %cst_162 : f32 to vector<8x128xf32>
    %338 = arith.addf %337, %336 : vector<8x128xf32>
    %339 = arith.divf %337, %338 : vector<8x128xf32>
    %340 = arith.mulf %339, %313 : vector<8x128xf32>
    %341 = arith.index_cast %329 : i32 to index
    %c0_163 = arith.constant 0 : index
    %342 = vector.load %arg9[%341, %c0_163] : memref<64x512xf32, #tpu.memory_space<vmem>>, vector<8x128xf32>
    %c0_164 = arith.constant 0 : index
    %c0_165 = arith.constant 0 : index
    %343 = vector.load %arg4[%c0_164, %c0_165] : memref<128x512xf32, #tpu.memory_space<vmem>>, vector<128x128xf32>
    %cst_166 = arith.constant dense<0.000000e+00> : vector<8x128xf32>
    %344 = tpu.matmul %325, %343, %cst_166 {dimension_numbers = #tpu.dot_dimension_numbers<[1], [0], [0], [1], [0, 0, 1, 1], [], []>} : vector<8x128xf32>, vector<128x128xf32>, vector<8x128xf32> -> vector<8x128xf32>
    %345 = arith.addf %342, %344 : vector<8x128xf32>
    %346 = arith.negf %345 : vector<8x128xf32>
    %347 = math.exp %346 : vector<8x128xf32>
    %cst_167 = arith.constant 1.000000e+00 : f32
    %348 = vector.broadcast %cst_167 : f32 to vector<8x128xf32>
    %349 = arith.addf %348, %347 : vector<8x128xf32>
    %350 = arith.divf %348, %349 : vector<8x128xf32>
    %351 = arith.index_cast %329 : i32 to index
    %c256_168 = arith.constant 256 : index
    %352 = vector.load %arg9[%351, %c256_168] : memref<64x512xf32, #tpu.memory_space<vmem>>, vector<8x128xf32>
    %c0_169 = arith.constant 0 : index
    %c256_170 = arith.constant 256 : index
    %353 = vector.load %arg4[%c0_169, %c256_170] : memref<128x512xf32, #tpu.memory_space<vmem>>, vector<128x128xf32>
    %cst_171 = arith.constant dense<0.000000e+00> : vector<8x128xf32>
    %354 = tpu.matmul %325, %353, %cst_171 {dimension_numbers = #tpu.dot_dimension_numbers<[1], [0], [0], [1], [0, 0, 1, 1], [], []>} : vector<8x128xf32>, vector<128x128xf32>, vector<8x128xf32> -> vector<8x128xf32>
    %355 = arith.addf %352, %354 : vector<8x128xf32>
    %356 = math.tanh %355 : vector<8x128xf32>
    %357 = arith.mulf %350, %356 : vector<8x128xf32>
    %358 = arith.addf %340, %357 : vector<8x128xf32>
    %359 = arith.index_cast %329 : i32 to index
    %c384_172 = arith.constant 384 : index
    %360 = vector.load %arg9[%359, %c384_172] : memref<64x512xf32, #tpu.memory_space<vmem>>, vector<8x128xf32>
    %c0_173 = arith.constant 0 : index
    %c384_174 = arith.constant 384 : index
    %361 = vector.load %arg4[%c0_173, %c384_174] : memref<128x512xf32, #tpu.memory_space<vmem>>, vector<128x128xf32>
    %cst_175 = arith.constant dense<0.000000e+00> : vector<8x128xf32>
    %362 = tpu.matmul %325, %361, %cst_175 {dimension_numbers = #tpu.dot_dimension_numbers<[1], [0], [0], [1], [0, 0, 1, 1], [], []>} : vector<8x128xf32>, vector<128x128xf32>, vector<8x128xf32> -> vector<8x128xf32>
    %363 = arith.addf %360, %362 : vector<8x128xf32>
    %364 = arith.negf %363 : vector<8x128xf32>
    %365 = math.exp %364 : vector<8x128xf32>
    %cst_176 = arith.constant 1.000000e+00 : f32
    %366 = vector.broadcast %cst_176 : f32 to vector<8x128xf32>
    %367 = arith.addf %366, %365 : vector<8x128xf32>
    %368 = arith.divf %366, %367 : vector<8x128xf32>
    %369 = math.tanh %358 : vector<8x128xf32>
    %370 = arith.mulf %368, %369 : vector<8x128xf32>
    %371 = arith.index_cast %329 : i32 to index
    %c0_177 = arith.constant 0 : index
    %372 = vector.load %arg10[%371, %c0_177] : memref<64x128xf32, #tpu.memory_space<vmem>>, vector<8x128xf32>
    tpu.vector_store %arg10[%371, %c0_177], %370 {strides = array<i32>} : memref<64x128xf32, #tpu.memory_space<vmem>>, vector<8x128xf32>,
    %c8_i32_178 = arith.constant 8 : i32
    %c0_179 = arith.constant 0 : index
    %c0_180 = arith.constant 0 : index
    %373 = vector.load %arg11[%c0_179, %c0_180] : memref<8x128xf32, #tpu.memory_space<vmem>>, vector<8x128xf32>
    tpu.vector_store %arg11[%c0_179, %c0_180], %370 {strides = array<i32>} : memref<8x128xf32, #tpu.memory_space<vmem>>, vector<8x128xf32>,
    %c0_181 = arith.constant 0 : index
    %c0_182 = arith.constant 0 : index
    %374 = vector.load %arg12[%c0_181, %c0_182] : memref<8x128xf32, #tpu.memory_space<vmem>>, vector<8x128xf32>
    tpu.vector_store %arg12[%c0_181, %c0_182], %358 {strides = array<i32>} : memref<8x128xf32, #tpu.memory_space<vmem>>, vector<8x128xf32>,
    %c0_183 = arith.constant 0 : index
    %c0_184 = arith.constant 0 : index
    %375 = vector.load %arg10[%c0_183, %c0_184] : memref<64x128xf32, #tpu.memory_space<vmem>>, vector<64x128xf32>
    %c0_185 = arith.constant 0 : index
    %c0_186 = arith.constant 0 : index
    %376 = vector.load %arg6[%c0_185, %c0_186] : memref<128x128xf32, #tpu.memory_space<vmem>>, vector<128x128xf32>
    %cst_187 = arith.constant dense<0.000000e+00> : vector<64x128xf32>
    %377 = tpu.matmul %375, %376, %cst_187 {dimension_numbers = #tpu.dot_dimension_numbers<[1], [0], [0], [1], [0, 0, 1, 1], [], []>} : vector<64x128xf32>, vector<128x128xf32>, vector<64x128xf32> -> vector<64x128xf32>
    %c0_188 = arith.constant 0 : index
    %c0_189 = arith.constant 0 : index
    %378 = vector.load %arg7[%c0_188, %c0_189] : memref<1x128xf32, #tpu.memory_space<vmem>>, vector<1x128xf32>
    %379 = vector.broadcast %378 : vector<1x128xf32> to vector<64x128xf32>
    %380 = arith.addf %377, %379 : vector<64x128xf32>
    %381 = math.tanh %380 : vector<64x128xf32>
    %c0_190 = arith.constant 0 : index
    %c0_191 = arith.constant 0 : index
    %c0_192 = arith.constant 0 : index
    %382 = vector.load %arg8[%c0_190, %c0_191, %c0_192] : memref<1x64x128xf32, #tpu.memory_space<vmem>>, vector<1x64x128xf32>
    %383 = vector.shape_cast %382 : vector<1x64x128xf32> to vector<64x128xf32>
    %384 = vector.shape_cast %381 : vector<64x128xf32> to vector<1x64x128xf32>
    tpu.vector_store %arg8[%c0_190, %c0_191, %c0_192], %384 {strides = array<i32>} : memref<1x64x128xf32, #tpu.memory_space<vmem>>, vector<1x64x128xf32>,
    return
  }
  func.func @transform_0(%arg0: i32, %arg1: i32) -> (i32, i32, i32) {
    %c0_i32 = arith.constant 0 : i32
    %c0_i32_0 = arith.constant 0 : i32
    return %arg0, %arg1, %c0_i32 : i32, i32, i32
  }
  func.func @transform_1(%arg0: i32, %arg1: i32) -> (i32, i32) {
    %c0_i32 = arith.constant 0 : i32
    %c0_i32_0 = arith.constant 0 : i32
    %c0_i32_1 = arith.constant 0 : i32
    return %c0_i32, %c0_i32_0 : i32, i32
  }
  func.func @transform_2(%arg0: i32, %arg1: i32) -> (i32, i32) {
    %c0_i32 = arith.constant 0 : i32
    %c0_i32_0 = arith.constant 0 : i32
    %c0_i32_1 = arith.constant 0 : i32
    return %c0_i32, %c0_i32_0 : i32, i32
  }
  func.func @transform_3(%arg0: i32, %arg1: i32) -> (i32, i32) {
    %c0_i32 = arith.constant 0 : i32
    %c0_i32_0 = arith.constant 0 : i32
    %c0_i32_1 = arith.constant 0 : i32
    return %c0_i32, %c0_i32_0 : i32, i32
  }
  func.func @transform_4(%arg0: i32, %arg1: i32) -> (i32, i32) {
    %c0_i32 = arith.constant 0 : i32
    %c0_i32_0 = arith.constant 0 : i32
    %c0_i32_1 = arith.constant 0 : i32
    return %c0_i32, %c0_i32_0 : i32, i32
  }
  func.func @transform_5(%arg0: i32, %arg1: i32) -> (i32, i32) {
    %c0_i32 = arith.constant 0 : i32
    %c0_i32_0 = arith.constant 0 : i32
    %c0_i32_1 = arith.constant 0 : i32
    return %c0_i32, %c0_i32_0 : i32, i32
  }
  func.func @transform_6(%arg0: i32, %arg1: i32) -> (i32, i32, i32) {
    %c0_i32 = arith.constant 0 : i32
    %c0_i32_0 = arith.constant 0 : i32
    return %arg0, %arg1, %c0_i32 : i32, i32, i32
  }
}

module attributes {stable_mosaic.version = 11 : i64} {
  func.func @_lstm_gen_kernel(%arg0: i32, %arg1: i32, %arg2: memref<1x64x8xf32, #tpu.memory_space<vmem>>, %arg3: memref<8x512xf32, #tpu.memory_space<vmem>>, %arg4: memref<128x512xf32, #tpu.memory_space<vmem>>, %arg5: memref<1x512xf32, #tpu.memory_space<vmem>>, %arg6: memref<128x128xf32, #tpu.memory_space<vmem>>, %arg7: memref<1x128xf32, #tpu.memory_space<vmem>>, %arg8: memref<1x64x128xf32, #tpu.memory_space<vmem>>, %arg9: memref<64x512xf32, #tpu.memory_space<vmem>>, %arg10: memref<64x128xf32, #tpu.memory_space<vmem>>, %arg11: memref<8x128xf32, #tpu.memory_space<vmem>>, %arg12: memref<8x128xf32, #tpu.memory_space<vmem>>) attributes {dimension_semantics = [#tpu.dimension_semantics<parallel>, #tpu.dimension_semantics<arbitrary>], iteration_bounds = array<i64: 1, 1>, scalar_prefetch = 0 : i64, scratch_operands = 4 : i64, tpu.core_type = #tpu.core_type<tc>, window_params = [{transform_indices = @transform_0, window_bounds = array<i64: 1, 64, 8>}, {pipeline_mode = #tpu.pipeline_mode<synchronous>, transform_indices = @transform_1, window_bounds = array<i64: 8, 512>}, {pipeline_mode = #tpu.pipeline_mode<synchronous>, transform_indices = @transform_2, window_bounds = array<i64: 128, 512>}, {pipeline_mode = #tpu.pipeline_mode<synchronous>, transform_indices = @transform_3, window_bounds = array<i64: 1, 512>}, {pipeline_mode = #tpu.pipeline_mode<synchronous>, transform_indices = @transform_4, window_bounds = array<i64: 128, 128>}, {pipeline_mode = #tpu.pipeline_mode<synchronous>, transform_indices = @transform_5, window_bounds = array<i64: 1, 128>}, {transform_indices = @transform_6, window_bounds = array<i64: 1, 64, 128>}]} {
    %c0_i32 = arith.constant 0 : i32
    %0 = arith.cmpi eq, %arg1, %c0_i32 : i32
    %1 = arith.extui %0 : i1 to i32
    %c0_i32_0 = arith.constant 0 : i32
    %2 = arith.cmpi ne, %1, %c0_i32_0 : i32
    scf.if %2 {
      %cst_193 = arith.constant 0.000000e+00 : f32
      %385 = vector.broadcast %cst_193 : f32 to vector<8x128xf32>
      %c0_194 = arith.constant 0 : index
      %c0_195 = arith.constant 0 : index
      %386 = vector.load %arg11[%c0_194, %c0_195] : memref<8x128xf32, #tpu.memory_space<vmem>>, vector<8x128xf32>
      tpu.vector_store %arg11[%c0_194, %c0_195], %385 {strides = array<i32>} : memref<8x128xf32, #tpu.memory_space<vmem>>, vector<8x128xf32>,
      %cst_196 = arith.constant 0.000000e+00 : f32
      %387 = vector.broadcast %cst_196 : f32 to vector<8x128xf32>
      %c0_197 = arith.constant 0 : index
      %c0_198 = arith.constant 0 : index
      %388 = vector.load %arg12[%c0_197, %c0_198] : memref<8x128xf32, #tpu.memory_space<vmem>>, vector<8x128xf32>
      tpu.vector_store %arg12[%c0_197, %c0_198], %387 {strides = array<i32>} : memref<8x128xf32, #tpu.memory_space<vmem>>, vector<8x128xf32>,
    } else {
    }
    %c0 = arith.constant 0 : index
    %c0_1 = arith.constant 0 : index
    %c0_2 = arith.constant 0 : index
    %3 = vector.load %arg2[%c0, %c0_1, %c0_2] : memref<1x64x8xf32, #tpu.memory_space<vmem>>, vector<1x64x8xf32>
    %4 = vector.shape_cast %3 : vector<1x64x8xf32> to vector<64x8xf32>
    %c0_3 = arith.constant 0 : index
    %c0_4 = arith.constant 0 : index
    %5 = vector.load %arg3[%c0_3, %c0_4] : memref<8x512xf32, #tpu.memory_space<vmem>>, vector<8x512xf32>
    %cst = arith.constant dense<0.000000e+00> : vector<64x512xf32>
    %6 = tpu.matmul %4, %5, %cst {dimension_numbers = #tpu.dot_dimension_numbers<[1], [0], [0], [1], [0, 0, 1, 1], [], []>} : vector<64x8xf32>, vector<8x512xf32>, vector<64x512xf32> -> vector<64x512xf32>
    %c0_5 = arith.constant 0 : index
    %c0_6 = arith.constant 0 : index
    %7 = vector.load %arg5[%c0_5, %c0_6] : memref<1x512xf32, #tpu.memory_space<vmem>>, vector<1x512xf32>
    %8 = vector.broadcast %7 : vector<1x512xf32> to vector<64x512xf32>
    %9 = arith.addf %6, %8 : vector<64x512xf32>
    %c0_7 = arith.constant 0 : index
    %c0_8 = arith.constant 0 : index
    %10 = vector.load %arg9[%c0_7, %c0_8] : memref<64x512xf32, #tpu.memory_space<vmem>>, vector<64x512xf32>
    tpu.vector_store %arg9[%c0_7, %c0_8], %9 {strides = array<i32>} : memref<64x512xf32, #tpu.memory_space<vmem>>, vector<64x512xf32>,
    %c0_9 = arith.constant 0 : index
    %c0_10 = arith.constant 0 : index
    %11 = vector.load %arg11[%c0_9, %c0_10] : memref<8x128xf32, #tpu.memory_space<vmem>>, vector<8x128xf32>
    %c0_11 = arith.constant 0 : index
    %c0_12 = arith.constant 0 : index
    %12 = vector.load %arg12[%c0_11, %c0_12] : memref<8x128xf32, #tpu.memory_space<vmem>>, vector<8x128xf32>
    %c0_i32_13 = arith.constant 0 : i32
    %c8_i32 = arith.constant 8 : i32
    %13 = arith.muli %c0_i32_13, %c8_i32 : i32
    %14 = tpu.assume_multiple %13, 8 : i32
    %15 = arith.index_cast %14 : i32 to index
    %c128 = arith.constant 128 : index
    %16 = vector.load %arg9[%15, %c128] : memref<64x512xf32, #tpu.memory_space<vmem>>, vector<8x128xf32>
    %c0_14 = arith.constant 0 : index
    %c128_15 = arith.constant 128 : index
    %17 = vector.load %arg4[%c0_14, %c128_15] : memref<128x512xf32, #tpu.memory_space<vmem>>, vector<128x128xf32>
    %cst_16 = arith.constant dense<0.000000e+00> : vector<8x128xf32>
    %18 = tpu.matmul %11, %17, %cst_16 {dimension_numbers = #tpu.dot_dimension_numbers<[1], [0], [0], [1], [0, 0, 1, 1], [], []>} : vector<8x128xf32>, vector<128x128xf32>, vector<8x128xf32> -> vector<8x128xf32>
    %19 = arith.addf %16, %18 : vector<8x128xf32>
    %20 = arith.negf %19 : vector<8x128xf32>
    %21 = math.exp %20 : vector<8x128xf32>
    %cst_17 = arith.constant 1.000000e+00 : f32
    %22 = vector.broadcast %cst_17 : f32 to vector<8x128xf32>
    %23 = arith.addf %22, %21 : vector<8x128xf32>
    %24 = arith.divf %22, %23 : vector<8x128xf32>
    %25 = arith.mulf %24, %12 : vector<8x128xf32>
    %26 = arith.index_cast %14 : i32 to index
    %c0_18 = arith.constant 0 : index
    %27 = vector.load %arg9[%26, %c0_18] : memref<64x512xf32, #tpu.memory_space<vmem>>, vector<8x128xf32>
    %c0_19 = arith.constant 0 : index
    %c0_20 = arith.constant 0 : index
    %28 = vector.load %arg4[%c0_19, %c0_20] : memref<128x512xf32, #tpu.memory_space<vmem>>, vector<128x128xf32>
    %cst_21 = arith.constant dense<0.000000e+00> : vector<8x128xf32>
    %29 = tpu.matmul %11, %28, %cst_21 {dimension_numbers = #tpu.dot_dimension_numbers<[1], [0], [0], [1], [0, 0, 1, 1], [], []>} : vector<8x128xf32>, vector<128x128xf32>, vector<8x128xf32> -> vector<8x128xf32>
    %30 = arith.addf %27, %29 : vector<8x128xf32>
    %31 = arith.negf %30 : vector<8x128xf32>
    %32 = math.exp %31 : vector<8x128xf32>
    %cst_22 = arith.constant 1.000000e+00 : f32
    %33 = vector.broadcast %cst_22 : f32 to vector<8x128xf32>
    %34 = arith.addf %33, %32 : vector<8x128xf32>
    %35 = arith.divf %33, %34 : vector<8x128xf32>
    %36 = arith.index_cast %14 : i32 to index
    %c256 = arith.constant 256 : index
    %37 = vector.load %arg9[%36, %c256] : memref<64x512xf32, #tpu.memory_space<vmem>>, vector<8x128xf32>
    %c0_23 = arith.constant 0 : index
    %c256_24 = arith.constant 256 : index
    %38 = vector.load %arg4[%c0_23, %c256_24] : memref<128x512xf32, #tpu.memory_space<vmem>>, vector<128x128xf32>
    %cst_25 = arith.constant dense<0.000000e+00> : vector<8x128xf32>
    %39 = tpu.matmul %11, %38, %cst_25 {dimension_numbers = #tpu.dot_dimension_numbers<[1], [0], [0], [1], [0, 0, 1, 1], [], []>} : vector<8x128xf32>, vector<128x128xf32>, vector<8x128xf32> -> vector<8x128xf32>
    %40 = arith.addf %37, %39 : vector<8x128xf32>
    %41 = math.tanh %40 : vector<8x128xf32>
    %42 = arith.mulf %35, %41 : vector<8x128xf32>
    %43 = arith.addf %25, %42 : vector<8x128xf32>
    %44 = arith.index_cast %14 : i32 to index
    %c384 = arith.constant 384 : index
    %45 = vector.load %arg9[%44, %c384] : memref<64x512xf32, #tpu.memory_space<vmem>>, vector<8x128xf32>
    %c0_26 = arith.constant 0 : index
    %c384_27 = arith.constant 384 : index
    %46 = vector.load %arg4[%c0_26, %c384_27] : memref<128x512xf32, #tpu.memory_space<vmem>>, vector<128x128xf32>
    %cst_28 = arith.constant dense<0.000000e+00> : vector<8x128xf32>
    %47 = tpu.matmul %11, %46, %cst_28 {dimension_numbers = #tpu.dot_dimension_numbers<[1], [0], [0], [1], [0, 0, 1, 1], [], []>} : vector<8x128xf32>, vector<128x128xf32>, vector<8x128xf32> -> vector<8x128xf32>
    %48 = arith.addf %45, %47 : vector<8x128xf32>
    %49 = arith.negf %48 : vector<8x128xf32>
    %50 = math.exp %49 : vector<8x128xf32>
    %cst_29 = arith.constant 1.000000e+00 : f32
    %51 = vector.broadcast %cst_29 : f32 to vector<8x128xf32>
    %52 = arith.addf %51, %50 : vector<8x128xf32>
    %53 = arith.divf %51, %52 : vector<8x128xf32>
    %54 = math.tanh %43 : vector<8x128xf32>
    %55 = arith.mulf %53, %54 : vector<8x128xf32>
    %56 = arith.index_cast %14 : i32 to index
    %c0_30 = arith.constant 0 : index
    %57 = vector.load %arg10[%56, %c0_30] : memref<64x128xf32, #tpu.memory_space<vmem>>, vector<8x128xf32>
    tpu.vector_store %arg10[%56, %c0_30], %55 {strides = array<i32>} : memref<64x128xf32, #tpu.memory_space<vmem>>, vector<8x128xf32>,
    %c1_i32 = arith.constant 1 : i32
    %c8_i32_31 = arith.constant 8 : i32
    %58 = arith.muli %c1_i32, %c8_i32_31 : i32
    %59 = tpu.assume_multiple %58, 8 : i32
    %60 = arith.index_cast %59 : i32 to index
    %c128_32 = arith.constant 128 : index
    %61 = vector.load %arg9[%60, %c128_32] : memref<64x512xf32, #tpu.memory_space<vmem>>, vector<8x128xf32>
    %c0_33 = arith.constant 0 : index
    %c128_34 = arith.constant 128 : index
    %62 = vector.load %arg4[%c0_33, %c128_34] : memref<128x512xf32, #tpu.memory_space<vmem>>, vector<128x128xf32>
    %cst_35 = arith.constant dense<0.000000e+00> : vector<8x128xf32>
    %63 = tpu.matmul %55, %62, %cst_35 {dimension_numbers = #tpu.dot_dimension_numbers<[1], [0], [0], [1], [0, 0, 1, 1], [], []>} : vector<8x128xf32>, vector<128x128xf32>, vector<8x128xf32> -> vector<8x128xf32>
    %64 = arith.addf %61, %63 : vector<8x128xf32>
    %65 = arith.negf %64 : vector<8x128xf32>
    %66 = math.exp %65 : vector<8x128xf32>
    %cst_36 = arith.constant 1.000000e+00 : f32
    %67 = vector.broadcast %cst_36 : f32 to vector<8x128xf32>
    %68 = arith.addf %67, %66 : vector<8x128xf32>
    %69 = arith.divf %67, %68 : vector<8x128xf32>
    %70 = arith.mulf %69, %43 : vector<8x128xf32>
    %71 = arith.index_cast %59 : i32 to index
    %c0_37 = arith.constant 0 : index
    %72 = vector.load %arg9[%71, %c0_37] : memref<64x512xf32, #tpu.memory_space<vmem>>, vector<8x128xf32>
    %c0_38 = arith.constant 0 : index
    %c0_39 = arith.constant 0 : index
    %73 = vector.load %arg4[%c0_38, %c0_39] : memref<128x512xf32, #tpu.memory_space<vmem>>, vector<128x128xf32>
    %cst_40 = arith.constant dense<0.000000e+00> : vector<8x128xf32>
    %74 = tpu.matmul %55, %73, %cst_40 {dimension_numbers = #tpu.dot_dimension_numbers<[1], [0], [0], [1], [0, 0, 1, 1], [], []>} : vector<8x128xf32>, vector<128x128xf32>, vector<8x128xf32> -> vector<8x128xf32>
    %75 = arith.addf %72, %74 : vector<8x128xf32>
    %76 = arith.negf %75 : vector<8x128xf32>
    %77 = math.exp %76 : vector<8x128xf32>
    %cst_41 = arith.constant 1.000000e+00 : f32
    %78 = vector.broadcast %cst_41 : f32 to vector<8x128xf32>
    %79 = arith.addf %78, %77 : vector<8x128xf32>
    %80 = arith.divf %78, %79 : vector<8x128xf32>
    %81 = arith.index_cast %59 : i32 to index
    %c256_42 = arith.constant 256 : index
    %82 = vector.load %arg9[%81, %c256_42] : memref<64x512xf32, #tpu.memory_space<vmem>>, vector<8x128xf32>
    %c0_43 = arith.constant 0 : index
    %c256_44 = arith.constant 256 : index
    %83 = vector.load %arg4[%c0_43, %c256_44] : memref<128x512xf32, #tpu.memory_space<vmem>>, vector<128x128xf32>
    %cst_45 = arith.constant dense<0.000000e+00> : vector<8x128xf32>
    %84 = tpu.matmul %55, %83, %cst_45 {dimension_numbers = #tpu.dot_dimension_numbers<[1], [0], [0], [1], [0, 0, 1, 1], [], []>} : vector<8x128xf32>, vector<128x128xf32>, vector<8x128xf32> -> vector<8x128xf32>
    %85 = arith.addf %82, %84 : vector<8x128xf32>
    %86 = math.tanh %85 : vector<8x128xf32>
    %87 = arith.mulf %80, %86 : vector<8x128xf32>
    %88 = arith.addf %70, %87 : vector<8x128xf32>
    %89 = arith.index_cast %59 : i32 to index
    %c384_46 = arith.constant 384 : index
    %90 = vector.load %arg9[%89, %c384_46] : memref<64x512xf32, #tpu.memory_space<vmem>>, vector<8x128xf32>
    %c0_47 = arith.constant 0 : index
    %c384_48 = arith.constant 384 : index
    %91 = vector.load %arg4[%c0_47, %c384_48] : memref<128x512xf32, #tpu.memory_space<vmem>>, vector<128x128xf32>
    %cst_49 = arith.constant dense<0.000000e+00> : vector<8x128xf32>
    %92 = tpu.matmul %55, %91, %cst_49 {dimension_numbers = #tpu.dot_dimension_numbers<[1], [0], [0], [1], [0, 0, 1, 1], [], []>} : vector<8x128xf32>, vector<128x128xf32>, vector<8x128xf32> -> vector<8x128xf32>
    %93 = arith.addf %90, %92 : vector<8x128xf32>
    %94 = arith.negf %93 : vector<8x128xf32>
    %95 = math.exp %94 : vector<8x128xf32>
    %cst_50 = arith.constant 1.000000e+00 : f32
    %96 = vector.broadcast %cst_50 : f32 to vector<8x128xf32>
    %97 = arith.addf %96, %95 : vector<8x128xf32>
    %98 = arith.divf %96, %97 : vector<8x128xf32>
    %99 = math.tanh %88 : vector<8x128xf32>
    %100 = arith.mulf %98, %99 : vector<8x128xf32>
    %101 = arith.index_cast %59 : i32 to index
    %c0_51 = arith.constant 0 : index
    %102 = vector.load %arg10[%101, %c0_51] : memref<64x128xf32, #tpu.memory_space<vmem>>, vector<8x128xf32>
    tpu.vector_store %arg10[%101, %c0_51], %100 {strides = array<i32>} : memref<64x128xf32, #tpu.memory_space<vmem>>, vector<8x128xf32>,
    %c2_i32 = arith.constant 2 : i32
    %c8_i32_52 = arith.constant 8 : i32
    %103 = arith.muli %c2_i32, %c8_i32_52 : i32
    %104 = tpu.assume_multiple %103, 8 : i32
    %105 = arith.index_cast %104 : i32 to index
    %c128_53 = arith.constant 128 : index
    %106 = vector.load %arg9[%105, %c128_53] : memref<64x512xf32, #tpu.memory_space<vmem>>, vector<8x128xf32>
    %c0_54 = arith.constant 0 : index
    %c128_55 = arith.constant 128 : index
    %107 = vector.load %arg4[%c0_54, %c128_55] : memref<128x512xf32, #tpu.memory_space<vmem>>, vector<128x128xf32>
    %cst_56 = arith.constant dense<0.000000e+00> : vector<8x128xf32>
    %108 = tpu.matmul %100, %107, %cst_56 {dimension_numbers = #tpu.dot_dimension_numbers<[1], [0], [0], [1], [0, 0, 1, 1], [], []>} : vector<8x128xf32>, vector<128x128xf32>, vector<8x128xf32> -> vector<8x128xf32>
    %109 = arith.addf %106, %108 : vector<8x128xf32>
    %110 = arith.negf %109 : vector<8x128xf32>
    %111 = math.exp %110 : vector<8x128xf32>
    %cst_57 = arith.constant 1.000000e+00 : f32
    %112 = vector.broadcast %cst_57 : f32 to vector<8x128xf32>
    %113 = arith.addf %112, %111 : vector<8x128xf32>
    %114 = arith.divf %112, %113 : vector<8x128xf32>
    %115 = arith.mulf %114, %88 : vector<8x128xf32>
    %116 = arith.index_cast %104 : i32 to index
    %c0_58 = arith.constant 0 : index
    %117 = vector.load %arg9[%116, %c0_58] : memref<64x512xf32, #tpu.memory_space<vmem>>, vector<8x128xf32>
    %c0_59 = arith.constant 0 : index
    %c0_60 = arith.constant 0 : index
    %118 = vector.load %arg4[%c0_59, %c0_60] : memref<128x512xf32, #tpu.memory_space<vmem>>, vector<128x128xf32>
    %cst_61 = arith.constant dense<0.000000e+00> : vector<8x128xf32>
    %119 = tpu.matmul %100, %118, %cst_61 {dimension_numbers = #tpu.dot_dimension_numbers<[1], [0], [0], [1], [0, 0, 1, 1], [], []>} : vector<8x128xf32>, vector<128x128xf32>, vector<8x128xf32> -> vector<8x128xf32>
    %120 = arith.addf %117, %119 : vector<8x128xf32>
    %121 = arith.negf %120 : vector<8x128xf32>
    %122 = math.exp %121 : vector<8x128xf32>
    %cst_62 = arith.constant 1.000000e+00 : f32
    %123 = vector.broadcast %cst_62 : f32 to vector<8x128xf32>
    %124 = arith.addf %123, %122 : vector<8x128xf32>
    %125 = arith.divf %123, %124 : vector<8x128xf32>
    %126 = arith.index_cast %104 : i32 to index
    %c256_63 = arith.constant 256 : index
    %127 = vector.load %arg9[%126, %c256_63] : memref<64x512xf32, #tpu.memory_space<vmem>>, vector<8x128xf32>
    %c0_64 = arith.constant 0 : index
    %c256_65 = arith.constant 256 : index
    %128 = vector.load %arg4[%c0_64, %c256_65] : memref<128x512xf32, #tpu.memory_space<vmem>>, vector<128x128xf32>
    %cst_66 = arith.constant dense<0.000000e+00> : vector<8x128xf32>
    %129 = tpu.matmul %100, %128, %cst_66 {dimension_numbers = #tpu.dot_dimension_numbers<[1], [0], [0], [1], [0, 0, 1, 1], [], []>} : vector<8x128xf32>, vector<128x128xf32>, vector<8x128xf32> -> vector<8x128xf32>
    %130 = arith.addf %127, %129 : vector<8x128xf32>
    %131 = math.tanh %130 : vector<8x128xf32>
    %132 = arith.mulf %125, %131 : vector<8x128xf32>
    %133 = arith.addf %115, %132 : vector<8x128xf32>
    %134 = arith.index_cast %104 : i32 to index
    %c384_67 = arith.constant 384 : index
    %135 = vector.load %arg9[%134, %c384_67] : memref<64x512xf32, #tpu.memory_space<vmem>>, vector<8x128xf32>
    %c0_68 = arith.constant 0 : index
    %c384_69 = arith.constant 384 : index
    %136 = vector.load %arg4[%c0_68, %c384_69] : memref<128x512xf32, #tpu.memory_space<vmem>>, vector<128x128xf32>
    %cst_70 = arith.constant dense<0.000000e+00> : vector<8x128xf32>
    %137 = tpu.matmul %100, %136, %cst_70 {dimension_numbers = #tpu.dot_dimension_numbers<[1], [0], [0], [1], [0, 0, 1, 1], [], []>} : vector<8x128xf32>, vector<128x128xf32>, vector<8x128xf32> -> vector<8x128xf32>
    %138 = arith.addf %135, %137 : vector<8x128xf32>
    %139 = arith.negf %138 : vector<8x128xf32>
    %140 = math.exp %139 : vector<8x128xf32>
    %cst_71 = arith.constant 1.000000e+00 : f32
    %141 = vector.broadcast %cst_71 : f32 to vector<8x128xf32>
    %142 = arith.addf %141, %140 : vector<8x128xf32>
    %143 = arith.divf %141, %142 : vector<8x128xf32>
    %144 = math.tanh %133 : vector<8x128xf32>
    %145 = arith.mulf %143, %144 : vector<8x128xf32>
    %146 = arith.index_cast %104 : i32 to index
    %c0_72 = arith.constant 0 : index
    %147 = vector.load %arg10[%146, %c0_72] : memref<64x128xf32, #tpu.memory_space<vmem>>, vector<8x128xf32>
    tpu.vector_store %arg10[%146, %c0_72], %145 {strides = array<i32>} : memref<64x128xf32, #tpu.memory_space<vmem>>, vector<8x128xf32>,
    %c3_i32 = arith.constant 3 : i32
    %c8_i32_73 = arith.constant 8 : i32
    %148 = arith.muli %c3_i32, %c8_i32_73 : i32
    %149 = tpu.assume_multiple %148, 8 : i32
    %150 = arith.index_cast %149 : i32 to index
    %c128_74 = arith.constant 128 : index
    %151 = vector.load %arg9[%150, %c128_74] : memref<64x512xf32, #tpu.memory_space<vmem>>, vector<8x128xf32>
    %c0_75 = arith.constant 0 : index
    %c128_76 = arith.constant 128 : index
    %152 = vector.load %arg4[%c0_75, %c128_76] : memref<128x512xf32, #tpu.memory_space<vmem>>, vector<128x128xf32>
    %cst_77 = arith.constant dense<0.000000e+00> : vector<8x128xf32>
    %153 = tpu.matmul %145, %152, %cst_77 {dimension_numbers = #tpu.dot_dimension_numbers<[1], [0], [0], [1], [0, 0, 1, 1], [], []>} : vector<8x128xf32>, vector<128x128xf32>, vector<8x128xf32> -> vector<8x128xf32>
    %154 = arith.addf %151, %153 : vector<8x128xf32>
    %155 = arith.negf %154 : vector<8x128xf32>
    %156 = math.exp %155 : vector<8x128xf32>
    %cst_78 = arith.constant 1.000000e+00 : f32
    %157 = vector.broadcast %cst_78 : f32 to vector<8x128xf32>
    %158 = arith.addf %157, %156 : vector<8x128xf32>
    %159 = arith.divf %157, %158 : vector<8x128xf32>
    %160 = arith.mulf %159, %133 : vector<8x128xf32>
    %161 = arith.index_cast %149 : i32 to index
    %c0_79 = arith.constant 0 : index
    %162 = vector.load %arg9[%161, %c0_79] : memref<64x512xf32, #tpu.memory_space<vmem>>, vector<8x128xf32>
    %c0_80 = arith.constant 0 : index
    %c0_81 = arith.constant 0 : index
    %163 = vector.load %arg4[%c0_80, %c0_81] : memref<128x512xf32, #tpu.memory_space<vmem>>, vector<128x128xf32>
    %cst_82 = arith.constant dense<0.000000e+00> : vector<8x128xf32>
    %164 = tpu.matmul %145, %163, %cst_82 {dimension_numbers = #tpu.dot_dimension_numbers<[1], [0], [0], [1], [0, 0, 1, 1], [], []>} : vector<8x128xf32>, vector<128x128xf32>, vector<8x128xf32> -> vector<8x128xf32>
    %165 = arith.addf %162, %164 : vector<8x128xf32>
    %166 = arith.negf %165 : vector<8x128xf32>
    %167 = math.exp %166 : vector<8x128xf32>
    %cst_83 = arith.constant 1.000000e+00 : f32
    %168 = vector.broadcast %cst_83 : f32 to vector<8x128xf32>
    %169 = arith.addf %168, %167 : vector<8x128xf32>
    %170 = arith.divf %168, %169 : vector<8x128xf32>
    %171 = arith.index_cast %149 : i32 to index
    %c256_84 = arith.constant 256 : index
    %172 = vector.load %arg9[%171, %c256_84] : memref<64x512xf32, #tpu.memory_space<vmem>>, vector<8x128xf32>
    %c0_85 = arith.constant 0 : index
    %c256_86 = arith.constant 256 : index
    %173 = vector.load %arg4[%c0_85, %c256_86] : memref<128x512xf32, #tpu.memory_space<vmem>>, vector<128x128xf32>
    %cst_87 = arith.constant dense<0.000000e+00> : vector<8x128xf32>
    %174 = tpu.matmul %145, %173, %cst_87 {dimension_numbers = #tpu.dot_dimension_numbers<[1], [0], [0], [1], [0, 0, 1, 1], [], []>} : vector<8x128xf32>, vector<128x128xf32>, vector<8x128xf32> -> vector<8x128xf32>
    %175 = arith.addf %172, %174 : vector<8x128xf32>
    %176 = math.tanh %175 : vector<8x128xf32>
    %177 = arith.mulf %170, %176 : vector<8x128xf32>
    %178 = arith.addf %160, %177 : vector<8x128xf32>
    %179 = arith.index_cast %149 : i32 to index
    %c384_88 = arith.constant 384 : index
    %180 = vector.load %arg9[%179, %c384_88] : memref<64x512xf32, #tpu.memory_space<vmem>>, vector<8x128xf32>
    %c0_89 = arith.constant 0 : index
    %c384_90 = arith.constant 384 : index
    %181 = vector.load %arg4[%c0_89, %c384_90] : memref<128x512xf32, #tpu.memory_space<vmem>>, vector<128x128xf32>
    %cst_91 = arith.constant dense<0.000000e+00> : vector<8x128xf32>
    %182 = tpu.matmul %145, %181, %cst_91 {dimension_numbers = #tpu.dot_dimension_numbers<[1], [0], [0], [1], [0, 0, 1, 1], [], []>} : vector<8x128xf32>, vector<128x128xf32>, vector<8x128xf32> -> vector<8x128xf32>
    %183 = arith.addf %180, %182 : vector<8x128xf32>
    %184 = arith.negf %183 : vector<8x128xf32>
    %185 = math.exp %184 : vector<8x128xf32>
    %cst_92 = arith.constant 1.000000e+00 : f32
    %186 = vector.broadcast %cst_92 : f32 to vector<8x128xf32>
    %187 = arith.addf %186, %185 : vector<8x128xf32>
    %188 = arith.divf %186, %187 : vector<8x128xf32>
    %189 = math.tanh %178 : vector<8x128xf32>
    %190 = arith.mulf %188, %189 : vector<8x128xf32>
    %191 = arith.index_cast %149 : i32 to index
    %c0_93 = arith.constant 0 : index
    %192 = vector.load %arg10[%191, %c0_93] : memref<64x128xf32, #tpu.memory_space<vmem>>, vector<8x128xf32>
    tpu.vector_store %arg10[%191, %c0_93], %190 {strides = array<i32>} : memref<64x128xf32, #tpu.memory_space<vmem>>, vector<8x128xf32>,
    %c4_i32 = arith.constant 4 : i32
    %c8_i32_94 = arith.constant 8 : i32
    %193 = arith.muli %c4_i32, %c8_i32_94 : i32
    %194 = tpu.assume_multiple %193, 8 : i32
    %195 = arith.index_cast %194 : i32 to index
    %c128_95 = arith.constant 128 : index
    %196 = vector.load %arg9[%195, %c128_95] : memref<64x512xf32, #tpu.memory_space<vmem>>, vector<8x128xf32>
    %c0_96 = arith.constant 0 : index
    %c128_97 = arith.constant 128 : index
    %197 = vector.load %arg4[%c0_96, %c128_97] : memref<128x512xf32, #tpu.memory_space<vmem>>, vector<128x128xf32>
    %cst_98 = arith.constant dense<0.000000e+00> : vector<8x128xf32>
    %198 = tpu.matmul %190, %197, %cst_98 {dimension_numbers = #tpu.dot_dimension_numbers<[1], [0], [0], [1], [0, 0, 1, 1], [], []>} : vector<8x128xf32>, vector<128x128xf32>, vector<8x128xf32> -> vector<8x128xf32>
    %199 = arith.addf %196, %198 : vector<8x128xf32>
    %200 = arith.negf %199 : vector<8x128xf32>
    %201 = math.exp %200 : vector<8x128xf32>
    %cst_99 = arith.constant 1.000000e+00 : f32
    %202 = vector.broadcast %cst_99 : f32 to vector<8x128xf32>
    %203 = arith.addf %202, %201 : vector<8x128xf32>
    %204 = arith.divf %202, %203 : vector<8x128xf32>
    %205 = arith.mulf %204, %178 : vector<8x128xf32>
    %206 = arith.index_cast %194 : i32 to index
    %c0_100 = arith.constant 0 : index
    %207 = vector.load %arg9[%206, %c0_100] : memref<64x512xf32, #tpu.memory_space<vmem>>, vector<8x128xf32>
    %c0_101 = arith.constant 0 : index
    %c0_102 = arith.constant 0 : index
    %208 = vector.load %arg4[%c0_101, %c0_102] : memref<128x512xf32, #tpu.memory_space<vmem>>, vector<128x128xf32>
    %cst_103 = arith.constant dense<0.000000e+00> : vector<8x128xf32>
    %209 = tpu.matmul %190, %208, %cst_103 {dimension_numbers = #tpu.dot_dimension_numbers<[1], [0], [0], [1], [0, 0, 1, 1], [], []>} : vector<8x128xf32>, vector<128x128xf32>, vector<8x128xf32> -> vector<8x128xf32>
    %210 = arith.addf %207, %209 : vector<8x128xf32>
    %211 = arith.negf %210 : vector<8x128xf32>
    %212 = math.exp %211 : vector<8x128xf32>
    %cst_104 = arith.constant 1.000000e+00 : f32
    %213 = vector.broadcast %cst_104 : f32 to vector<8x128xf32>
    %214 = arith.addf %213, %212 : vector<8x128xf32>
    %215 = arith.divf %213, %214 : vector<8x128xf32>
    %216 = arith.index_cast %194 : i32 to index
    %c256_105 = arith.constant 256 : index
    %217 = vector.load %arg9[%216, %c256_105] : memref<64x512xf32, #tpu.memory_space<vmem>>, vector<8x128xf32>
    %c0_106 = arith.constant 0 : index
    %c256_107 = arith.constant 256 : index
    %218 = vector.load %arg4[%c0_106, %c256_107] : memref<128x512xf32, #tpu.memory_space<vmem>>, vector<128x128xf32>
    %cst_108 = arith.constant dense<0.000000e+00> : vector<8x128xf32>
    %219 = tpu.matmul %190, %218, %cst_108 {dimension_numbers = #tpu.dot_dimension_numbers<[1], [0], [0], [1], [0, 0, 1, 1], [], []>} : vector<8x128xf32>, vector<128x128xf32>, vector<8x128xf32> -> vector<8x128xf32>
    %220 = arith.addf %217, %219 : vector<8x128xf32>
    %221 = math.tanh %220 : vector<8x128xf32>
    %222 = arith.mulf %215, %221 : vector<8x128xf32>
    %223 = arith.addf %205, %222 : vector<8x128xf32>
    %224 = arith.index_cast %194 : i32 to index
    %c384_109 = arith.constant 384 : index
    %225 = vector.load %arg9[%224, %c384_109] : memref<64x512xf32, #tpu.memory_space<vmem>>, vector<8x128xf32>
    %c0_110 = arith.constant 0 : index
    %c384_111 = arith.constant 384 : index
    %226 = vector.load %arg4[%c0_110, %c384_111] : memref<128x512xf32, #tpu.memory_space<vmem>>, vector<128x128xf32>
    %cst_112 = arith.constant dense<0.000000e+00> : vector<8x128xf32>
    %227 = tpu.matmul %190, %226, %cst_112 {dimension_numbers = #tpu.dot_dimension_numbers<[1], [0], [0], [1], [0, 0, 1, 1], [], []>} : vector<8x128xf32>, vector<128x128xf32>, vector<8x128xf32> -> vector<8x128xf32>
    %228 = arith.addf %225, %227 : vector<8x128xf32>
    %229 = arith.negf %228 : vector<8x128xf32>
    %230 = math.exp %229 : vector<8x128xf32>
    %cst_113 = arith.constant 1.000000e+00 : f32
    %231 = vector.broadcast %cst_113 : f32 to vector<8x128xf32>
    %232 = arith.addf %231, %230 : vector<8x128xf32>
    %233 = arith.divf %231, %232 : vector<8x128xf32>
    %234 = math.tanh %223 : vector<8x128xf32>
    %235 = arith.mulf %233, %234 : vector<8x128xf32>
    %236 = arith.index_cast %194 : i32 to index
    %c0_114 = arith.constant 0 : index
    %237 = vector.load %arg10[%236, %c0_114] : memref<64x128xf32, #tpu.memory_space<vmem>>, vector<8x128xf32>
    tpu.vector_store %arg10[%236, %c0_114], %235 {strides = array<i32>} : memref<64x128xf32, #tpu.memory_space<vmem>>, vector<8x128xf32>,
    %c5_i32 = arith.constant 5 : i32
    %c8_i32_115 = arith.constant 8 : i32
    %238 = arith.muli %c5_i32, %c8_i32_115 : i32
    %239 = tpu.assume_multiple %238, 8 : i32
    %240 = arith.index_cast %239 : i32 to index
    %c128_116 = arith.constant 128 : index
    %241 = vector.load %arg9[%240, %c128_116] : memref<64x512xf32, #tpu.memory_space<vmem>>, vector<8x128xf32>
    %c0_117 = arith.constant 0 : index
    %c128_118 = arith.constant 128 : index
    %242 = vector.load %arg4[%c0_117, %c128_118] : memref<128x512xf32, #tpu.memory_space<vmem>>, vector<128x128xf32>
    %cst_119 = arith.constant dense<0.000000e+00> : vector<8x128xf32>
    %243 = tpu.matmul %235, %242, %cst_119 {dimension_numbers = #tpu.dot_dimension_numbers<[1], [0], [0], [1], [0, 0, 1, 1], [], []>} : vector<8x128xf32>, vector<128x128xf32>, vector<8x128xf32> -> vector<8x128xf32>
    %244 = arith.addf %241, %243 : vector<8x128xf32>
    %245 = arith.negf %244 : vector<8x128xf32>
    %246 = math.exp %245 : vector<8x128xf32>
    %cst_120 = arith.constant 1.000000e+00 : f32
    %247 = vector.broadcast %cst_120 : f32 to vector<8x128xf32>
    %248 = arith.addf %247, %246 : vector<8x128xf32>
    %249 = arith.divf %247, %248 : vector<8x128xf32>
    %250 = arith.mulf %249, %223 : vector<8x128xf32>
    %251 = arith.index_cast %239 : i32 to index
    %c0_121 = arith.constant 0 : index
    %252 = vector.load %arg9[%251, %c0_121] : memref<64x512xf32, #tpu.memory_space<vmem>>, vector<8x128xf32>
    %c0_122 = arith.constant 0 : index
    %c0_123 = arith.constant 0 : index
    %253 = vector.load %arg4[%c0_122, %c0_123] : memref<128x512xf32, #tpu.memory_space<vmem>>, vector<128x128xf32>
    %cst_124 = arith.constant dense<0.000000e+00> : vector<8x128xf32>
    %254 = tpu.matmul %235, %253, %cst_124 {dimension_numbers = #tpu.dot_dimension_numbers<[1], [0], [0], [1], [0, 0, 1, 1], [], []>} : vector<8x128xf32>, vector<128x128xf32>, vector<8x128xf32> -> vector<8x128xf32>
    %255 = arith.addf %252, %254 : vector<8x128xf32>
    %256 = arith.negf %255 : vector<8x128xf32>
    %257 = math.exp %256 : vector<8x128xf32>
    %cst_125 = arith.constant 1.000000e+00 : f32
    %258 = vector.broadcast %cst_125 : f32 to vector<8x128xf32>
    %259 = arith.addf %258, %257 : vector<8x128xf32>
    %260 = arith.divf %258, %259 : vector<8x128xf32>
    %261 = arith.index_cast %239 : i32 to index
    %c256_126 = arith.constant 256 : index
    %262 = vector.load %arg9[%261, %c256_126] : memref<64x512xf32, #tpu.memory_space<vmem>>, vector<8x128xf32>
    %c0_127 = arith.constant 0 : index
    %c256_128 = arith.constant 256 : index
    %263 = vector.load %arg4[%c0_127, %c256_128] : memref<128x512xf32, #tpu.memory_space<vmem>>, vector<128x128xf32>
    %cst_129 = arith.constant dense<0.000000e+00> : vector<8x128xf32>
    %264 = tpu.matmul %235, %263, %cst_129 {dimension_numbers = #tpu.dot_dimension_numbers<[1], [0], [0], [1], [0, 0, 1, 1], [], []>} : vector<8x128xf32>, vector<128x128xf32>, vector<8x128xf32> -> vector<8x128xf32>
    %265 = arith.addf %262, %264 : vector<8x128xf32>
    %266 = math.tanh %265 : vector<8x128xf32>
    %267 = arith.mulf %260, %266 : vector<8x128xf32>
    %268 = arith.addf %250, %267 : vector<8x128xf32>
    %269 = arith.index_cast %239 : i32 to index
    %c384_130 = arith.constant 384 : index
    %270 = vector.load %arg9[%269, %c384_130] : memref<64x512xf32, #tpu.memory_space<vmem>>, vector<8x128xf32>
    %c0_131 = arith.constant 0 : index
    %c384_132 = arith.constant 384 : index
    %271 = vector.load %arg4[%c0_131, %c384_132] : memref<128x512xf32, #tpu.memory_space<vmem>>, vector<128x128xf32>
    %cst_133 = arith.constant dense<0.000000e+00> : vector<8x128xf32>
    %272 = tpu.matmul %235, %271, %cst_133 {dimension_numbers = #tpu.dot_dimension_numbers<[1], [0], [0], [1], [0, 0, 1, 1], [], []>} : vector<8x128xf32>, vector<128x128xf32>, vector<8x128xf32> -> vector<8x128xf32>
    %273 = arith.addf %270, %272 : vector<8x128xf32>
    %274 = arith.negf %273 : vector<8x128xf32>
    %275 = math.exp %274 : vector<8x128xf32>
    %cst_134 = arith.constant 1.000000e+00 : f32
    %276 = vector.broadcast %cst_134 : f32 to vector<8x128xf32>
    %277 = arith.addf %276, %275 : vector<8x128xf32>
    %278 = arith.divf %276, %277 : vector<8x128xf32>
    %279 = math.tanh %268 : vector<8x128xf32>
    %280 = arith.mulf %278, %279 : vector<8x128xf32>
    %281 = arith.index_cast %239 : i32 to index
    %c0_135 = arith.constant 0 : index
    %282 = vector.load %arg10[%281, %c0_135] : memref<64x128xf32, #tpu.memory_space<vmem>>, vector<8x128xf32>
    tpu.vector_store %arg10[%281, %c0_135], %280 {strides = array<i32>} : memref<64x128xf32, #tpu.memory_space<vmem>>, vector<8x128xf32>,
    %c6_i32 = arith.constant 6 : i32
    %c8_i32_136 = arith.constant 8 : i32
    %283 = arith.muli %c6_i32, %c8_i32_136 : i32
    %284 = tpu.assume_multiple %283, 8 : i32
    %285 = arith.index_cast %284 : i32 to index
    %c128_137 = arith.constant 128 : index
    %286 = vector.load %arg9[%285, %c128_137] : memref<64x512xf32, #tpu.memory_space<vmem>>, vector<8x128xf32>
    %c0_138 = arith.constant 0 : index
    %c128_139 = arith.constant 128 : index
    %287 = vector.load %arg4[%c0_138, %c128_139] : memref<128x512xf32, #tpu.memory_space<vmem>>, vector<128x128xf32>
    %cst_140 = arith.constant dense<0.000000e+00> : vector<8x128xf32>
    %288 = tpu.matmul %280, %287, %cst_140 {dimension_numbers = #tpu.dot_dimension_numbers<[1], [0], [0], [1], [0, 0, 1, 1], [], []>} : vector<8x128xf32>, vector<128x128xf32>, vector<8x128xf32> -> vector<8x128xf32>
    %289 = arith.addf %286, %288 : vector<8x128xf32>
    %290 = arith.negf %289 : vector<8x128xf32>
    %291 = math.exp %290 : vector<8x128xf32>
    %cst_141 = arith.constant 1.000000e+00 : f32
    %292 = vector.broadcast %cst_141 : f32 to vector<8x128xf32>
    %293 = arith.addf %292, %291 : vector<8x128xf32>
    %294 = arith.divf %292, %293 : vector<8x128xf32>
    %295 = arith.mulf %294, %268 : vector<8x128xf32>
    %296 = arith.index_cast %284 : i32 to index
    %c0_142 = arith.constant 0 : index
    %297 = vector.load %arg9[%296, %c0_142] : memref<64x512xf32, #tpu.memory_space<vmem>>, vector<8x128xf32>
    %c0_143 = arith.constant 0 : index
    %c0_144 = arith.constant 0 : index
    %298 = vector.load %arg4[%c0_143, %c0_144] : memref<128x512xf32, #tpu.memory_space<vmem>>, vector<128x128xf32>
    %cst_145 = arith.constant dense<0.000000e+00> : vector<8x128xf32>
    %299 = tpu.matmul %280, %298, %cst_145 {dimension_numbers = #tpu.dot_dimension_numbers<[1], [0], [0], [1], [0, 0, 1, 1], [], []>} : vector<8x128xf32>, vector<128x128xf32>, vector<8x128xf32> -> vector<8x128xf32>
    %300 = arith.addf %297, %299 : vector<8x128xf32>
    %301 = arith.negf %300 : vector<8x128xf32>
    %302 = math.exp %301 : vector<8x128xf32>
    %cst_146 = arith.constant 1.000000e+00 : f32
    %303 = vector.broadcast %cst_146 : f32 to vector<8x128xf32>
    %304 = arith.addf %303, %302 : vector<8x128xf32>
    %305 = arith.divf %303, %304 : vector<8x128xf32>
    %306 = arith.index_cast %284 : i32 to index
    %c256_147 = arith.constant 256 : index
    %307 = vector.load %arg9[%306, %c256_147] : memref<64x512xf32, #tpu.memory_space<vmem>>, vector<8x128xf32>
    %c0_148 = arith.constant 0 : index
    %c256_149 = arith.constant 256 : index
    %308 = vector.load %arg4[%c0_148, %c256_149] : memref<128x512xf32, #tpu.memory_space<vmem>>, vector<128x128xf32>
    %cst_150 = arith.constant dense<0.000000e+00> : vector<8x128xf32>
    %309 = tpu.matmul %280, %308, %cst_150 {dimension_numbers = #tpu.dot_dimension_numbers<[1], [0], [0], [1], [0, 0, 1, 1], [], []>} : vector<8x128xf32>, vector<128x128xf32>, vector<8x128xf32> -> vector<8x128xf32>
    %310 = arith.addf %307, %309 : vector<8x128xf32>
    %311 = math.tanh %310 : vector<8x128xf32>
    %312 = arith.mulf %305, %311 : vector<8x128xf32>
    %313 = arith.addf %295, %312 : vector<8x128xf32>
    %314 = arith.index_cast %284 : i32 to index
    %c384_151 = arith.constant 384 : index
    %315 = vector.load %arg9[%314, %c384_151] : memref<64x512xf32, #tpu.memory_space<vmem>>, vector<8x128xf32>
    %c0_152 = arith.constant 0 : index
    %c384_153 = arith.constant 384 : index
    %316 = vector.load %arg4[%c0_152, %c384_153] : memref<128x512xf32, #tpu.memory_space<vmem>>, vector<128x128xf32>
    %cst_154 = arith.constant dense<0.000000e+00> : vector<8x128xf32>
    %317 = tpu.matmul %280, %316, %cst_154 {dimension_numbers = #tpu.dot_dimension_numbers<[1], [0], [0], [1], [0, 0, 1, 1], [], []>} : vector<8x128xf32>, vector<128x128xf32>, vector<8x128xf32> -> vector<8x128xf32>
    %318 = arith.addf %315, %317 : vector<8x128xf32>
    %319 = arith.negf %318 : vector<8x128xf32>
    %320 = math.exp %319 : vector<8x128xf32>
    %cst_155 = arith.constant 1.000000e+00 : f32
    %321 = vector.broadcast %cst_155 : f32 to vector<8x128xf32>
    %322 = arith.addf %321, %320 : vector<8x128xf32>
    %323 = arith.divf %321, %322 : vector<8x128xf32>
    %324 = math.tanh %313 : vector<8x128xf32>
    %325 = arith.mulf %323, %324 : vector<8x128xf32>
    %326 = arith.index_cast %284 : i32 to index
    %c0_156 = arith.constant 0 : index
    %327 = vector.load %arg10[%326, %c0_156] : memref<64x128xf32, #tpu.memory_space<vmem>>, vector<8x128xf32>
    tpu.vector_store %arg10[%326, %c0_156], %325 {strides = array<i32>} : memref<64x128xf32, #tpu.memory_space<vmem>>, vector<8x128xf32>,
    %c7_i32 = arith.constant 7 : i32
    %c8_i32_157 = arith.constant 8 : i32
    %328 = arith.muli %c7_i32, %c8_i32_157 : i32
    %329 = tpu.assume_multiple %328, 8 : i32
    %330 = arith.index_cast %329 : i32 to index
    %c128_158 = arith.constant 128 : index
    %331 = vector.load %arg9[%330, %c128_158] : memref<64x512xf32, #tpu.memory_space<vmem>>, vector<8x128xf32>
    %c0_159 = arith.constant 0 : index
    %c128_160 = arith.constant 128 : index
    %332 = vector.load %arg4[%c0_159, %c128_160] : memref<128x512xf32, #tpu.memory_space<vmem>>, vector<128x128xf32>
    %cst_161 = arith.constant dense<0.000000e+00> : vector<8x128xf32>
    %333 = tpu.matmul %325, %332, %cst_161 {dimension_numbers = #tpu.dot_dimension_numbers<[1], [0], [0], [1], [0, 0, 1, 1], [], []>} : vector<8x128xf32>, vector<128x128xf32>, vector<8x128xf32> -> vector<8x128xf32>
    %334 = arith.addf %331, %333 : vector<8x128xf32>
    %335 = arith.negf %334 : vector<8x128xf32>
    %336 = math.exp %335 : vector<8x128xf32>
    %cst_162 = arith.constant 1.000000e+00 : f32
    %337 = vector.broadcast %cst_162 : f32 to vector<8x128xf32>
    %338 = arith.addf %337, %336 : vector<8x128xf32>
    %339 = arith.divf %337, %338 : vector<8x128xf32>
    %340 = arith.mulf %339, %313 : vector<8x128xf32>
    %341 = arith.index_cast %329 : i32 to index
    %c0_163 = arith.constant 0 : index
    %342 = vector.load %arg9[%341, %c0_163] : memref<64x512xf32, #tpu.memory_space<vmem>>, vector<8x128xf32>
    %c0_164 = arith.constant 0 : index
    %c0_165 = arith.constant 0 : index
    %343 = vector.load %arg4[%c0_164, %c0_165] : memref<128x512xf32, #tpu.memory_space<vmem>>, vector<128x128xf32>
    %cst_166 = arith.constant dense<0.000000e+00> : vector<8x128xf32>
    %344 = tpu.matmul %325, %343, %cst_166 {dimension_numbers = #tpu.dot_dimension_numbers<[1], [0], [0], [1], [0, 0, 1, 1], [], []>} : vector<8x128xf32>, vector<128x128xf32>, vector<8x128xf32> -> vector<8x128xf32>
    %345 = arith.addf %342, %344 : vector<8x128xf32>
    %346 = arith.negf %345 : vector<8x128xf32>
    %347 = math.exp %346 : vector<8x128xf32>
    %cst_167 = arith.constant 1.000000e+00 : f32
    %348 = vector.broadcast %cst_167 : f32 to vector<8x128xf32>
    %349 = arith.addf %348, %347 : vector<8x128xf32>
    %350 = arith.divf %348, %349 : vector<8x128xf32>
    %351 = arith.index_cast %329 : i32 to index
    %c256_168 = arith.constant 256 : index
    %352 = vector.load %arg9[%351, %c256_168] : memref<64x512xf32, #tpu.memory_space<vmem>>, vector<8x128xf32>
    %c0_169 = arith.constant 0 : index
    %c256_170 = arith.constant 256 : index
    %353 = vector.load %arg4[%c0_169, %c256_170] : memref<128x512xf32, #tpu.memory_space<vmem>>, vector<128x128xf32>
    %cst_171 = arith.constant dense<0.000000e+00> : vector<8x128xf32>
    %354 = tpu.matmul %325, %353, %cst_171 {dimension_numbers = #tpu.dot_dimension_numbers<[1], [0], [0], [1], [0, 0, 1, 1], [], []>} : vector<8x128xf32>, vector<128x128xf32>, vector<8x128xf32> -> vector<8x128xf32>
    %355 = arith.addf %352, %354 : vector<8x128xf32>
    %356 = math.tanh %355 : vector<8x128xf32>
    %357 = arith.mulf %350, %356 : vector<8x128xf32>
    %358 = arith.addf %340, %357 : vector<8x128xf32>
    %359 = arith.index_cast %329 : i32 to index
    %c384_172 = arith.constant 384 : index
    %360 = vector.load %arg9[%359, %c384_172] : memref<64x512xf32, #tpu.memory_space<vmem>>, vector<8x128xf32>
    %c0_173 = arith.constant 0 : index
    %c384_174 = arith.constant 384 : index
    %361 = vector.load %arg4[%c0_173, %c384_174] : memref<128x512xf32, #tpu.memory_space<vmem>>, vector<128x128xf32>
    %cst_175 = arith.constant dense<0.000000e+00> : vector<8x128xf32>
    %362 = tpu.matmul %325, %361, %cst_175 {dimension_numbers = #tpu.dot_dimension_numbers<[1], [0], [0], [1], [0, 0, 1, 1], [], []>} : vector<8x128xf32>, vector<128x128xf32>, vector<8x128xf32> -> vector<8x128xf32>
    %363 = arith.addf %360, %362 : vector<8x128xf32>
    %364 = arith.negf %363 : vector<8x128xf32>
    %365 = math.exp %364 : vector<8x128xf32>
    %cst_176 = arith.constant 1.000000e+00 : f32
    %366 = vector.broadcast %cst_176 : f32 to vector<8x128xf32>
    %367 = arith.addf %366, %365 : vector<8x128xf32>
    %368 = arith.divf %366, %367 : vector<8x128xf32>
    %369 = math.tanh %358 : vector<8x128xf32>
    %370 = arith.mulf %368, %369 : vector<8x128xf32>
    %371 = arith.index_cast %329 : i32 to index
    %c0_177 = arith.constant 0 : index
    %372 = vector.load %arg10[%371, %c0_177] : memref<64x128xf32, #tpu.memory_space<vmem>>, vector<8x128xf32>
    tpu.vector_store %arg10[%371, %c0_177], %370 {strides = array<i32>} : memref<64x128xf32, #tpu.memory_space<vmem>>, vector<8x128xf32>,
    %c8_i32_178 = arith.constant 8 : i32
    %c0_179 = arith.constant 0 : index
    %c0_180 = arith.constant 0 : index
    %373 = vector.load %arg11[%c0_179, %c0_180] : memref<8x128xf32, #tpu.memory_space<vmem>>, vector<8x128xf32>
    tpu.vector_store %arg11[%c0_179, %c0_180], %370 {strides = array<i32>} : memref<8x128xf32, #tpu.memory_space<vmem>>, vector<8x128xf32>,
    %c0_181 = arith.constant 0 : index
    %c0_182 = arith.constant 0 : index
    %374 = vector.load %arg12[%c0_181, %c0_182] : memref<8x128xf32, #tpu.memory_space<vmem>>, vector<8x128xf32>
    tpu.vector_store %arg12[%c0_181, %c0_182], %358 {strides = array<i32>} : memref<8x128xf32, #tpu.memory_space<vmem>>, vector<8x128xf32>,
    %c0_183 = arith.constant 0 : index
    %c0_184 = arith.constant 0 : index
    %375 = vector.load %arg10[%c0_183, %c0_184] : memref<64x128xf32, #tpu.memory_space<vmem>>, vector<64x128xf32>
    %c0_185 = arith.constant 0 : index
    %c0_186 = arith.constant 0 : index
    %376 = vector.load %arg6[%c0_185, %c0_186] : memref<128x128xf32, #tpu.memory_space<vmem>>, vector<128x128xf32>
    %cst_187 = arith.constant dense<0.000000e+00> : vector<64x128xf32>
    %377 = tpu.matmul %375, %376, %cst_187 {dimension_numbers = #tpu.dot_dimension_numbers<[1], [0], [0], [1], [0, 0, 1, 1], [], []>} : vector<64x128xf32>, vector<128x128xf32>, vector<64x128xf32> -> vector<64x128xf32>
    %c0_188 = arith.constant 0 : index
    %c0_189 = arith.constant 0 : index
    %378 = vector.load %arg7[%c0_188, %c0_189] : memref<1x128xf32, #tpu.memory_space<vmem>>, vector<1x128xf32>
    %379 = vector.broadcast %378 : vector<1x128xf32> to vector<64x128xf32>
    %380 = arith.addf %377, %379 : vector<64x128xf32>
    %381 = math.tanh %380 : vector<64x128xf32>
    %c0_190 = arith.constant 0 : index
    %c0_191 = arith.constant 0 : index
    %c0_192 = arith.constant 0 : index
    %382 = vector.load %arg8[%c0_190, %c0_191, %c0_192] : memref<1x64x128xf32, #tpu.memory_space<vmem>>, vector<1x64x128xf32>
    %383 = vector.shape_cast %382 : vector<1x64x128xf32> to vector<64x128xf32>
    %384 = vector.shape_cast %381 : vector<64x128xf32> to vector<1x64x128xf32>
    tpu.vector_store %arg8[%c0_190, %c0_191, %c0_192], %384 {strides = array<i32>} : memref<1x64x128xf32, #tpu.memory_space<vmem>>, vector<1x64x128xf32>,
    return
  }
  func.func @transform_0(%arg0: i32, %arg1: i32) -> (i32, i32, i32) {
    %c0_i32 = arith.constant 0 : i32
    %c0_i32_0 = arith.constant 0 : i32
    return %arg0, %arg1, %c0_i32 : i32, i32, i32
  }
  func.func @transform_1(%arg0: i32, %arg1: i32) -> (i32, i32) {
    %c0_i32 = arith.constant 0 : i32
    %c0_i32_0 = arith.constant 0 : i32
    %c0_i32_1 = arith.constant 0 : i32
    return %c0_i32, %c0_i32_0 : i32, i32
  }
  func.func @transform_2(%arg0: i32, %arg1: i32) -> (i32, i32) {
    %c0_i32 = arith.constant 0 : i32
    %c0_i32_0 = arith.constant 0 : i32
    %c0_i32_1 = arith.constant 0 : i32
    return %c0_i32, %c0_i32_0 : i32, i32
  }
  func.func @transform_3(%arg0: i32, %arg1: i32) -> (i32, i32) {
    %c0_i32 = arith.constant 0 : i32
    %c0_i32_0 = arith.constant 0 : i32
    %c0_i32_1 = arith.constant 0 : i32
    return %c0_i32, %c0_i32_0 : i32, i32
  }
  func.func @transform_4(%arg0: i32, %arg1: i32) -> (i32, i32) {
    %c0_i32 = arith.constant 0 : i32
    %c0_i32_0 = arith.constant 0 : i32
    %c0_i32_1 = arith.constant 0 : i32
    return %c0_i32, %c0_i32_0 : i32, i32
  }
  func.func @transform_5(%arg0: i32, %arg1: i32) -> (i32, i32) {
    %c0_i32 = arith.constant 0 : i32
    %c0_i32_0 = arith.constant 0 : i32
    %c0_i32_1 = arith.constant 0 : i32
    return %c0_i32, %c0_i32_0 : i32, i32
  }
  func.func @transform_6(%arg0: i32, %arg1: i32) -> (i32, i32, i32) {
    %c0_i32 = arith.constant 0 : i32
    %c0_i32_0 = arith.constant 0 : i32
    return %arg0, %arg1, %c0_i32 : i32, i32, i32
  }
}

</mosaic_0001>

<llo_original>
// kernel: tpu_custom_call.1
$region0: #{tpu_custom_call.1}
  #allocation0 [shape = 'u32[]', space=smem, size = 0x4, offset = 0x4, fixed_abs, tag = 'smem constant byte address 0x4 - core index']
  #allocation1 [shape = 'u32[144,128]{1,0:T(1,128)}', space=vmem, size = 0x12000, scoped, tag = 'internal scratch']
  #allocation2 [shape = 'f32[64,512]{1,0:T(8,128)}', space=vmem, size = 0x20000, scoped, tag = 'scratch operand']
  #allocation3 [shape = 'f32[64,128]{1,0:T(8,128)}', space=vmem, size = 0x8000, scoped, tag = 'scratch operand']
  #allocation4 [shape = 'f32[8,128]{1,0:T(8,128)}', space=vmem, size = 0x1000, scoped, tag = 'scratch operand']
  #allocation5 [shape = 'f32[8,128]{1,0:T(8,128)}', space=vmem, size = 0x1000, scoped, tag = 'scratch operand']
  %s0 = inlined_call_operand.vmem [shape: f32[1,64,8], index: 0, kind: input, shape index: {}]
  %s1 = inlined_call_operand.vmem [shape: f32[8,512], index: 1, kind: input, shape index: {}]
  %s2 = inlined_call_operand.hbm [shape: f32[128,512], index: 2, kind: input, shape index: {}]
  %s3 = inlined_call_operand.vmem [shape: f32[1,512], index: 3, kind: input, shape index: {}]
  %s4 = inlined_call_operand.hbm [shape: f32[128,128], index: 4, kind: input, shape index: {}]
  %s5 = inlined_call_operand.vmem [shape: f32[1,128], index: 5, kind: input, shape index: {}]
  %s6 = inlined_call_operand.hbm [shape: f32[1,64,128], index: 6, kind: output, shape index: {}]
  %s7 = sld [smem:[#allocation0]]
  $region46: #{tpu_custom_call.1} parent=0
    _
  %s9 = ssub.s32 1, %s7
  %s10 = scalar_select 0, %s9, %s7
  $region1: #{tpu_custom_call.1} parent=0
    #allocation6 [shape = 'u8[262144]{0}', space=vmem, size = 0x40000, scoped, tag = 'input window, operand 2, single buffered']
    #allocation7 [shape = 's32[1]{0}', space=sflag, size = 0x4, scoped, tag = 'scoped memory for tpu_custom_call.1']
    #allocation8 [shape = 's32[1]{0}', space=sflag, size = 0x4, scoped, tag = 'scoped memory for tpu_custom_call.1']
    #allocation9 [shape = 'u8[65536]{0}', space=vmem, size = 0x10000, scoped, tag = 'input window, operand 4, single buffered']
    #allocation10 [shape = 's32[1]{0}', space=sflag, size = 0x4, scoped, tag = 'scoped memory for tpu_custom_call.1']
    #allocation11 [shape = 'u8[32768]{0}', space=vmem, size = 0x8000, scoped, tag = 'output window, operand 0, single buffered']
    %11 = vsyncpa [#allocation7], 0
    %12 = vsyncpa [#allocation10], 0
    %13 = vsyncpa [#allocation8], 0
    // Predicated region
    $region2: #{tpu_custom_call.1} parent=1 // pred_check
      _
    $region3: #{tpu_custom_call.1} parent=1 // pred_check_branch
      %15 = sbr.rel (0) target = $region5
    $region4: #{tpu_custom_call.1} parent=1 // pred_region
      _
    $region5: #{tpu_custom_call.1} parent=1 // pred_fallthru
      _
    // Predicated region
    $region6: #{tpu_custom_call.1} parent=1 // pred_check
      _
    $region7: #{tpu_custom_call.1} parent=1 // pred_check_branch
      %17 = sbr.rel (0) target = $region9
    $region8: #{tpu_custom_call.1} parent=1 // pred_region
      _
    $region9: #{tpu_custom_call.1} parent=1 // pred_fallthru
      _
    // Predicated region
    $region10: #{tpu_custom_call.1} parent=1 // pred_check
      _
    $region11: #{tpu_custom_call.1} parent=1 // pred_check_branch
      %19 = sbr.rel (0) target = $region13
    $region12: #{tpu_custom_call.1} parent=1 // pred_region
      %s21 = ssub.s32 8192, 8192
      %22 = vsyncadd [#allocation7], %s21
      %s23 = sshll.u32 [#allocation6], 4
      %s24 = int_to_ptr.vmem [resolvable:$true] %s23
      %29 = dma.hbm_to_vmem [thread:$0]  %s2, 8192, %s24, [#allocation7], 512, 512, 32
    $region13: #{tpu_custom_call.1} parent=1 // pred_fallthru
      _
    // Predicated region
    $region14: #{tpu_custom_call.1} parent=1 // pred_check
      _
    $region15: #{tpu_custom_call.1} parent=1 // pred_check_branch
      %31 = sbr.rel (0) target = $region17
    $region16: #{tpu_custom_call.1} parent=1 // pred_region
      _
    $region17: #{tpu_custom_call.1} parent=1 // pred_fallthru
      _
    // Predicated region
    $region18: #{tpu_custom_call.1} parent=1 // pred_check
      _
    $region19: #{tpu_custom_call.1} parent=1 // pred_check_branch
      %33 = sbr.rel (0) target = $region21
    $region20: #{tpu_custom_call.1} parent=1 // pred_region
      %s35 = ssub.s32 2048, 2048
      %36 = vsyncadd [#allocation10], %s35
      %s37 = sshll.u32 [#allocation9], 4
      %s38 = int_to_ptr.vmem [resolvable:$true] %s37
      %43 = dma.hbm_to_vmem [thread:$0]  %s4, 2048, %s38, [#allocation10], 128, 128, 8
    $region21: #{tpu_custom_call.1} parent=1 // pred_fallthru
      _
    // Predicated region
    $region22: #{tpu_custom_call.1} parent=1 // pred_check
      _
    $region23: #{tpu_custom_call.1} parent=1 // pred_check_branch
      %45 = sbr.rel (0) target = $region25
    $region24: #{tpu_custom_call.1} parent=1 // pred_region
      _
    $region25: #{tpu_custom_call.1} parent=1 // pred_fallthru
      _
    // Predicated region
    $region26: #{tpu_custom_call.1} parent=1 // pred_check
      _
    $region27: #{tpu_custom_call.1} parent=1 // pred_check_branch
      %47 = sbr.rel (0) target = $region29
    $region28: #{tpu_custom_call.1} parent=1 // pred_region
      %48 = dma.done [#allocation7], 8192
    $region29: #{tpu_custom_call.1} parent=1 // pred_fallthru
      _
    // Predicated region
    $region30: #{tpu_custom_call.1} parent=1 // pred_check
      _
    $region31: #{tpu_custom_call.1} parent=1 // pred_check_branch
      %50 = sbr.rel (0) target = $region33
    $region32: #{tpu_custom_call.1} parent=1 // pred_region
      %51 = dma.done [#allocation10], 2048
    $region33: #{tpu_custom_call.1} parent=1 // pred_fallthru
      _
    %p52 = scmp.eq.s32.totalorder 0, 0
    // Predicated region
    $region34: #{tpu_custom_call.1} parent=1 // pred_check
      %p53 = pneg %p52
    $region35: #{tpu_custom_call.1} parent=1 // pred_check_branch
      %55 = sbr.rel (%p53) target = $region37
    $region36: #{tpu_custom_call.1} parent=1 // pred_region
      %56 = vst [vmem:[#allocation4] sm:$0xff] 0.0
      %57 = vst [vmem:[#allocation5] sm:$0xff] 0.0
    $region37: #{tpu_custom_call.1} parent=1 // pred_fallthru
      _
    %v58 = vld [vmem:[%s0] sm:$0xff]
    %v59 = vld [vmem:[%s0 + $0x8] sm:$0xff]
    %v60 = vld [vmem:[%s0 + $0x10] sm:$0xff]
    %v61 = vld [vmem:[%s0 + $0x18] sm:$0xff]
    %v62 = vld [vmem:[%s0 + $0x20] sm:$0xff]
    %v63 = vld [vmem:[%s0 + $0x28] sm:$0xff]
    %v64 = vld [vmem:[%s0 + $0x30] sm:$0xff]
    %v65 = vld [vmem:[%s0 + $0x38] sm:$0xff]
    %v66 = vld [vmem:[%s1] sm:$0xff]
    %v67 = vld [vmem:[%s1 + $0x8] sm:$0xff]
    %v68 = vld [vmem:[%s1 + $0x10] sm:$0xff]
    %v69 = vld [vmem:[%s1 + $0x18] sm:$0xff]
    %v70 = vld [vmem:[%s3] sm:$0xf]
    %v72 = vlaneseq
    %v73 = vshrl.u32 %v72, 7
    %v74 = vsub.s32 0, %v73
    %v75 = vrot.slane %v70, %v74
    %v76 = vlaneseq
    %v77 = vshrl.u32 %v76, 7
    %v78 = vsub.s32 1, %v77
    %v79 = vrot.slane %v70, %v78
    %v80 = vlaneseq
    %v81 = vshrl.u32 %v80, 7
    %v82 = vsub.s32 2, %v81
    %v83 = vrot.slane %v70, %v82
    %v84 = vlaneseq
    %v85 = vshrl.u32 %v84, 7
    %v86 = vsub.s32 3, %v85
    %v87 = vrot.slane %v70, %v86
    %vm92 = vcmask 64512
    %v94 = vsel %vm92, %v58, 0
    %v97 = vsel %vm92, %v59, 0
    %v100 = vsel %vm92, %v60, 0
    %v103 = vsel %vm92, %v61, 0
    %v106 = vsel %vm92, %v62, 0
    %v109 = vsel %vm92, %v63, 0
    %v112 = vsel %vm92, %v64, 0
    %v115 = vsel %vm92, %v65, 0
    %117 = vmatprep.subr.mxu0 %v67
    %118 = vmatpush1.msra.mxu0 %v66
    %119 = vmatprep.subr.mxu0 0.0
    %120 = vmatpush1.msra.mxu0 0.0
    %121 = vmatprep.subr.mxu0 0.0
    %122 = vmatpush1.msra.mxu0 0.0
    %123 = vmatprep.subr.mxu0 0.0
    %124 = vmatpush1.msra.mxu0 0.0
    %125 = vmatprep.subr.mxu0 0.0
    %126 = vmatpush1.msra.mxu0 0.0
    %127 = vmatprep.subr.mxu0 0.0
    %128 = vmatpush1.msra.mxu0 0.0
    %129 = vmatprep.subr.mxu0 0.0
    %130 = vmatpush1.msra.mxu0 0.0
    %131 = vmatprep.subr.mxu0 0.0
    %132 = vmatpush1.msra.mxu0 0.0
    %133 = vmatprep.subr.mxu0 0.0
    %134 = vmatpush1.msra.mxu0 0.0
    %135 = vmatprep.subr.mxu0 0.0
    %136 = vmatpush1.msra.mxu0 0.0
    %137 = vmatprep.subr.mxu0 0.0
    %138 = vmatpush1.msra.mxu0 0.0
    %139 = vmatprep.subr.mxu0 0.0
    %140 = vmatpush1.msra.mxu0 0.0
    %141 = vmatprep.subr.mxu0 0.0
    %142 = vmatpush1.msra.mxu0 0.0
    %143 = vmatprep.subr.mxu0 0.0
    %144 = vmatpush1.msra.mxu0 0.0
    %145 = vmatprep.subr.mxu0 0.0
    %146 = vmatpush1.msra.mxu0 0.0
    %147 = vmatprep.subr.mxu0 0.0
    %148 = vmatpush1.msra.mxu0 0.0
    %149 = vmatprep.subr.mxu0 0.0
    %150 = vmatpush1.msra.mxu0 0.0
    %151 = vmatprep.subr.mxu0 0.0
    %152 = vmatpush1.msra.mxu0 0.0
    %153 = vmatprep.subr.mxu0 0.0
    %154 = vmatpush1.msra.mxu0 0.0
    %155 = vmatprep.subr.mxu0 0.0
    %156 = vmatpush1.msra.mxu0 0.0
    %157 = vmatprep.subr.mxu0 0.0
    %158 = vmatpush1.msra.mxu0 0.0
    %159 = vmatprep.subr.mxu0 0.0
    %160 = vmatpush1.msra.mxu0 0.0
    %161 = vmatprep.subr.mxu0 0.0
    %162 = vmatpush1.msra.mxu0 0.0
    %163 = vmatprep.subr.mxu0 0.0
    %164 = vmatpush1.msra.mxu0 0.0
    %165 = vmatprep.subr.mxu0 0.0
    %166 = vmatpush1.msra.mxu0 0.0
    %167 = vmatprep.subr.mxu0 0.0
    %168 = vmatpush1.msra.mxu0 0.0
    %169 = vmatprep.subr.mxu0 0.0
    %170 = vmatpush1.msra.mxu0 0.0
    %171 = vmatprep.subr.mxu0 0.0
    %172 = vmatpush1.msra.mxu0 0.0
    %173 = vmatprep.subr.mxu0 0.0
    %174 = vmatpush1.msra.mxu0 0.0
    %175 = vmatprep.subr.mxu0 0.0
    %176 = vmatpush1.msra.mxu0 0.0
    %177 = vmatprep.subr.mxu0 0.0
    %178 = vmatpush1.msra.mxu0 0.0
    %179 = vmatprep.subr.mxu0 0.0
    %180 = vmatpush1.msra.mxu0 0.0
    %181 = vmatprep.mubr.f32.mxu0 0.0
    %182 = vmatmul.mubr.f32.gmra.mrb[0].mxu0 %v94
    %v183 = vpop.f32.mrb[0].mxu0
    %v184 = vadd.f32 %v75, %v183
    %v185 = vpop.f32.mrb[0].mxu0
    %v186 = vadd.f32 %v79, %v185
    %187 = vmatprep.mubr.f32.mxu0 0.0
    %188 = vmatmul.mubr.f32.gmra.mrb[0].mxu0 %v97
    %v189 = vpop.f32.mrb[0].mxu0
    %v190 = vadd.f32 %v75, %v189
    %v191 = vpop.f32.mrb[0].mxu0
    %v192 = vadd.f32 %v79, %v191
    %193 = vmatprep.mubr.f32.mxu0 0.0
    %194 = vmatmul.mubr.f32.gmra.mrb[0].mxu0 %v100
    %v195 = vpop.f32.mrb[0].mxu0
    %v196 = vadd.f32 %v75, %v195
    %v197 = vpop.f32.mrb[0].mxu0
    %v198 = vadd.f32 %v79, %v197
    %199 = vmatprep.mubr.f32.mxu0 0.0
    %200 = vmatmul.mubr.f32.gmra.mrb[0].mxu0 %v103
    %v201 = vpop.f32.mrb[0].mxu0
    %v202 = vadd.f32 %v75, %v201
    %v203 = vpop.f32.mrb[0].mxu0
    %v204 = vadd.f32 %v79, %v203
    %205 = vmatprep.mubr.f32.mxu0 0.0
    %206 = vmatmul.mubr.f32.gmra.mrb[0].mxu0 %v106
    %v207 = vpop.f32.mrb[0].mxu0
    %v208 = vadd.f32 %v75, %v207
    %v209 = vpop.f32.mrb[0].mxu0
    %v210 = vadd.f32 %v79, %v209
    %211 = vmatprep.mubr.f32.mxu0 0.0
    %212 = vmatmul.mubr.f32.gmra.mrb[0].mxu0 %v109
    %v213 = vpop.f32.mrb[0].mxu0
    %v214 = vadd.f32 %v75, %v213
    %v215 = vpop.f32.mrb[0].mxu0
    %v216 = vadd.f32 %v79, %v215
    %217 = vmatprep.mubr.f32.mxu0 0.0
    %218 = vmatmul.mubr.f32.gmra.mrb[0].mxu0 %v112
    %v219 = vpop.f32.mrb[0].mxu0
    %v220 = vadd.f32 %v75, %v219
    %v221 = vpop.f32.mrb[0].mxu0
    %v222 = vadd.f32 %v79, %v221
    %223 = vmatprep.mubr.f32.mxu0 0.0
    %224 = vmatmul.mubr.f32.gmra.mrb[0].mxu0 %v115
    %v225 = vpop.f32.mrb[0].mxu0
    %v226 = vadd.f32 %v75, %v225
    %v227 = vpop.f32.mrb[0].mxu0
    %v228 = vadd.f32 %v79, %v227
    %229 = vdwg.mxu0
    %230 = vmatprep.subr.mxu0 %v69
    %231 = vmatpush1.msra.mxu0 %v68
    %232 = vmatprep.subr.mxu0 0.0
    %233 = vmatpush1.msra.mxu0 0.0
    %234 = vmatprep.subr.mxu0 0.0
    %235 = vmatpush1.msra.mxu0 0.0
    %236 = vmatprep.subr.mxu0 0.0
    %237 = vmatpush1.msra.mxu0 0.0
    %238 = vmatprep.subr.mxu0 0.0
    %239 = vmatpush1.msra.mxu0 0.0
    %240 = vmatprep.subr.mxu0 0.0
    %241 = vmatpush1.msra.mxu0 0.0
    %242 = vmatprep.subr.mxu0 0.0
    %243 = vmatpush1.msra.mxu0 0.0
    %244 = vmatprep.subr.mxu0 0.0
    %245 = vmatpush1.msra.mxu0 0.0
    %246 = vmatprep.subr.mxu0 0.0
    %247 = vmatpush1.msra.mxu0 0.0
    %248 = vmatprep.subr.mxu0 0.0
    %249 = vmatpush1.msra.mxu0 0.0
    %250 = vmatprep.subr.mxu0 0.0
    %251 = vmatpush1.msra.mxu0 0.0
    %252 = vmatprep.subr.mxu0 0.0
    %253 = vmatpush1.msra.mxu0 0.0
    %254 = vmatprep.subr.mxu0 0.0
    %255 = vmatpush1.msra.mxu0 0.0
    %256 = vmatprep.subr.mxu0 0.0
    %257 = vmatpush1.msra.mxu0 0.0
    %258 = vmatprep.subr.mxu0 0.0
    %259 = vmatpush1.msra.mxu0 0.0
    %260 = vmatprep.subr.mxu0 0.0
    %261 = vmatpush1.msra.mxu0 0.0
    %262 = vmatprep.subr.mxu0 0.0
    %263 = vmatpush1.msra.mxu0 0.0
    %264 = vmatprep.subr.mxu0 0.0
    %265 = vmatpush1.msra.mxu0 0.0
    %266 = vmatprep.subr.mxu0 0.0
    %267 = vmatpush1.msra.mxu0 0.0
    %268 = vmatprep.subr.mxu0 0.0
    %269 = vmatpush1.msra.mxu0 0.0
    %270 = vmatprep.subr.mxu0 0.0
    %271 = vmatpush1.msra.mxu0 0.0
    %272 = vmatprep.subr.mxu0 0.0
    %273 = vmatpush1.msra.mxu0 0.0
    %274 = vmatprep.subr.mxu0 0.0
    %275 = vmatpush1.msra.mxu0 0.0
    %276 = vmatprep.subr.mxu0 0.0
    %277 = vmatpush1.msra.mxu0 0.0
    %278 = vmatprep.subr.mxu0 0.0
    %279 = vmatpush1.msra.mxu0 0.0
    %280 = vmatprep.subr.mxu0 0.0
    %281 = vmatpush1.msra.mxu0 0.0
    %282 = vmatprep.subr.mxu0 0.0
    %283 = vmatpush1.msra.mxu0 0.0
    %284 = vmatprep.subr.mxu0 0.0
    %285 = vmatpush1.msra.mxu0 0.0
    %286 = vmatprep.subr.mxu0 0.0
    %287 = vmatpush1.msra.mxu0 0.0
    %288 = vmatprep.subr.mxu0 0.0
    %289 = vmatpush1.msra.mxu0 0.0
    %290 = vmatprep.subr.mxu0 0.0
    %291 = vmatpush1.msra.mxu0 0.0
    %292 = vmatprep.subr.mxu0 0.0
    %293 = vmatpush1.msra.mxu0 0.0
    %294 = vmatprep.mubr.f32.mxu0 0.0
    %295 = vmatmul.mubr.f32.gmra.mrb[0].mxu0 %v94
    %v296 = vpop.f32.mrb[0].mxu0
    %v297 = vadd.f32 %v83, %v296
    %v298 = vpop.f32.mrb[0].mxu0
    %v299 = vadd.f32 %v87, %v298
    %300 = vmatprep.mubr.f32.mxu0 0.0
    %301 = vmatmul.mubr.f32.gmra.mrb[0].mxu0 %v97
    %v302 = vpop.f32.mrb[0].mxu0
    %v303 = vadd.f32 %v83, %v302
    %v304 = vpop.f32.mrb[0].mxu0
    %v305 = vadd.f32 %v87, %v304
    %306 = vmatprep.mubr.f32.mxu0 0.0
    %307 = vmatmul.mubr.f32.gmra.mrb[0].mxu0 %v100
    %v308 = vpop.f32.mrb[0].mxu0
    %v309 = vadd.f32 %v83, %v308
    %v310 = vpop.f32.mrb[0].mxu0
    %v311 = vadd.f32 %v87, %v310
    %312 = vmatprep.mubr.f32.mxu0 0.0
    %313 = vmatmul.mubr.f32.gmra.mrb[0].mxu0 %v103
    %v314 = vpop.f32.mrb[0].mxu0
    %v315 = vadd.f32 %v83, %v314
    %v316 = vpop.f32.mrb[0].mxu0
    %v317 = vadd.f32 %v87, %v316
    %318 = vmatprep.mubr.f32.mxu0 0.0
    %319 = vmatmul.mubr.f32.gmra.mrb[0].mxu0 %v106
    %v320 = vpop.f32.mrb[0].mxu0
    %v321 = vadd.f32 %v83, %v320
    %v322 = vpop.f32.mrb[0].mxu0
    %v323 = vadd.f32 %v87, %v322
    %324 = vmatprep.mubr.f32.mxu0 0.0
    %325 = vmatmul.mubr.f32.gmra.mrb[0].mxu0 %v109
    %v326 = vpop.f32.mrb[0].mxu0
    %v327 = vadd.f32 %v83, %v326
    %v328 = vpop.f32.mrb[0].mxu0
    %v329 = vadd.f32 %v87, %v328
    %330 = vmatprep.mubr.f32.mxu0 0.0
    %331 = vmatmul.mubr.f32.gmra.mrb[0].mxu0 %v112
    %v332 = vpop.f32.mrb[0].mxu0
    %v333 = vadd.f32 %v83, %v332
    %v334 = vpop.f32.mrb[0].mxu0
    %v335 = vadd.f32 %v87, %v334
    %336 = vmatprep.mubr.f32.mxu0 0.0
    %337 = vmatmul.mubr.f32.gmra.mrb[0].mxu0 %v115
    %v338 = vpop.f32.mrb[0].mxu0
    %v339 = vadd.f32 %v83, %v338
    %v340 = vpop.f32.mrb[0].mxu0
    %v341 = vadd.f32 %v87, %v340
    %342 = vdwg.mxu0
    %343 = vst [vmem:[#allocation2] sm:$0xff] %v184
    %344 = vst [vmem:[#allocation2 + $0x8] sm:$0xff] %v186
    %345 = vst [vmem:[#allocation2 + $0x10] sm:$0xff] %v297
    %346 = vst [vmem:[#allocation2 + $0x18] sm:$0xff] %v299
    %347 = vst [vmem:[#allocation2 + $0x20] sm:$0xff] %v190
    %348 = vst [vmem:[#allocation2 + $0x28] sm:$0xff] %v192
    %349 = vst [vmem:[#allocation2 + $0x30] sm:$0xff] %v303
    %350 = vst [vmem:[#allocation2 + $0x38] sm:$0xff] %v305
    %351 = vst [vmem:[#allocation2 + $0x40] sm:$0xff] %v196
    %352 = vst [vmem:[#allocation2 + $0x48] sm:$0xff] %v198
    %353 = vst [vmem:[#allocation2 + $0x50] sm:$0xff] %v309
    %354 = vst [vmem:[#allocation2 + $0x58] sm:$0xff] %v311
    %355 = vst [vmem:[#allocation2 + $0x60] sm:$0xff] %v202
    %356 = vst [vmem:[#allocation2 + $0x68] sm:$0xff] %v204
    %357 = vst [vmem:[#allocation2 + $0x70] sm:$0xff] %v315
    %358 = vst [vmem:[#allocation2 + $0x78] sm:$0xff] %v317
    %359 = vst [vmem:[#allocation2 + $0x80] sm:$0xff] %v208
    %360 = vst [vmem:[#allocation2 + $0x88] sm:$0xff] %v210
    %361 = vst [vmem:[#allocation2 + $0x90] sm:$0xff] %v321
    %362 = vst [vmem:[#allocation2 + $0x98] sm:$0xff] %v323
    %363 = vst [vmem:[#allocation2 + $0xa0] sm:$0xff] %v214
    %364 = vst [vmem:[#allocation2 + $0xa8] sm:$0xff] %v216
    %365 = vst [vmem:[#allocation2 + $0xb0] sm:$0xff] %v327
    %366 = vst [vmem:[#allocation2 + $0xb8] sm:$0xff] %v329
    %367 = vst [vmem:[#allocation2 + $0xc0] sm:$0xff] %v220
    %368 = vst [vmem:[#allocation2 + $0xc8] sm:$0xff] %v222
    %369 = vst [vmem:[#allocation2 + $0xd0] sm:$0xff] %v333
    %370 = vst [vmem:[#allocation2 + $0xd8] sm:$0xff] %v335
    %371 = vst [vmem:[#allocation2 + $0xe0] sm:$0xff] %v226
    %372 = vst [vmem:[#allocation2 + $0xe8] sm:$0xff] %v228
    %373 = vst [vmem:[#allocation2 + $0xf0] sm:$0xff] %v339
    %374 = vst [vmem:[#allocation2 + $0xf8] sm:$0xff] %v341
    %v375 = vld [vmem:[#allocation4] sm:$0xff]
    %v376 = vld [vmem:[#allocation5] sm:$0xff]
    %s377 = smul.u32 0, 4
    %s378 = smul.addr %s377, 8
    %s379 = scalar_lea.vmem [#allocation2], %s378
    %v380 = vld [vmem:[%s379 + $0x8] sm:$0xff]
    %v381 = vld [vmem:[#allocation6 + $0x8] sm:$0xff]
    %v382 = vld [vmem:[#allocation6 + $0x28] sm:$0xff]
    %v383 = vld [vmem:[#allocation6 + $0x48] sm:$0xff]
    %v384 = vld [vmem:[#allocation6 + $0x68] sm:$0xff]
    %v385 = vld [vmem:[#allocation6 + $0x88] sm:$0xff]
    %v386 = vld [vmem:[#allocation6 + $0xa8] sm:$0xff]
    %v387 = vld [vmem:[#allocation6 + $0xc8] sm:$0xff]
    %v388 = vld [vmem:[#allocation6 + $0xe8] sm:$0xff]
    %v389 = vld [vmem:[#allocation6 + $0x108] sm:$0xff]
    %v390 = vld [vmem:[#allocation6 + $0x128] sm:$0xff]
    %v391 = vld [vmem:[#allocation6 + $0x148] sm:$0xff]
    %v392 = vld [vmem:[#allocation6 + $0x168] sm:$0xff]
    %v393 = vld [vmem:[#allocation6 + $0x188] sm:$0xff]
    %v394 = vld [vmem:[#allocation6 + $0x1a8] sm:$0xff]
    %v395 = vld [vmem:[#allocation6 + $0x1c8] sm:$0xff]
    %v396 = vld [vmem:[#allocation6 + $0x1e8] sm:$0xff]
    %397 = vmatprep.subr.mxu0 0.0
    %398 = vmatpush1.msra.mxu0 %v381
    %399 = vmatprep.subr.mxu0 0.0
    %400 = vmatpush1.msra.mxu0 %v382
    %401 = vmatprep.subr.mxu0 0.0
    %402 = vmatpush1.msra.mxu0 %v383
    %403 = vmatprep.subr.mxu0 0.0
    %404 = vmatpush1.msra.mxu0 %v384
    %405 = vmatprep.subr.mxu0 0.0
    %406 = vmatpush1.msra.mxu0 %v385
    %407 = vmatprep.subr.mxu0 0.0
    %408 = vmatpush1.msra.mxu0 %v386
    %409 = vmatprep.subr.mxu0 0.0
    %410 = vmatpush1.msra.mxu0 %v387
    %411 = vmatprep.subr.mxu0 0.0
    %412 = vmatpush1.msra.mxu0 %v388
    %413 = vmatprep.subr.mxu0 0.0
    %414 = vmatpush1.msra.mxu0 %v389
    %415 = vmatprep.subr.mxu0 0.0
    %416 = vmatpush1.msra.mxu0 %v390
    %417 = vmatprep.subr.mxu0 0.0
    %418 = vmatpush1.msra.mxu0 %v391
    %419 = vmatprep.subr.mxu0 0.0
    %420 = vmatpush1.msra.mxu0 %v392
    %421 = vmatprep.subr.mxu0 0.0
    %422 = vmatpush1.msra.mxu0 %v393
    %423 = vmatprep.subr.mxu0 0.0
    %424 = vmatpush1.msra.mxu0 %v394
    %425 = vmatprep.subr.mxu0 0.0
    %426 = vmatpush1.msra.mxu0 %v395
    %427 = vmatprep.subr.mxu0 0.0
    %428 = vmatpush1.msra.mxu0 %v396
    %429 = vmatprep.subr.mxu0 0.0
    %430 = vmatpush1.msra.mxu0 0.0
    %431 = vmatprep.subr.mxu0 0.0
    %432 = vmatpush1.msra.mxu0 0.0
    %433 = vmatprep.subr.mxu0 0.0
    %434 = vmatpush1.msra.mxu0 0.0
    %435 = vmatprep.subr.mxu0 0.0
    %436 = vmatpush1.msra.mxu0 0.0
    %437 = vmatprep.subr.mxu0 0.0
    %438 = vmatpush1.msra.mxu0 0.0
    %439 = vmatprep.subr.mxu0 0.0
    %440 = vmatpush1.msra.mxu0 0.0
    %441 = vmatprep.subr.mxu0 0.0
    %442 = vmatpush1.msra.mxu0 0.0
    %443 = vmatprep.subr.mxu0 0.0
    %444 = vmatpush1.msra.mxu0 0.0
    %445 = vmatprep.subr.mxu0 0.0
    %446 = vmatpush1.msra.mxu0 0.0
    %447 = vmatprep.subr.mxu0 0.0
    %448 = vmatpush1.msra.mxu0 0.0
    %449 = vmatprep.subr.mxu0 0.0
    %450 = vmatpush1.msra.mxu0 0.0
    %451 = vmatprep.subr.mxu0 0.0
    %452 = vmatpush1.msra.mxu0 0.0
    %453 = vmatprep.subr.mxu0 0.0
    %454 = vmatpush1.msra.mxu0 0.0
    %455 = vmatprep.subr.mxu0 0.0
    %456 = vmatpush1.msra.mxu0 0.0
    %457 = vmatprep.subr.mxu0 0.0
    %458 = vmatpush1.msra.mxu0 0.0
    %459 = vmatprep.subr.mxu0 0.0
    %460 = vmatpush1.msra.mxu0 0.0
    %461 = vmatprep.mubr.f32.mxu0 0.0
    %462 = vmatmul.mubr.f32.gmra.mrb[0].mxu0 %v375
    %v463 = vpop.f32.mrb[0].mxu0
    %v464 = vadd.f32 0.0, %v463
    %v465 = vpop.f32.mrb[0].mxu0
    %466 = vdwg.mxu0
    %v467 = vadd.f32 %v380, %v464
    %v468 = vxor.u32 %v467, 2147483648
    %v469 = vmul.f32 %v468, 1.442695
    %v470 = vpow.pop %v469
    %v471 = vadd.f32 %v470, 1.0
    %v472 = vrcp.pop %v471
    %v473 = vmul.f32 1.0, %v472
    %v474 = vmul.f32 %v473, %v376
    %v475 = vld [vmem:[%s379] sm:$0xff]
    %v476 = vld [vmem:[#allocation6] sm:$0xff]
    %v477 = vld [vmem:[#allocation6 + $0x20] sm:$0xff]
    %v478 = vld [vmem:[#allocation6 + $0x40] sm:$0xff]
    %v479 = vld [vmem:[#allocation6 + $0x60] sm:$0xff]
    %v480 = vld [vmem:[#allocation6 + $0x80] sm:$0xff]
    %v481 = vld [vmem:[#allocation6 + $0xa0] sm:$0xff]
    %v482 = vld [vmem:[#allocation6 + $0xc0] sm:$0xff]
    %v483 = vld [vmem:[#allocation6 + $0xe0] sm:$0xff]
    %v484 = vld [vmem:[#allocation6 + $0x100] sm:$0xff]
    %v485 = vld [vmem:[#allocation6 + $0x120] sm:$0xff]
    %v486 = vld [vmem:[#allocation6 + $0x140] sm:$0xff]
    %v487 = vld [vmem:[#allocation6 + $0x160] sm:$0xff]
    %v488 = vld [vmem:[#allocation6 + $0x180] sm:$0xff]
    %v489 = vld [vmem:[#allocation6 + $0x1a0] sm:$0xff]
    %v490 = vld [vmem:[#allocation6 + $0x1c0] sm:$0xff]
    %v491 = vld [vmem:[#allocation6 + $0x1e0] sm:$0xff]
    %492 = vmatprep.subr.mxu0 0.0
    %493 = vmatpush1.msra.mxu0 %v476
    %494 = vmatprep.subr.mxu0 0.0
    %495 = vmatpush1.msra.mxu0 %v477
    %496 = vmatprep.subr.mxu0 0.0
    %497 = vmatpush1.msra.mxu0 %v478
    %498 = vmatprep.subr.mxu0 0.0
    %499 = vmatpush1.msra.mxu0 %v479
    %500 = vmatprep.subr.mxu0 0.0
    %501 = vmatpush1.msra.mxu0 %v480
    %502 = vmatprep.subr.mxu0 0.0
    %503 = vmatpush1.msra.mxu0 %v481
    %504 = vmatprep.subr.mxu0 0.0
    %505 = vmatpush1.msra.mxu0 %v482
    %506 = vmatprep.subr.mxu0 0.0
    %507 = vmatpush1.msra.mxu0 %v483
    %508 = vmatprep.subr.mxu0 0.0
    %509 = vmatpush1.msra.mxu0 %v484
    %510 = vmatprep.subr.mxu0 0.0
    %511 = vmatpush1.msra.mxu0 %v485
    %512 = vmatprep.subr.mxu0 0.0
    %513 = vmatpush1.msra.mxu0 %v486
    %514 = vmatprep.subr.mxu0 0.0
    %515 = vmatpush1.msra.mxu0 %v487
    %516 = vmatprep.subr.mxu0 0.0
    %517 = vmatpush1.msra.mxu0 %v488
    %518 = vmatprep.subr.mxu0 0.0
    %519 = vmatpush1.msra.mxu0 %v489
    %520 = vmatprep.subr.mxu0 0.0
    %521 = vmatpush1.msra.mxu0 %v490
    %522 = vmatprep.subr.mxu0 0.0
    %523 = vmatpush1.msra.mxu0 %v491
    %524 = vmatprep.subr.mxu0 0.0
    %525 = vmatpush1.msra.mxu0 0.0
    %526 = vmatprep.subr.mxu0 0.0
    %527 = vmatpush1.msra.mxu0 0.0
    %528 = vmatprep.subr.mxu0 0.0
    %529 = vmatpush1.msra.mxu0 0.0
    %530 = vmatprep.subr.mxu0 0.0
    %531 = vmatpush1.msra.mxu0 0.0
    %532 = vmatprep.subr.mxu0 0.0
    %533 = vmatpush1.msra.mxu0 0.0
    %534 = vmatprep.subr.mxu0 0.0
    %535 = vmatpush1.msra.mxu0 0.0
    %536 = vmatprep.subr.mxu0 0.0
    %537 = vmatpush1.msra.mxu0 0.0
    %538 = vmatprep.subr.mxu0 0.0
    %539 = vmatpush1.msra.mxu0 0.0
    %540 = vmatprep.subr.mxu0 0.0
    %541 = vmatpush1.msra.mxu0 0.0
    %542 = vmatprep.subr.mxu0 0.0
    %543 = vmatpush1.msra.mxu0 0.0
    %544 = vmatprep.subr.mxu0 0.0
    %545 = vmatpush1.msra.mxu0 0.0
    %546 = vmatprep.subr.mxu0 0.0
    %547 = vmatpush1.msra.mxu0 0.0
    %548 = vmatprep.subr.mxu0 0.0
    %549 = vmatpush1.msra.mxu0 0.0
    %550 = vmatprep.subr.mxu0 0.0
    %551 = vmatpush1.msra.mxu0 0.0
    %552 = vmatprep.subr.mxu0 0.0
    %553 = vmatpush1.msra.mxu0 0.0
    %554 = vmatprep.subr.mxu0 0.0
    %555 = vmatpush1.msra.mxu0 0.0
    %556 = vmatprep.mubr.f32.mxu0 0.0
    %557 = vmatmul.mubr.f32.gmra.mrb[0].mxu0 %v375
    %v558 = vpop.f32.mrb[0].mxu0
    %v559 = vadd.f32 0.0, %v558
    %v560 = vpop.f32.mrb[0].mxu0
    %561 = vdwg.mxu0
    %v562 = vadd.f32 %v475, %v559
    %v563 = vxor.u32 %v562, 2147483648
    %v564 = vmul.f32 %v563, 1.442695
    %v565 = vpow.pop %v564
    %v566 = vadd.f32 %v565, 1.0
    %v567 = vrcp.pop %v566
    %v568 = vmul.f32 1.0, %v567
    %v569 = vld [vmem:[%s379 + $0x10] sm:$0xff]
    %v570 = vld [vmem:[#allocation6 + $0x10] sm:$0xff]
    %v571 = vld [vmem:[#allocation6 + $0x30] sm:$0xff]
    %v572 = vld [vmem:[#allocation6 + $0x50] sm:$0xff]
    %v573 = vld [vmem:[#allocation6 + $0x70] sm:$0xff]
    %v574 = vld [vmem:[#allocation6 + $0x90] sm:$0xff]
    %v575 = vld [vmem:[#allocation6 + $0xb0] sm:$0xff]
    %v576 = vld [vmem:[#allocation6 + $0xd0] sm:$0xff]
    %v577 = vld [vmem:[#allocation6 + $0xf0] sm:$0xff]
    %v578 = vld [vmem:[#allocation6 + $0x110] sm:$0xff]
    %v579 = vld [vmem:[#allocation6 + $0x130] sm:$0xff]
    %v580 = vld [vmem:[#allocation6 + $0x150] sm:$0xff]
    %v581 = vld [vmem:[#allocation6 + $0x170] sm:$0xff]
    %v582 = vld [vmem:[#allocation6 + $0x190] sm:$0xff]
    %v583 = vld [vmem:[#allocation6 + $0x1b0] sm:$0xff]
    %v584 = vld [vmem:[#allocation6 + $0x1d0] sm:$0xff]
    %v585 = vld [vmem:[#allocation6 + $0x1f0] sm:$0xff]
    %586 = vmatprep.subr.mxu0 0.0
    %587 = vmatpush1.msra.mxu0 %v570
    %588 = vmatprep.subr.mxu0 0.0
    %589 = vmatpush1.msra.mxu0 %v571
    %590 = vmatprep.subr.mxu0 0.0
    %591 = vmatpush1.msra.mxu0 %v572
    %592 = vmatprep.subr.mxu0 0.0
    %593 = vmatpush1.msra.mxu0 %v573
    %594 = vmatprep.subr.mxu0 0.0
    %595 = vmatpush1.msra.mxu0 %v574
    %596 = vmatprep.subr.mxu0 0.0
    %597 = vmatpush1.msra.mxu0 %v575
    %598 = vmatprep.subr.mxu0 0.0
    %599 = vmatpush1.msra.mxu0 %v576
    %600 = vmatprep.subr.mxu0 0.0
    %601 = vmatpush1.msra.mxu0 %v577
    %602 = vmatprep.subr.mxu0 0.0
    %603 = vmatpush1.msra.mxu0 %v578
    %604 = vmatprep.subr.mxu0 0.0
    %605 = vmatpush1.msra.mxu0 %v579
    %606 = vmatprep.subr.mxu0 0.0
    %607 = vmatpush1.msra.mxu0 %v580
    %608 = vmatprep.subr.mxu0 0.0
    %609 = vmatpush1.msra.mxu0 %v581
    %610 = vmatprep.subr.mxu0 0.0
    %611 = vmatpush1.msra.mxu0 %v582
    %612 = vmatprep.subr.mxu0 0.0
    %613 = vmatpush1.msra.mxu0 %v583
    %614 = vmatprep.subr.mxu0 0.0
    %615 = vmatpush1.msra.mxu0 %v584
    %616 = vmatprep.subr.mxu0 0.0
    %617 = vmatpush1.msra.mxu0 %v585
    %618 = vmatprep.subr.mxu0 0.0
    %619 = vmatpush1.msra.mxu0 0.0
    %620 = vmatprep.subr.mxu0 0.0
    %621 = vmatpush1.msra.mxu0 0.0
    %622 = vmatprep.subr.mxu0 0.0
    %623 = vmatpush1.msra.mxu0 0.0
    %624 = vmatprep.subr.mxu0 0.0
    %625 = vmatpush1.msra.mxu0 0.0
    %626 = vmatprep.subr.mxu0 0.0
    %627 = vmatpush1.msra.mxu0 0.0
    %628 = vmatprep.subr.mxu0 0.0
    %629 = vmatpush1.msra.mxu0 0.0
    %630 = vmatprep.subr.mxu0 0.0
    %631 = vmatpush1.msra.mxu0 0.0
    %632 = vmatprep.subr.mxu0 0.0
    %633 = vmatpush1.msra.mxu0 0.0
    %634 = vmatprep.subr.mxu0 0.0
    %635 = vmatpush1.msra.mxu0 0.0
    %636 = vmatprep.subr.mxu0 0.0
    %637 = vmatpush1.msra.mxu0 0.0
    %638 = vmatprep.subr.mxu0 0.0
    %639 = vmatpush1.msra.mxu0 0.0
    %640 = vmatprep.subr.mxu0 0.0
    %641 = vmatpush1.msra.mxu0 0.0
    %642 = vmatprep.subr.mxu0 0.0
    %643 = vmatpush1.msra.mxu0 0.0
    %644 = vmatprep.subr.mxu0 0.0
    %645 = vmatpush1.msra.mxu0 0.0
    %646 = vmatprep.subr.mxu0 0.0
    %647 = vmatpush1.msra.mxu0 0.0
    %648 = vmatprep.subr.mxu0 0.0
    %649 = vmatpush1.msra.mxu0 0.0
    %650 = vmatprep.mubr.f32.mxu0 0.0
    %651 = vmatmul.mubr.f32.gmra.mrb[0].mxu0 %v375
    %v652 = vpop.f32.mrb[0].mxu0
    %v653 = vadd.f32 0.0, %v652
    %v654 = vpop.f32.mrb[0].mxu0
    %655 = vdwg.mxu0
    %v656 = vadd.f32 %v569, %v653
    %v657 = vtanh.pop %v656
    %v658 = vmul.f32 %v568, %v657
    %v659 = vadd.f32 %v474, %v658
    %v660 = vld [vmem:[%s379 + $0x18] sm:$0xff]
    %v661 = vld [vmem:[#allocation6 + $0x18] sm:$0xff]
    %v662 = vld [vmem:[#allocation6 + $0x38] sm:$0xff]
    %v663 = vld [vmem:[#allocation6 + $0x58] sm:$0xff]
    %v664 = vld [vmem:[#allocation6 + $0x78] sm:$0xff]
    %v665 = vld [vmem:[#allocation6 + $0x98] sm:$0xff]
    %v666 = vld [vmem:[#allocation6 + $0xb8] sm:$0xff]
    %v667 = vld [vmem:[#allocation6 + $0xd8] sm:$0xff]
    %v668 = vld [vmem:[#allocation6 + $0xf8] sm:$0xff]
    %v669 = vld [vmem:[#allocation6 + $0x118] sm:$0xff]
    %v670 = vld [vmem:[#allocation6 + $0x138] sm:$0xff]
    %v671 = vld [vmem:[#allocation6 + $0x158] sm:$0xff]
    %v672 = vld [vmem:[#allocation6 + $0x178] sm:$0xff]
    %v673 = vld [vmem:[#allocation6 + $0x198] sm:$0xff]
    %v674 = vld [vmem:[#allocation6 + $0x1b8] sm:$0xff]
    %v675 = vld [vmem:[#allocation6 + $0x1d8] sm:$0xff]
    %v676 = vld [vmem:[#allocation6 + $0x1f8] sm:$0xff]
    %677 = vmatprep.subr.mxu0 0.0
    %678 = vmatpush1.msra.mxu0 %v661
    %679 = vmatprep.subr.mxu0 0.0
    %680 = vmatpush1.msra.mxu0 %v662
    %681 = vmatprep.subr.mxu0 0.0
    %682 = vmatpush1.msra.mxu0 %v663
    %683 = vmatprep.subr.mxu0 0.0
    %684 = vmatpush1.msra.mxu0 %v664
    %685 = vmatprep.subr.mxu0 0.0
    %686 = vmatpush1.msra.mxu0 %v665
    %687 = vmatprep.subr.mxu0 0.0
    %688 = vmatpush1.msra.mxu0 %v666
    %689 = vmatprep.subr.mxu0 0.0
    %690 = vmatpush1.msra.mxu0 %v667
    %691 = vmatprep.subr.mxu0 0.0
    %692 = vmatpush1.msra.mxu0 %v668
    %693 = vmatprep.subr.mxu0 0.0
    %694 = vmatpush1.msra.mxu0 %v669
    %695 = vmatprep.subr.mxu0 0.0
    %696 = vmatpush1.msra.mxu0 %v670
    %697 = vmatprep.subr.mxu0 0.0
    %698 = vmatpush1.msra.mxu0 %v671
    %699 = vmatprep.subr.mxu0 0.0
    %700 = vmatpush1.msra.mxu0 %v672
    %701 = vmatprep.subr.mxu0 0.0
    %702 = vmatpush1.msra.mxu0 %v673
    %703 = vmatprep.subr.mxu0 0.0
    %704 = vmatpush1.msra.mxu0 %v674
    %705 = vmatprep.subr.mxu0 0.0
    %706 = vmatpush1.msra.mxu0 %v675
    %707 = vmatprep.subr.mxu0 0.0
    %708 = vmatpush1.msra.mxu0 %v676
    %709 = vmatprep.subr.mxu0 0.0
    %710 = vmatpush1.msra.mxu0 0.0
    %711 = vmatprep.subr.mxu0 0.0
    %712 = vmatpush1.msra.mxu0 0.0
    %713 = vmatprep.subr.mxu0 0.0
    %714 = vmatpush1.msra.mxu0 0.0
    %715 = vmatprep.subr.mxu0 0.0
    %716 = vmatpush1.msra.mxu0 0.0
    %717 = vmatprep.subr.mxu0 0.0
    %718 = vmatpush1.msra.mxu0 0.0
    %719 = vmatprep.subr.mxu0 0.0
    %720 = vmatpush1.msra.mxu0 0.0
    %721 = vmatprep.subr.mxu0 0.0
    %722 = vmatpush1.msra.mxu0 0.0
    %723 = vmatprep.subr.mxu0 0.0
    %724 = vmatpush1.msra.mxu0 0.0
    %725 = vmatprep.subr.mxu0 0.0
    %726 = vmatpush1.msra.mxu0 0.0
    %727 = vmatprep.subr.mxu0 0.0
    %728 = vmatpush1.msra.mxu0 0.0
    %729 = vmatprep.subr.mxu0 0.0
    %730 = vmatpush1.msra.mxu0 0.0
    %731 = vmatprep.subr.mxu0 0.0
    %732 = vmatpush1.msra.mxu0 0.0
    %733 = vmatprep.subr.mxu0 0.0
    %734 = vmatpush1.msra.mxu0 0.0
    %735 = vmatprep.subr.mxu0 0.0
    %736 = vmatpush1.msra.mxu0 0.0
    %737 = vmatprep.subr.mxu0 0.0
    %738 = vmatpush1.msra.mxu0 0.0
    %739 = vmatprep.subr.mxu0 0.0
    %740 = vmatpush1.msra.mxu0 0.0
    %741 = vmatprep.mubr.f32.mxu0 0.0
    %742 = vmatmul.mubr.f32.gmra.mrb[0].mxu0 %v375
    %v743 = vpop.f32.mrb[0].mxu0
    %v744 = vadd.f32 0.0, %v743
    %v745 = vpop.f32.mrb[0].mxu0
    %746 = vdwg.mxu0
    %v747 = vadd.f32 %v660, %v744
    %v748 = vxor.u32 %v747, 2147483648
    %v749 = vmul.f32 %v748, 1.442695
    %v750 = vpow.pop %v749
    %v751 = vadd.f32 %v750, 1.0
    %v752 = vrcp.pop %v751
    %v753 = vmul.f32 1.0, %v752
    %v754 = vtanh.pop %v659
    %v755 = vmul.f32 %v753, %v754
    %756 = vst [vmem:[#allocation3] sm:$0xff] %v755
    %s757 = smul.u32 1, 4
    %s758 = smul.addr %s757, 8
    %s759 = scalar_lea.vmem [#allocation2], %s758
    %v760 = vld [vmem:[%s759 + $0x8] sm:$0xff]
    %v761 = vld [vmem:[#allocation6 + $0x8] sm:$0xff]
    %v762 = vld [vmem:[#allocation6 + $0x28] sm:$0xff]
    %v763 = vld [vmem:[#allocation6 + $0x48] sm:$0xff]
    %v764 = vld [vmem:[#allocation6 + $0x68] sm:$0xff]
    %v765 = vld [vmem:[#allocation6 + $0x88] sm:$0xff]
    %v766 = vld [vmem:[#allocation6 + $0xa8] sm:$0xff]
    %v767 = vld [vmem:[#allocation6 + $0xc8] sm:$0xff]
    %v768 = vld [vmem:[#allocation6 + $0xe8] sm:$0xff]
    %v769 = vld [vmem:[#allocation6 + $0x108] sm:$0xff]
    %v770 = vld [vmem:[#allocation6 + $0x128] sm:$0xff]
    %v771 = vld [vmem:[#allocation6 + $0x148] sm:$0xff]
    %v772 = vld [vmem:[#allocation6 + $0x168] sm:$0xff]
    %v773 = vld [vmem:[#allocation6 + $0x188] sm:$0xff]
    %v774 = vld [vmem:[#allocation6 + $0x1a8] sm:$0xff]
    %v775 = vld [vmem:[#allocation6 + $0x1c8] sm:$0xff]
    %v776 = vld [vmem:[#allocation6 + $0x1e8] sm:$0xff]
    %777 = vmatprep.subr.mxu0 0.0
    %778 = vmatpush1.msra.mxu0 %v761
    %779 = vmatprep.subr.mxu0 0.0
    %780 = vmatpush1.msra.mxu0 %v762
    %781 = vmatprep.subr.mxu0 0.0
    %782 = vmatpush1.msra.mxu0 %v763
    %783 = vmatprep.subr.mxu0 0.0
    %784 = vmatpush1.msra.mxu0 %v764
    %785 = vmatprep.subr.mxu0 0.0
    %786 = vmatpush1.msra.mxu0 %v765
    %787 = vmatprep.subr.mxu0 0.0
    %788 = vmatpush1.msra.mxu0 %v766
    %789 = vmatprep.subr.mxu0 0.0
    %790 = vmatpush1.msra.mxu0 %v767
    %791 = vmatprep.subr.mxu0 0.0
    %792 = vmatpush1.msra.mxu0 %v768
    %793 = vmatprep.subr.mxu0 0.0
    %794 = vmatpush1.msra.mxu0 %v769
    %795 = vmatprep.subr.mxu0 0.0
    %796 = vmatpush1.msra.mxu0 %v770
    %797 = vmatprep.subr.mxu0 0.0
    %798 = vmatpush1.msra.mxu0 %v771
    %799 = vmatprep.subr.mxu0 0.0
    %800 = vmatpush1.msra.mxu0 %v772
    %801 = vmatprep.subr.mxu0 0.0
    %802 = vmatpush1.msra.mxu0 %v773
    %803 = vmatprep.subr.mxu0 0.0
    %804 = vmatpush1.msra.mxu0 %v774
    %805 = vmatprep.subr.mxu0 0.0
    %806 = vmatpush1.msra.mxu0 %v775
    %807 = vmatprep.subr.mxu0 0.0
    %808 = vmatpush1.msra.mxu0 %v776
    %809 = vmatprep.subr.mxu0 0.0
    %810 = vmatpush1.msra.mxu0 0.0
    %811 = vmatprep.subr.mxu0 0.0
    %812 = vmatpush1.msra.mxu0 0.0
    %813 = vmatprep.subr.mxu0 0.0
    %814 = vmatpush1.msra.mxu0 0.0
    %815 = vmatprep.subr.mxu0 0.0
    %816 = vmatpush1.msra.mxu0 0.0
    %817 = vmatprep.subr.mxu0 0.0
    %818 = vmatpush1.msra.mxu0 0.0
    %819 = vmatprep.subr.mxu0 0.0
    %820 = vmatpush1.msra.mxu0 0.0
    %821 = vmatprep.subr.mxu0 0.0
    %822 = vmatpush1.msra.mxu0 0.0
    %823 = vmatprep.subr.mxu0 0.0
    %824 = vmatpush1.msra.mxu0 0.0
    %825 = vmatprep.subr.mxu0 0.0
    %826 = vmatpush1.msra.mxu0 0.0
    %827 = vmatprep.subr.mxu0 0.0
    %828 = vmatpush1.msra.mxu0 0.0
    %829 = vmatprep.subr.mxu0 0.0
    %830 = vmatpush1.msra.mxu0 0.0
    %831 = vmatprep.subr.mxu0 0.0
    %832 = vmatpush1.msra.mxu0 0.0
    %833 = vmatprep.subr.mxu0 0.0
    %834 = vmatpush1.msra.mxu0 0.0
    %835 = vmatprep.subr.mxu0 0.0
    %836 = vmatpush1.msra.mxu0 0.0
    %837 = vmatprep.subr.mxu0 0.0
    %838 = vmatpush1.msra.mxu0 0.0
    %839 = vmatprep.subr.mxu0 0.0
    %840 = vmatpush1.msra.mxu0 0.0
    %841 = vmatprep.mubr.f32.mxu0 0.0
    %842 = vmatmul.mubr.f32.gmra.mrb[0].mxu0 %v755
    %v843 = vpop.f32.mrb[0].mxu0
    %v844 = vadd.f32 0.0, %v843
    %v845 = vpop.f32.mrb[0].mxu0
    %846 = vdwg.mxu0
    %v847 = vadd.f32 %v760, %v844
    %v848 = vxor.u32 %v847, 2147483648
    %v849 = vmul.f32 %v848, 1.442695
    %v850 = vpow.pop %v849
    %v851 = vadd.f32 %v850, 1.0
    %v852 = vrcp.pop %v851
    %v853 = vmul.f32 1.0, %v852
    %v854 = vmul.f32 %v853, %v659
    %v855 = vld [vmem:[%s759] sm:$0xff]
    %v856 = vld [vmem:[#allocation6] sm:$0xff]
    %v857 = vld [vmem:[#allocation6 + $0x20] sm:$0xff]
    %v858 = vld [vmem:[#allocation6 + $0x40] sm:$0xff]
    %v859 = vld [vmem:[#allocation6 + $0x60] sm:$0xff]
    %v860 = vld [vmem:[#allocation6 + $0x80] sm:$0xff]
    %v861 = vld [vmem:[#allocation6 + $0xa0] sm:$0xff]
    %v862 = vld [vmem:[#allocation6 + $0xc0] sm:$0xff]
    %v863 = vld [vmem:[#allocation6 + $0xe0] sm:$0xff]
    %v864 = vld [vmem:[#allocation6 + $0x100] sm:$0xff]
    %v865 = vld [vmem:[#allocation6 + $0x120] sm:$0xff]
    %v866 = vld [vmem:[#allocation6 + $0x140] sm:$0xff]
    %v867 = vld [vmem:[#allocation6 + $0x160] sm:$0xff]
    %v868 = vld [vmem:[#allocation6 + $0x180] sm:$0xff]
    %v869 = vld [vmem:[#allocation6 + $0x1a0] sm:$0xff]
    %v870 = vld [vmem:[#allocation6 + $0x1c0] sm:$0xff]
    %v871 = vld [vmem:[#allocation6 + $0x1e0] sm:$0xff]
    %872 = vmatprep.subr.mxu0 0.0
    %873 = vmatpush1.msra.mxu0 %v856
    %874 = vmatprep.subr.mxu0 0.0
    %875 = vmatpush1.msra.mxu0 %v857
    %876 = vmatprep.subr.mxu0 0.0
    %877 = vmatpush1.msra.mxu0 %v858
    %878 = vmatprep.subr.mxu0 0.0
    %879 = vmatpush1.msra.mxu0 %v859
    %880 = vmatprep.subr.mxu0 0.0
    %881 = vmatpush1.msra.mxu0 %v860
    %882 = vmatprep.subr.mxu0 0.0
    %883 = vmatpush1.msra.mxu0 %v861
    %884 = vmatprep.subr.mxu0 0.0
    %885 = vmatpush1.msra.mxu0 %v862
    %886 = vmatprep.subr.mxu0 0.0
    %887 = vmatpush1.msra.mxu0 %v863
    %888 = vmatprep.subr.mxu0 0.0
    %889 = vmatpush1.msra.mxu0 %v864
    %890 = vmatprep.subr.mxu0 0.0
    %891 = vmatpush1.msra.mxu0 %v865
    %892 = vmatprep.subr.mxu0 0.0
    %893 = vmatpush1.msra.mxu0 %v866
    %894 = vmatprep.subr.mxu0 0.0
    %895 = vmatpush1.msra.mxu0 %v867
    %896 = vmatprep.subr.mxu0 0.0
    %897 = vmatpush1.msra.mxu0 %v868
    %898 = vmatprep.subr.mxu0 0.0
    %899 = vmatpush1.msra.mxu0 %v869
    %900 = vmatprep.subr.mxu0 0.0
    %901 = vmatpush1.msra.mxu0 %v870
    %902 = vmatprep.subr.mxu0 0.0
    %903 = vmatpush1.msra.mxu0 %v871
    %904 = vmatprep.subr.mxu0 0.0
    %905 = vmatpush1.msra.mxu0 0.0
    %906 = vmatprep.subr.mxu0 0.0
    %907 = vmatpush1.msra.mxu0 0.0
    %908 = vmatprep.subr.mxu0 0.0
    %909 = vmatpush1.msra.mxu0 0.0
    %910 = vmatprep.subr.mxu0 0.0
    %911 = vmatpush1.msra.mxu0 0.0
    %912 = vmatprep.subr.mxu0 0.0
    %913 = vmatpush1.msra.mxu0 0.0
    %914 = vmatprep.subr.mxu0 0.0
    %915 = vmatpush1.msra.mxu0 0.0
    %916 = vmatprep.subr.mxu0 0.0
    %917 = vmatpush1.msra.mxu0 0.0
    %918 = vmatprep.subr.mxu0 0.0
    %919 = vmatpush1.msra.mxu0 0.0
    %920 = vmatprep.subr.mxu0 0.0
    %921 = vmatpush1.msra.mxu0 0.0
    %922 = vmatprep.subr.mxu0 0.0
    %923 = vmatpush1.msra.mxu0 0.0
    %924 = vmatprep.subr.mxu0 0.0
    %925 = vmatpush1.msra.mxu0 0.0
    %926 = vmatprep.subr.mxu0 0.0
    %927 = vmatpush1.msra.mxu0 0.0
    %928 = vmatprep.subr.mxu0 0.0
    %929 = vmatpush1.msra.mxu0 0.0
    %930 = vmatprep.subr.mxu0 0.0
    %931 = vmatpush1.msra.mxu0 0.0
    %932 = vmatprep.subr.mxu0 0.0
    %933 = vmatpush1.msra.mxu0 0.0
    %934 = vmatprep.subr.mxu0 0.0
    %935 = vmatpush1.msra.mxu0 0.0
    %936 = vmatprep.mubr.f32.mxu0 0.0
    %937 = vmatmul.mubr.f32.gmra.mrb[0].mxu0 %v755
    %v938 = vpop.f32.mrb[0].mxu0
    %v939 = vadd.f32 0.0, %v938
    %v940 = vpop.f32.mrb[0].mxu0
    %941 = vdwg.mxu0
    %v942 = vadd.f32 %v855, %v939
    %v943 = vxor.u32 %v942, 2147483648
    %v944 = vmul.f32 %v943, 1.442695
    %v945 = vpow.pop %v944
    %v946 = vadd.f32 %v945, 1.0
    %v947 = vrcp.pop %v946
    %v948 = vmul.f32 1.0, %v947
    %v949 = vld [vmem:[%s759 + $0x10] sm:$0xff]
    %v950 = vld [vmem:[#allocation6 + $0x10] sm:$0xff]
    %v951 = vld [vmem:[#allocation6 + $0x30] sm:$0xff]
    %v952 = vld [vmem:[#allocation6 + $0x50] sm:$0xff]
    %v953 = vld [vmem:[#allocation6 + $0x70] sm:$0xff]
    %v954 = vld [vmem:[#allocation6 + $0x90] sm:$0xff]
    %v955 = vld [vmem:[#allocation6 + $0xb0] sm:$0xff]
    %v956 = vld [vmem:[#allocation6 + $0xd0] sm:$0xff]
    %v957 = vld [vmem:[#allocation6 + $0xf0] sm:$0xff]
    %v958 = vld [vmem:[#allocation6 + $0x110] sm:$0xff]
    %v959 = vld [vmem:[#allocation6 + $0x130] sm:$0xff]
    %v960 = vld [vmem:[#allocation6 + $0x150] sm:$0xff]
    %v961 = vld [vmem:[#allocation6 + $0x170] sm:$0xff]
    %v962 = vld [vmem:[#allocation6 + $0x190] sm:$0xff]
    %v963 = vld [vmem:[#allocation6 + $0x1b0] sm:$0xff]
    %v964 = vld [vmem:[#allocation6 + $0x1d0] sm:$0xff]
    %v965 = vld [vmem:[#allocation6 + $0x1f0] sm:$0xff]
    %966 = vmatprep.subr.mxu0 0.0
    %967 = vmatpush1.msra.mxu0 %v950
    %968 = vmatprep.subr.mxu0 0.0
    %969 = vmatpush1.msra.mxu0 %v951
    %970 = vmatprep.subr.mxu0 0.0
    %971 = vmatpush1.msra.mxu0 %v952
    %972 = vmatprep.subr.mxu0 0.0
    %973 = vmatpush1.msra.mxu0 %v953
    %974 = vmatprep.subr.mxu0 0.0
    %975 = vmatpush1.msra.mxu0 %v954
    %976 = vmatprep.subr.mxu0 0.0
    %977 = vmatpush1.msra.mxu0 %v955
    %978 = vmatprep.subr.mxu0 0.0
    %979 = vmatpush1.msra.mxu0 %v956
    %980 = vmatprep.subr.mxu0 0.0
    %981 = vmatpush1.msra.mxu0 %v957
    %982 = vmatprep.subr.mxu0 0.0
    %983 = vmatpush1.msra.mxu0 %v958
    %984 = vmatprep.subr.mxu0 0.0
    %985 = vmatpush1.msra.mxu0 %v959
    %986 = vmatprep.subr.mxu0 0.0
    %987 = vmatpush1.msra.mxu0 %v960
    %988 = vmatprep.subr.mxu0 0.0
    %989 = vmatpush1.msra.mxu0 %v961
    %990 = vmatprep.subr.mxu0 0.0
    %991 = vmatpush1.msra.mxu0 %v962
    %992 = vmatprep.subr.mxu0 0.0
    %993 = vmatpush1.msra.mxu0 %v963
    %994 = vmatprep.subr.mxu0 0.0
    %995 = vmatpush1.msra.mxu0 %v964
    %996 = vmatprep.subr.mxu0 0.0
    %997 = vmatpush1.msra.mxu0 %v965
    %998 = vmatprep.subr.mxu0 0.0
    %999 = vmatpush1.msra.mxu0 0.0
    %1000 = vmatprep.subr.mxu0 0.0
    %1001 = vmatpush1.msra.mxu0 0.0
    %1002 = vmatprep.subr.mxu0 0.0
    %1003 = vmatpush1.msra.mxu0 0.0
    %1004 = vmatprep.subr.mxu0 0.0
    %1005 = vmatpush1.msra.mxu0 0.0
    %1006 = vmatprep.subr.mxu0 0.0
    %1007 = vmatpush1.msra.mxu0 0.0
    %1008 = vmatprep.subr.mxu0 0.0
    %1009 = vmatpush1.msra.mxu0 0.0
    %1010 = vmatprep.subr.mxu0 0.0
    %1011 = vmatpush1.msra.mxu0 0.0
    %1012 = vmatprep.subr.mxu0 0.0
    %1013 = vmatpush1.msra.mxu0 0.0
    %1014 = vmatprep.subr.mxu0 0.0
    %1015 = vmatpush1.msra.mxu0 0.0
    %1016 = vmatprep.subr.mxu0 0.0
    %1017 = vmatpush1.msra.mxu0 0.0
    %1018 = vmatprep.subr.mxu0 0.0
    %1019 = vmatpush1.msra.mxu0 0.0
    %1020 = vmatprep.subr.mxu0 0.0
    %1021 = vmatpush1.msra.mxu0 0.0
    %1022 = vmatprep.subr.mxu0 0.0
    %1023 = vmatpush1.msra.mxu0 0.0
    %1024 = vmatprep.subr.mxu0 0.0
    %1025 = vmatpush1.msra.mxu0 0.0
    %1026 = vmatprep.subr.mxu0 0.0
    %1027 = vmatpush1.msra.mxu0 0.0
    %1028 = vmatprep.subr.mxu0 0.0
    %1029 = vmatpush1.msra.mxu0 0.0
    %1030 = vmatprep.mubr.f32.mxu0 0.0
    %1031 = vmatmul.mubr.f32.gmra.mrb[0].mxu0 %v755
    %v1032 = vpop.f32.mrb[0].mxu0
    %v1033 = vadd.f32 0.0, %v1032
    %v1034 = vpop.f32.mrb[0].mxu0
    %1035 = vdwg.mxu0
    %v1036 = vadd.f32 %v949, %v1033
    %v1037 = vtanh.pop %v1036
    %v1038 = vmul.f32 %v948, %v1037
    %v1039 = vadd.f32 %v854, %v1038
    %v1040 = vld [vmem:[%s759 + $0x18] sm:$0xff]
    %v1041 = vld [vmem:[#allocation6 + $0x18] sm:$0xff]
    %v1042 = vld [vmem:[#allocation6 + $0x38] sm:$0xff]
    %v1043 = vld [vmem:[#allocation6 + $0x58] sm:$0xff]
    %v1044 = vld [vmem:[#allocation6 + $0x78] sm:$0xff]
    %v1045 = vld [vmem:[#allocation6 + $0x98] sm:$0xff]
    %v1046 = vld [vmem:[#allocation6 + $0xb8] sm:$0xff]
    %v1047 = vld [vmem:[#allocation6 + $0xd8] sm:$0xff]
    %v1048 = vld [vmem:[#allocation6 + $0xf8] sm:$0xff]
    %v1049 = vld [vmem:[#allocation6 + $0x118] sm:$0xff]
    %v1050 = vld [vmem:[#allocation6 + $0x138] sm:$0xff]
    %v1051 = vld [vmem:[#allocation6 + $0x158] sm:$0xff]
    %v1052 = vld [vmem:[#allocation6 + $0x178] sm:$0xff]
    %v1053 = vld [vmem:[#allocation6 + $0x198] sm:$0xff]
    %v1054 = vld [vmem:[#allocation6 + $0x1b8] sm:$0xff]
    %v1055 = vld [vmem:[#allocation6 + $0x1d8] sm:$0xff]
    %v1056 = vld [vmem:[#allocation6 + $0x1f8] sm:$0xff]
    %1057 = vmatprep.subr.mxu0 0.0
    %1058 = vmatpush1.msra.mxu0 %v1041
    %1059 = vmatprep.subr.mxu0 0.0
    %1060 = vmatpush1.msra.mxu0 %v1042
    %1061 = vmatprep.subr.mxu0 0.0
    %1062 = vmatpush1.msra.mxu0 %v1043
    %1063 = vmatprep.subr.mxu0 0.0
    %1064 = vmatpush1.msra.mxu0 %v1044
    %1065 = vmatprep.subr.mxu0 0.0
    %1066 = vmatpush1.msra.mxu0 %v1045
    %1067 = vmatprep.subr.mxu0 0.0
    %1068 = vmatpush1.msra.mxu0 %v1046
    %1069 = vmatprep.subr.mxu0 0.0
    %1070 = vmatpush1.msra.mxu0 %v1047
    %1071 = vmatprep.subr.mxu0 0.0
    %1072 = vmatpush1.msra.mxu0 %v1048
    %1073 = vmatprep.subr.mxu0 0.0
    %1074 = vmatpush1.msra.mxu0 %v1049
    %1075 = vmatprep.subr.mxu0 0.0
    %1076 = vmatpush1.msra.mxu0 %v1050
    %1077 = vmatprep.subr.mxu0 0.0
    %1078 = vmatpush1.msra.mxu0 %v1051
    %1079 = vmatprep.subr.mxu0 0.0
    %1080 = vmatpush1.msra.mxu0 %v1052
    %1081 = vmatprep.subr.mxu0 0.0
    %1082 = vmatpush1.msra.mxu0 %v1053
    %1083 = vmatprep.subr.mxu0 0.0
    %1084 = vmatpush1.msra.mxu0 %v1054
    %1085 = vmatprep.subr.mxu0 0.0
    %1086 = vmatpush1.msra.mxu0 %v1055
    %1087 = vmatprep.subr.mxu0 0.0
    %1088 = vmatpush1.msra.mxu0 %v1056
    %1089 = vmatprep.subr.mxu0 0.0
    %1090 = vmatpush1.msra.mxu0 0.0
    %1091 = vmatprep.subr.mxu0 0.0
    %1092 = vmatpush1.msra.mxu0 0.0
    %1093 = vmatprep.subr.mxu0 0.0
    %1094 = vmatpush1.msra.mxu0 0.0
    %1095 = vmatprep.subr.mxu0 0.0
    %1096 = vmatpush1.msra.mxu0 0.0
    %1097 = vmatprep.subr.mxu0 0.0
    %1098 = vmatpush1.msra.mxu0 0.0
    %1099 = vmatprep.subr.mxu0 0.0
    %1100 = vmatpush1.msra.mxu0 0.0
    %1101 = vmatprep.subr.mxu0 0.0
    %1102 = vmatpush1.msra.mxu0 0.0
    %1103 = vmatprep.subr.mxu0 0.0
    %1104 = vmatpush1.msra.mxu0 0.0
    %1105 = vmatprep.subr.mxu0 0.0
    %1106 = vmatpush1.msra.mxu0 0.0
    %1107 = vmatprep.subr.mxu0 0.0
    %1108 = vmatpush1.msra.mxu0 0.0
    %1109 = vmatprep.subr.mxu0 0.0
    %1110 = vmatpush1.msra.mxu0 0.0
    %1111 = vmatprep.subr.mxu0 0.0
    %1112 = vmatpush1.msra.mxu0 0.0
    %1113 = vmatprep.subr.mxu0 0.0
    %1114 = vmatpush1.msra.mxu0 0.0
    %1115 = vmatprep.subr.mxu0 0.0
    %1116 = vmatpush1.msra.mxu0 0.0
    %1117 = vmatprep.subr.mxu0 0.0
    %1118 = vmatpush1.msra.mxu0 0.0
    %1119 = vmatprep.subr.mxu0 0.0
    %1120 = vmatpush1.msra.mxu0 0.0
    %1121 = vmatprep.mubr.f32.mxu0 0.0
    %1122 = vmatmul.mubr.f32.gmra.mrb[0].mxu0 %v755
    %v1123 = vpop.f32.mrb[0].mxu0
    %v1124 = vadd.f32 0.0, %v1123
    %v1125 = vpop.f32.mrb[0].mxu0
    %1126 = vdwg.mxu0
    %v1127 = vadd.f32 %v1040, %v1124
    %v1128 = vxor.u32 %v1127, 2147483648
    %v1129 = vmul.f32 %v1128, 1.442695
    %v1130 = vpow.pop %v1129
    %v1131 = vadd.f32 %v1130, 1.0
    %v1132 = vrcp.pop %v1131
    %v1133 = vmul.f32 1.0, %v1132
    %v1134 = vtanh.pop %v1039
    %v1135 = vmul.f32 %v1133, %v1134
    %s1136 = scalar_lea.vmem [#allocation3], 8
    %1137 = vst [vmem:[%s1136] sm:$0xff] %v1135
    %s1138 = smul.u32 2, 4
    %s1139 = smul.addr %s1138, 8
    %s1140 = scalar_lea.vmem [#allocation2], %s1139
    %v1141 = vld [vmem:[%s1140 + $0x8] sm:$0xff]
    %v1142 = vld [vmem:[#allocation6 + $0x8] sm:$0xff]
    %v1143 = vld [vmem:[#allocation6 + $0x28] sm:$0xff]
    %v1144 = vld [vmem:[#allocation6 + $0x48] sm:$0xff]
    %v1145 = vld [vmem:[#allocation6 + $0x68] sm:$0xff]
    %v1146 = vld [vmem:[#allocation6 + $0x88] sm:$0xff]
    %v1147 = vld [vmem:[#allocation6 + $0xa8] sm:$0xff]
    %v1148 = vld [vmem:[#allocation6 + $0xc8] sm:$0xff]
    %v1149 = vld [vmem:[#allocation6 + $0xe8] sm:$0xff]
    %v1150 = vld [vmem:[#allocation6 + $0x108] sm:$0xff]
    %v1151 = vld [vmem:[#allocation6 + $0x128] sm:$0xff]
    %v1152 = vld [vmem:[#allocation6 + $0x148] sm:$0xff]
    %v1153 = vld [vmem:[#allocation6 + $0x168] sm:$0xff]
    %v1154 = vld [vmem:[#allocation6 + $0x188] sm:$0xff]
    %v1155 = vld [vmem:[#allocation6 + $0x1a8] sm:$0xff]
    %v1156 = vld [vmem:[#allocation6 + $0x1c8] sm:$0xff]
    %v1157 = vld [vmem:[#allocation6 + $0x1e8] sm:$0xff]
    %1158 = vmatprep.subr.mxu0 0.0
    %1159 = vmatpush1.msra.mxu0 %v1142
    %1160 = vmatprep.subr.mxu0 0.0
    %1161 = vmatpush1.msra.mxu0 %v1143
    %1162 = vmatprep.subr.mxu0 0.0
    %1163 = vmatpush1.msra.mxu0 %v1144
    %1164 = vmatprep.subr.mxu0 0.0
    %1165 = vmatpush1.msra.mxu0 %v1145
    %1166 = vmatprep.subr.mxu0 0.0
    %1167 = vmatpush1.msra.mxu0 %v1146
    %1168 = vmatprep.subr.mxu0 0.0
    %1169 = vmatpush1.msra.mxu0 %v1147
    %1170 = vmatprep.subr.mxu0 0.0
    %1171 = vmatpush1.msra.mxu0 %v1148
    %1172 = vmatprep.subr.mxu0 0.0
    %1173 = vmatpush1.msra.mxu0 %v1149
    %1174 = vmatprep.subr.mxu0 0.0
    %1175 = vmatpush1.msra.mxu0 %v1150
    %1176 = vmatprep.subr.mxu0 0.0
    %1177 = vmatpush1.msra.mxu0 %v1151
    %1178 = vmatprep.subr.mxu0 0.0
    %1179 = vmatpush1.msra.mxu0 %v1152
    %1180 = vmatprep.subr.mxu0 0.0
    %1181 = vmatpush1.msra.mxu0 %v1153
    %1182 = vmatprep.subr.mxu0 0.0
    %1183 = vmatpush1.msra.mxu0 %v1154
    %1184 = vmatprep.subr.mxu0 0.0
    %1185 = vmatpush1.msra.mxu0 %v1155
    %1186 = vmatprep.subr.mxu0 0.0
    %1187 = vmatpush1.msra.mxu0 %v1156
    %1188 = vmatprep.subr.mxu0 0.0
    %1189 = vmatpush1.msra.mxu0 %v1157
    %1190 = vmatprep.subr.mxu0 0.0
    %1191 = vmatpush1.msra.mxu0 0.0
    %1192 = vmatprep.subr.mxu0 0.0
    %1193 = vmatpush1.msra.mxu0 0.0
    %1194 = vmatprep.subr.mxu0 0.0
    %1195 = vmatpush1.msra.mxu0 0.0
    %1196 = vmatprep.subr.mxu0 0.0
    %1197 = vmatpush1.msra.mxu0 0.0
    %1198 = vmatprep.subr.mxu0 0.0
    %1199 = vmatpush1.msra.mxu0 0.0
    %1200 = vmatprep.subr.mxu0 0.0
    %1201 = vmatpush1.msra.mxu0 0.0
    %1202 = vmatprep.subr.mxu0 0.0
    %1203 = vmatpush1.msra.mxu0 0.0
    %1204 = vmatprep.subr.mxu0 0.0
    %1205 = vmatpush1.msra.mxu0 0.0
    %1206 = vmatprep.subr.mxu0 0.0
    %1207 = vmatpush1.msra.mxu0 0.0
    %1208 = vmatprep.subr.mxu0 0.0
    %1209 = vmatpush1.msra.mxu0 0.0
    %1210 = vmatprep.subr.mxu0 0.0
    %1211 = vmatpush1.msra.mxu0 0.0
    %1212 = vmatprep.subr.mxu0 0.0
    %1213 = vmatpush1.msra.mxu0 0.0
    %1214 = vmatprep.subr.mxu0 0.0
    %1215 = vmatpush1.msra.mxu0 0.0
    %1216 = vmatprep.subr.mxu0 0.0
    %1217 = vmatpush1.msra.mxu0 0.0
    %1218 = vmatprep.subr.mxu0 0.0
    %1219 = vmatpush1.msra.mxu0 0.0
    %1220 = vmatprep.subr.mxu0 0.0
    %1221 = vmatpush1.msra.mxu0 0.0
    %1222 = vmatprep.mubr.f32.mxu0 0.0
    %1223 = vmatmul.mubr.f32.gmra.mrb[0].mxu0 %v1135
    %v1224 = vpop.f32.mrb[0].mxu0
    %v1225 = vadd.f32 0.0, %v1224
    %v1226 = vpop.f32.mrb[0].mxu0
    %1227 = vdwg.mxu0
    %v1228 = vadd.f32 %v1141, %v1225
    %v1229 = vxor.u32 %v1228, 2147483648
    %v1230 = vmul.f32 %v1229, 1.442695
    %v1231 = vpow.pop %v1230
    %v1232 = vadd.f32 %v1231, 1.0
    %v1233 = vrcp.pop %v1232
    %v1234 = vmul.f32 1.0, %v1233
    %v1235 = vmul.f32 %v1234, %v1039
    %v1236 = vld [vmem:[%s1140] sm:$0xff]
    %v1237 = vld [vmem:[#allocation6] sm:$0xff]
    %v1238 = vld [vmem:[#allocation6 + $0x20] sm:$0xff]
    %v1239 = vld [vmem:[#allocation6 + $0x40] sm:$0xff]
    %v1240 = vld [vmem:[#allocation6 + $0x60] sm:$0xff]
    %v1241 = vld [vmem:[#allocation6 + $0x80] sm:$0xff]
    %v1242 = vld [vmem:[#allocation6 + $0xa0] sm:$0xff]
    %v1243 = vld [vmem:[#allocation6 + $0xc0] sm:$0xff]
    %v1244 = vld [vmem:[#allocation6 + $0xe0] sm:$0xff]
    %v1245 = vld [vmem:[#allocation6 + $0x100] sm:$0xff]
    %v1246 = vld [vmem:[#allocation6 + $0x120] sm:$0xff]
    %v1247 = vld [vmem:[#allocation6 + $0x140] sm:$0xff]
    %v1248 = vld [vmem:[#allocation6 + $0x160] sm:$0xff]
    %v1249 = vld [vmem:[#allocation6 + $0x180] sm:$0xff]
    %v1250 = vld [vmem:[#allocation6 + $0x1a0] sm:$0xff]
    %v1251 = vld [vmem:[#allocation6 + $0x1c0] sm:$0xff]
    %v1252 = vld [vmem:[#allocation6 + $0x1e0] sm:$0xff]
    %1253 = vmatprep.subr.mxu0 0.0
    %1254 = vmatpush1.msra.mxu0 %v1237
    %1255 = vmatprep.subr.mxu0 0.0
    %1256 = vmatpush1.msra.mxu0 %v1238
    %1257 = vmatprep.subr.mxu0 0.0
    %1258 = vmatpush1.msra.mxu0 %v1239
    %1259 = vmatprep.subr.mxu0 0.0
    %1260 = vmatpush1.msra.mxu0 %v1240
    %1261 = vmatprep.subr.mxu0 0.0
    %1262 = vmatpush1.msra.mxu0 %v1241
    %1263 = vmatprep.subr.mxu0 0.0
    %1264 = vmatpush1.msra.mxu0 %v1242
    %1265 = vmatprep.subr.mxu0 0.0
    %1266 = vmatpush1.msra.mxu0 %v1243
    %1267 = vmatprep.subr.mxu0 0.0
    %1268 = vmatpush1.msra.mxu0 %v1244
    %1269 = vmatprep.subr.mxu0 0.0
    %1270 = vmatpush1.msra.mxu0 %v1245
    %1271 = vmatprep.subr.mxu0 0.0
    %1272 = vmatpush1.msra.mxu0 %v1246
    %1273 = vmatprep.subr.mxu0 0.0
    %1274 = vmatpush1.msra.mxu0 %v1247
    %1275 = vmatprep.subr.mxu0 0.0
    %1276 = vmatpush1.msra.mxu0 %v1248
    %1277 = vmatprep.subr.mxu0 0.0
    %1278 = vmatpush1.msra.mxu0 %v1249
    %1279 = vmatprep.subr.mxu0 0.0
    %1280 = vmatpush1.msra.mxu0 %v1250
    %1281 = vmatprep.subr.mxu0 0.0
    %1282 = vmatpush1.msra.mxu0 %v1251
    %1283 = vmatprep.subr.mxu0 0.0
    %1284 = vmatpush1.msra.mxu0 %v1252
    %1285 = vmatprep.subr.mxu0 0.0
    %1286 = vmatpush1.msra.mxu0 0.0
    %1287 = vmatprep.subr.mxu0 0.0
    %1288 = vmatpush1.msra.mxu0 0.0
    %1289 = vmatprep.subr.mxu0 0.0
    %1290 = vmatpush1.msra.mxu0 0.0
    %1291 = vmatprep.subr.mxu0 0.0
    %1292 = vmatpush1.msra.mxu0 0.0
    %1293 = vmatprep.subr.mxu0 0.0
    %1294 = vmatpush1.msra.mxu0 0.0
    %1295 = vmatprep.subr.mxu0 0.0
    %1296 = vmatpush1.msra.mxu0 0.0
    %1297 = vmatprep.subr.mxu0 0.0
    %1298 = vmatpush1.msra.mxu0 0.0
    %1299 = vmatprep.subr.mxu0 0.0
    %1300 = vmatpush1.msra.mxu0 0.0
    %1301 = vmatprep.subr.mxu0 0.0
    %1302 = vmatpush1.msra.mxu0 0.0
    %1303 = vmatprep.subr.mxu0 0.0
    %1304 = vmatpush1.msra.mxu0 0.0
    %1305 = vmatprep.subr.mxu0 0.0
    %1306 = vmatpush1.msra.mxu0 0.0
    %1307 = vmatprep.subr.mxu0 0.0
    %1308 = vmatpush1.msra.mxu0 0.0
    %1309 = vmatprep.subr.mxu0 0.0
    %1310 = vmatpush1.msra.mxu0 0.0
    %1311 = vmatprep.subr.mxu0 0.0
    %1312 = vmatpush1.msra.mxu0 0.0
    %1313 = vmatprep.subr.mxu0 0.0
    %1314 = vmatpush1.msra.mxu0 0.0
    %1315 = vmatprep.subr.mxu0 0.0
    %1316 = vmatpush1.msra.mxu0 0.0
    %1317 = vmatprep.mubr.f32.mxu0 0.0
    %1318 = vmatmul.mubr.f32.gmra.mrb[0].mxu0 %v1135
    %v1319 = vpop.f32.mrb[0].mxu0
    %v1320 = vadd.f32 0.0, %v1319
    %v1321 = vpop.f32.mrb[0].mxu0
    %1322 = vdwg.mxu0
    %v1323 = vadd.f32 %v1236, %v1320
    %v1324 = vxor.u32 %v1323, 2147483648
    %v1325 = vmul.f32 %v1324, 1.442695
    %v1326 = vpow.pop %v1325
    %v1327 = vadd.f32 %v1326, 1.0
    %v1328 = vrcp.pop %v1327
    %v1329 = vmul.f32 1.0, %v1328
    %v1330 = vld [vmem:[%s1140 + $0x10] sm:$0xff]
    %v1331 = vld [vmem:[#allocation6 + $0x10] sm:$0xff]
    %v1332 = vld [vmem:[#allocation6 + $0x30] sm:$0xff]
    %v1333 = vld [vmem:[#allocation6 + $0x50] sm:$0xff]
    %v1334 = vld [vmem:[#allocation6 + $0x70] sm:$0xff]
    %v1335 = vld [vmem:[#allocation6 + $0x90] sm:$0xff]
    %v1336 = vld [vmem:[#allocation6 + $0xb0] sm:$0xff]
    %v1337 = vld [vmem:[#allocation6 + $0xd0] sm:$0xff]
    %v1338 = vld [vmem:[#allocation6 + $0xf0] sm:$0xff]
    %v1339 = vld [vmem:[#allocation6 + $0x110] sm:$0xff]
    %v1340 = vld [vmem:[#allocation6 + $0x130] sm:$0xff]
    %v1341 = vld [vmem:[#allocation6 + $0x150] sm:$0xff]
    %v1342 = vld [vmem:[#allocation6 + $0x170] sm:$0xff]
    %v1343 = vld [vmem:[#allocation6 + $0x190] sm:$0xff]
    %v1344 = vld [vmem:[#allocation6 + $0x1b0] sm:$0xff]
    %v1345 = vld [vmem:[#allocation6 + $0x1d0] sm:$0xff]
    %v1346 = vld [vmem:[#allocation6 + $0x1f0] sm:$0xff]
    %1347 = vmatprep.subr.mxu0 0.0
    %1348 = vmatpush1.msra.mxu0 %v1331
    %1349 = vmatprep.subr.mxu0 0.0
    %1350 = vmatpush1.msra.mxu0 %v1332
    %1351 = vmatprep.subr.mxu0 0.0
    %1352 = vmatpush1.msra.mxu0 %v1333
    %1353 = vmatprep.subr.mxu0 0.0
    %1354 = vmatpush1.msra.mxu0 %v1334
    %1355 = vmatprep.subr.mxu0 0.0
    %1356 = vmatpush1.msra.mxu0 %v1335
    %1357 = vmatprep.subr.mxu0 0.0
    %1358 = vmatpush1.msra.mxu0 %v1336
    %1359 = vmatprep.subr.mxu0 0.0
    %1360 = vmatpush1.msra.mxu0 %v1337
    %1361 = vmatprep.subr.mxu0 0.0
    %1362 = vmatpush1.msra.mxu0 %v1338
    %1363 = vmatprep.subr.mxu0 0.0
    %1364 = vmatpush1.msra.mxu0 %v1339
    %1365 = vmatprep.subr.mxu0 0.0
    %1366 = vmatpush1.msra.mxu0 %v1340
    %1367 = vmatprep.subr.mxu0 0.0
    %1368 = vmatpush1.msra.mxu0 %v1341
    %1369 = vmatprep.subr.mxu0 0.0
    %1370 = vmatpush1.msra.mxu0 %v1342
    %1371 = vmatprep.subr.mxu0 0.0
    %1372 = vmatpush1.msra.mxu0 %v1343
    %1373 = vmatprep.subr.mxu0 0.0
    %1374 = vmatpush1.msra.mxu0 %v1344
    %1375 = vmatprep.subr.mxu0 0.0
    %1376 = vmatpush1.msra.mxu0 %v1345
    %1377 = vmatprep.subr.mxu0 0.0
    %1378 = vmatpush1.msra.mxu0 %v1346
    %1379 = vmatprep.subr.mxu0 0.0
    %1380 = vmatpush1.msra.mxu0 0.0
    %1381 = vmatprep.subr.mxu0 0.0
    %1382 = vmatpush1.msra.mxu0 0.0
    %1383 = vmatprep.subr.mxu0 0.0
    %1384 = vmatpush1.msra.mxu0 0.0
    %1385 = vmatprep.subr.mxu0 0.0
    %1386 = vmatpush1.msra.mxu0 0.0
    %1387 = vmatprep.subr.mxu0 0.0
    %1388 = vmatpush1.msra.mxu0 0.0
    %1389 = vmatprep.subr.mxu0 0.0
    %1390 = vmatpush1.msra.mxu0 0.0
    %1391 = vmatprep.subr.mxu0 0.0
    %1392 = vmatpush1.msra.mxu0 0.0
    %1393 = vmatprep.subr.mxu0 0.0
    %1394 = vmatpush1.msra.mxu0 0.0
    %1395 = vmatprep.subr.mxu0 0.0
    %1396 = vmatpush1.msra.mxu0 0.0
    %1397 = vmatprep.subr.mxu0 0.0
    %1398 = vmatpush1.msra.mxu0 0.0
    %1399 = vmatprep.subr.mxu0 0.0
    %1400 = vmatpush1.msra.mxu0 0.0
    %1401 = vmatprep.subr.mxu0 0.0
    %1402 = vmatpush1.msra.mxu0 0.0
    %1403 = vmatprep.subr.mxu0 0.0
    %1404 = vmatpush1.msra.mxu0 0.0
    %1405 = vmatprep.subr.mxu0 0.0
    %1406 = vmatpush1.msra.mxu0 0.0
    %1407 = vmatprep.subr.mxu0 0.0
    %1408 = vmatpush1.msra.mxu0 0.0
    %1409 = vmatprep.subr.mxu0 0.0
    %1410 = vmatpush1.msra.mxu0 0.0
    %1411 = vmatprep.mubr.f32.mxu0 0.0
    %1412 = vmatmul.mubr.f32.gmra.mrb[0].mxu0 %v1135
    %v1413 = vpop.f32.mrb[0].mxu0
    %v1414 = vadd.f32 0.0, %v1413
    %v1415 = vpop.f32.mrb[0].mxu0
    %1416 = vdwg.mxu0
    %v1417 = vadd.f32 %v1330, %v1414
    %v1418 = vtanh.pop %v1417
    %v1419 = vmul.f32 %v1329, %v1418
    %v1420 = vadd.f32 %v1235, %v1419
    %v1421 = vld [vmem:[%s1140 + $0x18] sm:$0xff]
    %v1422 = vld [vmem:[#allocation6 + $0x18] sm:$0xff]
    %v1423 = vld [vmem:[#allocation6 + $0x38] sm:$0xff]
    %v1424 = vld [vmem:[#allocation6 + $0x58] sm:$0xff]
    %v1425 = vld [vmem:[#allocation6 + $0x78] sm:$0xff]
    %v1426 = vld [vmem:[#allocation6 + $0x98] sm:$0xff]
    %v1427 = vld [vmem:[#allocation6 + $0xb8] sm:$0xff]
    %v1428 = vld [vmem:[#allocation6 + $0xd8] sm:$0xff]
    %v1429 = vld [vmem:[#allocation6 + $0xf8] sm:$0xff]
    %v1430 = vld [vmem:[#allocation6 + $0x118] sm:$0xff]
    %v1431 = vld [vmem:[#allocation6 + $0x138] sm:$0xff]
    %v1432 = vld [vmem:[#allocation6 + $0x158] sm:$0xff]
    %v1433 = vld [vmem:[#allocation6 + $0x178] sm:$0xff]
    %v1434 = vld [vmem:[#allocation6 + $0x198] sm:$0xff]
    %v1435 = vld [vmem:[#allocation6 + $0x1b8] sm:$0xff]
    %v1436 = vld [vmem:[#allocation6 + $0x1d8] sm:$0xff]
    %v1437 = vld [vmem:[#allocation6 + $0x1f8] sm:$0xff]
    %1438 = vmatprep.subr.mxu0 0.0
    %1439 = vmatpush1.msra.mxu0 %v1422
    %1440 = vmatprep.subr.mxu0 0.0
    %1441 = vmatpush1.msra.mxu0 %v1423
    %1442 = vmatprep.subr.mxu0 0.0
    %1443 = vmatpush1.msra.mxu0 %v1424
    %1444 = vmatprep.subr.mxu0 0.0
    %1445 = vmatpush1.msra.mxu0 %v1425
    %1446 = vmatprep.subr.mxu0 0.0
    %1447 = vmatpush1.msra.mxu0 %v1426
    %1448 = vmatprep.subr.mxu0 0.0
    %1449 = vmatpush1.msra.mxu0 %v1427
    %1450 = vmatprep.subr.mxu0 0.0
    %1451 = vmatpush1.msra.mxu0 %v1428
    %1452 = vmatprep.subr.mxu0 0.0
    %1453 = vmatpush1.msra.mxu0 %v1429
    %1454 = vmatprep.subr.mxu0 0.0
    %1455 = vmatpush1.msra.mxu0 %v1430
    %1456 = vmatprep.subr.mxu0 0.0
    %1457 = vmatpush1.msra.mxu0 %v1431
    %1458 = vmatprep.subr.mxu0 0.0
    %1459 = vmatpush1.msra.mxu0 %v1432
    %1460 = vmatprep.subr.mxu0 0.0
    %1461 = vmatpush1.msra.mxu0 %v1433
    %1462 = vmatprep.subr.mxu0 0.0
    %1463 = vmatpush1.msra.mxu0 %v1434
    %1464 = vmatprep.subr.mxu0 0.0
    %1465 = vmatpush1.msra.mxu0 %v1435
    %1466 = vmatprep.subr.mxu0 0.0
    %1467 = vmatpush1.msra.mxu0 %v1436
    %1468 = vmatprep.subr.mxu0 0.0
    %1469 = vmatpush1.msra.mxu0 %v1437
    %1470 = vmatprep.subr.mxu0 0.0
    %1471 = vmatpush1.msra.mxu0 0.0
    %1472 = vmatprep.subr.mxu0 0.0
    %1473 = vmatpush1.msra.mxu0 0.0
    %1474 = vmatprep.subr.mxu0 0.0
    %1475 = vmatpush1.msra.mxu0 0.0
    %1476 = vmatprep.subr.mxu0 0.0
    %1477 = vmatpush1.msra.mxu0 0.0
    %1478 = vmatprep.subr.mxu0 0.0
    %1479 = vmatpush1.msra.mxu0 0.0
    %1480 = vmatprep.subr.mxu0 0.0
    %1481 = vmatpush1.msra.mxu0 0.0
    %1482 = vmatprep.subr.mxu0 0.0
    %1483 = vmatpush1.msra.mxu0 0.0
    %1484 = vmatprep.subr.mxu0 0.0
    %1485 = vmatpush1.msra.mxu0 0.0
    %1486 = vmatprep.subr.mxu0 0.0
    %1487 = vmatpush1.msra.mxu0 0.0
    %1488 = vmatprep.subr.mxu0 0.0
    %1489 = vmatpush1.msra.mxu0 0.0
    %1490 = vmatprep.subr.mxu0 0.0
    %1491 = vmatpush1.msra.mxu0 0.0
    %1492 = vmatprep.subr.mxu0 0.0
    %1493 = vmatpush1.msra.mxu0 0.0
    %1494 = vmatprep.subr.mxu0 0.0
    %1495 = vmatpush1.msra.mxu0 0.0
    %1496 = vmatprep.subr.mxu0 0.0
    %1497 = vmatpush1.msra.mxu0 0.0
    %1498 = vmatprep.subr.mxu0 0.0
    %1499 = vmatpush1.msra.mxu0 0.0
    %1500 = vmatprep.subr.mxu0 0.0
    %1501 = vmatpush1.msra.mxu0 0.0
    %1502 = vmatprep.mubr.f32.mxu0 0.0
    %1503 = vmatmul.mubr.f32.gmra.mrb[0].mxu0 %v1135
    %v1504 = vpop.f32.mrb[0].mxu0
    %v1505 = vadd.f32 0.0, %v1504
    %v1506 = vpop.f32.mrb[0].mxu0
    %1507 = vdwg.mxu0
    %v1508 = vadd.f32 %v1421, %v1505
    %v1509 = vxor.u32 %v1508, 2147483648
    %v1510 = vmul.f32 %v1509, 1.442695
    %v1511 = vpow.pop %v1510
    %v1512 = vadd.f32 %v1511, 1.0
    %v1513 = vrcp.pop %v1512
    %v1514 = vmul.f32 1.0, %v1513
    %v1515 = vtanh.pop %v1420
    %v1516 = vmul.f32 %v1514, %v1515
    %s1517 = scalar_lea.vmem [#allocation3], 16
    %1518 = vst [vmem:[%s1517] sm:$0xff] %v1516
    %s1519 = smul.u32 3, 4
    %s1520 = smul.addr %s1519, 8
    %s1521 = scalar_lea.vmem [#allocation2], %s1520
    %v1522 = vld [vmem:[%s1521 + $0x8] sm:$0xff]
    %v1523 = vld [vmem:[#allocation6 + $0x8] sm:$0xff]
    %v1524 = vld [vmem:[#allocation6 + $0x28] sm:$0xff]
    %v1525 = vld [vmem:[#allocation6 + $0x48] sm:$0xff]
    %v1526 = vld [vmem:[#allocation6 + $0x68] sm:$0xff]
    %v1527 = vld [vmem:[#allocation6 + $0x88] sm:$0xff]
    %v1528 = vld [vmem:[#allocation6 + $0xa8] sm:$0xff]
    %v1529 = vld [vmem:[#allocation6 + $0xc8] sm:$0xff]
    %v1530 = vld [vmem:[#allocation6 + $0xe8] sm:$0xff]
    %v1531 = vld [vmem:[#allocation6 + $0x108] sm:$0xff]
    %v1532 = vld [vmem:[#allocation6 + $0x128] sm:$0xff]
    %v1533 = vld [vmem:[#allocation6 + $0x148] sm:$0xff]
    %v1534 = vld [vmem:[#allocation6 + $0x168] sm:$0xff]
    %v1535 = vld [vmem:[#allocation6 + $0x188] sm:$0xff]
    %v1536 = vld [vmem:[#allocation6 + $0x1a8] sm:$0xff]
    %v1537 = vld [vmem:[#allocation6 + $0x1c8] sm:$0xff]
    %v1538 = vld [vmem:[#allocation6 + $0x1e8] sm:$0xff]
    %1539 = vmatprep.subr.mxu0 0.0
    %1540 = vmatpush1.msra.mxu0 %v1523
    %1541 = vmatprep.subr.mxu0 0.0
    %1542 = vmatpush1.msra.mxu0 %v1524
    %1543 = vmatprep.subr.mxu0 0.0
    %1544 = vmatpush1.msra.mxu0 %v1525
    %1545 = vmatprep.subr.mxu0 0.0
    %1546 = vmatpush1.msra.mxu0 %v1526
    %1547 = vmatprep.subr.mxu0 0.0
    %1548 = vmatpush1.msra.mxu0 %v1527
    %1549 = vmatprep.subr.mxu0 0.0
    %1550 = vmatpush1.msra.mxu0 %v1528
    %1551 = vmatprep.subr.mxu0 0.0
    %1552 = vmatpush1.msra.mxu0 %v1529
    %1553 = vmatprep.subr.mxu0 0.0
    %1554 = vmatpush1.msra.mxu0 %v1530
    %1555 = vmatprep.subr.mxu0 0.0
    %1556 = vmatpush1.msra.mxu0 %v1531
    %1557 = vmatprep.subr.mxu0 0.0
    %1558 = vmatpush1.msra.mxu0 %v1532
    %1559 = vmatprep.subr.mxu0 0.0
    %1560 = vmatpush1.msra.mxu0 %v1533
    %1561 = vmatprep.subr.mxu0 0.0
    %1562 = vmatpush1.msra.mxu0 %v1534
    %1563 = vmatprep.subr.mxu0 0.0
    %1564 = vmatpush1.msra.mxu0 %v1535
    %1565 = vmatprep.subr.mxu0 0.0
    %1566 = vmatpush1.msra.mxu0 %v1536
    %1567 = vmatprep.subr.mxu0 0.0
    %1568 = vmatpush1.msra.mxu0 %v1537
    %1569 = vmatprep.subr.mxu0 0.0
    %1570 = vmatpush1.msra.mxu0 %v1538
    %1571 = vmatprep.subr.mxu0 0.0
    %1572 = vmatpush1.msra.mxu0 0.0
    %1573 = vmatprep.subr.mxu0 0.0
    %1574 = vmatpush1.msra.mxu0 0.0
    %1575 = vmatprep.subr.mxu0 0.0
    %1576 = vmatpush1.msra.mxu0 0.0
    %1577 = vmatprep.subr.mxu0 0.0
    %1578 = vmatpush1.msra.mxu0 0.0
    %1579 = vmatprep.subr.mxu0 0.0
    %1580 = vmatpush1.msra.mxu0 0.0
    %1581 = vmatprep.subr.mxu0 0.0
    %1582 = vmatpush1.msra.mxu0 0.0
    %1583 = vmatprep.subr.mxu0 0.0
    %1584 = vmatpush1.msra.mxu0 0.0
    %1585 = vmatprep.subr.mxu0 0.0
    %1586 = vmatpush1.msra.mxu0 0.0
    %1587 = vmatprep.subr.mxu0 0.0
    %1588 = vmatpush1.msra.mxu0 0.0
    %1589 = vmatprep.subr.mxu0 0.0
    %1590 = vmatpush1.msra.mxu0 0.0
    %1591 = vmatprep.subr.mxu0 0.0
    %1592 = vmatpush1.msra.mxu0 0.0
    %1593 = vmatprep.subr.mxu0 0.0
    %1594 = vmatpush1.msra.mxu0 0.0
    %1595 = vmatprep.subr.mxu0 0.0
    %1596 = vmatpush1.msra.mxu0 0.0
    %1597 = vmatprep.subr.mxu0 0.0
    %1598 = vmatpush1.msra.mxu0 0.0
    %1599 = vmatprep.subr.mxu0 0.0
    %1600 = vmatpush1.msra.mxu0 0.0
    %1601 = vmatprep.subr.mxu0 0.0
    %1602 = vmatpush1.msra.mxu0 0.0
    %1603 = vmatprep.mubr.f32.mxu0 0.0
    %1604 = vmatmul.mubr.f32.gmra.mrb[0].mxu0 %v1516
    %v1605 = vpop.f32.mrb[0].mxu0
    %v1606 = vadd.f32 0.0, %v1605
    %v1607 = vpop.f32.mrb[0].mxu0
    %1608 = vdwg.mxu0
    %v1609 = vadd.f32 %v1522, %v1606
    %v1610 = vxor.u32 %v1609, 2147483648
    %v1611 = vmul.f32 %v1610, 1.442695
    %v1612 = vpow.pop %v1611
    %v1613 = vadd.f32 %v1612, 1.0
    %v1614 = vrcp.pop %v1613
    %v1615 = vmul.f32 1.0, %v1614
    %v1616 = vmul.f32 %v1615, %v1420
    %v1617 = vld [vmem:[%s1521] sm:$0xff]
    %v1618 = vld [vmem:[#allocation6] sm:$0xff]
    %v1619 = vld [vmem:[#allocation6 + $0x20] sm:$0xff]
    %v1620 = vld [vmem:[#allocation6 + $0x40] sm:$0xff]
    %v1621 = vld [vmem:[#allocation6 + $0x60] sm:$0xff]
    %v1622 = vld [vmem:[#allocation6 + $0x80] sm:$0xff]
    %v1623 = vld [vmem:[#allocation6 + $0xa0] sm:$0xff]
    %v1624 = vld [vmem:[#allocation6 + $0xc0] sm:$0xff]
    %v1625 = vld [vmem:[#allocation6 + $0xe0] sm:$0xff]
    %v1626 = vld [vmem:[#allocation6 + $0x100] sm:$0xff]
    %v1627 = vld [vmem:[#allocation6 + $0x120] sm:$0xff]
    %v1628 = vld [vmem:[#allocation6 + $0x140] sm:$0xff]
    %v1629 = vld [vmem:[#allocation6 + $0x160] sm:$0xff]
    %v1630 = vld [vmem:[#allocation6 + $0x180] sm:$0xff]
    %v1631 = vld [vmem:[#allocation6 + $0x1a0] sm:$0xff]
    %v1632 = vld [vmem:[#allocation6 + $0x1c0] sm:$0xff]
    %v1633 = vld [vmem:[#allocation6 + $0x1e0] sm:$0xff]
    %1634 = vmatprep.subr.mxu0 0.0
    %1635 = vmatpush1.msra.mxu0 %v1618
    %1636 = vmatprep.subr.mxu0 0.0
    %1637 = vmatpush1.msra.mxu0 %v1619
    %1638 = vmatprep.subr.mxu0 0.0
    %1639 = vmatpush1.msra.mxu0 %v1620
    %1640 = vmatprep.subr.mxu0 0.0
    %1641 = vmatpush1.msra.mxu0 %v1621
    %1642 = vmatprep.subr.mxu0 0.0
    %1643 = vmatpush1.msra.mxu0 %v1622
    %1644 = vmatprep.subr.mxu0 0.0
    %1645 = vmatpush1.msra.mxu0 %v1623
    %1646 = vmatprep.subr.mxu0 0.0
    %1647 = vmatpush1.msra.mxu0 %v1624
    %1648 = vmatprep.subr.mxu0 0.0
    %1649 = vmatpush1.msra.mxu0 %v1625
    %1650 = vmatprep.subr.mxu0 0.0
    %1651 = vmatpush1.msra.mxu0 %v1626
    %1652 = vmatprep.subr.mxu0 0.0
    %1653 = vmatpush1.msra.mxu0 %v1627
    %1654 = vmatprep.subr.mxu0 0.0
    %1655 = vmatpush1.msra.mxu0 %v1628
    %1656 = vmatprep.subr.mxu0 0.0
    %1657 = vmatpush1.msra.mxu0 %v1629
    %1658 = vmatprep.subr.mxu0 0.0
    %1659 = vmatpush1.msra.mxu0 %v1630
    %1660 = vmatprep.subr.mxu0 0.0
    %1661 = vmatpush1.msra.mxu0 %v1631
    %1662 = vmatprep.subr.mxu0 0.0
    %1663 = vmatpush1.msra.mxu0 %v1632
    %1664 = vmatprep.subr.mxu0 0.0
    %1665 = vmatpush1.msra.mxu0 %v1633
    %1666 = vmatprep.subr.mxu0 0.0
    %1667 = vmatpush1.msra.mxu0 0.0
    %1668 = vmatprep.subr.mxu0 0.0
    %1669 = vmatpush1.msra.mxu0 0.0
    %1670 = vmatprep.subr.mxu0 0.0
    %1671 = vmatpush1.msra.mxu0 0.0
    %1672 = vmatprep.subr.mxu0 0.0
    %1673 = vmatpush1.msra.mxu0 0.0
    %1674 = vmatprep.subr.mxu0 0.0
    %1675 = vmatpush1.msra.mxu0 0.0
    %1676 = vmatprep.subr.mxu0 0.0
    %1677 = vmatpush1.msra.mxu0 0.0
    %1678 = vmatprep.subr.mxu0 0.0
    %1679 = vmatpush1.msra.mxu0 0.0
    %1680 = vmatprep.subr.mxu0 0.0
    %1681 = vmatpush1.msra.mxu0 0.0
    %1682 = vmatprep.subr.mxu0 0.0
    %1683 = vmatpush1.msra.mxu0 0.0
    %1684 = vmatprep.subr.mxu0 0.0
    %1685 = vmatpush1.msra.mxu0 0.0
    %1686 = vmatprep.subr.mxu0 0.0
    %1687 = vmatpush1.msra.mxu0 0.0
    %1688 = vmatprep.subr.mxu0 0.0
    %1689 = vmatpush1.msra.mxu0 0.0
    %1690 = vmatprep.subr.mxu0 0.0
    %1691 = vmatpush1.msra.mxu0 0.0
    %1692 = vmatprep.subr.mxu0 0.0
    %1693 = vmatpush1.msra.mxu0 0.0
    %1694 = vmatprep.subr.mxu0 0.0
    %1695 = vmatpush1.msra.mxu0 0.0
    %1696 = vmatprep.subr.mxu0 0.0
    %1697 = vmatpush1.msra.mxu0 0.0
    %1698 = vmatprep.mubr.f32.mxu0 0.0
    %1699 = vmatmul.mubr.f32.gmra.mrb[0].mxu0 %v1516
    %v1700 = vpop.f32.mrb[0].mxu0
    %v1701 = vadd.f32 0.0, %v1700
    %v1702 = vpop.f32.mrb[0].mxu0
    %1703 = vdwg.mxu0
    %v1704 = vadd.f32 %v1617, %v1701
    %v1705 = vxor.u32 %v1704, 2147483648
    %v1706 = vmul.f32 %v1705, 1.442695
    %v1707 = vpow.pop %v1706
    %v1708 = vadd.f32 %v1707, 1.0
    %v1709 = vrcp.pop %v1708
    %v1710 = vmul.f32 1.0, %v1709
    %v1711 = vld [vmem:[%s1521 + $0x10] sm:$0xff]
    %v1712 = vld [vmem:[#allocation6 + $0x10] sm:$0xff]
    %v1713 = vld [vmem:[#allocation6 + $0x30] sm:$0xff]
    %v1714 = vld [vmem:[#allocation6 + $0x50] sm:$0xff]
    %v1715 = vld [vmem:[#allocation6 + $0x70] sm:$0xff]
    %v1716 = vld [vmem:[#allocation6 + $0x90] sm:$0xff]
    %v1717 = vld [vmem:[#allocation6 + $0xb0] sm:$0xff]
    %v1718 = vld [vmem:[#allocation6 + $0xd0] sm:$0xff]
    %v1719 = vld [vmem:[#allocation6 + $0xf0] sm:$0xff]
    %v1720 = vld [vmem:[#allocation6 + $0x110] sm:$0xff]
    %v1721 = vld [vmem:[#allocation6 + $0x130] sm:$0xff]
    %v1722 = vld [vmem:[#allocation6 + $0x150] sm:$0xff]
    %v1723 = vld [vmem:[#allocation6 + $0x170] sm:$0xff]
    %v1724 = vld [vmem:[#allocation6 + $0x190] sm:$0xff]
    %v1725 = vld [vmem:[#allocation6 + $0x1b0] sm:$0xff]
    %v1726 = vld [vmem:[#allocation6 + $0x1d0] sm:$0xff]
    %v1727 = vld [vmem:[#allocation6 + $0x1f0] sm:$0xff]
    %1728 = vmatprep.subr.mxu0 0.0
    %1729 = vmatpush1.msra.mxu0 %v1712
    %1730 = vmatprep.subr.mxu0 0.0
    %1731 = vmatpush1.msra.mxu0 %v1713
    %1732 = vmatprep.subr.mxu0 0.0
    %1733 = vmatpush1.msra.mxu0 %v1714
    %1734 = vmatprep.subr.mxu0 0.0
    %1735 = vmatpush1.msra.mxu0 %v1715
    %1736 = vmatprep.subr.mxu0 0.0
    %1737 = vmatpush1.msra.mxu0 %v1716
    %1738 = vmatprep.subr.mxu0 0.0
    %1739 = vmatpush1.msra.mxu0 %v1717
    %1740 = vmatprep.subr.mxu0 0.0
    %1741 = vmatpush1.msra.mxu0 %v1718
    %1742 = vmatprep.subr.mxu0 0.0
    %1743 = vmatpush1.msra.mxu0 %v1719
    %1744 = vmatprep.subr.mxu0 0.0
    %1745 = vmatpush1.msra.mxu0 %v1720
    %1746 = vmatprep.subr.mxu0 0.0
    %1747 = vmatpush1.msra.mxu0 %v1721
    %1748 = vmatprep.subr.mxu0 0.0
    %1749 = vmatpush1.msra.mxu0 %v1722
    %1750 = vmatprep.subr.mxu0 0.0
    %1751 = vmatpush1.msra.mxu0 %v1723
    %1752 = vmatprep.subr.mxu0 0.0
    %1753 = vmatpush1.msra.mxu0 %v1724
    %1754 = vmatprep.subr.mxu0 0.0
    %1755 = vmatpush1.msra.mxu0 %v1725
    %1756 = vmatprep.subr.mxu0 0.0
    %1757 = vmatpush1.msra.mxu0 %v1726
    %1758 = vmatprep.subr.mxu0 0.0
    %1759 = vmatpush1.msra.mxu0 %v1727
    %1760 = vmatprep.subr.mxu0 0.0
    %1761 = vmatpush1.msra.mxu0 0.0
    %1762 = vmatprep.subr.mxu0 0.0
    %1763 = vmatpush1.msra.mxu0 0.0
    %1764 = vmatprep.subr.mxu0 0.0
    %1765 = vmatpush1.msra.mxu0 0.0
    %1766 = vmatprep.subr.mxu0 0.0
    %1767 = vmatpush1.msra.mxu0 0.0
    %1768 = vmatprep.subr.mxu0 0.0
    %1769 = vmatpush1.msra.mxu0 0.0
    %1770 = vmatprep.subr.mxu0 0.0
    %1771 = vmatpush1.msra.mxu0 0.0
    %1772 = vmatprep.subr.mxu0 0.0
    %1773 = vmatpush1.msra.mxu0 0.0
    %1774 = vmatprep.subr.mxu0 0.0
    %1775 = vmatpush1.msra.mxu0 0.0
    %1776 = vmatprep.subr.mxu0 0.0
    %1777 = vmatpush1.msra.mxu0 0.0
    %1778 = vmatprep.subr.mxu0 0.0
    %1779 = vmatpush1.msra.mxu0 0.0
    %1780 = vmatprep.subr.mxu0 0.0
    %1781 = vmatpush1.msra.mxu0 0.0
    %1782 = vmatprep.subr.mxu0 0.0
    %1783 = vmatpush1.msra.mxu0 0.0
    %1784 = vmatprep.subr.mxu0 0.0
    %1785 = vmatpush1.msra.mxu0 0.0
    %1786 = vmatprep.subr.mxu0 0.0
    %1787 = vmatpush1.msra.mxu0 0.0
    %1788 = vmatprep.subr.mxu0 0.0
    %1789 = vmatpush1.msra.mxu0 0.0
    %1790 = vmatprep.subr.mxu0 0.0
    %1791 = vmatpush1.msra.mxu0 0.0
    %1792 = vmatprep.mubr.f32.mxu0 0.0
    %1793 = vmatmul.mubr.f32.gmra.mrb[0].mxu0 %v1516
    %v1794 = vpop.f32.mrb[0].mxu0
    %v1795 = vadd.f32 0.0, %v1794
    %v1796 = vpop.f32.mrb[0].mxu0
    %1797 = vdwg.mxu0
    %v1798 = vadd.f32 %v1711, %v1795
    %v1799 = vtanh.pop %v1798
    %v1800 = vmul.f32 %v1710, %v1799
    %v1801 = vadd.f32 %v1616, %v1800
    %v1802 = vld [vmem:[%s1521 + $0x18] sm:$0xff]
    %v1803 = vld [vmem:[#allocation6 + $0x18] sm:$0xff]
    %v1804 = vld [vmem:[#allocation6 + $0x38] sm:$0xff]
    %v1805 = vld [vmem:[#allocation6 + $0x58] sm:$0xff]
    %v1806 = vld [vmem:[#allocation6 + $0x78] sm:$0xff]
    %v1807 = vld [vmem:[#allocation6 + $0x98] sm:$0xff]
    %v1808 = vld [vmem:[#allocation6 + $0xb8] sm:$0xff]
    %v1809 = vld [vmem:[#allocation6 + $0xd8] sm:$0xff]
    %v1810 = vld [vmem:[#allocation6 + $0xf8] sm:$0xff]
    %v1811 = vld [vmem:[#allocation6 + $0x118] sm:$0xff]
    %v1812 = vld [vmem:[#allocation6 + $0x138] sm:$0xff]
    %v1813 = vld [vmem:[#allocation6 + $0x158] sm:$0xff]
    %v1814 = vld [vmem:[#allocation6 + $0x178] sm:$0xff]
    %v1815 = vld [vmem:[#allocation6 + $0x198] sm:$0xff]
    %v1816 = vld [vmem:[#allocation6 + $0x1b8] sm:$0xff]
    %v1817 = vld [vmem:[#allocation6 + $0x1d8] sm:$0xff]
    %v1818 = vld [vmem:[#allocation6 + $0x1f8] sm:$0xff]
    %1819 = vmatprep.subr.mxu0 0.0
    %1820 = vmatpush1.msra.mxu0 %v1803
    %1821 = vmatprep.subr.mxu0 0.0
    %1822 = vmatpush1.msra.mxu0 %v1804
    %1823 = vmatprep.subr.mxu0 0.0
    %1824 = vmatpush1.msra.mxu0 %v1805
    %1825 = vmatprep.subr.mxu0 0.0
    %1826 = vmatpush1.msra.mxu0 %v1806
    %1827 = vmatprep.subr.mxu0 0.0
    %1828 = vmatpush1.msra.mxu0 %v1807
    %1829 = vmatprep.subr.mxu0 0.0
    %1830 = vmatpush1.msra.mxu0 %v1808
    %1831 = vmatprep.subr.mxu0 0.0
    %1832 = vmatpush1.msra.mxu0 %v1809
    %1833 = vmatprep.subr.mxu0 0.0
    %1834 = vmatpush1.msra.mxu0 %v1810
    %1835 = vmatprep.subr.mxu0 0.0
    %1836 = vmatpush1.msra.mxu0 %v1811
    %1837 = vmatprep.subr.mxu0 0.0
    %1838 = vmatpush1.msra.mxu0 %v1812
    %1839 = vmatprep.subr.mxu0 0.0
    %1840 = vmatpush1.msra.mxu0 %v1813
    %1841 = vmatprep.subr.mxu0 0.0
    %1842 = vmatpush1.msra.mxu0 %v1814
    %1843 = vmatprep.subr.mxu0 0.0
    %1844 = vmatpush1.msra.mxu0 %v1815
    %1845 = vmatprep.subr.mxu0 0.0
    %1846 = vmatpush1.msra.mxu0 %v1816
    %1847 = vmatprep.subr.mxu0 0.0
    %1848 = vmatpush1.msra.mxu0 %v1817
    %1849 = vmatprep.subr.mxu0 0.0
    %1850 = vmatpush1.msra.mxu0 %v1818
    %1851 = vmatprep.subr.mxu0 0.0
    %1852 = vmatpush1.msra.mxu0 0.0
    %1853 = vmatprep.subr.mxu0 0.0
    %1854 = vmatpush1.msra.mxu0 0.0
    %1855 = vmatprep.subr.mxu0 0.0
    %1856 = vmatpush1.msra.mxu0 0.0
    %1857 = vmatprep.subr.mxu0 0.0
    %1858 = vmatpush1.msra.mxu0 0.0
    %1859 = vmatprep.subr.mxu0 0.0
    %1860 = vmatpush1.msra.mxu0 0.0
    %1861 = vmatprep.subr.mxu0 0.0
    %1862 = vmatpush1.msra.mxu0 0.0
    %1863 = vmatprep.subr.mxu0 0.0
    %1864 = vmatpush1.msra.mxu0 0.0
    %1865 = vmatprep.subr.mxu0 0.0
    %1866 = vmatpush1.msra.mxu0 0.0
    %1867 = vmatprep.subr.mxu0 0.0
    %1868 = vmatpush1.msra.mxu0 0.0
    %1869 = vmatprep.subr.mxu0 0.0
    %1870 = vmatpush1.msra.mxu0 0.0
    %1871 = vmatprep.subr.mxu0 0.0
    %1872 = vmatpush1.msra.mxu0 0.0
    %1873 = vmatprep.subr.mxu0 0.0
    %1874 = vmatpush1.msra.mxu0 0.0
    %1875 = vmatprep.subr.mxu0 0.0
    %1876 = vmatpush1.msra.mxu0 0.0
    %1877 = vmatprep.subr.mxu0 0.0
    %1878 = vmatpush1.msra.mxu0 0.0
    %1879 = vmatprep.subr.mxu0 0.0
    %1880 = vmatpush1.msra.mxu0 0.0
    %1881 = vmatprep.subr.mxu0 0.0
    %1882 = vmatpush1.msra.mxu0 0.0
    %1883 = vmatprep.mubr.f32.mxu0 0.0
    %1884 = vmatmul.mubr.f32.gmra.mrb[0].mxu0 %v1516
    %v1885 = vpop.f32.mrb[0].mxu0
    %v1886 = vadd.f32 0.0, %v1885
    %v1887 = vpop.f32.mrb[0].mxu0
    %1888 = vdwg.mxu0
    %v1889 = vadd.f32 %v1802, %v1886
    %v1890 = vxor.u32 %v1889, 2147483648
    %v1891 = vmul.f32 %v1890, 1.442695
    %v1892 = vpow.pop %v1891
    %v1893 = vadd.f32 %v1892, 1.0
    %v1894 = vrcp.pop %v1893
    %v1895 = vmul.f32 1.0, %v1894
    %v1896 = vtanh.pop %v1801
    %v1897 = vmul.f32 %v1895, %v1896
    %s1898 = scalar_lea.vmem [#allocation3], 24
    %1899 = vst [vmem:[%s1898] sm:$0xff] %v1897
    %s1900 = smul.u32 4, 4
    %s1901 = smul.addr %s1900, 8
    %s1902 = scalar_lea.vmem [#allocation2], %s1901
    %v1903 = vld [vmem:[%s1902 + $0x8] sm:$0xff]
    %v1904 = vld [vmem:[#allocation6 + $0x8] sm:$0xff]
    %v1905 = vld [vmem:[#allocation6 + $0x28] sm:$0xff]
    %v1906 = vld [vmem:[#allocation6 + $0x48] sm:$0xff]
    %v1907 = vld [vmem:[#allocation6 + $0x68] sm:$0xff]
    %v1908 = vld [vmem:[#allocation6 + $0x88] sm:$0xff]
    %v1909 = vld [vmem:[#allocation6 + $0xa8] sm:$0xff]
    %v1910 = vld [vmem:[#allocation6 + $0xc8] sm:$0xff]
    %v1911 = vld [vmem:[#allocation6 + $0xe8] sm:$0xff]
    %v1912 = vld [vmem:[#allocation6 + $0x108] sm:$0xff]
    %v1913 = vld [vmem:[#allocation6 + $0x128] sm:$0xff]
    %v1914 = vld [vmem:[#allocation6 + $0x148] sm:$0xff]
    %v1915 = vld [vmem:[#allocation6 + $0x168] sm:$0xff]
    %v1916 = vld [vmem:[#allocation6 + $0x188] sm:$0xff]
    %v1917 = vld [vmem:[#allocation6 + $0x1a8] sm:$0xff]
    %v1918 = vld [vmem:[#allocation6 + $0x1c8] sm:$0xff]
    %v1919 = vld [vmem:[#allocation6 + $0x1e8] sm:$0xff]
    %1920 = vmatprep.subr.mxu0 0.0
    %1921 = vmatpush1.msra.mxu0 %v1904
    %1922 = vmatprep.subr.mxu0 0.0
    %1923 = vmatpush1.msra.mxu0 %v1905
    %1924 = vmatprep.subr.mxu0 0.0
    %1925 = vmatpush1.msra.mxu0 %v1906
    %1926 = vmatprep.subr.mxu0 0.0
    %1927 = vmatpush1.msra.mxu0 %v1907
    %1928 = vmatprep.subr.mxu0 0.0
    %1929 = vmatpush1.msra.mxu0 %v1908
    %1930 = vmatprep.subr.mxu0 0.0
    %1931 = vmatpush1.msra.mxu0 %v1909
    %1932 = vmatprep.subr.mxu0 0.0
    %1933 = vmatpush1.msra.mxu0 %v1910
    %1934 = vmatprep.subr.mxu0 0.0
    %1935 = vmatpush1.msra.mxu0 %v1911
    %1936 = vmatprep.subr.mxu0 0.0
    %1937 = vmatpush1.msra.mxu0 %v1912
    %1938 = vmatprep.subr.mxu0 0.0
    %1939 = vmatpush1.msra.mxu0 %v1913
    %1940 = vmatprep.subr.mxu0 0.0
    %1941 = vmatpush1.msra.mxu0 %v1914
    %1942 = vmatprep.subr.mxu0 0.0
    %1943 = vmatpush1.msra.mxu0 %v1915
    %1944 = vmatprep.subr.mxu0 0.0
    %1945 = vmatpush1.msra.mxu0 %v1916
    %1946 = vmatprep.subr.mxu0 0.0
    %1947 = vmatpush1.msra.mxu0 %v1917
    %1948 = vmatprep.subr.mxu0 0.0
    %1949 = vmatpush1.msra.mxu0 %v1918
    %1950 = vmatprep.subr.mxu0 0.0
    %1951 = vmatpush1.msra.mxu0 %v1919
    %1952 = vmatprep.subr.mxu0 0.0
    %1953 = vmatpush1.msra.mxu0 0.0
    %1954 = vmatprep.subr.mxu0 0.0
    %1955 = vmatpush1.msra.mxu0 0.0
    %1956 = vmatprep.subr.mxu0 0.0
    %1957 = vmatpush1.msra.mxu0 0.0
    %1958 = vmatprep.subr.mxu0 0.0
    %1959 = vmatpush1.msra.mxu0 0.0
    %1960 = vmatprep.subr.mxu0 0.0
    %1961 = vmatpush1.msra.mxu0 0.0
    %1962 = vmatprep.subr.mxu0 0.0
    %1963 = vmatpush1.msra.mxu0 0.0
    %1964 = vmatprep.subr.mxu0 0.0
    %1965 = vmatpush1.msra.mxu0 0.0
    %1966 = vmatprep.subr.mxu0 0.0
    %1967 = vmatpush1.msra.mxu0 0.0
    %1968 = vmatprep.subr.mxu0 0.0
    %1969 = vmatpush1.msra.mxu0 0.0
    %1970 = vmatprep.subr.mxu0 0.0
    %1971 = vmatpush1.msra.mxu0 0.0
    %1972 = vmatprep.subr.mxu0 0.0
    %1973 = vmatpush1.msra.mxu0 0.0
    %1974 = vmatprep.subr.mxu0 0.0
    %1975 = vmatpush1.msra.mxu0 0.0
    %1976 = vmatprep.subr.mxu0 0.0
    %1977 = vmatpush1.msra.mxu0 0.0
    %1978 = vmatprep.subr.mxu0 0.0
    %1979 = vmatpush1.msra.mxu0 0.0
    %1980 = vmatprep.subr.mxu0 0.0
    %1981 = vmatpush1.msra.mxu0 0.0
    %1982 = vmatprep.subr.mxu0 0.0
    %1983 = vmatpush1.msra.mxu0 0.0
    %1984 = vmatprep.mubr.f32.mxu0 0.0
    %1985 = vmatmul.mubr.f32.gmra.mrb[0].mxu0 %v1897
    %v1986 = vpop.f32.mrb[0].mxu0
    %v1987 = vadd.f32 0.0, %v1986
    %v1988 = vpop.f32.mrb[0].mxu0
    %1989 = vdwg.mxu0
    %v1990 = vadd.f32 %v1903, %v1987
    %v1991 = vxor.u32 %v1990, 2147483648
    %v1992 = vmul.f32 %v1991, 1.442695
    %v1993 = vpow.pop %v1992
    %v1994 = vadd.f32 %v1993, 1.0
    %v1995 = vrcp.pop %v1994
    %v1996 = vmul.f32 1.0, %v1995
    %v1997 = vmul.f32 %v1996, %v1801
    %v1998 = vld [vmem:[%s1902] sm:$0xff]
    %v1999 = vld [vmem:[#allocation6] sm:$0xff]
    %v2000 = vld [vmem:[#allocation6 + $0x20] sm:$0xff]
    %v2001 = vld [vmem:[#allocation6 + $0x40] sm:$0xff]
    %v2002 = vld [vmem:[#allocation6 + $0x60] sm:$0xff]
    %v2003 = vld [vmem:[#allocation6 + $0x80] sm:$0xff]
    %v2004 = vld [vmem:[#allocation6 + $0xa0] sm:$0xff]
    %v2005 = vld [vmem:[#allocation6 + $0xc0] sm:$0xff]
    %v2006 = vld [vmem:[#allocation6 + $0xe0] sm:$0xff]
    %v2007 = vld [vmem:[#allocation6 + $0x100] sm:$0xff]
    %v2008 = vld [vmem:[#allocation6 + $0x120] sm:$0xff]
    %v2009 = vld [vmem:[#allocation6 + $0x140] sm:$0xff]
    %v2010 = vld [vmem:[#allocation6 + $0x160] sm:$0xff]
    %v2011 = vld [vmem:[#allocation6 + $0x180] sm:$0xff]
    %v2012 = vld [vmem:[#allocation6 + $0x1a0] sm:$0xff]
    %v2013 = vld [vmem:[#allocation6 + $0x1c0] sm:$0xff]
    %v2014 = vld [vmem:[#allocation6 + $0x1e0] sm:$0xff]
    %2015 = vmatprep.subr.mxu0 0.0
    %2016 = vmatpush1.msra.mxu0 %v1999
    %2017 = vmatprep.subr.mxu0 0.0
    %2018 = vmatpush1.msra.mxu0 %v2000
    %2019 = vmatprep.subr.mxu0 0.0
    %2020 = vmatpush1.msra.mxu0 %v2001
    %2021 = vmatprep.subr.mxu0 0.0
    %2022 = vmatpush1.msra.mxu0 %v2002
    %2023 = vmatprep.subr.mxu0 0.0
    %2024 = vmatpush1.msra.mxu0 %v2003
    %2025 = vmatprep.subr.mxu0 0.0
    %2026 = vmatpush1.msra.mxu0 %v2004
    %2027 = vmatprep.subr.mxu0 0.0
    %2028 = vmatpush1.msra.mxu0 %v2005
    %2029 = vmatprep.subr.mxu0 0.0
    %2030 = vmatpush1.msra.mxu0 %v2006
    %2031 = vmatprep.subr.mxu0 0.0
    %2032 = vmatpush1.msra.mxu0 %v2007
    %2033 = vmatprep.subr.mxu0 0.0
    %2034 = vmatpush1.msra.mxu0 %v2008
    %2035 = vmatprep.subr.mxu0 0.0
    %2036 = vmatpush1.msra.mxu0 %v2009
    %2037 = vmatprep.subr.mxu0 0.0
    %2038 = vmatpush1.msra.mxu0 %v2010
    %2039 = vmatprep.subr.mxu0 0.0
    %2040 = vmatpush1.msra.mxu0 %v2011
    %2041 = vmatprep.subr.mxu0 0.0
    %2042 = vmatpush1.msra.mxu0 %v2012
    %2043 = vmatprep.subr.mxu0 0.0
    %2044 = vmatpush1.msra.mxu0 %v2013
    %2045 = vmatprep.subr.mxu0 0.0
    %2046 = vmatpush1.msra.mxu0 %v2014
    %2047 = vmatprep.subr.mxu0 0.0
    %2048 = vmatpush1.msra.mxu0 0.0
    %2049 = vmatprep.subr.mxu0 0.0
    %2050 = vmatpush1.msra.mxu0 0.0
    %2051 = vmatprep.subr.mxu0 0.0
    %2052 = vmatpush1.msra.mxu0 0.0
    %2053 = vmatprep.subr.mxu0 0.0
    %2054 = vmatpush1.msra.mxu0 0.0
    %2055 = vmatprep.subr.mxu0 0.0
    %2056 = vmatpush1.msra.mxu0 0.0
    %2057 = vmatprep.subr.mxu0 0.0
    %2058 = vmatpush1.msra.mxu0 0.0
    %2059 = vmatprep.subr.mxu0 0.0
    %2060 = vmatpush1.msra.mxu0 0.0
    %2061 = vmatprep.subr.mxu0 0.0
    %2062 = vmatpush1.msra.mxu0 0.0
    %2063 = vmatprep.subr.mxu0 0.0
    %2064 = vmatpush1.msra.mxu0 0.0
    %2065 = vmatprep.subr.mxu0 0.0
    %2066 = vmatpush1.msra.mxu0 0.0
    %2067 = vmatprep.subr.mxu0 0.0
    %2068 = vmatpush1.msra.mxu0 0.0
    %2069 = vmatprep.subr.mxu0 0.0
    %2070 = vmatpush1.msra.mxu0 0.0
    %2071 = vmatprep.subr.mxu0 0.0
    %2072 = vmatpush1.msra.mxu0 0.0
    %2073 = vmatprep.subr.mxu0 0.0
    %2074 = vmatpush1.msra.mxu0 0.0
    %2075 = vmatprep.subr.mxu0 0.0
    %2076 = vmatpush1.msra.mxu0 0.0
    %2077 = vmatprep.subr.mxu0 0.0
    %2078 = vmatpush1.msra.mxu0 0.0
    %2079 = vmatprep.mubr.f32.mxu0 0.0
    %2080 = vmatmul.mubr.f32.gmra.mrb[0].mxu0 %v1897
    %v2081 = vpop.f32.mrb[0].mxu0
    %v2082 = vadd.f32 0.0, %v2081
    %v2083 = vpop.f32.mrb[0].mxu0
    %2084 = vdwg.mxu0
    %v2085 = vadd.f32 %v1998, %v2082
    %v2086 = vxor.u32 %v2085, 2147483648
    %v2087 = vmul.f32 %v2086, 1.442695
    %v2088 = vpow.pop %v2087
    %v2089 = vadd.f32 %v2088, 1.0
    %v2090 = vrcp.pop %v2089
    %v2091 = vmul.f32 1.0, %v2090
    %v2092 = vld [vmem:[%s1902 + $0x10] sm:$0xff]
    %v2093 = vld [vmem:[#allocation6 + $0x10] sm:$0xff]
    %v2094 = vld [vmem:[#allocation6 + $0x30] sm:$0xff]
    %v2095 = vld [vmem:[#allocation6 + $0x50] sm:$0xff]
    %v2096 = vld [vmem:[#allocation6 + $0x70] sm:$0xff]
    %v2097 = vld [vmem:[#allocation6 + $0x90] sm:$0xff]
    %v2098 = vld [vmem:[#allocation6 + $0xb0] sm:$0xff]
    %v2099 = vld [vmem:[#allocation6 + $0xd0] sm:$0xff]
    %v2100 = vld [vmem:[#allocation6 + $0xf0] sm:$0xff]
    %v2101 = vld [vmem:[#allocation6 + $0x110] sm:$0xff]
    %v2102 = vld [vmem:[#allocation6 + $0x130] sm:$0xff]
    %v2103 = vld [vmem:[#allocation6 + $0x150] sm:$0xff]
    %v2104 = vld [vmem:[#allocation6 + $0x170] sm:$0xff]
    %v2105 = vld [vmem:[#allocation6 + $0x190] sm:$0xff]
    %v2106 = vld [vmem:[#allocation6 + $0x1b0] sm:$0xff]
    %v2107 = vld [vmem:[#allocation6 + $0x1d0] sm:$0xff]
    %v2108 = vld [vmem:[#allocation6 + $0x1f0] sm:$0xff]
    %2109 = vmatprep.subr.mxu0 0.0
    %2110 = vmatpush1.msra.mxu0 %v2093
    %2111 = vmatprep.subr.mxu0 0.0
    %2112 = vmatpush1.msra.mxu0 %v2094
    %2113 = vmatprep.subr.mxu0 0.0
    %2114 = vmatpush1.msra.mxu0 %v2095
    %2115 = vmatprep.subr.mxu0 0.0
    %2116 = vmatpush1.msra.mxu0 %v2096
    %2117 = vmatprep.subr.mxu0 0.0
    %2118 = vmatpush1.msra.mxu0 %v2097
    %2119 = vmatprep.subr.mxu0 0.0
    %2120 = vmatpush1.msra.mxu0 %v2098
    %2121 = vmatprep.subr.mxu0 0.0
    %2122 = vmatpush1.msra.mxu0 %v2099
    %2123 = vmatprep.subr.mxu0 0.0
    %2124 = vmatpush1.msra.mxu0 %v2100
    %2125 = vmatprep.subr.mxu0 0.0
    %2126 = vmatpush1.msra.mxu0 %v2101
    %2127 = vmatprep.subr.mxu0 0.0
    %2128 = vmatpush1.msra.mxu0 %v2102
    %2129 = vmatprep.subr.mxu0 0.0
    %2130 = vmatpush1.msra.mxu0 %v2103
    %2131 = vmatprep.subr.mxu0 0.0
    %2132 = vmatpush1.msra.mxu0 %v2104
    %2133 = vmatprep.subr.mxu0 0.0
    %2134 = vmatpush1.msra.mxu0 %v2105
    %2135 = vmatprep.subr.mxu0 0.0
    %2136 = vmatpush1.msra.mxu0 %v2106
    %2137 = vmatprep.subr.mxu0 0.0
    %2138 = vmatpush1.msra.mxu0 %v2107
    %2139 = vmatprep.subr.mxu0 0.0
    %2140 = vmatpush1.msra.mxu0 %v2108
    %2141 = vmatprep.subr.mxu0 0.0
    %2142 = vmatpush1.msra.mxu0 0.0
    %2143 = vmatprep.subr.mxu0 0.0
    %2144 = vmatpush1.msra.mxu0 0.0
    %2145 = vmatprep.subr.mxu0 0.0
    %2146 = vmatpush1.msra.mxu0 0.0
    %2147 = vmatprep.subr.mxu0 0.0
    %2148 = vmatpush1.msra.mxu0 0.0
    %2149 = vmatprep.subr.mxu0 0.0
    %2150 = vmatpush1.msra.mxu0 0.0
    %2151 = vmatprep.subr.mxu0 0.0
    %2152 = vmatpush1.msra.mxu0 0.0
    %2153 = vmatprep.subr.mxu0 0.0
    %2154 = vmatpush1.msra.mxu0 0.0
    %2155 = vmatprep.subr.mxu0 0.0
    %2156 = vmatpush1.msra.mxu0 0.0
    %2157 = vmatprep.subr.mxu0 0.0
    %2158 = vmatpush1.msra.mxu0 0.0
    %2159 = vmatprep.subr.mxu0 0.0
    %2160 = vmatpush1.msra.mxu0 0.0
    %2161 = vmatprep.subr.mxu0 0.0
    %2162 = vmatpush1.msra.mxu0 0.0
    %2163 = vmatprep.subr.mxu0 0.0
    %2164 = vmatpush1.msra.mxu0 0.0
    %2165 = vmatprep.subr.mxu0 0.0
    %2166 = vmatpush1.msra.mxu0 0.0
    %2167 = vmatprep.subr.mxu0 0.0
    %2168 = vmatpush1.msra.mxu0 0.0
    %2169 = vmatprep.subr.mxu0 0.0
    %2170 = vmatpush1.msra.mxu0 0.0
    %2171 = vmatprep.subr.mxu0 0.0
    %2172 = vmatpush1.msra.mxu0 0.0
    %2173 = vmatprep.mubr.f32.mxu0 0.0
    %2174 = vmatmul.mubr.f32.gmra.mrb[0].mxu0 %v1897
    %v2175 = vpop.f32.mrb[0].mxu0
    %v2176 = vadd.f32 0.0, %v2175
    %v2177 = vpop.f32.mrb[0].mxu0
    %2178 = vdwg.mxu0
    %v2179 = vadd.f32 %v2092, %v2176
    %v2180 = vtanh.pop %v2179
    %v2181 = vmul.f32 %v2091, %v2180
    %v2182 = vadd.f32 %v1997, %v2181
    %v2183 = vld [vmem:[%s1902 + $0x18] sm:$0xff]
    %v2184 = vld [vmem:[#allocation6 + $0x18] sm:$0xff]
    %v2185 = vld [vmem:[#allocation6 + $0x38] sm:$0xff]
    %v2186 = vld [vmem:[#allocation6 + $0x58] sm:$0xff]
    %v2187 = vld [vmem:[#allocation6 + $0x78] sm:$0xff]
    %v2188 = vld [vmem:[#allocation6 + $0x98] sm:$0xff]
    %v2189 = vld [vmem:[#allocation6 + $0xb8] sm:$0xff]
    %v2190 = vld [vmem:[#allocation6 + $0xd8] sm:$0xff]
    %v2191 = vld [vmem:[#allocation6 + $0xf8] sm:$0xff]
    %v2192 = vld [vmem:[#allocation6 + $0x118] sm:$0xff]
    %v2193 = vld [vmem:[#allocation6 + $0x138] sm:$0xff]
    %v2194 = vld [vmem:[#allocation6 + $0x158] sm:$0xff]
    %v2195 = vld [vmem:[#allocation6 + $0x178] sm:$0xff]
    %v2196 = vld [vmem:[#allocation6 + $0x198] sm:$0xff]
    %v2197 = vld [vmem:[#allocation6 + $0x1b8] sm:$0xff]
    %v2198 = vld [vmem:[#allocation6 + $0x1d8] sm:$0xff]
    %v2199 = vld [vmem:[#allocation6 + $0x1f8] sm:$0xff]
    %2200 = vmatprep.subr.mxu0 0.0
    %2201 = vmatpush1.msra.mxu0 %v2184
    %2202 = vmatprep.subr.mxu0 0.0
    %2203 = vmatpush1.msra.mxu0 %v2185
    %2204 = vmatprep.subr.mxu0 0.0
    %2205 = vmatpush1.msra.mxu0 %v2186
    %2206 = vmatprep.subr.mxu0 0.0
    %2207 = vmatpush1.msra.mxu0 %v2187
    %2208 = vmatprep.subr.mxu0 0.0
    %2209 = vmatpush1.msra.mxu0 %v2188
    %2210 = vmatprep.subr.mxu0 0.0
    %2211 = vmatpush1.msra.mxu0 %v2189
    %2212 = vmatprep.subr.mxu0 0.0
    %2213 = vmatpush1.msra.mxu0 %v2190
    %2214 = vmatprep.subr.mxu0 0.0
    %2215 = vmatpush1.msra.mxu0 %v2191
    %2216 = vmatprep.subr.mxu0 0.0
    %2217 = vmatpush1.msra.mxu0 %v2192
    %2218 = vmatprep.subr.mxu0 0.0
    %2219 = vmatpush1.msra.mxu0 %v2193
    %2220 = vmatprep.subr.mxu0 0.0
    %2221 = vmatpush1.msra.mxu0 %v2194
    %2222 = vmatprep.subr.mxu0 0.0
    %2223 = vmatpush1.msra.mxu0 %v2195
    %2224 = vmatprep.subr.mxu0 0.0
    %2225 = vmatpush1.msra.mxu0 %v2196
    %2226 = vmatprep.subr.mxu0 0.0
    %2227 = vmatpush1.msra.mxu0 %v2197
    %2228 = vmatprep.subr.mxu0 0.0
    %2229 = vmatpush1.msra.mxu0 %v2198
    %2230 = vmatprep.subr.mxu0 0.0
    %2231 = vmatpush1.msra.mxu0 %v2199
    %2232 = vmatprep.subr.mxu0 0.0
    %2233 = vmatpush1.msra.mxu0 0.0
    %2234 = vmatprep.subr.mxu0 0.0
    %2235 = vmatpush1.msra.mxu0 0.0
    %2236 = vmatprep.subr.mxu0 0.0
    %2237 = vmatpush1.msra.mxu0 0.0
    %2238 = vmatprep.subr.mxu0 0.0
    %2239 = vmatpush1.msra.mxu0 0.0
    %2240 = vmatprep.subr.mxu0 0.0
    %2241 = vmatpush1.msra.mxu0 0.0
    %2242 = vmatprep.subr.mxu0 0.0
    %2243 = vmatpush1.msra.mxu0 0.0
    %2244 = vmatprep.subr.mxu0 0.0
    %2245 = vmatpush1.msra.mxu0 0.0
    %2246 = vmatprep.subr.mxu0 0.0
    %2247 = vmatpush1.msra.mxu0 0.0
    %2248 = vmatprep.subr.mxu0 0.0
    %2249 = vmatpush1.msra.mxu0 0.0
    %2250 = vmatprep.subr.mxu0 0.0
    %2251 = vmatpush1.msra.mxu0 0.0
    %2252 = vmatprep.subr.mxu0 0.0
    %2253 = vmatpush1.msra.mxu0 0.0
    %2254 = vmatprep.subr.mxu0 0.0
    %2255 = vmatpush1.msra.mxu0 0.0
    %2256 = vmatprep.subr.mxu0 0.0
    %2257 = vmatpush1.msra.mxu0 0.0
    %2258 = vmatprep.subr.mxu0 0.0
    %2259 = vmatpush1.msra.mxu0 0.0
    %2260 = vmatprep.subr.mxu0 0.0
    %2261 = vmatpush1.msra.mxu0 0.0
    %2262 = vmatprep.subr.mxu0 0.0
    %2263 = vmatpush1.msra.mxu0 0.0
    %2264 = vmatprep.mubr.f32.mxu0 0.0
    %2265 = vmatmul.mubr.f32.gmra.mrb[0].mxu0 %v1897
    %v2266 = vpop.f32.mrb[0].mxu0
    %v2267 = vadd.f32 0.0, %v2266
    %v2268 = vpop.f32.mrb[0].mxu0
    %2269 = vdwg.mxu0
    %v2270 = vadd.f32 %v2183, %v2267
    %v2271 = vxor.u32 %v2270, 2147483648
    %v2272 = vmul.f32 %v2271, 1.442695
    %v2273 = vpow.pop %v2272
    %v2274 = vadd.f32 %v2273, 1.0
    %v2275 = vrcp.pop %v2274
    %v2276 = vmul.f32 1.0, %v2275
    %v2277 = vtanh.pop %v2182
    %v2278 = vmul.f32 %v2276, %v2277
    %s2279 = scalar_lea.vmem [#allocation3], 32
    %2280 = vst [vmem:[%s2279] sm:$0xff] %v2278
    %s2281 = smul.u32 5, 4
    %s2282 = smul.addr %s2281, 8
    %s2283 = scalar_lea.vmem [#allocation2], %s2282
    %v2284 = vld [vmem:[%s2283 + $0x8] sm:$0xff]
    %v2285 = vld [vmem:[#allocation6 + $0x8] sm:$0xff]
    %v2286 = vld [vmem:[#allocation6 + $0x28] sm:$0xff]
    %v2287 = vld [vmem:[#allocation6 + $0x48] sm:$0xff]
    %v2288 = vld [vmem:[#allocation6 + $0x68] sm:$0xff]
    %v2289 = vld [vmem:[#allocation6 + $0x88] sm:$0xff]
    %v2290 = vld [vmem:[#allocation6 + $0xa8] sm:$0xff]
    %v2291 = vld [vmem:[#allocation6 + $0xc8] sm:$0xff]
    %v2292 = vld [vmem:[#allocation6 + $0xe8] sm:$0xff]
    %v2293 = vld [vmem:[#allocation6 + $0x108] sm:$0xff]
    %v2294 = vld [vmem:[#allocation6 + $0x128] sm:$0xff]
    %v2295 = vld [vmem:[#allocation6 + $0x148] sm:$0xff]
    %v2296 = vld [vmem:[#allocation6 + $0x168] sm:$0xff]
    %v2297 = vld [vmem:[#allocation6 + $0x188] sm:$0xff]
    %v2298 = vld [vmem:[#allocation6 + $0x1a8] sm:$0xff]
    %v2299 = vld [vmem:[#allocation6 + $0x1c8] sm:$0xff]
    %v2300 = vld [vmem:[#allocation6 + $0x1e8] sm:$0xff]
    %2301 = vmatprep.subr.mxu0 0.0
    %2302 = vmatpush1.msra.mxu0 %v2285
    %2303 = vmatprep.subr.mxu0 0.0
    %2304 = vmatpush1.msra.mxu0 %v2286
    %2305 = vmatprep.subr.mxu0 0.0
    %2306 = vmatpush1.msra.mxu0 %v2287
    %2307 = vmatprep.subr.mxu0 0.0
    %2308 = vmatpush1.msra.mxu0 %v2288
    %2309 = vmatprep.subr.mxu0 0.0
    %2310 = vmatpush1.msra.mxu0 %v2289
    %2311 = vmatprep.subr.mxu0 0.0
    %2312 = vmatpush1.msra.mxu0 %v2290
    %2313 = vmatprep.subr.mxu0 0.0
    %2314 = vmatpush1.msra.mxu0 %v2291
    %2315 = vmatprep.subr.mxu0 0.0
    %2316 = vmatpush1.msra.mxu0 %v2292
    %2317 = vmatprep.subr.mxu0 0.0
    %2318 = vmatpush1.msra.mxu0 %v2293
    %2319 = vmatprep.subr.mxu0 0.0
    %2320 = vmatpush1.msra.mxu0 %v2294
    %2321 = vmatprep.subr.mxu0 0.0
    %2322 = vmatpush1.msra.mxu0 %v2295
    %2323 = vmatprep.subr.mxu0 0.0
    %2324 = vmatpush1.msra.mxu0 %v2296
    %2325 = vmatprep.subr.mxu0 0.0
    %2326 = vmatpush1.msra.mxu0 %v2297
    %2327 = vmatprep.subr.mxu0 0.0
    %2328 = vmatpush1.msra.mxu0 %v2298
    %2329 = vmatprep.subr.mxu0 0.0
    %2330 = vmatpush1.msra.mxu0 %v2299
    %2331 = vmatprep.subr.mxu0 0.0
    %2332 = vmatpush1.msra.mxu0 %v2300
    %2333 = vmatprep.subr.mxu0 0.0
    %2334 = vmatpush1.msra.mxu0 0.0
    %2335 = vmatprep.subr.mxu0 0.0
    %2336 = vmatpush1.msra.mxu0 0.0
    %2337 = vmatprep.subr.mxu0 0.0
    %2338 = vmatpush1.msra.mxu0 0.0
    %2339 = vmatprep.subr.mxu0 0.0
    %2340 = vmatpush1.msra.mxu0 0.0
    %2341 = vmatprep.subr.mxu0 0.0
    %2342 = vmatpush1.msra.mxu0 0.0
    %2343 = vmatprep.subr.mxu0 0.0
    %2344 = vmatpush1.msra.mxu0 0.0
    %2345 = vmatprep.subr.mxu0 0.0
    %2346 = vmatpush1.msra.mxu0 0.0
    %2347 = vmatprep.subr.mxu0 0.0
    %2348 = vmatpush1.msra.mxu0 0.0
    %2349 = vmatprep.subr.mxu0 0.0
    %2350 = vmatpush1.msra.mxu0 0.0
    %2351 = vmatprep.subr.mxu0 0.0
    %2352 = vmatpush1.msra.mxu0 0.0
    %2353 = vmatprep.subr.mxu0 0.0
    %2354 = vmatpush1.msra.mxu0 0.0
    %2355 = vmatprep.subr.mxu0 0.0
    %2356 = vmatpush1.msra.mxu0 0.0
    %2357 = vmatprep.subr.mxu0 0.0
    %2358 = vmatpush1.msra.mxu0 0.0
    %2359 = vmatprep.subr.mxu0 0.0
    %2360 = vmatpush1.msra.mxu0 0.0
    %2361 = vmatprep.subr.mxu0 0.0
    %2362 = vmatpush1.msra.mxu0 0.0
    %2363 = vmatprep.subr.mxu0 0.0
    %2364 = vmatpush1.msra.mxu0 0.0
    %2365 = vmatprep.mubr.f32.mxu0 0.0
    %2366 = vmatmul.mubr.f32.gmra.mrb[0].mxu0 %v2278
    %v2367 = vpop.f32.mrb[0].mxu0
    %v2368 = vadd.f32 0.0, %v2367
    %v2369 = vpop.f32.mrb[0].mxu0
    %2370 = vdwg.mxu0
    %v2371 = vadd.f32 %v2284, %v2368
    %v2372 = vxor.u32 %v2371, 2147483648
    %v2373 = vmul.f32 %v2372, 1.442695
    %v2374 = vpow.pop %v2373
    %v2375 = vadd.f32 %v2374, 1.0
    %v2376 = vrcp.pop %v2375
    %v2377 = vmul.f32 1.0, %v2376
    %v2378 = vmul.f32 %v2377, %v2182
    %v2379 = vld [vmem:[%s2283] sm:$0xff]
    %v2380 = vld [vmem:[#allocation6] sm:$0xff]
    %v2381 = vld [vmem:[#allocation6 + $0x20] sm:$0xff]
    %v2382 = vld [vmem:[#allocation6 + $0x40] sm:$0xff]
    %v2383 = vld [vmem:[#allocation6 + $0x60] sm:$0xff]
    %v2384 = vld [vmem:[#allocation6 + $0x80] sm:$0xff]
    %v2385 = vld [vmem:[#allocation6 + $0xa0] sm:$0xff]
    %v2386 = vld [vmem:[#allocation6 + $0xc0] sm:$0xff]
    %v2387 = vld [vmem:[#allocation6 + $0xe0] sm:$0xff]
    %v2388 = vld [vmem:[#allocation6 + $0x100] sm:$0xff]
    %v2389 = vld [vmem:[#allocation6 + $0x120] sm:$0xff]
    %v2390 = vld [vmem:[#allocation6 + $0x140] sm:$0xff]
    %v2391 = vld [vmem:[#allocation6 + $0x160] sm:$0xff]
    %v2392 = vld [vmem:[#allocation6 + $0x180] sm:$0xff]
    %v2393 = vld [vmem:[#allocation6 + $0x1a0] sm:$0xff]
    %v2394 = vld [vmem:[#allocation6 + $0x1c0] sm:$0xff]
    %v2395 = vld [vmem:[#allocation6 + $0x1e0] sm:$0xff]
    %2396 = vmatprep.subr.mxu0 0.0
    %2397 = vmatpush1.msra.mxu0 %v2380
    %2398 = vmatprep.subr.mxu0 0.0
    %2399 = vmatpush1.msra.mxu0 %v2381
    %2400 = vmatprep.subr.mxu0 0.0
    %2401 = vmatpush1.msra.mxu0 %v2382
    %2402 = vmatprep.subr.mxu0 0.0
    %2403 = vmatpush1.msra.mxu0 %v2383
    %2404 = vmatprep.subr.mxu0 0.0
    %2405 = vmatpush1.msra.mxu0 %v2384
    %2406 = vmatprep.subr.mxu0 0.0
    %2407 = vmatpush1.msra.mxu0 %v2385
    %2408 = vmatprep.subr.mxu0 0.0
    %2409 = vmatpush1.msra.mxu0 %v2386
    %2410 = vmatprep.subr.mxu0 0.0
    %2411 = vmatpush1.msra.mxu0 %v2387
    %2412 = vmatprep.subr.mxu0 0.0
    %2413 = vmatpush1.msra.mxu0 %v2388
    %2414 = vmatprep.subr.mxu0 0.0
    %2415 = vmatpush1.msra.mxu0 %v2389
    %2416 = vmatprep.subr.mxu0 0.0
    %2417 = vmatpush1.msra.mxu0 %v2390
    %2418 = vmatprep.subr.mxu0 0.0
    %2419 = vmatpush1.msra.mxu0 %v2391
    %2420 = vmatprep.subr.mxu0 0.0
    %2421 = vmatpush1.msra.mxu0 %v2392
    %2422 = vmatprep.subr.mxu0 0.0
    %2423 = vmatpush1.msra.mxu0 %v2393
    %2424 = vmatprep.subr.mxu0 0.0
    %2425 = vmatpush1.msra.mxu0 %v2394
    %2426 = vmatprep.subr.mxu0 0.0
    %2427 = vmatpush1.msra.mxu0 %v2395
    %2428 = vmatprep.subr.mxu0 0.0
    %2429 = vmatpush1.msra.mxu0 0.0
    %2430 = vmatprep.subr.mxu0 0.0
    %2431 = vmatpush1.msra.mxu0 0.0
    %2432 = vmatprep.subr.mxu0 0.0
    %2433 = vmatpush1.msra.mxu0 0.0
    %2434 = vmatprep.subr.mxu0 0.0
    %2435 = vmatpush1.msra.mxu0 0.0
    %2436 = vmatprep.subr.mxu0 0.0
    %2437 = vmatpush1.msra.mxu0 0.0
    %2438 = vmatprep.subr.mxu0 0.0
    %2439 = vmatpush1.msra.mxu0 0.0
    %2440 = vmatprep.subr.mxu0 0.0
    %2441 = vmatpush1.msra.mxu0 0.0
    %2442 = vmatprep.subr.mxu0 0.0
    %2443 = vmatpush1.msra.mxu0 0.0
    %2444 = vmatprep.subr.mxu0 0.0
    %2445 = vmatpush1.msra.mxu0 0.0
    %2446 = vmatprep.subr.mxu0 0.0
    %2447 = vmatpush1.msra.mxu0 0.0
    %2448 = vmatprep.subr.mxu0 0.0
    %2449 = vmatpush1.msra.mxu0 0.0
    %2450 = vmatprep.subr.mxu0 0.0
    %2451 = vmatpush1.msra.mxu0 0.0
    %2452 = vmatprep.subr.mxu0 0.0
    %2453 = vmatpush1.msra.mxu0 0.0
    %2454 = vmatprep.subr.mxu0 0.0
    %2455 = vmatpush1.msra.mxu0 0.0
    %2456 = vmatprep.subr.mxu0 0.0
    %2457 = vmatpush1.msra.mxu0 0.0
    %2458 = vmatprep.subr.mxu0 0.0
    %2459 = vmatpush1.msra.mxu0 0.0
    %2460 = vmatprep.mubr.f32.mxu0 0.0
    %2461 = vmatmul.mubr.f32.gmra.mrb[0].mxu0 %v2278
    %v2462 = vpop.f32.mrb[0].mxu0
    %v2463 = vadd.f32 0.0, %v2462
    %v2464 = vpop.f32.mrb[0].mxu0
    %2465 = vdwg.mxu0
    %v2466 = vadd.f32 %v2379, %v2463
    %v2467 = vxor.u32 %v2466, 2147483648
    %v2468 = vmul.f32 %v2467, 1.442695
    %v2469 = vpow.pop %v2468
    %v2470 = vadd.f32 %v2469, 1.0
    %v2471 = vrcp.pop %v2470
    %v2472 = vmul.f32 1.0, %v2471
    %v2473 = vld [vmem:[%s2283 + $0x10] sm:$0xff]
    %v2474 = vld [vmem:[#allocation6 + $0x10] sm:$0xff]
    %v2475 = vld [vmem:[#allocation6 + $0x30] sm:$0xff]
    %v2476 = vld [vmem:[#allocation6 + $0x50] sm:$0xff]
    %v2477 = vld [vmem:[#allocation6 + $0x70] sm:$0xff]
    %v2478 = vld [vmem:[#allocation6 + $0x90] sm:$0xff]
    %v2479 = vld [vmem:[#allocation6 + $0xb0] sm:$0xff]
    %v2480 = vld [vmem:[#allocation6 + $0xd0] sm:$0xff]
    %v2481 = vld [vmem:[#allocation6 + $0xf0] sm:$0xff]
    %v2482 = vld [vmem:[#allocation6 + $0x110] sm:$0xff]
    %v2483 = vld [vmem:[#allocation6 + $0x130] sm:$0xff]
    %v2484 = vld [vmem:[#allocation6 + $0x150] sm:$0xff]
    %v2485 = vld [vmem:[#allocation6 + $0x170] sm:$0xff]
    %v2486 = vld [vmem:[#allocation6 + $0x190] sm:$0xff]
    %v2487 = vld [vmem:[#allocation6 + $0x1b0] sm:$0xff]
    %v2488 = vld [vmem:[#allocation6 + $0x1d0] sm:$0xff]
    %v2489 = vld [vmem:[#allocation6 + $0x1f0] sm:$0xff]
    %2490 = vmatprep.subr.mxu0 0.0
    %2491 = vmatpush1.msra.mxu0 %v2474
    %2492 = vmatprep.subr.mxu0 0.0
    %2493 = vmatpush1.msra.mxu0 %v2475
    %2494 = vmatprep.subr.mxu0 0.0
    %2495 = vmatpush1.msra.mxu0 %v2476
    %2496 = vmatprep.subr.mxu0 0.0
    %2497 = vmatpush1.msra.mxu0 %v2477
    %2498 = vmatprep.subr.mxu0 0.0
    %2499 = vmatpush1.msra.mxu0 %v2478
    %2500 = vmatprep.subr.mxu0 0.0
    %2501 = vmatpush1.msra.mxu0 %v2479
    %2502 = vmatprep.subr.mxu0 0.0
    %2503 = vmatpush1.msra.mxu0 %v2480
    %2504 = vmatprep.subr.mxu0 0.0
    %2505 = vmatpush1.msra.mxu0 %v2481
    %2506 = vmatprep.subr.mxu0 0.0
    %2507 = vmatpush1.msra.mxu0 %v2482
    %2508 = vmatprep.subr.mxu0 0.0
    %2509 = vmatpush1.msra.mxu0 %v2483
    %2510 = vmatprep.subr.mxu0 0.0
    %2511 = vmatpush1.msra.mxu0 %v2484
    %2512 = vmatprep.subr.mxu0 0.0
    %2513 = vmatpush1.msra.mxu0 %v2485
    %2514 = vmatprep.subr.mxu0 0.0
    %2515 = vmatpush1.msra.mxu0 %v2486
    %2516 = vmatprep.subr.mxu0 0.0
    %2517 = vmatpush1.msra.mxu0 %v2487
    %2518 = vmatprep.subr.mxu0 0.0
    %2519 = vmatpush1.msra.mxu0 %v2488
    %2520 = vmatprep.subr.mxu0 0.0
    %2521 = vmatpush1.msra.mxu0 %v2489
    %2522 = vmatprep.subr.mxu0 0.0
    %2523 = vmatpush1.msra.mxu0 0.0
    %2524 = vmatprep.subr.mxu0 0.0
    %2525 = vmatpush1.msra.mxu0 0.0
    %2526 = vmatprep.subr.mxu0 0.0
    %2527 = vmatpush1.msra.mxu0 0.0
    %2528 = vmatprep.subr.mxu0 0.0
    %2529 = vmatpush1.msra.mxu0 0.0
    %2530 = vmatprep.subr.mxu0 0.0
    %2531 = vmatpush1.msra.mxu0 0.0
    %2532 = vmatprep.subr.mxu0 0.0
    %2533 = vmatpush1.msra.mxu0 0.0
    %2534 = vmatprep.subr.mxu0 0.0
    %2535 = vmatpush1.msra.mxu0 0.0
    %2536 = vmatprep.subr.mxu0 0.0
    %2537 = vmatpush1.msra.mxu0 0.0
    %2538 = vmatprep.subr.mxu0 0.0
    %2539 = vmatpush1.msra.mxu0 0.0
    %2540 = vmatprep.subr.mxu0 0.0
    %2541 = vmatpush1.msra.mxu0 0.0
    %2542 = vmatprep.subr.mxu0 0.0
    %2543 = vmatpush1.msra.mxu0 0.0
    %2544 = vmatprep.subr.mxu0 0.0
    %2545 = vmatpush1.msra.mxu0 0.0
    %2546 = vmatprep.subr.mxu0 0.0
    %2547 = vmatpush1.msra.mxu0 0.0
    %2548 = vmatprep.subr.mxu0 0.0
    %2549 = vmatpush1.msra.mxu0 0.0
    %2550 = vmatprep.subr.mxu0 0.0
    %2551 = vmatpush1.msra.mxu0 0.0
    %2552 = vmatprep.subr.mxu0 0.0
    %2553 = vmatpush1.msra.mxu0 0.0
    %2554 = vmatprep.mubr.f32.mxu0 0.0
    %2555 = vmatmul.mubr.f32.gmra.mrb[0].mxu0 %v2278
    %v2556 = vpop.f32.mrb[0].mxu0
    %v2557 = vadd.f32 0.0, %v2556
    %v2558 = vpop.f32.mrb[0].mxu0
    %2559 = vdwg.mxu0
    %v2560 = vadd.f32 %v2473, %v2557
    %v2561 = vtanh.pop %v2560
    %v2562 = vmul.f32 %v2472, %v2561
    %v2563 = vadd.f32 %v2378, %v2562
    %v2564 = vld [vmem:[%s2283 + $0x18] sm:$0xff]
    %v2565 = vld [vmem:[#allocation6 + $0x18] sm:$0xff]
    %v2566 = vld [vmem:[#allocation6 + $0x38] sm:$0xff]
    %v2567 = vld [vmem:[#allocation6 + $0x58] sm:$0xff]
    %v2568 = vld [vmem:[#allocation6 + $0x78] sm:$0xff]
    %v2569 = vld [vmem:[#allocation6 + $0x98] sm:$0xff]
    %v2570 = vld [vmem:[#allocation6 + $0xb8] sm:$0xff]
    %v2571 = vld [vmem:[#allocation6 + $0xd8] sm:$0xff]
    %v2572 = vld [vmem:[#allocation6 + $0xf8] sm:$0xff]
    %v2573 = vld [vmem:[#allocation6 + $0x118] sm:$0xff]
    %v2574 = vld [vmem:[#allocation6 + $0x138] sm:$0xff]
    %v2575 = vld [vmem:[#allocation6 + $0x158] sm:$0xff]
    %v2576 = vld [vmem:[#allocation6 + $0x178] sm:$0xff]
    %v2577 = vld [vmem:[#allocation6 + $0x198] sm:$0xff]
    %v2578 = vld [vmem:[#allocation6 + $0x1b8] sm:$0xff]
    %v2579 = vld [vmem:[#allocation6 + $0x1d8] sm:$0xff]
    %v2580 = vld [vmem:[#allocation6 + $0x1f8] sm:$0xff]
    %2581 = vmatprep.subr.mxu0 0.0
    %2582 = vmatpush1.msra.mxu0 %v2565
    %2583 = vmatprep.subr.mxu0 0.0
    %2584 = vmatpush1.msra.mxu0 %v2566
    %2585 = vmatprep.subr.mxu0 0.0
    %2586 = vmatpush1.msra.mxu0 %v2567
    %2587 = vmatprep.subr.mxu0 0.0
    %2588 = vmatpush1.msra.mxu0 %v2568
    %2589 = vmatprep.subr.mxu0 0.0
    %2590 = vmatpush1.msra.mxu0 %v2569
    %2591 = vmatprep.subr.mxu0 0.0
    %2592 = vmatpush1.msra.mxu0 %v2570
    %2593 = vmatprep.subr.mxu0 0.0
    %2594 = vmatpush1.msra.mxu0 %v2571
    %2595 = vmatprep.subr.mxu0 0.0
    %2596 = vmatpush1.msra.mxu0 %v2572
    %2597 = vmatprep.subr.mxu0 0.0
    %2598 = vmatpush1.msra.mxu0 %v2573
    %2599 = vmatprep.subr.mxu0 0.0
    %2600 = vmatpush1.msra.mxu0 %v2574
    %2601 = vmatprep.subr.mxu0 0.0
    %2602 = vmatpush1.msra.mxu0 %v2575
    %2603 = vmatprep.subr.mxu0 0.0
    %2604 = vmatpush1.msra.mxu0 %v2576
    %2605 = vmatprep.subr.mxu0 0.0
    %2606 = vmatpush1.msra.mxu0 %v2577
    %2607 = vmatprep.subr.mxu0 0.0
    %2608 = vmatpush1.msra.mxu0 %v2578
    %2609 = vmatprep.subr.mxu0 0.0
    %2610 = vmatpush1.msra.mxu0 %v2579
    %2611 = vmatprep.subr.mxu0 0.0
    %2612 = vmatpush1.msra.mxu0 %v2580
    %2613 = vmatprep.subr.mxu0 0.0
    %2614 = vmatpush1.msra.mxu0 0.0
    %2615 = vmatprep.subr.mxu0 0.0
    %2616 = vmatpush1.msra.mxu0 0.0
    %2617 = vmatprep.subr.mxu0 0.0
    %2618 = vmatpush1.msra.mxu0 0.0
    %2619 = vmatprep.subr.mxu0 0.0
    %2620 = vmatpush1.msra.mxu0 0.0
    %2621 = vmatprep.subr.mxu0 0.0
    %2622 = vmatpush1.msra.mxu0 0.0
    %2623 = vmatprep.subr.mxu0 0.0
    %2624 = vmatpush1.msra.mxu0 0.0
    %2625 = vmatprep.subr.mxu0 0.0
    %2626 = vmatpush1.msra.mxu0 0.0
    %2627 = vmatprep.subr.mxu0 0.0
    %2628 = vmatpush1.msra.mxu0 0.0
    %2629 = vmatprep.subr.mxu0 0.0
    %2630 = vmatpush1.msra.mxu0 0.0
    %2631 = vmatprep.subr.mxu0 0.0
    %2632 = vmatpush1.msra.mxu0 0.0
    %2633 = vmatprep.subr.mxu0 0.0
    %2634 = vmatpush1.msra.mxu0 0.0
    %2635 = vmatprep.subr.mxu0 0.0
    %2636 = vmatpush1.msra.mxu0 0.0
    %2637 = vmatprep.subr.mxu0 0.0
    %2638 = vmatpush1.msra.mxu0 0.0
    %2639 = vmatprep.subr.mxu0 0.0
    %2640 = vmatpush1.msra.mxu0 0.0
    %2641 = vmatprep.subr.mxu0 0.0
    %2642 = vmatpush1.msra.mxu0 0.0
    %2643 = vmatprep.subr.mxu0 0.0
    %2644 = vmatpush1.msra.mxu0 0.0
    %2645 = vmatprep.mubr.f32.mxu0 0.0
    %2646 = vmatmul.mubr.f32.gmra.mrb[0].mxu0 %v2278
    %v2647 = vpop.f32.mrb[0].mxu0
    %v2648 = vadd.f32 0.0, %v2647
    %v2649 = vpop.f32.mrb[0].mxu0
    %2650 = vdwg.mxu0
    %v2651 = vadd.f32 %v2564, %v2648
    %v2652 = vxor.u32 %v2651, 2147483648
    %v2653 = vmul.f32 %v2652, 1.442695
    %v2654 = vpow.pop %v2653
    %v2655 = vadd.f32 %v2654, 1.0
    %v2656 = vrcp.pop %v2655
    %v2657 = vmul.f32 1.0, %v2656
    %v2658 = vtanh.pop %v2563
    %v2659 = vmul.f32 %v2657, %v2658
    %s2660 = scalar_lea.vmem [#allocation3], 40
    %2661 = vst [vmem:[%s2660] sm:$0xff] %v2659
    %s2662 = smul.u32 6, 4
    %s2663 = smul.addr %s2662, 8
    %s2664 = scalar_lea.vmem [#allocation2], %s2663
    %v2665 = vld [vmem:[%s2664 + $0x8] sm:$0xff]
    %v2666 = vld [vmem:[#allocation6 + $0x8] sm:$0xff]
    %v2667 = vld [vmem:[#allocation6 + $0x28] sm:$0xff]
    %v2668 = vld [vmem:[#allocation6 + $0x48] sm:$0xff]
    %v2669 = vld [vmem:[#allocation6 + $0x68] sm:$0xff]
    %v2670 = vld [vmem:[#allocation6 + $0x88] sm:$0xff]
    %v2671 = vld [vmem:[#allocation6 + $0xa8] sm:$0xff]
    %v2672 = vld [vmem:[#allocation6 + $0xc8] sm:$0xff]
    %v2673 = vld [vmem:[#allocation6 + $0xe8] sm:$0xff]
    %v2674 = vld [vmem:[#allocation6 + $0x108] sm:$0xff]
    %v2675 = vld [vmem:[#allocation6 + $0x128] sm:$0xff]
    %v2676 = vld [vmem:[#allocation6 + $0x148] sm:$0xff]
    %v2677 = vld [vmem:[#allocation6 + $0x168] sm:$0xff]
    %v2678 = vld [vmem:[#allocation6 + $0x188] sm:$0xff]
    %v2679 = vld [vmem:[#allocation6 + $0x1a8] sm:$0xff]
    %v2680 = vld [vmem:[#allocation6 + $0x1c8] sm:$0xff]
    %v2681 = vld [vmem:[#allocation6 + $0x1e8] sm:$0xff]
    %2682 = vmatprep.subr.mxu0 0.0
    %2683 = vmatpush1.msra.mxu0 %v2666
    %2684 = vmatprep.subr.mxu0 0.0
    %2685 = vmatpush1.msra.mxu0 %v2667
    %2686 = vmatprep.subr.mxu0 0.0
    %2687 = vmatpush1.msra.mxu0 %v2668
    %2688 = vmatprep.subr.mxu0 0.0
    %2689 = vmatpush1.msra.mxu0 %v2669
    %2690 = vmatprep.subr.mxu0 0.0
    %2691 = vmatpush1.msra.mxu0 %v2670
    %2692 = vmatprep.subr.mxu0 0.0
    %2693 = vmatpush1.msra.mxu0 %v2671
    %2694 = vmatprep.subr.mxu0 0.0
    %2695 = vmatpush1.msra.mxu0 %v2672
    %2696 = vmatprep.subr.mxu0 0.0
    %2697 = vmatpush1.msra.mxu0 %v2673
    %2698 = vmatprep.subr.mxu0 0.0
    %2699 = vmatpush1.msra.mxu0 %v2674
    %2700 = vmatprep.subr.mxu0 0.0
    %2701 = vmatpush1.msra.mxu0 %v2675
    %2702 = vmatprep.subr.mxu0 0.0
    %2703 = vmatpush1.msra.mxu0 %v2676
    %2704 = vmatprep.subr.mxu0 0.0
    %2705 = vmatpush1.msra.mxu0 %v2677
    %2706 = vmatprep.subr.mxu0 0.0
    %2707 = vmatpush1.msra.mxu0 %v2678
    %2708 = vmatprep.subr.mxu0 0.0
    %2709 = vmatpush1.msra.mxu0 %v2679
    %2710 = vmatprep.subr.mxu0 0.0
    %2711 = vmatpush1.msra.mxu0 %v2680
    %2712 = vmatprep.subr.mxu0 0.0
    %2713 = vmatpush1.msra.mxu0 %v2681
    %2714 = vmatprep.subr.mxu0 0.0
    %2715 = vmatpush1.msra.mxu0 0.0
    %2716 = vmatprep.subr.mxu0 0.0
    %2717 = vmatpush1.msra.mxu0 0.0
    %2718 = vmatprep.subr.mxu0 0.0
    %2719 = vmatpush1.msra.mxu0 0.0
    %2720 = vmatprep.subr.mxu0 0.0
    %2721 = vmatpush1.msra.mxu0 0.0
    %2722 = vmatprep.subr.mxu0 0.0
    %2723 = vmatpush1.msra.mxu0 0.0
    %2724 = vmatprep.subr.mxu0 0.0
    %2725 = vmatpush1.msra.mxu0 0.0
    %2726 = vmatprep.subr.mxu0 0.0
    %2727 = vmatpush1.msra.mxu0 0.0
    %2728 = vmatprep.subr.mxu0 0.0
    %2729 = vmatpush1.msra.mxu0 0.0
    %2730 = vmatprep.subr.mxu0 0.0
    %2731 = vmatpush1.msra.mxu0 0.0
    %2732 = vmatprep.subr.mxu0 0.0
    %2733 = vmatpush1.msra.mxu0 0.0
    %2734 = vmatprep.subr.mxu0 0.0
    %2735 = vmatpush1.msra.mxu0 0.0
    %2736 = vmatprep.subr.mxu0 0.0
    %2737 = vmatpush1.msra.mxu0 0.0
    %2738 = vmatprep.subr.mxu0 0.0
    %2739 = vmatpush1.msra.mxu0 0.0
    %2740 = vmatprep.subr.mxu0 0.0
    %2741 = vmatpush1.msra.mxu0 0.0
    %2742 = vmatprep.subr.mxu0 0.0
    %2743 = vmatpush1.msra.mxu0 0.0
    %2744 = vmatprep.subr.mxu0 0.0
    %2745 = vmatpush1.msra.mxu0 0.0
    %2746 = vmatprep.mubr.f32.mxu0 0.0
    %2747 = vmatmul.mubr.f32.gmra.mrb[0].mxu0 %v2659
    %v2748 = vpop.f32.mrb[0].mxu0
    %v2749 = vadd.f32 0.0, %v2748
    %v2750 = vpop.f32.mrb[0].mxu0
    %2751 = vdwg.mxu0
    %v2752 = vadd.f32 %v2665, %v2749
    %v2753 = vxor.u32 %v2752, 2147483648
    %v2754 = vmul.f32 %v2753, 1.442695
    %v2755 = vpow.pop %v2754
    %v2756 = vadd.f32 %v2755, 1.0
    %v2757 = vrcp.pop %v2756
    %v2758 = vmul.f32 1.0, %v2757
    %v2759 = vmul.f32 %v2758, %v2563
    %v2760 = vld [vmem:[%s2664] sm:$0xff]
    %v2761 = vld [vmem:[#allocation6] sm:$0xff]
    %v2762 = vld [vmem:[#allocation6 + $0x20] sm:$0xff]
    %v2763 = vld [vmem:[#allocation6 + $0x40] sm:$0xff]
    %v2764 = vld [vmem:[#allocation6 + $0x60] sm:$0xff]
    %v2765 = vld [vmem:[#allocation6 + $0x80] sm:$0xff]
    %v2766 = vld [vmem:[#allocation6 + $0xa0] sm:$0xff]
    %v2767 = vld [vmem:[#allocation6 + $0xc0] sm:$0xff]
    %v2768 = vld [vmem:[#allocation6 + $0xe0] sm:$0xff]
    %v2769 = vld [vmem:[#allocation6 + $0x100] sm:$0xff]
    %v2770 = vld [vmem:[#allocation6 + $0x120] sm:$0xff]
    %v2771 = vld [vmem:[#allocation6 + $0x140] sm:$0xff]
    %v2772 = vld [vmem:[#allocation6 + $0x160] sm:$0xff]
    %v2773 = vld [vmem:[#allocation6 + $0x180] sm:$0xff]
    %v2774 = vld [vmem:[#allocation6 + $0x1a0] sm:$0xff]
    %v2775 = vld [vmem:[#allocation6 + $0x1c0] sm:$0xff]
    %v2776 = vld [vmem:[#allocation6 + $0x1e0] sm:$0xff]
    %2777 = vmatprep.subr.mxu0 0.0
    %2778 = vmatpush1.msra.mxu0 %v2761
    %2779 = vmatprep.subr.mxu0 0.0
    %2780 = vmatpush1.msra.mxu0 %v2762
    %2781 = vmatprep.subr.mxu0 0.0
    %2782 = vmatpush1.msra.mxu0 %v2763
    %2783 = vmatprep.subr.mxu0 0.0
    %2784 = vmatpush1.msra.mxu0 %v2764
    %2785 = vmatprep.subr.mxu0 0.0
    %2786 = vmatpush1.msra.mxu0 %v2765
    %2787 = vmatprep.subr.mxu0 0.0
    %2788 = vmatpush1.msra.mxu0 %v2766
    %2789 = vmatprep.subr.mxu0 0.0
    %2790 = vmatpush1.msra.mxu0 %v2767
    %2791 = vmatprep.subr.mxu0 0.0
    %2792 = vmatpush1.msra.mxu0 %v2768
    %2793 = vmatprep.subr.mxu0 0.0
    %2794 = vmatpush1.msra.mxu0 %v2769
    %2795 = vmatprep.subr.mxu0 0.0
    %2796 = vmatpush1.msra.mxu0 %v2770
    %2797 = vmatprep.subr.mxu0 0.0
    %2798 = vmatpush1.msra.mxu0 %v2771
    %2799 = vmatprep.subr.mxu0 0.0
    %2800 = vmatpush1.msra.mxu0 %v2772
    %2801 = vmatprep.subr.mxu0 0.0
    %2802 = vmatpush1.msra.mxu0 %v2773
    %2803 = vmatprep.subr.mxu0 0.0
    %2804 = vmatpush1.msra.mxu0 %v2774
    %2805 = vmatprep.subr.mxu0 0.0
    %2806 = vmatpush1.msra.mxu0 %v2775
    %2807 = vmatprep.subr.mxu0 0.0
    %2808 = vmatpush1.msra.mxu0 %v2776
    %2809 = vmatprep.subr.mxu0 0.0
    %2810 = vmatpush1.msra.mxu0 0.0
    %2811 = vmatprep.subr.mxu0 0.0
    %2812 = vmatpush1.msra.mxu0 0.0
    %2813 = vmatprep.subr.mxu0 0.0
    %2814 = vmatpush1.msra.mxu0 0.0
    %2815 = vmatprep.subr.mxu0 0.0
    %2816 = vmatpush1.msra.mxu0 0.0
    %2817 = vmatprep.subr.mxu0 0.0
    %2818 = vmatpush1.msra.mxu0 0.0
    %2819 = vmatprep.subr.mxu0 0.0
    %2820 = vmatpush1.msra.mxu0 0.0
    %2821 = vmatprep.subr.mxu0 0.0
    %2822 = vmatpush1.msra.mxu0 0.0
    %2823 = vmatprep.subr.mxu0 0.0
    %2824 = vmatpush1.msra.mxu0 0.0
    %2825 = vmatprep.subr.mxu0 0.0
    %2826 = vmatpush1.msra.mxu0 0.0
    %2827 = vmatprep.subr.mxu0 0.0
    %2828 = vmatpush1.msra.mxu0 0.0
    %2829 = vmatprep.subr.mxu0 0.0
    %2830 = vmatpush1.msra.mxu0 0.0
    %2831 = vmatprep.subr.mxu0 0.0
    %2832 = vmatpush1.msra.mxu0 0.0
    %2833 = vmatprep.subr.mxu0 0.0
    %2834 = vmatpush1.msra.mxu0 0.0
    %2835 = vmatprep.subr.mxu0 0.0
    %2836 = vmatpush1.msra.mxu0 0.0
    %2837 = vmatprep.subr.mxu0 0.0
    %2838 = vmatpush1.msra.mxu0 0.0
    %2839 = vmatprep.subr.mxu0 0.0
    %2840 = vmatpush1.msra.mxu0 0.0
    %2841 = vmatprep.mubr.f32.mxu0 0.0
    %2842 = vmatmul.mubr.f32.gmra.mrb[0].mxu0 %v2659
    %v2843 = vpop.f32.mrb[0].mxu0
    %v2844 = vadd.f32 0.0, %v2843
    %v2845 = vpop.f32.mrb[0].mxu0
    %2846 = vdwg.mxu0
    %v2847 = vadd.f32 %v2760, %v2844
    %v2848 = vxor.u32 %v2847, 2147483648
    %v2849 = vmul.f32 %v2848, 1.442695
    %v2850 = vpow.pop %v2849
    %v2851 = vadd.f32 %v2850, 1.0
    %v2852 = vrcp.pop %v2851
    %v2853 = vmul.f32 1.0, %v2852
    %v2854 = vld [vmem:[%s2664 + $0x10] sm:$0xff]
    %v2855 = vld [vmem:[#allocation6 + $0x10] sm:$0xff]
    %v2856 = vld [vmem:[#allocation6 + $0x30] sm:$0xff]
    %v2857 = vld [vmem:[#allocation6 + $0x50] sm:$0xff]
    %v2858 = vld [vmem:[#allocation6 + $0x70] sm:$0xff]
    %v2859 = vld [vmem:[#allocation6 + $0x90] sm:$0xff]
    %v2860 = vld [vmem:[#allocation6 + $0xb0] sm:$0xff]
    %v2861 = vld [vmem:[#allocation6 + $0xd0] sm:$0xff]
    %v2862 = vld [vmem:[#allocation6 + $0xf0] sm:$0xff]
    %v2863 = vld [vmem:[#allocation6 + $0x110] sm:$0xff]
    %v2864 = vld [vmem:[#allocation6 + $0x130] sm:$0xff]
    %v2865 = vld [vmem:[#allocation6 + $0x150] sm:$0xff]
    %v2866 = vld [vmem:[#allocation6 + $0x170] sm:$0xff]
    %v2867 = vld [vmem:[#allocation6 + $0x190] sm:$0xff]
    %v2868 = vld [vmem:[#allocation6 + $0x1b0] sm:$0xff]
    %v2869 = vld [vmem:[#allocation6 + $0x1d0] sm:$0xff]
    %v2870 = vld [vmem:[#allocation6 + $0x1f0] sm:$0xff]
    %2871 = vmatprep.subr.mxu0 0.0
    %2872 = vmatpush1.msra.mxu0 %v2855
    %2873 = vmatprep.subr.mxu0 0.0
    %2874 = vmatpush1.msra.mxu0 %v2856
    %2875 = vmatprep.subr.mxu0 0.0
    %2876 = vmatpush1.msra.mxu0 %v2857
    %2877 = vmatprep.subr.mxu0 0.0
    %2878 = vmatpush1.msra.mxu0 %v2858
    %2879 = vmatprep.subr.mxu0 0.0
    %2880 = vmatpush1.msra.mxu0 %v2859
    %2881 = vmatprep.subr.mxu0 0.0
    %2882 = vmatpush1.msra.mxu0 %v2860
    %2883 = vmatprep.subr.mxu0 0.0
    %2884 = vmatpush1.msra.mxu0 %v2861
    %2885 = vmatprep.subr.mxu0 0.0
    %2886 = vmatpush1.msra.mxu0 %v2862
    %2887 = vmatprep.subr.mxu0 0.0
    %2888 = vmatpush1.msra.mxu0 %v2863
    %2889 = vmatprep.subr.mxu0 0.0
    %2890 = vmatpush1.msra.mxu0 %v2864
    %2891 = vmatprep.subr.mxu0 0.0
    %2892 = vmatpush1.msra.mxu0 %v2865
    %2893 = vmatprep.subr.mxu0 0.0
    %2894 = vmatpush1.msra.mxu0 %v2866
    %2895 = vmatprep.subr.mxu0 0.0
    %2896 = vmatpush1.msra.mxu0 %v2867
    %2897 = vmatprep.subr.mxu0 0.0
    %2898 = vmatpush1.msra.mxu0 %v2868
    %2899 = vmatprep.subr.mxu0 0.0
    %2900 = vmatpush1.msra.mxu0 %v2869
    %2901 = vmatprep.subr.mxu0 0.0
    %2902 = vmatpush1.msra.mxu0 %v2870
    %2903 = vmatprep.subr.mxu0 0.0
    %2904 = vmatpush1.msra.mxu0 0.0
    %2905 = vmatprep.subr.mxu0 0.0
    %2906 = vmatpush1.msra.mxu0 0.0
    %2907 = vmatprep.subr.mxu0 0.0
    %2908 = vmatpush1.msra.mxu0 0.0
    %2909 = vmatprep.subr.mxu0 0.0
    %2910 = vmatpush1.msra.mxu0 0.0
    %2911 = vmatprep.subr.mxu0 0.0
    %2912 = vmatpush1.msra.mxu0 0.0
    %2913 = vmatprep.subr.mxu0 0.0
    %2914 = vmatpush1.msra.mxu0 0.0
    %2915 = vmatprep.subr.mxu0 0.0
    %2916 = vmatpush1.msra.mxu0 0.0
    %2917 = vmatprep.subr.mxu0 0.0
    %2918 = vmatpush1.msra.mxu0 0.0
    %2919 = vmatprep.subr.mxu0 0.0
    %2920 = vmatpush1.msra.mxu0 0.0
    %2921 = vmatprep.subr.mxu0 0.0
    %2922 = vmatpush1.msra.mxu0 0.0
    %2923 = vmatprep.subr.mxu0 0.0
    %2924 = vmatpush1.msra.mxu0 0.0
    %2925 = vmatprep.subr.mxu0 0.0
    %2926 = vmatpush1.msra.mxu0 0.0
    %2927 = vmatprep.subr.mxu0 0.0
    %2928 = vmatpush1.msra.mxu0 0.0
    %2929 = vmatprep.subr.mxu0 0.0
    %2930 = vmatpush1.msra.mxu0 0.0
    %2931 = vmatprep.subr.mxu0 0.0
    %2932 = vmatpush1.msra.mxu0 0.0
    %2933 = vmatprep.subr.mxu0 0.0
    %2934 = vmatpush1.msra.mxu0 0.0
    %2935 = vmatprep.mubr.f32.mxu0 0.0
    %2936 = vmatmul.mubr.f32.gmra.mrb[0].mxu0 %v2659
    %v2937 = vpop.f32.mrb[0].mxu0
    %v2938 = vadd.f32 0.0, %v2937
    %v2939 = vpop.f32.mrb[0].mxu0
    %2940 = vdwg.mxu0
    %v2941 = vadd.f32 %v2854, %v2938
    %v2942 = vtanh.pop %v2941
    %v2943 = vmul.f32 %v2853, %v2942
    %v2944 = vadd.f32 %v2759, %v2943
    %v2945 = vld [vmem:[%s2664 + $0x18] sm:$0xff]
    %v2946 = vld [vmem:[#allocation6 + $0x18] sm:$0xff]
    %v2947 = vld [vmem:[#allocation6 + $0x38] sm:$0xff]
    %v2948 = vld [vmem:[#allocation6 + $0x58] sm:$0xff]
    %v2949 = vld [vmem:[#allocation6 + $0x78] sm:$0xff]
    %v2950 = vld [vmem:[#allocation6 + $0x98] sm:$0xff]
    %v2951 = vld [vmem:[#allocation6 + $0xb8] sm:$0xff]
    %v2952 = vld [vmem:[#allocation6 + $0xd8] sm:$0xff]
    %v2953 = vld [vmem:[#allocation6 + $0xf8] sm:$0xff]
    %v2954 = vld [vmem:[#allocation6 + $0x118] sm:$0xff]
    %v2955 = vld [vmem:[#allocation6 + $0x138] sm:$0xff]
    %v2956 = vld [vmem:[#allocation6 + $0x158] sm:$0xff]
    %v2957 = vld [vmem:[#allocation6 + $0x178] sm:$0xff]
    %v2958 = vld [vmem:[#allocation6 + $0x198] sm:$0xff]
    %v2959 = vld [vmem:[#allocation6 + $0x1b8] sm:$0xff]
    %v2960 = vld [vmem:[#allocation6 + $0x1d8] sm:$0xff]
    %v2961 = vld [vmem:[#allocation6 + $0x1f8] sm:$0xff]
    %2962 = vmatprep.subr.mxu0 0.0
    %2963 = vmatpush1.msra.mxu0 %v2946
    %2964 = vmatprep.subr.mxu0 0.0
    %2965 = vmatpush1.msra.mxu0 %v2947
    %2966 = vmatprep.subr.mxu0 0.0
    %2967 = vmatpush1.msra.mxu0 %v2948
    %2968 = vmatprep.subr.mxu0 0.0
    %2969 = vmatpush1.msra.mxu0 %v2949
    %2970 = vmatprep.subr.mxu0 0.0
    %2971 = vmatpush1.msra.mxu0 %v2950
    %2972 = vmatprep.subr.mxu0 0.0
    %2973 = vmatpush1.msra.mxu0 %v2951
    %2974 = vmatprep.subr.mxu0 0.0
    %2975 = vmatpush1.msra.mxu0 %v2952
    %2976 = vmatprep.subr.mxu0 0.0
    %2977 = vmatpush1.msra.mxu0 %v2953
    %2978 = vmatprep.subr.mxu0 0.0
    %2979 = vmatpush1.msra.mxu0 %v2954
    %2980 = vmatprep.subr.mxu0 0.0
    %2981 = vmatpush1.msra.mxu0 %v2955
    %2982 = vmatprep.subr.mxu0 0.0
    %2983 = vmatpush1.msra.mxu0 %v2956
    %2984 = vmatprep.subr.mxu0 0.0
    %2985 = vmatpush1.msra.mxu0 %v2957
    %2986 = vmatprep.subr.mxu0 0.0
    %2987 = vmatpush1.msra.mxu0 %v2958
    %2988 = vmatprep.subr.mxu0 0.0
    %2989 = vmatpush1.msra.mxu0 %v2959
    %2990 = vmatprep.subr.mxu0 0.0
    %2991 = vmatpush1.msra.mxu0 %v2960
    %2992 = vmatprep.subr.mxu0 0.0
    %2993 = vmatpush1.msra.mxu0 %v2961
    %2994 = vmatprep.subr.mxu0 0.0
    %2995 = vmatpush1.msra.mxu0 0.0
    %2996 = vmatprep.subr.mxu0 0.0
    %2997 = vmatpush1.msra.mxu0 0.0
    %2998 = vmatprep.subr.mxu0 0.0
    %2999 = vmatpush1.msra.mxu0 0.0
    %3000 = vmatprep.subr.mxu0 0.0
    %3001 = vmatpush1.msra.mxu0 0.0
    %3002 = vmatprep.subr.mxu0 0.0
    %3003 = vmatpush1.msra.mxu0 0.0
    %3004 = vmatprep.subr.mxu0 0.0
    %3005 = vmatpush1.msra.mxu0 0.0
    %3006 = vmatprep.subr.mxu0 0.0
    %3007 = vmatpush1.msra.mxu0 0.0
    %3008 = vmatprep.subr.mxu0 0.0
    %3009 = vmatpush1.msra.mxu0 0.0
    %3010 = vmatprep.subr.mxu0 0.0
    %3011 = vmatpush1.msra.mxu0 0.0
    %3012 = vmatprep.subr.mxu0 0.0
    %3013 = vmatpush1.msra.mxu0 0.0
    %3014 = vmatprep.subr.mxu0 0.0
    %3015 = vmatpush1.msra.mxu0 0.0
    %3016 = vmatprep.subr.mxu0 0.0
    %3017 = vmatpush1.msra.mxu0 0.0
    %3018 = vmatprep.subr.mxu0 0.0
    %3019 = vmatpush1.msra.mxu0 0.0
    %3020 = vmatprep.subr.mxu0 0.0
    %3021 = vmatpush1.msra.mxu0 0.0
    %3022 = vmatprep.subr.mxu0 0.0
    %3023 = vmatpush1.msra.mxu0 0.0
    %3024 = vmatprep.subr.mxu0 0.0
    %3025 = vmatpush1.msra.mxu0 0.0
    %3026 = vmatprep.mubr.f32.mxu0 0.0
    %3027 = vmatmul.mubr.f32.gmra.mrb[0].mxu0 %v2659
    %v3028 = vpop.f32.mrb[0].mxu0
    %v3029 = vadd.f32 0.0, %v3028
    %v3030 = vpop.f32.mrb[0].mxu0
    %3031 = vdwg.mxu0
    %v3032 = vadd.f32 %v2945, %v3029
    %v3033 = vxor.u32 %v3032, 2147483648
    %v3034 = vmul.f32 %v3033, 1.442695
    %v3035 = vpow.pop %v3034
    %v3036 = vadd.f32 %v3035, 1.0
    %v3037 = vrcp.pop %v3036
    %v3038 = vmul.f32 1.0, %v3037
    %v3039 = vtanh.pop %v2944
    %v3040 = vmul.f32 %v3038, %v3039
    %s3041 = scalar_lea.vmem [#allocation3], 48
    %3042 = vst [vmem:[%s3041] sm:$0xff] %v3040
    %s3043 = smul.u32 7, 4
    %s3044 = smul.addr %s3043, 8
    %s3045 = scalar_lea.vmem [#allocation2], %s3044
    %v3046 = vld [vmem:[%s3045 + $0x8] sm:$0xff]
    %v3047 = vld [vmem:[#allocation6 + $0x8] sm:$0xff]
    %v3048 = vld [vmem:[#allocation6 + $0x28] sm:$0xff]
    %v3049 = vld [vmem:[#allocation6 + $0x48] sm:$0xff]
    %v3050 = vld [vmem:[#allocation6 + $0x68] sm:$0xff]
    %v3051 = vld [vmem:[#allocation6 + $0x88] sm:$0xff]
    %v3052 = vld [vmem:[#allocation6 + $0xa8] sm:$0xff]
    %v3053 = vld [vmem:[#allocation6 + $0xc8] sm:$0xff]
    %v3054 = vld [vmem:[#allocation6 + $0xe8] sm:$0xff]
    %v3055 = vld [vmem:[#allocation6 + $0x108] sm:$0xff]
    %v3056 = vld [vmem:[#allocation6 + $0x128] sm:$0xff]
    %v3057 = vld [vmem:[#allocation6 + $0x148] sm:$0xff]
    %v3058 = vld [vmem:[#allocation6 + $0x168] sm:$0xff]
    %v3059 = vld [vmem:[#allocation6 + $0x188] sm:$0xff]
    %v3060 = vld [vmem:[#allocation6 + $0x1a8] sm:$0xff]
    %v3061 = vld [vmem:[#allocation6 + $0x1c8] sm:$0xff]
    %v3062 = vld [vmem:[#allocation6 + $0x1e8] sm:$0xff]
    %3063 = vmatprep.subr.mxu0 0.0
    %3064 = vmatpush1.msra.mxu0 %v3047
    %3065 = vmatprep.subr.mxu0 0.0
    %3066 = vmatpush1.msra.mxu0 %v3048
    %3067 = vmatprep.subr.mxu0 0.0
    %3068 = vmatpush1.msra.mxu0 %v3049
    %3069 = vmatprep.subr.mxu0 0.0
    %3070 = vmatpush1.msra.mxu0 %v3050
    %3071 = vmatprep.subr.mxu0 0.0
    %3072 = vmatpush1.msra.mxu0 %v3051
    %3073 = vmatprep.subr.mxu0 0.0
    %3074 = vmatpush1.msra.mxu0 %v3052
    %3075 = vmatprep.subr.mxu0 0.0
    %3076 = vmatpush1.msra.mxu0 %v3053
    %3077 = vmatprep.subr.mxu0 0.0
    %3078 = vmatpush1.msra.mxu0 %v3054
    %3079 = vmatprep.subr.mxu0 0.0
    %3080 = vmatpush1.msra.mxu0 %v3055
    %3081 = vmatprep.subr.mxu0 0.0
    %3082 = vmatpush1.msra.mxu0 %v3056
    %3083 = vmatprep.subr.mxu0 0.0
    %3084 = vmatpush1.msra.mxu0 %v3057
    %3085 = vmatprep.subr.mxu0 0.0
    %3086 = vmatpush1.msra.mxu0 %v3058
    %3087 = vmatprep.subr.mxu0 0.0
    %3088 = vmatpush1.msra.mxu0 %v3059
    %3089 = vmatprep.subr.mxu0 0.0
    %3090 = vmatpush1.msra.mxu0 %v3060
    %3091 = vmatprep.subr.mxu0 0.0
    %3092 = vmatpush1.msra.mxu0 %v3061
    %3093 = vmatprep.subr.mxu0 0.0
    %3094 = vmatpush1.msra.mxu0 %v3062
    %3095 = vmatprep.subr.mxu0 0.0
    %3096 = vmatpush1.msra.mxu0 0.0
    %3097 = vmatprep.subr.mxu0 0.0
    %3098 = vmatpush1.msra.mxu0 0.0
    %3099 = vmatprep.subr.mxu0 0.0
    %3100 = vmatpush1.msra.mxu0 0.0
    %3101 = vmatprep.subr.mxu0 0.0
    %3102 = vmatpush1.msra.mxu0 0.0
    %3103 = vmatprep.subr.mxu0 0.0
    %3104 = vmatpush1.msra.mxu0 0.0
    %3105 = vmatprep.subr.mxu0 0.0
    %3106 = vmatpush1.msra.mxu0 0.0
    %3107 = vmatprep.subr.mxu0 0.0
    %3108 = vmatpush1.msra.mxu0 0.0
    %3109 = vmatprep.subr.mxu0 0.0
    %3110 = vmatpush1.msra.mxu0 0.0
    %3111 = vmatprep.subr.mxu0 0.0
    %3112 = vmatpush1.msra.mxu0 0.0
    %3113 = vmatprep.subr.mxu0 0.0
    %3114 = vmatpush1.msra.mxu0 0.0
    %3115 = vmatprep.subr.mxu0 0.0
    %3116 = vmatpush1.msra.mxu0 0.0
    %3117 = vmatprep.subr.mxu0 0.0
    %3118 = vmatpush1.msra.mxu0 0.0
    %3119 = vmatprep.subr.mxu0 0.0
    %3120 = vmatpush1.msra.mxu0 0.0
    %3121 = vmatprep.subr.mxu0 0.0
    %3122 = vmatpush1.msra.mxu0 0.0
    %3123 = vmatprep.subr.mxu0 0.0
    %3124 = vmatpush1.msra.mxu0 0.0
    %3125 = vmatprep.subr.mxu0 0.0
    %3126 = vmatpush1.msra.mxu0 0.0
    %3127 = vmatprep.mubr.f32.mxu0 0.0
    %3128 = vmatmul.mubr.f32.gmra.mrb[0].mxu0 %v3040
    %v3129 = vpop.f32.mrb[0].mxu0
    %v3130 = vadd.f32 0.0, %v3129
    %v3131 = vpop.f32.mrb[0].mxu0
    %3132 = vdwg.mxu0
    %v3133 = vadd.f32 %v3046, %v3130
    %v3134 = vxor.u32 %v3133, 2147483648
    %v3135 = vmul.f32 %v3134, 1.442695
    %v3136 = vpow.pop %v3135
    %v3137 = vadd.f32 %v3136, 1.0
    %v3138 = vrcp.pop %v3137
    %v3139 = vmul.f32 1.0, %v3138
    %v3140 = vmul.f32 %v3139, %v2944
    %v3141 = vld [vmem:[%s3045] sm:$0xff]
    %v3142 = vld [vmem:[#allocation6] sm:$0xff]
    %v3143 = vld [vmem:[#allocation6 + $0x20] sm:$0xff]
    %v3144 = vld [vmem:[#allocation6 + $0x40] sm:$0xff]
    %v3145 = vld [vmem:[#allocation6 + $0x60] sm:$0xff]
    %v3146 = vld [vmem:[#allocation6 + $0x80] sm:$0xff]
    %v3147 = vld [vmem:[#allocation6 + $0xa0] sm:$0xff]
    %v3148 = vld [vmem:[#allocation6 + $0xc0] sm:$0xff]
    %v3149 = vld [vmem:[#allocation6 + $0xe0] sm:$0xff]
    %v3150 = vld [vmem:[#allocation6 + $0x100] sm:$0xff]
    %v3151 = vld [vmem:[#allocation6 + $0x120] sm:$0xff]
    %v3152 = vld [vmem:[#allocation6 + $0x140] sm:$0xff]
    %v3153 = vld [vmem:[#allocation6 + $0x160] sm:$0xff]
    %v3154 = vld [vmem:[#allocation6 + $0x180] sm:$0xff]
    %v3155 = vld [vmem:[#allocation6 + $0x1a0] sm:$0xff]
    %v3156 = vld [vmem:[#allocation6 + $0x1c0] sm:$0xff]
    %v3157 = vld [vmem:[#allocation6 + $0x1e0] sm:$0xff]
    %3158 = vmatprep.subr.mxu0 0.0
    %3159 = vmatpush1.msra.mxu0 %v3142
    %3160 = vmatprep.subr.mxu0 0.0
    %3161 = vmatpush1.msra.mxu0 %v3143
    %3162 = vmatprep.subr.mxu0 0.0
    %3163 = vmatpush1.msra.mxu0 %v3144
    %3164 = vmatprep.subr.mxu0 0.0
    %3165 = vmatpush1.msra.mxu0 %v3145
    %3166 = vmatprep.subr.mxu0 0.0
    %3167 = vmatpush1.msra.mxu0 %v3146
    %3168 = vmatprep.subr.mxu0 0.0
    %3169 = vmatpush1.msra.mxu0 %v3147
    %3170 = vmatprep.subr.mxu0 0.0
    %3171 = vmatpush1.msra.mxu0 %v3148
    %3172 = vmatprep.subr.mxu0 0.0
    %3173 = vmatpush1.msra.mxu0 %v3149
    %3174 = vmatprep.subr.mxu0 0.0
    %3175 = vmatpush1.msra.mxu0 %v3150
    %3176 = vmatprep.subr.mxu0 0.0
    %3177 = vmatpush1.msra.mxu0 %v3151
    %3178 = vmatprep.subr.mxu0 0.0
    %3179 = vmatpush1.msra.mxu0 %v3152
    %3180 = vmatprep.subr.mxu0 0.0
    %3181 = vmatpush1.msra.mxu0 %v3153
    %3182 = vmatprep.subr.mxu0 0.0
    %3183 = vmatpush1.msra.mxu0 %v3154
    %3184 = vmatprep.subr.mxu0 0.0
    %3185 = vmatpush1.msra.mxu0 %v3155
    %3186 = vmatprep.subr.mxu0 0.0
    %3187 = vmatpush1.msra.mxu0 %v3156
    %3188 = vmatprep.subr.mxu0 0.0
    %3189 = vmatpush1.msra.mxu0 %v3157
    %3190 = vmatprep.subr.mxu0 0.0
    %3191 = vmatpush1.msra.mxu0 0.0
    %3192 = vmatprep.subr.mxu0 0.0
    %3193 = vmatpush1.msra.mxu0 0.0
    %3194 = vmatprep.subr.mxu0 0.0
    %3195 = vmatpush1.msra.mxu0 0.0
    %3196 = vmatprep.subr.mxu0 0.0
    %3197 = vmatpush1.msra.mxu0 0.0
    %3198 = vmatprep.subr.mxu0 0.0
    %3199 = vmatpush1.msra.mxu0 0.0
    %3200 = vmatprep.subr.mxu0 0.0
    %3201 = vmatpush1.msra.mxu0 0.0
    %3202 = vmatprep.subr.mxu0 0.0
    %3203 = vmatpush1.msra.mxu0 0.0
    %3204 = vmatprep.subr.mxu0 0.0
    %3205 = vmatpush1.msra.mxu0 0.0
    %3206 = vmatprep.subr.mxu0 0.0
    %3207 = vmatpush1.msra.mxu0 0.0
    %3208 = vmatprep.subr.mxu0 0.0
    %3209 = vmatpush1.msra.mxu0 0.0
    %3210 = vmatprep.subr.mxu0 0.0
    %3211 = vmatpush1.msra.mxu0 0.0
    %3212 = vmatprep.subr.mxu0 0.0
    %3213 = vmatpush1.msra.mxu0 0.0
    %3214 = vmatprep.subr.mxu0 0.0
    %3215 = vmatpush1.msra.mxu0 0.0
    %3216 = vmatprep.subr.mxu0 0.0
    %3217 = vmatpush1.msra.mxu0 0.0
    %3218 = vmatprep.subr.mxu0 0.0
    %3219 = vmatpush1.msra.mxu0 0.0
    %3220 = vmatprep.subr.mxu0 0.0
    %3221 = vmatpush1.msra.mxu0 0.0
    %3222 = vmatprep.mubr.f32.mxu0 0.0
    %3223 = vmatmul.mubr.f32.gmra.mrb[0].mxu0 %v3040
    %v3224 = vpop.f32.mrb[0].mxu0
    %v3225 = vadd.f32 0.0, %v3224
    %v3226 = vpop.f32.mrb[0].mxu0
    %3227 = vdwg.mxu0
    %v3228 = vadd.f32 %v3141, %v3225
    %v3229 = vxor.u32 %v3228, 2147483648
    %v3230 = vmul.f32 %v3229, 1.442695
    %v3231 = vpow.pop %v3230
    %v3232 = vadd.f32 %v3231, 1.0
    %v3233 = vrcp.pop %v3232
    %v3234 = vmul.f32 1.0, %v3233
    %v3235 = vld [vmem:[%s3045 + $0x10] sm:$0xff]
    %v3236 = vld [vmem:[#allocation6 + $0x10] sm:$0xff]
    %v3237 = vld [vmem:[#allocation6 + $0x30] sm:$0xff]
    %v3238 = vld [vmem:[#allocation6 + $0x50] sm:$0xff]
    %v3239 = vld [vmem:[#allocation6 + $0x70] sm:$0xff]
    %v3240 = vld [vmem:[#allocation6 + $0x90] sm:$0xff]
    %v3241 = vld [vmem:[#allocation6 + $0xb0] sm:$0xff]
    %v3242 = vld [vmem:[#allocation6 + $0xd0] sm:$0xff]
    %v3243 = vld [vmem:[#allocation6 + $0xf0] sm:$0xff]
    %v3244 = vld [vmem:[#allocation6 + $0x110] sm:$0xff]
    %v3245 = vld [vmem:[#allocation6 + $0x130] sm:$0xff]
    %v3246 = vld [vmem:[#allocation6 + $0x150] sm:$0xff]
    %v3247 = vld [vmem:[#allocation6 + $0x170] sm:$0xff]
    %v3248 = vld [vmem:[#allocation6 + $0x190] sm:$0xff]
    %v3249 = vld [vmem:[#allocation6 + $0x1b0] sm:$0xff]
    %v3250 = vld [vmem:[#allocation6 + $0x1d0] sm:$0xff]
    %v3251 = vld [vmem:[#allocation6 + $0x1f0] sm:$0xff]
    %3252 = vmatprep.subr.mxu0 0.0
    %3253 = vmatpush1.msra.mxu0 %v3236
    %3254 = vmatprep.subr.mxu0 0.0
    %3255 = vmatpush1.msra.mxu0 %v3237
    %3256 = vmatprep.subr.mxu0 0.0
    %3257 = vmatpush1.msra.mxu0 %v3238
    %3258 = vmatprep.subr.mxu0 0.0
    %3259 = vmatpush1.msra.mxu0 %v3239
    %3260 = vmatprep.subr.mxu0 0.0
    %3261 = vmatpush1.msra.mxu0 %v3240
    %3262 = vmatprep.subr.mxu0 0.0
    %3263 = vmatpush1.msra.mxu0 %v3241
    %3264 = vmatprep.subr.mxu0 0.0
    %3265 = vmatpush1.msra.mxu0 %v3242
    %3266 = vmatprep.subr.mxu0 0.0
    %3267 = vmatpush1.msra.mxu0 %v3243
    %3268 = vmatprep.subr.mxu0 0.0
    %3269 = vmatpush1.msra.mxu0 %v3244
    %3270 = vmatprep.subr.mxu0 0.0
    %3271 = vmatpush1.msra.mxu0 %v3245
    %3272 = vmatprep.subr.mxu0 0.0
    %3273 = vmatpush1.msra.mxu0 %v3246
    %3274 = vmatprep.subr.mxu0 0.0
    %3275 = vmatpush1.msra.mxu0 %v3247
    %3276 = vmatprep.subr.mxu0 0.0
    %3277 = vmatpush1.msra.mxu0 %v3248
    %3278 = vmatprep.subr.mxu0 0.0
    %3279 = vmatpush1.msra.mxu0 %v3249
    %3280 = vmatprep.subr.mxu0 0.0
    %3281 = vmatpush1.msra.mxu0 %v3250
    %3282 = vmatprep.subr.mxu0 0.0
    %3283 = vmatpush1.msra.mxu0 %v3251
    %3284 = vmatprep.subr.mxu0 0.0
    %3285 = vmatpush1.msra.mxu0 0.0
    %3286 = vmatprep.subr.mxu0 0.0
    %3287 = vmatpush1.msra.mxu0 0.0
    %3288 = vmatprep.subr.mxu0 0.0
    %3289 = vmatpush1.msra.mxu0 0.0
    %3290 = vmatprep.subr.mxu0 0.0
    %3291 = vmatpush1.msra.mxu0 0.0
    %3292 = vmatprep.subr.mxu0 0.0
    %3293 = vmatpush1.msra.mxu0 0.0
    %3294 = vmatprep.subr.mxu0 0.0
    %3295 = vmatpush1.msra.mxu0 0.0
    %3296 = vmatprep.subr.mxu0 0.0
    %3297 = vmatpush1.msra.mxu0 0.0
    %3298 = vmatprep.subr.mxu0 0.0
    %3299 = vmatpush1.msra.mxu0 0.0
    %3300 = vmatprep.subr.mxu0 0.0
    %3301 = vmatpush1.msra.mxu0 0.0
    %3302 = vmatprep.subr.mxu0 0.0
    %3303 = vmatpush1.msra.mxu0 0.0
    %3304 = vmatprep.subr.mxu0 0.0
    %3305 = vmatpush1.msra.mxu0 0.0
    %3306 = vmatprep.subr.mxu0 0.0
    %3307 = vmatpush1.msra.mxu0 0.0
    %3308 = vmatprep.subr.mxu0 0.0
    %3309 = vmatpush1.msra.mxu0 0.0
    %3310 = vmatprep.subr.mxu0 0.0
    %3311 = vmatpush1.msra.mxu0 0.0
    %3312 = vmatprep.subr.mxu0 0.0
    %3313 = vmatpush1.msra.mxu0 0.0
    %3314 = vmatprep.subr.mxu0 0.0
    %3315 = vmatpush1.msra.mxu0 0.0
    %3316 = vmatprep.mubr.f32.mxu0 0.0
    %3317 = vmatmul.mubr.f32.gmra.mrb[0].mxu0 %v3040
    %v3318 = vpop.f32.mrb[0].mxu0
    %v3319 = vadd.f32 0.0, %v3318
    %v3320 = vpop.f32.mrb[0].mxu0
    %3321 = vdwg.mxu0
    %v3322 = vadd.f32 %v3235, %v3319
    %v3323 = vtanh.pop %v3322
    %v3324 = vmul.f32 %v3234, %v3323
    %v3325 = vadd.f32 %v3140, %v3324
    %v3326 = vld [vmem:[%s3045 + $0x18] sm:$0xff]
    %v3327 = vld [vmem:[#allocation6 + $0x18] sm:$0xff]
    %v3328 = vld [vmem:[#allocation6 + $0x38] sm:$0xff]
    %v3329 = vld [vmem:[#allocation6 + $0x58] sm:$0xff]
    %v3330 = vld [vmem:[#allocation6 + $0x78] sm:$0xff]
    %v3331 = vld [vmem:[#allocation6 + $0x98] sm:$0xff]
    %v3332 = vld [vmem:[#allocation6 + $0xb8] sm:$0xff]
    %v3333 = vld [vmem:[#allocation6 + $0xd8] sm:$0xff]
    %v3334 = vld [vmem:[#allocation6 + $0xf8] sm:$0xff]
    %v3335 = vld [vmem:[#allocation6 + $0x118] sm:$0xff]
    %v3336 = vld [vmem:[#allocation6 + $0x138] sm:$0xff]
    %v3337 = vld [vmem:[#allocation6 + $0x158] sm:$0xff]
    %v3338 = vld [vmem:[#allocation6 + $0x178] sm:$0xff]
    %v3339 = vld [vmem:[#allocation6 + $0x198] sm:$0xff]
    %v3340 = vld [vmem:[#allocation6 + $0x1b8] sm:$0xff]
    %v3341 = vld [vmem:[#allocation6 + $0x1d8] sm:$0xff]
    %v3342 = vld [vmem:[#allocation6 + $0x1f8] sm:$0xff]
    %3343 = vmatprep.subr.mxu0 0.0
    %3344 = vmatpush1.msra.mxu0 %v3327
    %3345 = vmatprep.subr.mxu0 0.0
    %3346 = vmatpush1.msra.mxu0 %v3328
    %3347 = vmatprep.subr.mxu0 0.0
    %3348 = vmatpush1.msra.mxu0 %v3329
    %3349 = vmatprep.subr.mxu0 0.0
    %3350 = vmatpush1.msra.mxu0 %v3330
    %3351 = vmatprep.subr.mxu0 0.0
    %3352 = vmatpush1.msra.mxu0 %v3331
    %3353 = vmatprep.subr.mxu0 0.0
    %3354 = vmatpush1.msra.mxu0 %v3332
    %3355 = vmatprep.subr.mxu0 0.0
    %3356 = vmatpush1.msra.mxu0 %v3333
    %3357 = vmatprep.subr.mxu0 0.0
    %3358 = vmatpush1.msra.mxu0 %v3334
    %3359 = vmatprep.subr.mxu0 0.0
    %3360 = vmatpush1.msra.mxu0 %v3335
    %3361 = vmatprep.subr.mxu0 0.0
    %3362 = vmatpush1.msra.mxu0 %v3336
    %3363 = vmatprep.subr.mxu0 0.0
    %3364 = vmatpush1.msra.mxu0 %v3337
    %3365 = vmatprep.subr.mxu0 0.0
    %3366 = vmatpush1.msra.mxu0 %v3338
    %3367 = vmatprep.subr.mxu0 0.0
    %3368 = vmatpush1.msra.mxu0 %v3339
    %3369 = vmatprep.subr.mxu0 0.0
    %3370 = vmatpush1.msra.mxu0 %v3340
    %3371 = vmatprep.subr.mxu0 0.0
    %3372 = vmatpush1.msra.mxu0 %v3341
    %3373 = vmatprep.subr.mxu0 0.0
    %3374 = vmatpush1.msra.mxu0 %v3342
    %3375 = vmatprep.subr.mxu0 0.0
    %3376 = vmatpush1.msra.mxu0 0.0
    %3377 = vmatprep.subr.mxu0 0.0
    %3378 = vmatpush1.msra.mxu0 0.0
    %3379 = vmatprep.subr.mxu0 0.0
    %3380 = vmatpush1.msra.mxu0 0.0
    %3381 = vmatprep.subr.mxu0 0.0
    %3382 = vmatpush1.msra.mxu0 0.0
    %3383 = vmatprep.subr.mxu0 0.0
    %3384 = vmatpush1.msra.mxu0 0.0
    %3385 = vmatprep.subr.mxu0 0.0
    %3386 = vmatpush1.msra.mxu0 0.0
    %3387 = vmatprep.subr.mxu0 0.0
    %3388 = vmatpush1.msra.mxu0 0.0
    %3389 = vmatprep.subr.mxu0 0.0
    %3390 = vmatpush1.msra.mxu0 0.0
    %3391 = vmatprep.subr.mxu0 0.0
    %3392 = vmatpush1.msra.mxu0 0.0
    %3393 = vmatprep.subr.mxu0 0.0
    %3394 = vmatpush1.msra.mxu0 0.0
    %3395 = vmatprep.subr.mxu0 0.0
    %3396 = vmatpush1.msra.mxu0 0.0
    %3397 = vmatprep.subr.mxu0 0.0
    %3398 = vmatpush1.msra.mxu0 0.0
    %3399 = vmatprep.subr.mxu0 0.0
    %3400 = vmatpush1.msra.mxu0 0.0
    %3401 = vmatprep.subr.mxu0 0.0
    %3402 = vmatpush1.msra.mxu0 0.0
    %3403 = vmatprep.subr.mxu0 0.0
    %3404 = vmatpush1.msra.mxu0 0.0
    %3405 = vmatprep.subr.mxu0 0.0
    %3406 = vmatpush1.msra.mxu0 0.0
    %3407 = vmatprep.mubr.f32.mxu0 0.0
    %3408 = vmatmul.mubr.f32.gmra.mrb[0].mxu0 %v3040
    %v3409 = vpop.f32.mrb[0].mxu0
    %v3410 = vadd.f32 0.0, %v3409
    %v3411 = vpop.f32.mrb[0].mxu0
    %3412 = vdwg.mxu0
    %v3413 = vadd.f32 %v3326, %v3410
    %v3414 = vxor.u32 %v3413, 2147483648
    %v3415 = vmul.f32 %v3414, 1.442695
    %v3416 = vpow.pop %v3415
    %v3417 = vadd.f32 %v3416, 1.0
    %v3418 = vrcp.pop %v3417
    %v3419 = vmul.f32 1.0, %v3418
    %v3420 = vtanh.pop %v3325
    %v3421 = vmul.f32 %v3419, %v3420
    %s3422 = scalar_lea.vmem [#allocation3], 56
    %3423 = vst [vmem:[%s3422] sm:$0xff] %v3421
    %3424 = vst [vmem:[#allocation4] sm:$0xff] %v3421
    %3425 = vst [vmem:[#allocation5] sm:$0xff] %v3325
    %v3426 = vld [vmem:[#allocation3] sm:$0xff]
    %v3427 = vld [vmem:[#allocation3 + $0x8] sm:$0xff]
    %v3428 = vld [vmem:[#allocation3 + $0x10] sm:$0xff]
    %v3429 = vld [vmem:[#allocation3 + $0x18] sm:$0xff]
    %v3430 = vld [vmem:[#allocation3 + $0x20] sm:$0xff]
    %v3431 = vld [vmem:[#allocation3 + $0x28] sm:$0xff]
    %v3432 = vld [vmem:[#allocation3 + $0x30] sm:$0xff]
    %v3433 = vld [vmem:[#allocation3 + $0x38] sm:$0xff]
    %v3434 = vld [vmem:[#allocation9] sm:$0xff]
    %v3435 = vld [vmem:[#allocation9 + $0x8] sm:$0xff]
    %v3436 = vld [vmem:[#allocation9 + $0x10] sm:$0xff]
    %v3437 = vld [vmem:[#allocation9 + $0x18] sm:$0xff]
    %v3438 = vld [vmem:[#allocation9 + $0x20] sm:$0xff]
    %v3439 = vld [vmem:[#allocation9 + $0x28] sm:$0xff]
    %v3440 = vld [vmem:[#allocation9 + $0x30] sm:$0xff]
    %v3441 = vld [vmem:[#allocation9 + $0x38] sm:$0xff]
    %v3442 = vld [vmem:[#allocation9 + $0x40] sm:$0xff]
    %v3443 = vld [vmem:[#allocation9 + $0x48] sm:$0xff]
    %v3444 = vld [vmem:[#allocation9 + $0x50] sm:$0xff]
    %v3445 = vld [vmem:[#allocation9 + $0x58] sm:$0xff]
    %v3446 = vld [vmem:[#allocation9 + $0x60] sm:$0xff]
    %v3447 = vld [vmem:[#allocation9 + $0x68] sm:$0xff]
    %v3448 = vld [vmem:[#allocation9 + $0x70] sm:$0xff]
    %v3449 = vld [vmem:[#allocation9 + $0x78] sm:$0xff]
    %v3450 = vld [vmem:[%s5] sm:$0x1]
    %v3452 = vlaneseq
    %v3453 = vshrl.u32 %v3452, 7
    %v3454 = vsub.s32 0, %v3453
    %v3455 = vrot.slane %v3450, %v3454
    %3457 = vmatprep.subr.mxu0 0.0
    %3458 = vmatpush1.msra.mxu0 %v3434
    %3459 = vmatprep.subr.mxu0 0.0
    %3460 = vmatpush1.msra.mxu0 %v3435
    %3461 = vmatprep.subr.mxu0 0.0
    %3462 = vmatpush1.msra.mxu0 %v3436
    %3463 = vmatprep.subr.mxu0 0.0
    %3464 = vmatpush1.msra.mxu0 %v3437
    %3465 = vmatprep.subr.mxu0 0.0
    %3466 = vmatpush1.msra.mxu0 %v3438
    %3467 = vmatprep.subr.mxu0 0.0
    %3468 = vmatpush1.msra.mxu0 %v3439
    %3469 = vmatprep.subr.mxu0 0.0
    %3470 = vmatpush1.msra.mxu0 %v3440
    %3471 = vmatprep.subr.mxu0 0.0
    %3472 = vmatpush1.msra.mxu0 %v3441
    %3473 = vmatprep.subr.mxu0 0.0
    %3474 = vmatpush1.msra.mxu0 %v3442
    %3475 = vmatprep.subr.mxu0 0.0
    %3476 = vmatpush1.msra.mxu0 %v3443
    %3477 = vmatprep.subr.mxu0 0.0
    %3478 = vmatpush1.msra.mxu0 %v3444
    %3479 = vmatprep.subr.mxu0 0.0
    %3480 = vmatpush1.msra.mxu0 %v3445
    %3481 = vmatprep.subr.mxu0 0.0
    %3482 = vmatpush1.msra.mxu0 %v3446
    %3483 = vmatprep.subr.mxu0 0.0
    %3484 = vmatpush1.msra.mxu0 %v3447
    %3485 = vmatprep.subr.mxu0 0.0
    %3486 = vmatpush1.msra.mxu0 %v3448
    %3487 = vmatprep.subr.mxu0 0.0
    %3488 = vmatpush1.msra.mxu0 %v3449
    %3489 = vmatprep.subr.mxu0 0.0
    %3490 = vmatpush1.msra.mxu0 0.0
    %3491 = vmatprep.subr.mxu0 0.0
    %3492 = vmatpush1.msra.mxu0 0.0
    %3493 = vmatprep.subr.mxu0 0.0
    %3494 = vmatpush1.msra.mxu0 0.0
    %3495 = vmatprep.subr.mxu0 0.0
    %3496 = vmatpush1.msra.mxu0 0.0
    %3497 = vmatprep.subr.mxu0 0.0
    %3498 = vmatpush1.msra.mxu0 0.0
    %3499 = vmatprep.subr.mxu0 0.0
    %3500 = vmatpush1.msra.mxu0 0.0
    %3501 = vmatprep.subr.mxu0 0.0
    %3502 = vmatpush1.msra.mxu0 0.0
    %3503 = vmatprep.subr.mxu0 0.0
    %3504 = vmatpush1.msra.mxu0 0.0
    %3505 = vmatprep.subr.mxu0 0.0
    %3506 = vmatpush1.msra.mxu0 0.0
    %3507 = vmatprep.subr.mxu0 0.0
    %3508 = vmatpush1.msra.mxu0 0.0
    %3509 = vmatprep.subr.mxu0 0.0
    %3510 = vmatpush1.msra.mxu0 0.0
    %3511 = vmatprep.subr.mxu0 0.0
    %3512 = vmatpush1.msra.mxu0 0.0
    %3513 = vmatprep.subr.mxu0 0.0
    %3514 = vmatpush1.msra.mxu0 0.0
    %3515 = vmatprep.subr.mxu0 0.0
    %3516 = vmatpush1.msra.mxu0 0.0
    %3517 = vmatprep.subr.mxu0 0.0
    %3518 = vmatpush1.msra.mxu0 0.0
    %3519 = vmatprep.subr.mxu0 0.0
    %3520 = vmatpush1.msra.mxu0 0.0
    %3521 = vmatprep.mubr.f32.mxu0 0.0
    %3522 = vmatmul.mubr.f32.gmra.mrb[0].mxu0 %v3426
    %v3523 = vpop.f32.mrb[0].mxu0
    %v3524 = vadd.f32 %v3455, %v3523
    %v3525 = vpop.f32.mrb[0].mxu0
    %3526 = vmatprep.mubr.f32.mxu0 0.0
    %3527 = vmatmul.mubr.f32.gmra.mrb[0].mxu0 %v3427
    %v3528 = vpop.f32.mrb[0].mxu0
    %v3529 = vadd.f32 %v3455, %v3528
    %v3530 = vpop.f32.mrb[0].mxu0
    %3531 = vmatprep.mubr.f32.mxu0 0.0
    %3532 = vmatmul.mubr.f32.gmra.mrb[0].mxu0 %v3428
    %v3533 = vpop.f32.mrb[0].mxu0
    %v3534 = vadd.f32 %v3455, %v3533
    %v3535 = vpop.f32.mrb[0].mxu0
    %3536 = vmatprep.mubr.f32.mxu0 0.0
    %3537 = vmatmul.mubr.f32.gmra.mrb[0].mxu0 %v3429
    %v3538 = vpop.f32.mrb[0].mxu0
    %v3539 = vadd.f32 %v3455, %v3538
    %v3540 = vpop.f32.mrb[0].mxu0
    %3541 = vmatprep.mubr.f32.mxu0 0.0
    %3542 = vmatmul.mubr.f32.gmra.mrb[0].mxu0 %v3430
    %v3543 = vpop.f32.mrb[0].mxu0
    %v3544 = vadd.f32 %v3455, %v3543
    %v3545 = vpop.f32.mrb[0].mxu0
    %3546 = vmatprep.mubr.f32.mxu0 0.0
    %3547 = vmatmul.mubr.f32.gmra.mrb[0].mxu0 %v3431
    %v3548 = vpop.f32.mrb[0].mxu0
    %v3549 = vadd.f32 %v3455, %v3548
    %v3550 = vpop.f32.mrb[0].mxu0
    %3551 = vmatprep.mubr.f32.mxu0 0.0
    %3552 = vmatmul.mubr.f32.gmra.mrb[0].mxu0 %v3432
    %v3553 = vpop.f32.mrb[0].mxu0
    %v3554 = vadd.f32 %v3455, %v3553
    %v3555 = vpop.f32.mrb[0].mxu0
    %3556 = vmatprep.mubr.f32.mxu0 0.0
    %3557 = vmatmul.mubr.f32.gmra.mrb[0].mxu0 %v3433
    %v3558 = vpop.f32.mrb[0].mxu0
    %v3559 = vadd.f32 %v3455, %v3558
    %v3560 = vpop.f32.mrb[0].mxu0
    %3561 = vdwg.mxu0
    %v3562 = vtanh.pop %v3524
    %v3563 = vtanh.pop %v3529
    %v3564 = vtanh.pop %v3534
    %v3565 = vtanh.pop %v3539
    %v3566 = vtanh.pop %v3544
    %v3567 = vtanh.pop %v3549
    %v3568 = vtanh.pop %v3554
    %v3569 = vtanh.pop %v3559
    %3570 = vst [vmem:[#allocation11] sm:$0xff] %v3562
    %3571 = vst [vmem:[#allocation11 + $0x8] sm:$0xff] %v3563
    %3572 = vst [vmem:[#allocation11 + $0x10] sm:$0xff] %v3564
    %3573 = vst [vmem:[#allocation11 + $0x18] sm:$0xff] %v3565
    %3574 = vst [vmem:[#allocation11 + $0x20] sm:$0xff] %v3566
    %3575 = vst [vmem:[#allocation11 + $0x28] sm:$0xff] %v3567
    %3576 = vst [vmem:[#allocation11 + $0x30] sm:$0xff] %v3568
    %3577 = vst [vmem:[#allocation11 + $0x38] sm:$0xff] %v3569
    // Predicated region
    $region38: #{tpu_custom_call.1} parent=1 // pred_check
      _
    $region39: #{tpu_custom_call.1} parent=1 // pred_check_branch
      %3579 = sbr.rel (0) target = $region41
    $region40: #{tpu_custom_call.1} parent=1 // pred_region
      %s3581 = ssub.s32 1024, 1024
      %3582 = vsyncadd [#allocation8], %s3581
      %s3583 = sshll.u32 [#allocation11], 4
      %s3584 = int_to_ptr.vmem [resolvable:$true] %s3583
      %3589 = dma.vmem_to_hbm [thread:$0]  %s3584, 1024, %s6, [#allocation8], 128, 128, 8
    $region41: #{tpu_custom_call.1} parent=1 // pred_fallthru
      _
    // Predicated region
    $region42: #{tpu_custom_call.1} parent=1 // pred_check
      _
    $region43: #{tpu_custom_call.1} parent=1 // pred_check_branch
      %3591 = sbr.rel (0) target = $region45
    $region44: #{tpu_custom_call.1} parent=1 // pred_region
      %3592 = dma.done [#allocation8], 1024
    $region45: #{tpu_custom_call.1} parent=1 // pred_fallthru
      _
    %3593 = vsyncpa [#allocation7], 1
    %3594 = vsyncpa [#allocation10], 1
    %3595 = vsyncpa [#allocation8], 1

// kernel: tpu_custom_call.1
$region0: #{tpu_custom_call.1}
  #allocation0 [shape = 'u32[]', space=smem, size = 0x4, offset = 0x4, fixed_abs, tag = 'smem constant byte address 0x4 - core index']
  #allocation1 [shape = 'u32[144,128]{1,0:T(1,128)}', space=vmem, size = 0x12000, scoped, tag = 'internal scratch']
  #allocation2 [shape = 'f32[64,512]{1,0:T(8,128)}', space=vmem, size = 0x20000, scoped, tag = 'scratch operand']
  #allocation3 [shape = 'f32[64,128]{1,0:T(8,128)}', space=vmem, size = 0x8000, scoped, tag = 'scratch operand']
  #allocation4 [shape = 'f32[8,128]{1,0:T(8,128)}', space=vmem, size = 0x1000, scoped, tag = 'scratch operand']
  #allocation5 [shape = 'f32[8,128]{1,0:T(8,128)}', space=vmem, size = 0x1000, scoped, tag = 'scratch operand']
  %s0 = inlined_call_operand.vmem [shape: f32[1,64,8], index: 0, kind: input, shape index: {}]
  %s1 = inlined_call_operand.vmem [shape: f32[8,512], index: 1, kind: input, shape index: {}]
  %s2 = inlined_call_operand.hbm [shape: f32[128,512], index: 2, kind: input, shape index: {}]
  %s3 = inlined_call_operand.vmem [shape: f32[1,512], index: 3, kind: input, shape index: {}]
  %s4 = inlined_call_operand.hbm [shape: f32[128,128], index: 4, kind: input, shape index: {}]
  %s5 = inlined_call_operand.vmem [shape: f32[1,128], index: 5, kind: input, shape index: {}]
  %s6 = inlined_call_operand.hbm [shape: f32[1,64,128], index: 6, kind: output, shape index: {}]
  %s7 = sld [smem:[#allocation0]]
  $region46: #{tpu_custom_call.1} parent=0
    _
  %s9 = ssub.s32 1, %s7
  %s10 = scalar_select 0, %s9, %s7
  $region1: #{tpu_custom_call.1} parent=0
    #allocation6 [shape = 'u8[262144]{0}', space=vmem, size = 0x40000, scoped, tag = 'input window, operand 2, single buffered']
    #allocation7 [shape = 's32[1]{0}', space=sflag, size = 0x4, scoped, tag = 'scoped memory for tpu_custom_call.1']
    #allocation8 [shape = 's32[1]{0}', space=sflag, size = 0x4, scoped, tag = 'scoped memory for tpu_custom_call.1']
    #allocation9 [shape = 'u8[65536]{0}', space=vmem, size = 0x10000, scoped, tag = 'input window, operand 4, single buffered']
    #allocation10 [shape = 's32[1]{0}', space=sflag, size = 0x4, scoped, tag = 'scoped memory for tpu_custom_call.1']
    #allocation11 [shape = 'u8[32768]{0}', space=vmem, size = 0x8000, scoped, tag = 'output window, operand 0, single buffered']
    %11 = vsyncpa [#allocation7], 0
    %12 = vsyncpa [#allocation10], 0
    %13 = vsyncpa [#allocation8], 0
    // Predicated region
    $region2: #{tpu_custom_call.1} parent=1 // pred_check
      _
    $region3: #{tpu_custom_call.1} parent=1 // pred_check_branch
      %15 = sbr.rel (0) target = $region5
    $region4: #{tpu_custom_call.1} parent=1 // pred_region
      _
    $region5: #{tpu_custom_call.1} parent=1 // pred_fallthru
      _
    // Predicated region
    $region6: #{tpu_custom_call.1} parent=1 // pred_check
      _
    $region7: #{tpu_custom_call.1} parent=1 // pred_check_branch
      %17 = sbr.rel (0) target = $region9
    $region8: #{tpu_custom_call.1} parent=1 // pred_region
      _
    $region9: #{tpu_custom_call.1} parent=1 // pred_fallthru
      _
    // Predicated region
    $region10: #{tpu_custom_call.1} parent=1 // pred_check
      _
    $region11: #{tpu_custom_call.1} parent=1 // pred_check_branch
      %19 = sbr.rel (0) target = $region13
    $region12: #{tpu_custom_call.1} parent=1 // pred_region
      %s21 = ssub.s32 8192, 8192
      %22 = vsyncadd [#allocation7], %s21
      %s23 = sshll.u32 [#allocation6], 4
      %s24 = int_to_ptr.vmem [resolvable:$true] %s23
      %29 = dma.hbm_to_vmem [thread:$0]  %s2, 8192, %s24, [#allocation7], 512, 512, 32
    $region13: #{tpu_custom_call.1} parent=1 // pred_fallthru
      _
    // Predicated region
    $region14: #{tpu_custom_call.1} parent=1 // pred_check
      _
    $region15: #{tpu_custom_call.1} parent=1 // pred_check_branch
      %31 = sbr.rel (0) target = $region17
    $region16: #{tpu_custom_call.1} parent=1 // pred_region
      _
    $region17: #{tpu_custom_call.1} parent=1 // pred_fallthru
      _
    // Predicated region
    $region18: #{tpu_custom_call.1} parent=1 // pred_check
      _
    $region19: #{tpu_custom_call.1} parent=1 // pred_check_branch
      %33 = sbr.rel (0) target = $region21
    $region20: #{tpu_custom_call.1} parent=1 // pred_region
      %s35 = ssub.s32 2048, 2048
      %36 = vsyncadd [#allocation10], %s35
      %s37 = sshll.u32 [#allocation9], 4
      %s38 = int_to_ptr.vmem [resolvable:$true] %s37
      %43 = dma.hbm_to_vmem [thread:$0]  %s4, 2048, %s38, [#allocation10], 128, 128, 8
    $region21: #{tpu_custom_call.1} parent=1 // pred_fallthru
      _
    // Predicated region
    $region22: #{tpu_custom_call.1} parent=1 // pred_check
      _
    $region23: #{tpu_custom_call.1} parent=1 // pred_check_branch
      %45 = sbr.rel (0) target = $region25
    $region24: #{tpu_custom_call.1} parent=1 // pred_region
      _
    $region25: #{tpu_custom_call.1} parent=1 // pred_fallthru
      _
    // Predicated region
    $region26: #{tpu_custom_call.1} parent=1 // pred_check
      _
    $region27: #{tpu_custom_call.1} parent=1 // pred_check_branch
      %47 = sbr.rel (0) target = $region29
    $region28: #{tpu_custom_call.1} parent=1 // pred_region
      %48 = dma.done [#allocation7], 8192
    $region29: #{tpu_custom_call.1} parent=1 // pred_fallthru
      _
    // Predicated region
    $region30: #{tpu_custom_call.1} parent=1 // pred_check
      _
    $region31: #{tpu_custom_call.1} parent=1 // pred_check_branch
      %50 = sbr.rel (0) target = $region33
    $region32: #{tpu_custom_call.1} parent=1 // pred_region
      %51 = dma.done [#allocation10], 2048
    $region33: #{tpu_custom_call.1} parent=1 // pred_fallthru
      _
    %p52 = scmp.eq.s32.totalorder 0, 0
    // Predicated region
    $region34: #{tpu_custom_call.1} parent=1 // pred_check
      %p53 = pneg %p52
    $region35: #{tpu_custom_call.1} parent=1 // pred_check_branch
      %55 = sbr.rel (%p53) target = $region37
    $region36: #{tpu_custom_call.1} parent=1 // pred_region
      %56 = vst [vmem:[#allocation4] sm:$0xff] 0.0
      %57 = vst [vmem:[#allocation5] sm:$0xff] 0.0
    $region37: #{tpu_custom_call.1} parent=1 // pred_fallthru
      _
    %v58 = vld [vmem:[%s0] sm:$0xff]
    %v59 = vld [vmem:[%s0 + $0x8] sm:$0xff]
    %v60 = vld [vmem:[%s0 + $0x10] sm:$0xff]
    %v61 = vld [vmem:[%s0 + $0x18] sm:$0xff]
    %v62 = vld [vmem:[%s0 + $0x20] sm:$0xff]
    %v63 = vld [vmem:[%s0 + $0x28] sm:$0xff]
    %v64 = vld [vmem:[%s0 + $0x30] sm:$0xff]
    %v65 = vld [vmem:[%s0 + $0x38] sm:$0xff]
    %v66 = vld [vmem:[%s1] sm:$0xff]
    %v67 = vld [vmem:[%s1 + $0x8] sm:$0xff]
    %v68 = vld [vmem:[%s1 + $0x10] sm:$0xff]
    %v69 = vld [vmem:[%s1 + $0x18] sm:$0xff]
    %v70 = vld [vmem:[%s3] sm:$0xf]
    %v72 = vlaneseq
    %v73 = vshrl.u32 %v72, 7
    %v74 = vsub.s32 0, %v73
    %v75 = vrot.slane %v70, %v74
    %v76 = vlaneseq
    %v77 = vshrl.u32 %v76, 7
    %v78 = vsub.s32 1, %v77
    %v79 = vrot.slane %v70, %v78
    %v80 = vlaneseq
    %v81 = vshrl.u32 %v80, 7
    %v82 = vsub.s32 2, %v81
    %v83 = vrot.slane %v70, %v82
    %v84 = vlaneseq
    %v85 = vshrl.u32 %v84, 7
    %v86 = vsub.s32 3, %v85
    %v87 = vrot.slane %v70, %v86
    %vm92 = vcmask 64512
    %v94 = vsel %vm92, %v58, 0
    %v97 = vsel %vm92, %v59, 0
    %v100 = vsel %vm92, %v60, 0
    %v103 = vsel %vm92, %v61, 0
    %v106 = vsel %vm92, %v62, 0
    %v109 = vsel %vm92, %v63, 0
    %v112 = vsel %vm92, %v64, 0
    %v115 = vsel %vm92, %v65, 0
    %117 = vmatprep.subr.mxu0 %v67
    %118 = vmatpush1.msra.mxu0 %v66
    %119 = vmatprep.subr.mxu0 0.0
    %120 = vmatpush1.msra.mxu0 0.0
    %121 = vmatprep.subr.mxu0 0.0
    %122 = vmatpush1.msra.mxu0 0.0
    %123 = vmatprep.subr.mxu0 0.0
    %124 = vmatpush1.msra.mxu0 0.0
    %125 = vmatprep.subr.mxu0 0.0
    %126 = vmatpush1.msra.mxu0 0.0
    %127 = vmatprep.subr.mxu0 0.0
    %128 = vmatpush1.msra.mxu0 0.0
    %129 = vmatprep.subr.mxu0 0.0
    %130 = vmatpush1.msra.mxu0 0.0
    %131 = vmatprep.subr.mxu0 0.0
    %132 = vmatpush1.msra.mxu0 0.0
    %133 = vmatprep.subr.mxu0 0.0
    %134 = vmatpush1.msra.mxu0 0.0
    %135 = vmatprep.subr.mxu0 0.0
    %136 = vmatpush1.msra.mxu0 0.0
    %137 = vmatprep.subr.mxu0 0.0
    %138 = vmatpush1.msra.mxu0 0.0
    %139 = vmatprep.subr.mxu0 0.0
    %140 = vmatpush1.msra.mxu0 0.0
    %141 = vmatprep.subr.mxu0 0.0
    %142 = vmatpush1.msra.mxu0 0.0
    %143 = vmatprep.subr.mxu0 0.0
    %144 = vmatpush1.msra.mxu0 0.0
    %145 = vmatprep.subr.mxu0 0.0
    %146 = vmatpush1.msra.mxu0 0.0
    %147 = vmatprep.subr.mxu0 0.0
    %148 = vmatpush1.msra.mxu0 0.0
    %149 = vmatprep.subr.mxu0 0.0
    %150 = vmatpush1.msra.mxu0 0.0
    %151 = vmatprep.subr.mxu0 0.0
    %152 = vmatpush1.msra.mxu0 0.0
    %153 = vmatprep.subr.mxu0 0.0
    %154 = vmatpush1.msra.mxu0 0.0
    %155 = vmatprep.subr.mxu0 0.0
    %156 = vmatpush1.msra.mxu0 0.0
    %157 = vmatprep.subr.mxu0 0.0
    %158 = vmatpush1.msra.mxu0 0.0
    %159 = vmatprep.subr.mxu0 0.0
    %160 = vmatpush1.msra.mxu0 0.0
    %161 = vmatprep.subr.mxu0 0.0
    %162 = vmatpush1.msra.mxu0 0.0
    %163 = vmatprep.subr.mxu0 0.0
    %164 = vmatpush1.msra.mxu0 0.0
    %165 = vmatprep.subr.mxu0 0.0
    %166 = vmatpush1.msra.mxu0 0.0
    %167 = vmatprep.subr.mxu0 0.0
    %168 = vmatpush1.msra.mxu0 0.0
    %169 = vmatprep.subr.mxu0 0.0
    %170 = vmatpush1.msra.mxu0 0.0
    %171 = vmatprep.subr.mxu0 0.0
    %172 = vmatpush1.msra.mxu0 0.0
    %173 = vmatprep.subr.mxu0 0.0
    %174 = vmatpush1.msra.mxu0 0.0
    %175 = vmatprep.subr.mxu0 0.0
    %176 = vmatpush1.msra.mxu0 0.0
    %177 = vmatprep.subr.mxu0 0.0
    %178 = vmatpush1.msra.mxu0 0.0
    %179 = vmatprep.subr.mxu0 0.0
    %180 = vmatpush1.msra.mxu0 0.0
    %181 = vmatprep.mubr.f32.mxu0 0.0
    %182 = vmatmul.mubr.f32.gmra.mrb[0].mxu0 %v94
    %v183 = vpop.f32.mrb[0].mxu0
    %v184 = vadd.f32 %v75, %v183
    %v185 = vpop.f32.mrb[0].mxu0
    %v186 = vadd.f32 %v79, %v185
    %187 = vmatprep.mubr.f32.mxu0 0.0
    %188 = vmatmul.mubr.f32.gmra.mrb[0].mxu0 %v97
    %v189 = vpop.f32.mrb[0].mxu0
    %v190 = vadd.f32 %v75, %v189
    %v191 = vpop.f32.mrb[0].mxu0
    %v192 = vadd.f32 %v79, %v191
    %193 = vmatprep.mubr.f32.mxu0 0.0
    %194 = vmatmul.mubr.f32.gmra.mrb[0].mxu0 %v100
    %v195 = vpop.f32.mrb[0].mxu0
    %v196 = vadd.f32 %v75, %v195
    %v197 = vpop.f32.mrb[0].mxu0
    %v198 = vadd.f32 %v79, %v197
    %199 = vmatprep.mubr.f32.mxu0 0.0
    %200 = vmatmul.mubr.f32.gmra.mrb[0].mxu0 %v103
    %v201 = vpop.f32.mrb[0].mxu0
    %v202 = vadd.f32 %v75, %v201
    %v203 = vpop.f32.mrb[0].mxu0
    %v204 = vadd.f32 %v79, %v203
    %205 = vmatprep.mubr.f32.mxu0 0.0
    %206 = vmatmul.mubr.f32.gmra.mrb[0].mxu0 %v106
    %v207 = vpop.f32.mrb[0].mxu0
    %v208 = vadd.f32 %v75, %v207
    %v209 = vpop.f32.mrb[0].mxu0
    %v210 = vadd.f32 %v79, %v209
    %211 = vmatprep.mubr.f32.mxu0 0.0
    %212 = vmatmul.mubr.f32.gmra.mrb[0].mxu0 %v109
    %v213 = vpop.f32.mrb[0].mxu0
    %v214 = vadd.f32 %v75, %v213
    %v215 = vpop.f32.mrb[0].mxu0
    %v216 = vadd.f32 %v79, %v215
    %217 = vmatprep.mubr.f32.mxu0 0.0
    %218 = vmatmul.mubr.f32.gmra.mrb[0].mxu0 %v112
    %v219 = vpop.f32.mrb[0].mxu0
    %v220 = vadd.f32 %v75, %v219
    %v221 = vpop.f32.mrb[0].mxu0
    %v222 = vadd.f32 %v79, %v221
    %223 = vmatprep.mubr.f32.mxu0 0.0
    %224 = vmatmul.mubr.f32.gmra.mrb[0].mxu0 %v115
    %v225 = vpop.f32.mrb[0].mxu0
    %v226 = vadd.f32 %v75, %v225
    %v227 = vpop.f32.mrb[0].mxu0
    %v228 = vadd.f32 %v79, %v227
    %229 = vdwg.mxu0
    %230 = vmatprep.subr.mxu0 %v69
    %231 = vmatpush1.msra.mxu0 %v68
    %232 = vmatprep.subr.mxu0 0.0
    %233 = vmatpush1.msra.mxu0 0.0
    %234 = vmatprep.subr.mxu0 0.0
    %235 = vmatpush1.msra.mxu0 0.0
    %236 = vmatprep.subr.mxu0 0.0
    %237 = vmatpush1.msra.mxu0 0.0
    %238 = vmatprep.subr.mxu0 0.0
    %239 = vmatpush1.msra.mxu0 0.0
    %240 = vmatprep.subr.mxu0 0.0
    %241 = vmatpush1.msra.mxu0 0.0
    %242 = vmatprep.subr.mxu0 0.0
    %243 = vmatpush1.msra.mxu0 0.0
    %244 = vmatprep.subr.mxu0 0.0
    %245 = vmatpush1.msra.mxu0 0.0
    %246 = vmatprep.subr.mxu0 0.0
    %247 = vmatpush1.msra.mxu0 0.0
    %248 = vmatprep.subr.mxu0 0.0
    %249 = vmatpush1.msra.mxu0 0.0
    %250 = vmatprep.subr.mxu0 0.0
    %251 = vmatpush1.msra.mxu0 0.0
    %252 = vmatprep.subr.mxu0 0.0
    %253 = vmatpush1.msra.mxu0 0.0
    %254 = vmatprep.subr.mxu0 0.0
    %255 = vmatpush1.msra.mxu0 0.0
    %256 = vmatprep.subr.mxu0 0.0
    %257 = vmatpush1.msra.mxu0 0.0
    %258 = vmatprep.subr.mxu0 0.0
    %259 = vmatpush1.msra.mxu0 0.0
    %260 = vmatprep.subr.mxu0 0.0
    %261 = vmatpush1.msra.mxu0 0.0
    %262 = vmatprep.subr.mxu0 0.0
    %263 = vmatpush1.msra.mxu0 0.0
    %264 = vmatprep.subr.mxu0 0.0
    %265 = vmatpush1.msra.mxu0 0.0
    %266 = vmatprep.subr.mxu0 0.0
    %267 = vmatpush1.msra.mxu0 0.0
    %268 = vmatprep.subr.mxu0 0.0
    %269 = vmatpush1.msra.mxu0 0.0
    %270 = vmatprep.subr.mxu0 0.0
    %271 = vmatpush1.msra.mxu0 0.0
    %272 = vmatprep.subr.mxu0 0.0
    %273 = vmatpush1.msra.mxu0 0.0
    %274 = vmatprep.subr.mxu0 0.0
    %275 = vmatpush1.msra.mxu0 0.0
    %276 = vmatprep.subr.mxu0 0.0
    %277 = vmatpush1.msra.mxu0 0.0
    %278 = vmatprep.subr.mxu0 0.0
    %279 = vmatpush1.msra.mxu0 0.0
    %280 = vmatprep.subr.mxu0 0.0
    %281 = vmatpush1.msra.mxu0 0.0
    %282 = vmatprep.subr.mxu0 0.0
    %283 = vmatpush1.msra.mxu0 0.0
    %284 = vmatprep.subr.mxu0 0.0
    %285 = vmatpush1.msra.mxu0 0.0
    %286 = vmatprep.subr.mxu0 0.0
    %287 = vmatpush1.msra.mxu0 0.0
    %288 = vmatprep.subr.mxu0 0.0
    %289 = vmatpush1.msra.mxu0 0.0
    %290 = vmatprep.subr.mxu0 0.0
    %291 = vmatpush1.msra.mxu0 0.0
    %292 = vmatprep.subr.mxu0 0.0
    %293 = vmatpush1.msra.mxu0 0.0
    %294 = vmatprep.mubr.f32.mxu0 0.0
    %295 = vmatmul.mubr.f32.gmra.mrb[0].mxu0 %v94
    %v296 = vpop.f32.mrb[0].mxu0
    %v297 = vadd.f32 %v83, %v296
    %v298 = vpop.f32.mrb[0].mxu0
    %v299 = vadd.f32 %v87, %v298
    %300 = vmatprep.mubr.f32.mxu0 0.0
    %301 = vmatmul.mubr.f32.gmra.mrb[0].mxu0 %v97
    %v302 = vpop.f32.mrb[0].mxu0
    %v303 = vadd.f32 %v83, %v302
    %v304 = vpop.f32.mrb[0].mxu0
    %v305 = vadd.f32 %v87, %v304
    %306 = vmatprep.mubr.f32.mxu0 0.0
    %307 = vmatmul.mubr.f32.gmra.mrb[0].mxu0 %v100
    %v308 = vpop.f32.mrb[0].mxu0
    %v309 = vadd.f32 %v83, %v308
    %v310 = vpop.f32.mrb[0].mxu0
    %v311 = vadd.f32 %v87, %v310
    %312 = vmatprep.mubr.f32.mxu0 0.0
    %313 = vmatmul.mubr.f32.gmra.mrb[0].mxu0 %v103
    %v314 = vpop.f32.mrb[0].mxu0
    %v315 = vadd.f32 %v83, %v314
    %v316 = vpop.f32.mrb[0].mxu0
    %v317 = vadd.f32 %v87, %v316
    %318 = vmatprep.mubr.f32.mxu0 0.0
    %319 = vmatmul.mubr.f32.gmra.mrb[0].mxu0 %v106
    %v320 = vpop.f32.mrb[0].mxu0
    %v321 = vadd.f32 %v83, %v320
    %v322 = vpop.f32.mrb[0].mxu0
    %v323 = vadd.f32 %v87, %v322
    %324 = vmatprep.mubr.f32.mxu0 0.0
    %325 = vmatmul.mubr.f32.gmra.mrb[0].mxu0 %v109
    %v326 = vpop.f32.mrb[0].mxu0
    %v327 = vadd.f32 %v83, %v326
    %v328 = vpop.f32.mrb[0].mxu0
    %v329 = vadd.f32 %v87, %v328
    %330 = vmatprep.mubr.f32.mxu0 0.0
    %331 = vmatmul.mubr.f32.gmra.mrb[0].mxu0 %v112
    %v332 = vpop.f32.mrb[0].mxu0
    %v333 = vadd.f32 %v83, %v332
    %v334 = vpop.f32.mrb[0].mxu0
    %v335 = vadd.f32 %v87, %v334
    %336 = vmatprep.mubr.f32.mxu0 0.0
    %337 = vmatmul.mubr.f32.gmra.mrb[0].mxu0 %v115
    %v338 = vpop.f32.mrb[0].mxu0
    %v339 = vadd.f32 %v83, %v338
    %v340 = vpop.f32.mrb[0].mxu0
    %v341 = vadd.f32 %v87, %v340
    %342 = vdwg.mxu0
    %343 = vst [vmem:[#allocation2] sm:$0xff] %v184
    %344 = vst [vmem:[#allocation2 + $0x8] sm:$0xff] %v186
    %345 = vst [vmem:[#allocation2 + $0x10] sm:$0xff] %v297
    %346 = vst [vmem:[#allocation2 + $0x18] sm:$0xff] %v299
    %347 = vst [vmem:[#allocation2 + $0x20] sm:$0xff] %v190
    %348 = vst [vmem:[#allocation2 + $0x28] sm:$0xff] %v192
    %349 = vst [vmem:[#allocation2 + $0x30] sm:$0xff] %v303
    %350 = vst [vmem:[#allocation2 + $0x38] sm:$0xff] %v305
    %351 = vst [vmem:[#allocation2 + $0x40] sm:$0xff] %v196
    %352 = vst [vmem:[#allocation2 + $0x48] sm:$0xff] %v198
    %353 = vst [vmem:[#allocation2 + $0x50] sm:$0xff] %v309
    %354 = vst [vmem:[#allocation2 + $0x58] sm:$0xff] %v311
    %355 = vst [vmem:[#allocation2 + $0x60] sm:$0xff] %v202
    %356 = vst [vmem:[#allocation2 + $0x68] sm:$0xff] %v204
    %357 = vst [vmem:[#allocation2 + $0x70] sm:$0xff] %v315
    %358 = vst [vmem:[#allocation2 + $0x78] sm:$0xff] %v317
    %359 = vst [vmem:[#allocation2 + $0x80] sm:$0xff] %v208
    %360 = vst [vmem:[#allocation2 + $0x88] sm:$0xff] %v210
    %361 = vst [vmem:[#allocation2 + $0x90] sm:$0xff] %v321
    %362 = vst [vmem:[#allocation2 + $0x98] sm:$0xff] %v323
    %363 = vst [vmem:[#allocation2 + $0xa0] sm:$0xff] %v214
    %364 = vst [vmem:[#allocation2 + $0xa8] sm:$0xff] %v216
    %365 = vst [vmem:[#allocation2 + $0xb0] sm:$0xff] %v327
    %366 = vst [vmem:[#allocation2 + $0xb8] sm:$0xff] %v329
    %367 = vst [vmem:[#allocation2 + $0xc0] sm:$0xff] %v220
    %368 = vst [vmem:[#allocation2 + $0xc8] sm:$0xff] %v222
    %369 = vst [vmem:[#allocation2 + $0xd0] sm:$0xff] %v333
    %370 = vst [vmem:[#allocation2 + $0xd8] sm:$0xff] %v335
    %371 = vst [vmem:[#allocation2 + $0xe0] sm:$0xff] %v226
    %372 = vst [vmem:[#allocation2 + $0xe8] sm:$0xff] %v228
    %373 = vst [vmem:[#allocation2 + $0xf0] sm:$0xff] %v339
    %374 = vst [vmem:[#allocation2 + $0xf8] sm:$0xff] %v341
    %v375 = vld [vmem:[#allocation4] sm:$0xff]
    %v376 = vld [vmem:[#allocation5] sm:$0xff]
    %s377 = smul.u32 0, 4
    %s378 = smul.addr %s377, 8
    %s379 = scalar_lea.vmem [#allocation2], %s378
    %v380 = vld [vmem:[%s379 + $0x8] sm:$0xff]
    %v381 = vld [vmem:[#allocation6 + $0x8] sm:$0xff]
    %v382 = vld [vmem:[#allocation6 + $0x28] sm:$0xff]
    %v383 = vld [vmem:[#allocation6 + $0x48] sm:$0xff]
    %v384 = vld [vmem:[#allocation6 + $0x68] sm:$0xff]
    %v385 = vld [vmem:[#allocation6 + $0x88] sm:$0xff]
    %v386 = vld [vmem:[#allocation6 + $0xa8] sm:$0xff]
    %v387 = vld [vmem:[#allocation6 + $0xc8] sm:$0xff]
    %v388 = vld [vmem:[#allocation6 + $0xe8] sm:$0xff]
    %v389 = vld [vmem:[#allocation6 + $0x108] sm:$0xff]
    %v390 = vld [vmem:[#allocation6 + $0x128] sm:$0xff]
    %v391 = vld [vmem:[#allocation6 + $0x148] sm:$0xff]
    %v392 = vld [vmem:[#allocation6 + $0x168] sm:$0xff]
    %v393 = vld [vmem:[#allocation6 + $0x188] sm:$0xff]
    %v394 = vld [vmem:[#allocation6 + $0x1a8] sm:$0xff]
    %v395 = vld [vmem:[#allocation6 + $0x1c8] sm:$0xff]
    %v396 = vld [vmem:[#allocation6 + $0x1e8] sm:$0xff]
    %397 = vmatprep.subr.mxu0 0.0
    %398 = vmatpush1.msra.mxu0 %v381
    %399 = vmatprep.subr.mxu0 0.0
    %400 = vmatpush1.msra.mxu0 %v382
    %401 = vmatprep.subr.mxu0 0.0
    %402 = vmatpush1.msra.mxu0 %v383
    %403 = vmatprep.subr.mxu0 0.0
    %404 = vmatpush1.msra.mxu0 %v384
    %405 = vmatprep.subr.mxu0 0.0
    %406 = vmatpush1.msra.mxu0 %v385
    %407 = vmatprep.subr.mxu0 0.0
    %408 = vmatpush1.msra.mxu0 %v386
    %409 = vmatprep.subr.mxu0 0.0
    %410 = vmatpush1.msra.mxu0 %v387
    %411 = vmatprep.subr.mxu0 0.0
    %412 = vmatpush1.msra.mxu0 %v388
    %413 = vmatprep.subr.mxu0 0.0
    %414 = vmatpush1.msra.mxu0 %v389
    %415 = vmatprep.subr.mxu0 0.0
    %416 = vmatpush1.msra.mxu0 %v390
    %417 = vmatprep.subr.mxu0 0.0
    %418 = vmatpush1.msra.mxu0 %v391
    %419 = vmatprep.subr.mxu0 0.0
    %420 = vmatpush1.msra.mxu0 %v392
    %421 = vmatprep.subr.mxu0 0.0
    %422 = vmatpush1.msra.mxu0 %v393
    %423 = vmatprep.subr.mxu0 0.0
    %424 = vmatpush1.msra.mxu0 %v394
    %425 = vmatprep.subr.mxu0 0.0
    %426 = vmatpush1.msra.mxu0 %v395
    %427 = vmatprep.subr.mxu0 0.0
    %428 = vmatpush1.msra.mxu0 %v396
    %429 = vmatprep.subr.mxu0 0.0
    %430 = vmatpush1.msra.mxu0 0.0
    %431 = vmatprep.subr.mxu0 0.0
    %432 = vmatpush1.msra.mxu0 0.0
    %433 = vmatprep.subr.mxu0 0.0
    %434 = vmatpush1.msra.mxu0 0.0
    %435 = vmatprep.subr.mxu0 0.0
    %436 = vmatpush1.msra.mxu0 0.0
    %437 = vmatprep.subr.mxu0 0.0
    %438 = vmatpush1.msra.mxu0 0.0
    %439 = vmatprep.subr.mxu0 0.0
    %440 = vmatpush1.msra.mxu0 0.0
    %441 = vmatprep.subr.mxu0 0.0
    %442 = vmatpush1.msra.mxu0 0.0
    %443 = vmatprep.subr.mxu0 0.0
    %444 = vmatpush1.msra.mxu0 0.0
    %445 = vmatprep.subr.mxu0 0.0
    %446 = vmatpush1.msra.mxu0 0.0
    %447 = vmatprep.subr.mxu0 0.0
    %448 = vmatpush1.msra.mxu0 0.0
    %449 = vmatprep.subr.mxu0 0.0
    %450 = vmatpush1.msra.mxu0 0.0
    %451 = vmatprep.subr.mxu0 0.0
    %452 = vmatpush1.msra.mxu0 0.0
    %453 = vmatprep.subr.mxu0 0.0
    %454 = vmatpush1.msra.mxu0 0.0
    %455 = vmatprep.subr.mxu0 0.0
    %456 = vmatpush1.msra.mxu0 0.0
    %457 = vmatprep.subr.mxu0 0.0
    %458 = vmatpush1.msra.mxu0 0.0
    %459 = vmatprep.subr.mxu0 0.0
    %460 = vmatpush1.msra.mxu0 0.0
    %461 = vmatprep.mubr.f32.mxu0 0.0
    %462 = vmatmul.mubr.f32.gmra.mrb[0].mxu0 %v375
    %v463 = vpop.f32.mrb[0].mxu0
    %v464 = vadd.f32 0.0, %v463
    %v465 = vpop.f32.mrb[0].mxu0
    %466 = vdwg.mxu0
    %v467 = vadd.f32 %v380, %v464
    %v468 = vxor.u32 %v467, 2147483648
    %v469 = vmul.f32 %v468, 1.442695
    %v470 = vpow.pop %v469
    %v471 = vadd.f32 %v470, 1.0
    %v472 = vrcp.pop %v471
    %v473 = vmul.f32 1.0, %v472
    %v474 = vmul.f32 %v473, %v376
    %v475 = vld [vmem:[%s379] sm:$0xff]
    %v476 = vld [vmem:[#allocation6] sm:$0xff]
    %v477 = vld [vmem:[#allocation6 + $0x20] sm:$0xff]
    %v478 = vld [vmem:[#allocation6 + $0x40] sm:$0xff]
    %v479 = vld [vmem:[#allocation6 + $0x60] sm:$0xff]
    %v480 = vld [vmem:[#allocation6 + $0x80] sm:$0xff]
    %v481 = vld [vmem:[#allocation6 + $0xa0] sm:$0xff]
    %v482 = vld [vmem:[#allocation6 + $0xc0] sm:$0xff]
    %v483 = vld [vmem:[#allocation6 + $0xe0] sm:$0xff]
    %v484 = vld [vmem:[#allocation6 + $0x100] sm:$0xff]
    %v485 = vld [vmem:[#allocation6 + $0x120] sm:$0xff]
    %v486 = vld [vmem:[#allocation6 + $0x140] sm:$0xff]
    %v487 = vld [vmem:[#allocation6 + $0x160] sm:$0xff]
    %v488 = vld [vmem:[#allocation6 + $0x180] sm:$0xff]
    %v489 = vld [vmem:[#allocation6 + $0x1a0] sm:$0xff]
    %v490 = vld [vmem:[#allocation6 + $0x1c0] sm:$0xff]
    %v491 = vld [vmem:[#allocation6 + $0x1e0] sm:$0xff]
    %492 = vmatprep.subr.mxu0 0.0
    %493 = vmatpush1.msra.mxu0 %v476
    %494 = vmatprep.subr.mxu0 0.0
    %495 = vmatpush1.msra.mxu0 %v477
    %496 = vmatprep.subr.mxu0 0.0
    %497 = vmatpush1.msra.mxu0 %v478
    %498 = vmatprep.subr.mxu0 0.0
    %499 = vmatpush1.msra.mxu0 %v479
    %500 = vmatprep.subr.mxu0 0.0
    %501 = vmatpush1.msra.mxu0 %v480
    %502 = vmatprep.subr.mxu0 0.0
    %503 = vmatpush1.msra.mxu0 %v481
    %504 = vmatprep.subr.mxu0 0.0
    %505 = vmatpush1.msra.mxu0 %v482
    %506 = vmatprep.subr.mxu0 0.0
    %507 = vmatpush1.msra.mxu0 %v483
    %508 = vmatprep.subr.mxu0 0.0
    %509 = vmatpush1.msra.mxu0 %v484
    %510 = vmatprep.subr.mxu0 0.0
    %511 = vmatpush1.msra.mxu0 %v485
    %512 = vmatprep.subr.mxu0 0.0
    %513 = vmatpush1.msra.mxu0 %v486
    %514 = vmatprep.subr.mxu0 0.0
    %515 = vmatpush1.msra.mxu0 %v487
    %516 = vmatprep.subr.mxu0 0.0
    %517 = vmatpush1.msra.mxu0 %v488
    %518 = vmatprep.subr.mxu0 0.0
    %519 = vmatpush1.msra.mxu0 %v489
    %520 = vmatprep.subr.mxu0 0.0
    %521 = vmatpush1.msra.mxu0 %v490
    %522 = vmatprep.subr.mxu0 0.0
    %523 = vmatpush1.msra.mxu0 %v491
    %524 = vmatprep.subr.mxu0 0.0
    %525 = vmatpush1.msra.mxu0 0.0
    %526 = vmatprep.subr.mxu0 0.0
    %527 = vmatpush1.msra.mxu0 0.0
    %528 = vmatprep.subr.mxu0 0.0
    %529 = vmatpush1.msra.mxu0 0.0
    %530 = vmatprep.subr.mxu0 0.0
    %531 = vmatpush1.msra.mxu0 0.0
    %532 = vmatprep.subr.mxu0 0.0
    %533 = vmatpush1.msra.mxu0 0.0
    %534 = vmatprep.subr.mxu0 0.0
    %535 = vmatpush1.msra.mxu0 0.0
    %536 = vmatprep.subr.mxu0 0.0
    %537 = vmatpush1.msra.mxu0 0.0
    %538 = vmatprep.subr.mxu0 0.0
    %539 = vmatpush1.msra.mxu0 0.0
    %540 = vmatprep.subr.mxu0 0.0
    %541 = vmatpush1.msra.mxu0 0.0
    %542 = vmatprep.subr.mxu0 0.0
    %543 = vmatpush1.msra.mxu0 0.0
    %544 = vmatprep.subr.mxu0 0.0
    %545 = vmatpush1.msra.mxu0 0.0
    %546 = vmatprep.subr.mxu0 0.0
    %547 = vmatpush1.msra.mxu0 0.0
    %548 = vmatprep.subr.mxu0 0.0
    %549 = vmatpush1.msra.mxu0 0.0
    %550 = vmatprep.subr.mxu0 0.0
    %551 = vmatpush1.msra.mxu0 0.0
    %552 = vmatprep.subr.mxu0 0.0
    %553 = vmatpush1.msra.mxu0 0.0
    %554 = vmatprep.subr.mxu0 0.0
    %555 = vmatpush1.msra.mxu0 0.0
    %556 = vmatprep.mubr.f32.mxu0 0.0
    %557 = vmatmul.mubr.f32.gmra.mrb[0].mxu0 %v375
    %v558 = vpop.f32.mrb[0].mxu0
    %v559 = vadd.f32 0.0, %v558
    %v560 = vpop.f32.mrb[0].mxu0
    %561 = vdwg.mxu0
    %v562 = vadd.f32 %v475, %v559
    %v563 = vxor.u32 %v562, 2147483648
    %v564 = vmul.f32 %v563, 1.442695
    %v565 = vpow.pop %v564
    %v566 = vadd.f32 %v565, 1.0
    %v567 = vrcp.pop %v566
    %v568 = vmul.f32 1.0, %v567
    %v569 = vld [vmem:[%s379 + $0x10] sm:$0xff]
    %v570 = vld [vmem:[#allocation6 + $0x10] sm:$0xff]
    %v571 = vld [vmem:[#allocation6 + $0x30] sm:$0xff]
    %v572 = vld [vmem:[#allocation6 + $0x50] sm:$0xff]
    %v573 = vld [vmem:[#allocation6 + $0x70] sm:$0xff]
    %v574 = vld [vmem:[#allocation6 + $0x90] sm:$0xff]
    %v575 = vld [vmem:[#allocation6 + $0xb0] sm:$0xff]
    %v576 = vld [vmem:[#allocation6 + $0xd0] sm:$0xff]
    %v577 = vld [vmem:[#allocation6 + $0xf0] sm:$0xff]
    %v578 = vld [vmem:[#allocation6 + $0x110] sm:$0xff]
    %v579 = vld [vmem:[#allocation6 + $0x130] sm:$0xff]
    %v580 = vld [vmem:[#allocation6 + $0x150] sm:$0xff]
    %v581 = vld [vmem:[#allocation6 + $0x170] sm:$0xff]
    %v582 = vld [vmem:[#allocation6 + $0x190] sm:$0xff]
    %v583 = vld [vmem:[#allocation6 + $0x1b0] sm:$0xff]
    %v584 = vld [vmem:[#allocation6 + $0x1d0] sm:$0xff]
    %v585 = vld [vmem:[#allocation6 + $0x1f0] sm:$0xff]
    %586 = vmatprep.subr.mxu0 0.0
    %587 = vmatpush1.msra.mxu0 %v570
    %588 = vmatprep.subr.mxu0 0.0
    %589 = vmatpush1.msra.mxu0 %v571
    %590 = vmatprep.subr.mxu0 0.0
    %591 = vmatpush1.msra.mxu0 %v572
    %592 = vmatprep.subr.mxu0 0.0
    %593 = vmatpush1.msra.mxu0 %v573
    %594 = vmatprep.subr.mxu0 0.0
    %595 = vmatpush1.msra.mxu0 %v574
    %596 = vmatprep.subr.mxu0 0.0
    %597 = vmatpush1.msra.mxu0 %v575
    %598 = vmatprep.subr.mxu0 0.0
    %599 = vmatpush1.msra.mxu0 %v576
    %600 = vmatprep.subr.mxu0 0.0
    %601 = vmatpush1.msra.mxu0 %v577
    %602 = vmatprep.subr.mxu0 0.0
    %603 = vmatpush1.msra.mxu0 %v578
    %604 = vmatprep.subr.mxu0 0.0
    %605 = vmatpush1.msra.mxu0 %v579
    %606 = vmatprep.subr.mxu0 0.0
    %607 = vmatpush1.msra.mxu0 %v580
    %608 = vmatprep.subr.mxu0 0.0
    %609 = vmatpush1.msra.mxu0 %v581
    %610 = vmatprep.subr.mxu0 0.0
    %611 = vmatpush1.msra.mxu0 %v582
    %612 = vmatprep.subr.mxu0 0.0
    %613 = vmatpush1.msra.mxu0 %v583
    %614 = vmatprep.subr.mxu0 0.0
    %615 = vmatpush1.msra.mxu0 %v584
    %616 = vmatprep.subr.mxu0 0.0
    %617 = vmatpush1.msra.mxu0 %v585
    %618 = vmatprep.subr.mxu0 0.0
    %619 = vmatpush1.msra.mxu0 0.0
    %620 = vmatprep.subr.mxu0 0.0
    %621 = vmatpush1.msra.mxu0 0.0
    %622 = vmatprep.subr.mxu0 0.0
    %623 = vmatpush1.msra.mxu0 0.0
    %624 = vmatprep.subr.mxu0 0.0
    %625 = vmatpush1.msra.mxu0 0.0
    %626 = vmatprep.subr.mxu0 0.0
    %627 = vmatpush1.msra.mxu0 0.0
    %628 = vmatprep.subr.mxu0 0.0
    %629 = vmatpush1.msra.mxu0 0.0
    %630 = vmatprep.subr.mxu0 0.0
    %631 = vmatpush1.msra.mxu0 0.0
    %632 = vmatprep.subr.mxu0 0.0
    %633 = vmatpush1.msra.mxu0 0.0
    %634 = vmatprep.subr.mxu0 0.0
    %635 = vmatpush1.msra.mxu0 0.0
    %636 = vmatprep.subr.mxu0 0.0
    %637 = vmatpush1.msra.mxu0 0.0
    %638 = vmatprep.subr.mxu0 0.0
    %639 = vmatpush1.msra.mxu0 0.0
    %640 = vmatprep.subr.mxu0 0.0
    %641 = vmatpush1.msra.mxu0 0.0
    %642 = vmatprep.subr.mxu0 0.0
    %643 = vmatpush1.msra.mxu0 0.0
    %644 = vmatprep.subr.mxu0 0.0
    %645 = vmatpush1.msra.mxu0 0.0
    %646 = vmatprep.subr.mxu0 0.0
    %647 = vmatpush1.msra.mxu0 0.0
    %648 = vmatprep.subr.mxu0 0.0
    %649 = vmatpush1.msra.mxu0 0.0
    %650 = vmatprep.mubr.f32.mxu0 0.0
    %651 = vmatmul.mubr.f32.gmra.mrb[0].mxu0 %v375
    %v652 = vpop.f32.mrb[0].mxu0
    %v653 = vadd.f32 0.0, %v652
    %v654 = vpop.f32.mrb[0].mxu0
    %655 = vdwg.mxu0
    %v656 = vadd.f32 %v569, %v653
    %v657 = vtanh.pop %v656
    %v658 = vmul.f32 %v568, %v657
    %v659 = vadd.f32 %v474, %v658
    %v660 = vld [vmem:[%s379 + $0x18] sm:$0xff]
    %v661 = vld [vmem:[#allocation6 + $0x18] sm:$0xff]
    %v662 = vld [vmem:[#allocation6 + $0x38] sm:$0xff]
    %v663 = vld [vmem:[#allocation6 + $0x58] sm:$0xff]
    %v664 = vld [vmem:[#allocation6 + $0x78] sm:$0xff]
    %v665 = vld [vmem:[#allocation6 + $0x98] sm:$0xff]
    %v666 = vld [vmem:[#allocation6 + $0xb8] sm:$0xff]
    %v667 = vld [vmem:[#allocation6 + $0xd8] sm:$0xff]
    %v668 = vld [vmem:[#allocation6 + $0xf8] sm:$0xff]
    %v669 = vld [vmem:[#allocation6 + $0x118] sm:$0xff]
    %v670 = vld [vmem:[#allocation6 + $0x138] sm:$0xff]
    %v671 = vld [vmem:[#allocation6 + $0x158] sm:$0xff]
    %v672 = vld [vmem:[#allocation6 + $0x178] sm:$0xff]
    %v673 = vld [vmem:[#allocation6 + $0x198] sm:$0xff]
    %v674 = vld [vmem:[#allocation6 + $0x1b8] sm:$0xff]
    %v675 = vld [vmem:[#allocation6 + $0x1d8] sm:$0xff]
    %v676 = vld [vmem:[#allocation6 + $0x1f8] sm:$0xff]
    %677 = vmatprep.subr.mxu0 0.0
    %678 = vmatpush1.msra.mxu0 %v661
    %679 = vmatprep.subr.mxu0 0.0
    %680 = vmatpush1.msra.mxu0 %v662
    %681 = vmatprep.subr.mxu0 0.0
    %682 = vmatpush1.msra.mxu0 %v663
    %683 = vmatprep.subr.mxu0 0.0
    %684 = vmatpush1.msra.mxu0 %v664
    %685 = vmatprep.subr.mxu0 0.0
    %686 = vmatpush1.msra.mxu0 %v665
    %687 = vmatprep.subr.mxu0 0.0
    %688 = vmatpush1.msra.mxu0 %v666
    %689 = vmatprep.subr.mxu0 0.0
    %690 = vmatpush1.msra.mxu0 %v667
    %691 = vmatprep.subr.mxu0 0.0
    %692 = vmatpush1.msra.mxu0 %v668
    %693 = vmatprep.subr.mxu0 0.0
    %694 = vmatpush1.msra.mxu0 %v669
    %695 = vmatprep.subr.mxu0 0.0
    %696 = vmatpush1.msra.mxu0 %v670
    %697 = vmatprep.subr.mxu0 0.0
    %698 = vmatpush1.msra.mxu0 %v671
    %699 = vmatprep.subr.mxu0 0.0
    %700 = vmatpush1.msra.mxu0 %v672
    %701 = vmatprep.subr.mxu0 0.0
    %702 = vmatpush1.msra.mxu0 %v673
    %703 = vmatprep.subr.mxu0 0.0
    %704 = vmatpush1.msra.mxu0 %v674
    %705 = vmatprep.subr.mxu0 0.0
    %706 = vmatpush1.msra.mxu0 %v675
    %707 = vmatprep.subr.mxu0 0.0
    %708 = vmatpush1.msra.mxu0 %v676
    %709 = vmatprep.subr.mxu0 0.0
    %710 = vmatpush1.msra.mxu0 0.0
    %711 = vmatprep.subr.mxu0 0.0
    %712 = vmatpush1.msra.mxu0 0.0
    %713 = vmatprep.subr.mxu0 0.0
    %714 = vmatpush1.msra.mxu0 0.0
    %715 = vmatprep.subr.mxu0 0.0
    %716 = vmatpush1.msra.mxu0 0.0
    %717 = vmatprep.subr.mxu0 0.0
    %718 = vmatpush1.msra.mxu0 0.0
    %719 = vmatprep.subr.mxu0 0.0
    %720 = vmatpush1.msra.mxu0 0.0
    %721 = vmatprep.subr.mxu0 0.0
    %722 = vmatpush1.msra.mxu0 0.0
    %723 = vmatprep.subr.mxu0 0.0
    %724 = vmatpush1.msra.mxu0 0.0
    %725 = vmatprep.subr.mxu0 0.0
    %726 = vmatpush1.msra.mxu0 0.0
    %727 = vmatprep.subr.mxu0 0.0
    %728 = vmatpush1.msra.mxu0 0.0
    %729 = vmatprep.subr.mxu0 0.0
    %730 = vmatpush1.msra.mxu0 0.0
    %731 = vmatprep.subr.mxu0 0.0
    %732 = vmatpush1.msra.mxu0 0.0
    %733 = vmatprep.subr.mxu0 0.0
    %734 = vmatpush1.msra.mxu0 0.0
    %735 = vmatprep.subr.mxu0 0.0
    %736 = vmatpush1.msra.mxu0 0.0
    %737 = vmatprep.subr.mxu0 0.0
    %738 = vmatpush1.msra.mxu0 0.0
    %739 = vmatprep.subr.mxu0 0.0
    %740 = vmatpush1.msra.mxu0 0.0
    %741 = vmatprep.mubr.f32.mxu0 0.0
    %742 = vmatmul.mubr.f32.gmra.mrb[0].mxu0 %v375
    %v743 = vpop.f32.mrb[0].mxu0
    %v744 = vadd.f32 0.0, %v743
    %v745 = vpop.f32.mrb[0].mxu0
    %746 = vdwg.mxu0
    %v747 = vadd.f32 %v660, %v744
    %v748 = vxor.u32 %v747, 2147483648
    %v749 = vmul.f32 %v748, 1.442695
    %v750 = vpow.pop %v749
    %v751 = vadd.f32 %v750, 1.0
    %v752 = vrcp.pop %v751
    %v753 = vmul.f32 1.0, %v752
    %v754 = vtanh.pop %v659
    %v755 = vmul.f32 %v753, %v754
    %756 = vst [vmem:[#allocation3] sm:$0xff] %v755
    %s757 = smul.u32 1, 4
    %s758 = smul.addr %s757, 8
    %s759 = scalar_lea.vmem [#allocation2], %s758
    %v760 = vld [vmem:[%s759 + $0x8] sm:$0xff]
    %v761 = vld [vmem:[#allocation6 + $0x8] sm:$0xff]
    %v762 = vld [vmem:[#allocation6 + $0x28] sm:$0xff]
    %v763 = vld [vmem:[#allocation6 + $0x48] sm:$0xff]
    %v764 = vld [vmem:[#allocation6 + $0x68] sm:$0xff]
    %v765 = vld [vmem:[#allocation6 + $0x88] sm:$0xff]
    %v766 = vld [vmem:[#allocation6 + $0xa8] sm:$0xff]
    %v767 = vld [vmem:[#allocation6 + $0xc8] sm:$0xff]
    %v768 = vld [vmem:[#allocation6 + $0xe8] sm:$0xff]
    %v769 = vld [vmem:[#allocation6 + $0x108] sm:$0xff]
    %v770 = vld [vmem:[#allocation6 + $0x128] sm:$0xff]
    %v771 = vld [vmem:[#allocation6 + $0x148] sm:$0xff]
    %v772 = vld [vmem:[#allocation6 + $0x168] sm:$0xff]
    %v773 = vld [vmem:[#allocation6 + $0x188] sm:$0xff]
    %v774 = vld [vmem:[#allocation6 + $0x1a8] sm:$0xff]
    %v775 = vld [vmem:[#allocation6 + $0x1c8] sm:$0xff]
    %v776 = vld [vmem:[#allocation6 + $0x1e8] sm:$0xff]
    %777 = vmatprep.subr.mxu0 0.0
    %778 = vmatpush1.msra.mxu0 %v761
    %779 = vmatprep.subr.mxu0 0.0
    %780 = vmatpush1.msra.mxu0 %v762
    %781 = vmatprep.subr.mxu0 0.0
    %782 = vmatpush1.msra.mxu0 %v763
    %783 = vmatprep.subr.mxu0 0.0
    %784 = vmatpush1.msra.mxu0 %v764
    %785 = vmatprep.subr.mxu0 0.0
    %786 = vmatpush1.msra.mxu0 %v765
    %787 = vmatprep.subr.mxu0 0.0
    %788 = vmatpush1.msra.mxu0 %v766
    %789 = vmatprep.subr.mxu0 0.0
    %790 = vmatpush1.msra.mxu0 %v767
    %791 = vmatprep.subr.mxu0 0.0
    %792 = vmatpush1.msra.mxu0 %v768
    %793 = vmatprep.subr.mxu0 0.0
    %794 = vmatpush1.msra.mxu0 %v769
    %795 = vmatprep.subr.mxu0 0.0
    %796 = vmatpush1.msra.mxu0 %v770
    %797 = vmatprep.subr.mxu0 0.0
    %798 = vmatpush1.msra.mxu0 %v771
    %799 = vmatprep.subr.mxu0 0.0
    %800 = vmatpush1.msra.mxu0 %v772
    %801 = vmatprep.subr.mxu0 0.0
    %802 = vmatpush1.msra.mxu0 %v773
    %803 = vmatprep.subr.mxu0 0.0
    %804 = vmatpush1.msra.mxu0 %v774
    %805 = vmatprep.subr.mxu0 0.0
    %806 = vmatpush1.msra.mxu0 %v775
    %807 = vmatprep.subr.mxu0 0.0
    %808 = vmatpush1.msra.mxu0 %v776
    %809 = vmatprep.subr.mxu0 0.0
    %810 = vmatpush1.msra.mxu0 0.0
    %811 = vmatprep.subr.mxu0 0.0
    %812 = vmatpush1.msra.mxu0 0.0
    %813 = vmatprep.subr.mxu0 0.0
    %814 = vmatpush1.msra.mxu0 0.0
    %815 = vmatprep.subr.mxu0 0.0
    %816 = vmatpush1.msra.mxu0 0.0
    %817 = vmatprep.subr.mxu0 0.0
    %818 = vmatpush1.msra.mxu0 0.0
    %819 = vmatprep.subr.mxu0 0.0
    %820 = vmatpush1.msra.mxu0 0.0
    %821 = vmatprep.subr.mxu0 0.0
    %822 = vmatpush1.msra.mxu0 0.0
    %823 = vmatprep.subr.mxu0 0.0
    %824 = vmatpush1.msra.mxu0 0.0
    %825 = vmatprep.subr.mxu0 0.0
    %826 = vmatpush1.msra.mxu0 0.0
    %827 = vmatprep.subr.mxu0 0.0
    %828 = vmatpush1.msra.mxu0 0.0
    %829 = vmatprep.subr.mxu0 0.0
    %830 = vmatpush1.msra.mxu0 0.0
    %831 = vmatprep.subr.mxu0 0.0
    %832 = vmatpush1.msra.mxu0 0.0
    %833 = vmatprep.subr.mxu0 0.0
    %834 = vmatpush1.msra.mxu0 0.0
    %835 = vmatprep.subr.mxu0 0.0
    %836 = vmatpush1.msra.mxu0 0.0
    %837 = vmatprep.subr.mxu0 0.0
    %838 = vmatpush1.msra.mxu0 0.0
    %839 = vmatprep.subr.mxu0 0.0
    %840 = vmatpush1.msra.mxu0 0.0
    %841 = vmatprep.mubr.f32.mxu0 0.0
    %842 = vmatmul.mubr.f32.gmra.mrb[0].mxu0 %v755
    %v843 = vpop.f32.mrb[0].mxu0
    %v844 = vadd.f32 0.0, %v843
    %v845 = vpop.f32.mrb[0].mxu0
    %846 = vdwg.mxu0
    %v847 = vadd.f32 %v760, %v844
    %v848 = vxor.u32 %v847, 2147483648
    %v849 = vmul.f32 %v848, 1.442695
    %v850 = vpow.pop %v849
    %v851 = vadd.f32 %v850, 1.0
    %v852 = vrcp.pop %v851
    %v853 = vmul.f32 1.0, %v852
    %v854 = vmul.f32 %v853, %v659
    %v855 = vld [vmem:[%s759] sm:$0xff]
    %v856 = vld [vmem:[#allocation6] sm:$0xff]
    %v857 = vld [vmem:[#allocation6 + $0x20] sm:$0xff]
    %v858 = vld [vmem:[#allocation6 + $0x40] sm:$0xff]
    %v859 = vld [vmem:[#allocation6 + $0x60] sm:$0xff]
    %v860 = vld [vmem:[#allocation6 + $0x80] sm:$0xff]
    %v861 = vld [vmem:[#allocation6 + $0xa0] sm:$0xff]
    %v862 = vld [vmem:[#allocation6 + $0xc0] sm:$0xff]
    %v863 = vld [vmem:[#allocation6 + $0xe0] sm:$0xff]
    %v864 = vld [vmem:[#allocation6 + $0x100] sm:$0xff]
    %v865 = vld [vmem:[#allocation6 + $0x120] sm:$0xff]
    %v866 = vld [vmem:[#allocation6 + $0x140] sm:$0xff]
    %v867 = vld [vmem:[#allocation6 + $0x160] sm:$0xff]
    %v868 = vld [vmem:[#allocation6 + $0x180] sm:$0xff]
    %v869 = vld [vmem:[#allocation6 + $0x1a0] sm:$0xff]
    %v870 = vld [vmem:[#allocation6 + $0x1c0] sm:$0xff]
    %v871 = vld [vmem:[#allocation6 + $0x1e0] sm:$0xff]
    %872 = vmatprep.subr.mxu0 0.0
    %873 = vmatpush1.msra.mxu0 %v856
    %874 = vmatprep.subr.mxu0 0.0
    %875 = vmatpush1.msra.mxu0 %v857
    %876 = vmatprep.subr.mxu0 0.0
    %877 = vmatpush1.msra.mxu0 %v858
    %878 = vmatprep.subr.mxu0 0.0
    %879 = vmatpush1.msra.mxu0 %v859
    %880 = vmatprep.subr.mxu0 0.0
    %881 = vmatpush1.msra.mxu0 %v860
    %882 = vmatprep.subr.mxu0 0.0
    %883 = vmatpush1.msra.mxu0 %v861
    %884 = vmatprep.subr.mxu0 0.0
    %885 = vmatpush1.msra.mxu0 %v862
    %886 = vmatprep.subr.mxu0 0.0
    %887 = vmatpush1.msra.mxu0 %v863
    %888 = vmatprep.subr.mxu0 0.0
    %889 = vmatpush1.msra.mxu0 %v864
    %890 = vmatprep.subr.mxu0 0.0
    %891 = vmatpush1.msra.mxu0 %v865
    %892 = vmatprep.subr.mxu0 0.0
    %893 = vmatpush1.msra.mxu0 %v866
    %894 = vmatprep.subr.mxu0 0.0
    %895 = vmatpush1.msra.mxu0 %v867
    %896 = vmatprep.subr.mxu0 0.0
    %897 = vmatpush1.msra.mxu0 %v868
    %898 = vmatprep.subr.mxu0 0.0
    %899 = vmatpush1.msra.mxu0 %v869
    %900 = vmatprep.subr.mxu0 0.0
    %901 = vmatpush1.msra.mxu0 %v870
    %902 = vmatprep.subr.mxu0 0.0
    %903 = vmatpush1.msra.mxu0 %v871
    %904 = vmatprep.subr.mxu0 0.0
    %905 = vmatpush1.msra.mxu0 0.0
    %906 = vmatprep.subr.mxu0 0.0
    %907 = vmatpush1.msra.mxu0 0.0
    %908 = vmatprep.subr.mxu0 0.0
    %909 = vmatpush1.msra.mxu0 0.0
    %910 = vmatprep.subr.mxu0 0.0
    %911 = vmatpush1.msra.mxu0 0.0
    %912 = vmatprep.subr.mxu0 0.0
    %913 = vmatpush1.msra.mxu0 0.0
    %914 = vmatprep.subr.mxu0 0.0
    %915 = vmatpush1.msra.mxu0 0.0
    %916 = vmatprep.subr.mxu0 0.0
    %917 = vmatpush1.msra.mxu0 0.0
    %918 = vmatprep.subr.mxu0 0.0
    %919 = vmatpush1.msra.mxu0 0.0
    %920 = vmatprep.subr.mxu0 0.0
    %921 = vmatpush1.msra.mxu0 0.0
    %922 = vmatprep.subr.mxu0 0.0
    %923 = vmatpush1.msra.mxu0 0.0
    %924 = vmatprep.subr.mxu0 0.0
    %925 = vmatpush1.msra.mxu0 0.0
    %926 = vmatprep.subr.mxu0 0.0
    %927 = vmatpush1.msra.mxu0 0.0
    %928 = vmatprep.subr.mxu0 0.0
    %929 = vmatpush1.msra.mxu0 0.0
    %930 = vmatprep.subr.mxu0 0.0
    %931 = vmatpush1.msra.mxu0 0.0
    %932 = vmatprep.subr.mxu0 0.0
    %933 = vmatpush1.msra.mxu0 0.0
    %934 = vmatprep.subr.mxu0 0.0
    %935 = vmatpush1.msra.mxu0 0.0
    %936 = vmatprep.mubr.f32.mxu0 0.0
    %937 = vmatmul.mubr.f32.gmra.mrb[0].mxu0 %v755
    %v938 = vpop.f32.mrb[0].mxu0
    %v939 = vadd.f32 0.0, %v938
    %v940 = vpop.f32.mrb[0].mxu0
    %941 = vdwg.mxu0
    %v942 = vadd.f32 %v855, %v939
    %v943 = vxor.u32 %v942, 2147483648
    %v944 = vmul.f32 %v943, 1.442695
    %v945 = vpow.pop %v944
    %v946 = vadd.f32 %v945, 1.0
    %v947 = vrcp.pop %v946
    %v948 = vmul.f32 1.0, %v947
    %v949 = vld [vmem:[%s759 + $0x10] sm:$0xff]
    %v950 = vld [vmem:[#allocation6 + $0x10] sm:$0xff]
    %v951 = vld [vmem:[#allocation6 + $0x30] sm:$0xff]
    %v952 = vld [vmem:[#allocation6 + $0x50] sm:$0xff]
    %v953 = vld [vmem:[#allocation6 + $0x70] sm:$0xff]
    %v954 = vld [vmem:[#allocation6 + $0x90] sm:$0xff]
    %v955 = vld [vmem:[#allocation6 + $0xb0] sm:$0xff]
    %v956 = vld [vmem:[#allocation6 + $0xd0] sm:$0xff]
    %v957 = vld [vmem:[#allocation6 + $0xf0] sm:$0xff]
    %v958 = vld [vmem:[#allocation6 + $0x110] sm:$0xff]
    %v959 = vld [vmem:[#allocation6 + $0x130] sm:$0xff]
    %v960 = vld [vmem:[#allocation6 + $0x150] sm:$0xff]
    %v961 = vld [vmem:[#allocation6 + $0x170] sm:$0xff]
    %v962 = vld [vmem:[#allocation6 + $0x190] sm:$0xff]
    %v963 = vld [vmem:[#allocation6 + $0x1b0] sm:$0xff]
    %v964 = vld [vmem:[#allocation6 + $0x1d0] sm:$0xff]
    %v965 = vld [vmem:[#allocation6 + $0x1f0] sm:$0xff]
    %966 = vmatprep.subr.mxu0 0.0
    %967 = vmatpush1.msra.mxu0 %v950
    %968 = vmatprep.subr.mxu0 0.0
    %969 = vmatpush1.msra.mxu0 %v951
    %970 = vmatprep.subr.mxu0 0.0
    %971 = vmatpush1.msra.mxu0 %v952
    %972 = vmatprep.subr.mxu0 0.0
    %973 = vmatpush1.msra.mxu0 %v953
    %974 = vmatprep.subr.mxu0 0.0
    %975 = vmatpush1.msra.mxu0 %v954
    %976 = vmatprep.subr.mxu0 0.0
    %977 = vmatpush1.msra.mxu0 %v955
    %978 = vmatprep.subr.mxu0 0.0
    %979 = vmatpush1.msra.mxu0 %v956
    %980 = vmatprep.subr.mxu0 0.0
    %981 = vmatpush1.msra.mxu0 %v957
    %982 = vmatprep.subr.mxu0 0.0
    %983 = vmatpush1.msra.mxu0 %v958
    %984 = vmatprep.subr.mxu0 0.0
    %985 = vmatpush1.msra.mxu0 %v959
    %986 = vmatprep.subr.mxu0 0.0
    %987 = vmatpush1.msra.mxu0 %v960
    %988 = vmatprep.subr.mxu0 0.0
    %989 = vmatpush1.msra.mxu0 %v961
    %990 = vmatprep.subr.mxu0 0.0
    %991 = vmatpush1.msra.mxu0 %v962
    %992 = vmatprep.subr.mxu0 0.0
    %993 = vmatpush1.msra.mxu0 %v963
    %994 = vmatprep.subr.mxu0 0.0
    %995 = vmatpush1.msra.mxu0 %v964
    %996 = vmatprep.subr.mxu0 0.0
    %997 = vmatpush1.msra.mxu0 %v965
    %998 = vmatprep.subr.mxu0 0.0
    %999 = vmatpush1.msra.mxu0 0.0
    %1000 = vmatprep.subr.mxu0 0.0
    %1001 = vmatpush1.msra.mxu0 0.0
    %1002 = vmatprep.subr.mxu0 0.0
    %1003 = vmatpush1.msra.mxu0 0.0
    %1004 = vmatprep.subr.mxu0 0.0
    %1005 = vmatpush1.msra.mxu0 0.0
    %1006 = vmatprep.subr.mxu0 0.0
    %1007 = vmatpush1.msra.mxu0 0.0
    %1008 = vmatprep.subr.mxu0 0.0
    %1009 = vmatpush1.msra.mxu0 0.0
    %1010 = vmatprep.subr.mxu0 0.0
    %1011 = vmatpush1.msra.mxu0 0.0
    %1012 = vmatprep.subr.mxu0 0.0
    %1013 = vmatpush1.msra.mxu0 0.0
    %1014 = vmatprep.subr.mxu0 0.0
    %1015 = vmatpush1.msra.mxu0 0.0
    %1016 = vmatprep.subr.mxu0 0.0
    %1017 = vmatpush1.msra.mxu0 0.0
    %1018 = vmatprep.subr.mxu0 0.0
    %1019 = vmatpush1.msra.mxu0 0.0
    %1020 = vmatprep.subr.mxu0 0.0
    %1021 = vmatpush1.msra.mxu0 0.0
    %1022 = vmatprep.subr.mxu0 0.0
    %1023 = vmatpush1.msra.mxu0 0.0
    %1024 = vmatprep.subr.mxu0 0.0
    %1025 = vmatpush1.msra.mxu0 0.0
    %1026 = vmatprep.subr.mxu0 0.0
    %1027 = vmatpush1.msra.mxu0 0.0
    %1028 = vmatprep.subr.mxu0 0.0
    %1029 = vmatpush1.msra.mxu0 0.0
    %1030 = vmatprep.mubr.f32.mxu0 0.0
    %1031 = vmatmul.mubr.f32.gmra.mrb[0].mxu0 %v755
    %v1032 = vpop.f32.mrb[0].mxu0
    %v1033 = vadd.f32 0.0, %v1032
    %v1034 = vpop.f32.mrb[0].mxu0
    %1035 = vdwg.mxu0
    %v1036 = vadd.f32 %v949, %v1033
    %v1037 = vtanh.pop %v1036
    %v1038 = vmul.f32 %v948, %v1037
    %v1039 = vadd.f32 %v854, %v1038
    %v1040 = vld [vmem:[%s759 + $0x18] sm:$0xff]
    %v1041 = vld [vmem:[#allocation6 + $0x18] sm:$0xff]
    %v1042 = vld [vmem:[#allocation6 + $0x38] sm:$0xff]
    %v1043 = vld [vmem:[#allocation6 + $0x58] sm:$0xff]
    %v1044 = vld [vmem:[#allocation6 + $0x78] sm:$0xff]
    %v1045 = vld [vmem:[#allocation6 + $0x98] sm:$0xff]
    %v1046 = vld [vmem:[#allocation6 + $0xb8] sm:$0xff]
    %v1047 = vld [vmem:[#allocation6 + $0xd8] sm:$0xff]
    %v1048 = vld [vmem:[#allocation6 + $0xf8] sm:$0xff]
    %v1049 = vld [vmem:[#allocation6 + $0x118] sm:$0xff]
    %v1050 = vld [vmem:[#allocation6 + $0x138] sm:$0xff]
    %v1051 = vld [vmem:[#allocation6 + $0x158] sm:$0xff]
    %v1052 = vld [vmem:[#allocation6 + $0x178] sm:$0xff]
    %v1053 = vld [vmem:[#allocation6 + $0x198] sm:$0xff]
    %v1054 = vld [vmem:[#allocation6 + $0x1b8] sm:$0xff]
    %v1055 = vld [vmem:[#allocation6 + $0x1d8] sm:$0xff]
    %v1056 = vld [vmem:[#allocation6 + $0x1f8] sm:$0xff]
    %1057 = vmatprep.subr.mxu0 0.0
    %1058 = vmatpush1.msra.mxu0 %v1041
    %1059 = vmatprep.subr.mxu0 0.0
    %1060 = vmatpush1.msra.mxu0 %v1042
    %1061 = vmatprep.subr.mxu0 0.0
    %1062 = vmatpush1.msra.mxu0 %v1043
    %1063 = vmatprep.subr.mxu0 0.0
    %1064 = vmatpush1.msra.mxu0 %v1044
    %1065 = vmatprep.subr.mxu0 0.0
    %1066 = vmatpush1.msra.mxu0 %v1045
    %1067 = vmatprep.subr.mxu0 0.0
    %1068 = vmatpush1.msra.mxu0 %v1046
    %1069 = vmatprep.subr.mxu0 0.0
    %1070 = vmatpush1.msra.mxu0 %v1047
    %1071 = vmatprep.subr.mxu0 0.0
    %1072 = vmatpush1.msra.mxu0 %v1048
    %1073 = vmatprep.subr.mxu0 0.0
    %1074 = vmatpush1.msra.mxu0 %v1049
    %1075 = vmatprep.subr.mxu0 0.0
    %1076 = vmatpush1.msra.mxu0 %v1050
    %1077 = vmatprep.subr.mxu0 0.0
    %1078 = vmatpush1.msra.mxu0 %v1051
    %1079 = vmatprep.subr.mxu0 0.0
    %1080 = vmatpush1.msra.mxu0 %v1052
    %1081 = vmatprep.subr.mxu0 0.0
    %1082 = vmatpush1.msra.mxu0 %v1053
    %1083 = vmatprep.subr.mxu0 0.0
    %1084 = vmatpush1.msra.mxu0 %v1054
    %1085 = vmatprep.subr.mxu0 0.0
    %1086 = vmatpush1.msra.mxu0 %v1055
    %1087 = vmatprep.subr.mxu0 0.0
    %1088 = vmatpush1.msra.mxu0 %v1056
    %1089 = vmatprep.subr.mxu0 0.0
    %1090 = vmatpush1.msra.mxu0 0.0
    %1091 = vmatprep.subr.mxu0 0.0
    %1092 = vmatpush1.msra.mxu0 0.0
    %1093 = vmatprep.subr.mxu0 0.0
    %1094 = vmatpush1.msra.mxu0 0.0
    %1095 = vmatprep.subr.mxu0 0.0
    %1096 = vmatpush1.msra.mxu0 0.0
    %1097 = vmatprep.subr.mxu0 0.0
    %1098 = vmatpush1.msra.mxu0 0.0
    %1099 = vmatprep.subr.mxu0 0.0
    %1100 = vmatpush1.msra.mxu0 0.0
    %1101 = vmatprep.subr.mxu0 0.0
    %1102 = vmatpush1.msra.mxu0 0.0
    %1103 = vmatprep.subr.mxu0 0.0
    %1104 = vmatpush1.msra.mxu0 0.0
    %1105 = vmatprep.subr.mxu0 0.0
    %1106 = vmatpush1.msra.mxu0 0.0
    %1107 = vmatprep.subr.mxu0 0.0
    %1108 = vmatpush1.msra.mxu0 0.0
    %1109 = vmatprep.subr.mxu0 0.0
    %1110 = vmatpush1.msra.mxu0 0.0
    %1111 = vmatprep.subr.mxu0 0.0
    %1112 = vmatpush1.msra.mxu0 0.0
    %1113 = vmatprep.subr.mxu0 0.0
    %1114 = vmatpush1.msra.mxu0 0.0
    %1115 = vmatprep.subr.mxu0 0.0
    %1116 = vmatpush1.msra.mxu0 0.0
    %1117 = vmatprep.subr.mxu0 0.0
    %1118 = vmatpush1.msra.mxu0 0.0
    %1119 = vmatprep.subr.mxu0 0.0
    %1120 = vmatpush1.msra.mxu0 0.0
    %1121 = vmatprep.mubr.f32.mxu0 0.0
    %1122 = vmatmul.mubr.f32.gmra.mrb[0].mxu0 %v755
    %v1123 = vpop.f32.mrb[0].mxu0
    %v1124 = vadd.f32 0.0, %v1123
    %v1125 = vpop.f32.mrb[0].mxu0
    %1126 = vdwg.mxu0
    %v1127 = vadd.f32 %v1040, %v1124
    %v1128 = vxor.u32 %v1127, 2147483648
    %v1129 = vmul.f32 %v1128, 1.442695
    %v1130 = vpow.pop %v1129
    %v1131 = vadd.f32 %v1130, 1.0
    %v1132 = vrcp.pop %v1131
    %v1133 = vmul.f32 1.0, %v1132
    %v1134 = vtanh.pop %v1039
    %v1135 = vmul.f32 %v1133, %v1134
    %s1136 = scalar_lea.vmem [#allocation3], 8
    %1137 = vst [vmem:[%s1136] sm:$0xff] %v1135
    %s1138 = smul.u32 2, 4
    %s1139 = smul.addr %s1138, 8
    %s1140 = scalar_lea.vmem [#allocation2], %s1139
    %v1141 = vld [vmem:[%s1140 + $0x8] sm:$0xff]
    %v1142 = vld [vmem:[#allocation6 + $0x8] sm:$0xff]
    %v1143 = vld [vmem:[#allocation6 + $0x28] sm:$0xff]
    %v1144 = vld [vmem:[#allocation6 + $0x48] sm:$0xff]
    %v1145 = vld [vmem:[#allocation6 + $0x68] sm:$0xff]
    %v1146 = vld [vmem:[#allocation6 + $0x88] sm:$0xff]
    %v1147 = vld [vmem:[#allocation6 + $0xa8] sm:$0xff]
    %v1148 = vld [vmem:[#allocation6 + $0xc8] sm:$0xff]
    %v1149 = vld [vmem:[#allocation6 + $0xe8] sm:$0xff]
    %v1150 = vld [vmem:[#allocation6 + $0x108] sm:$0xff]
    %v1151 = vld [vmem:[#allocation6 + $0x128] sm:$0xff]
    %v1152 = vld [vmem:[#allocation6 + $0x148] sm:$0xff]
    %v1153 = vld [vmem:[#allocation6 + $0x168] sm:$0xff]
    %v1154 = vld [vmem:[#allocation6 + $0x188] sm:$0xff]
    %v1155 = vld [vmem:[#allocation6 + $0x1a8] sm:$0xff]
    %v1156 = vld [vmem:[#allocation6 + $0x1c8] sm:$0xff]
    %v1157 = vld [vmem:[#allocation6 + $0x1e8] sm:$0xff]
    %1158 = vmatprep.subr.mxu0 0.0
    %1159 = vmatpush1.msra.mxu0 %v1142
    %1160 = vmatprep.subr.mxu0 0.0
    %1161 = vmatpush1.msra.mxu0 %v1143
    %1162 = vmatprep.subr.mxu0 0.0
    %1163 = vmatpush1.msra.mxu0 %v1144
    %1164 = vmatprep.subr.mxu0 0.0
    %1165 = vmatpush1.msra.mxu0 %v1145
    %1166 = vmatprep.subr.mxu0 0.0
    %1167 = vmatpush1.msra.mxu0 %v1146
    %1168 = vmatprep.subr.mxu0 0.0
    %1169 = vmatpush1.msra.mxu0 %v1147
    %1170 = vmatprep.subr.mxu0 0.0
    %1171 = vmatpush1.msra.mxu0 %v1148
    %1172 = vmatprep.subr.mxu0 0.0
    %1173 = vmatpush1.msra.mxu0 %v1149
    %1174 = vmatprep.subr.mxu0 0.0
    %1175 = vmatpush1.msra.mxu0 %v1150
    %1176 = vmatprep.subr.mxu0 0.0
    %1177 = vmatpush1.msra.mxu0 %v1151
    %1178 = vmatprep.subr.mxu0 0.0
    %1179 = vmatpush1.msra.mxu0 %v1152
    %1180 = vmatprep.subr.mxu0 0.0
    %1181 = vmatpush1.msra.mxu0 %v1153
    %1182 = vmatprep.subr.mxu0 0.0
    %1183 = vmatpush1.msra.mxu0 %v1154
    %1184 = vmatprep.subr.mxu0 0.0
    %1185 = vmatpush1.msra.mxu0 %v1155
    %1186 = vmatprep.subr.mxu0 0.0
    %1187 = vmatpush1.msra.mxu0 %v1156
    %1188 = vmatprep.subr.mxu0 0.0
    %1189 = vmatpush1.msra.mxu0 %v1157
    %1190 = vmatprep.subr.mxu0 0.0
    %1191 = vmatpush1.msra.mxu0 0.0
    %1192 = vmatprep.subr.mxu0 0.0
    %1193 = vmatpush1.msra.mxu0 0.0
    %1194 = vmatprep.subr.mxu0 0.0
    %1195 = vmatpush1.msra.mxu0 0.0
    %1196 = vmatprep.subr.mxu0 0.0
    %1197 = vmatpush1.msra.mxu0 0.0
    %1198 = vmatprep.subr.mxu0 0.0
    %1199 = vmatpush1.msra.mxu0 0.0
    %1200 = vmatprep.subr.mxu0 0.0
    %1201 = vmatpush1.msra.mxu0 0.0
    %1202 = vmatprep.subr.mxu0 0.0
    %1203 = vmatpush1.msra.mxu0 0.0
    %1204 = vmatprep.subr.mxu0 0.0
    %1205 = vmatpush1.msra.mxu0 0.0
    %1206 = vmatprep.subr.mxu0 0.0
    %1207 = vmatpush1.msra.mxu0 0.0
    %1208 = vmatprep.subr.mxu0 0.0
    %1209 = vmatpush1.msra.mxu0 0.0
    %1210 = vmatprep.subr.mxu0 0.0
    %1211 = vmatpush1.msra.mxu0 0.0
    %1212 = vmatprep.subr.mxu0 0.0
    %1213 = vmatpush1.msra.mxu0 0.0
    %1214 = vmatprep.subr.mxu0 0.0
    %1215 = vmatpush1.msra.mxu0 0.0
    %1216 = vmatprep.subr.mxu0 0.0
    %1217 = vmatpush1.msra.mxu0 0.0
    %1218 = vmatprep.subr.mxu0 0.0
    %1219 = vmatpush1.msra.mxu0 0.0
    %1220 = vmatprep.subr.mxu0 0.0
    %1221 = vmatpush1.msra.mxu0 0.0
    %1222 = vmatprep.mubr.f32.mxu0 0.0
    %1223 = vmatmul.mubr.f32.gmra.mrb[0].mxu0 %v1135
    %v1224 = vpop.f32.mrb[0].mxu0
    %v1225 = vadd.f32 0.0, %v1224
    %v1226 = vpop.f32.mrb[0].mxu0
    %1227 = vdwg.mxu0
    %v1228 = vadd.f32 %v1141, %v1225
    %v1229 = vxor.u32 %v1228, 2147483648
    %v1230 = vmul.f32 %v1229, 1.442695
    %v1231 = vpow.pop %v1230
    %v1232 = vadd.f32 %v1231, 1.0
    %v1233 = vrcp.pop %v1232
    %v1234 = vmul.f32 1.0, %v1233
    %v1235 = vmul.f32 %v1234, %v1039
    %v1236 = vld [vmem:[%s1140] sm:$0xff]
    %v1237 = vld [vmem:[#allocation6] sm:$0xff]
    %v1238 = vld [vmem:[#allocation6 + $0x20] sm:$0xff]
    %v1239 = vld [vmem:[#allocation6 + $0x40] sm:$0xff]
    %v1240 = vld [vmem:[#allocation6 + $0x60] sm:$0xff]
    %v1241 = vld [vmem:[#allocation6 + $0x80] sm:$0xff]
    %v1242 = vld [vmem:[#allocation6 + $0xa0] sm:$0xff]
    %v1243 = vld [vmem:[#allocation6 + $0xc0] sm:$0xff]
    %v1244 = vld [vmem:[#allocation6 + $0xe0] sm:$0xff]
    %v1245 = vld [vmem:[#allocation6 + $0x100] sm:$0xff]
    %v1246 = vld [vmem:[#allocation6 + $0x120] sm:$0xff]
    %v1247 = vld [vmem:[#allocation6 + $0x140] sm:$0xff]
    %v1248 = vld [vmem:[#allocation6 + $0x160] sm:$0xff]
    %v1249 = vld [vmem:[#allocation6 + $0x180] sm:$0xff]
    %v1250 = vld [vmem:[#allocation6 + $0x1a0] sm:$0xff]
    %v1251 = vld [vmem:[#allocation6 + $0x1c0] sm:$0xff]
    %v1252 = vld [vmem:[#allocation6 + $0x1e0] sm:$0xff]
    %1253 = vmatprep.subr.mxu0 0.0
    %1254 = vmatpush1.msra.mxu0 %v1237
    %1255 = vmatprep.subr.mxu0 0.0
    %1256 = vmatpush1.msra.mxu0 %v1238
    %1257 = vmatprep.subr.mxu0 0.0
    %1258 = vmatpush1.msra.mxu0 %v1239
    %1259 = vmatprep.subr.mxu0 0.0
    %1260 = vmatpush1.msra.mxu0 %v1240
    %1261 = vmatprep.subr.mxu0 0.0
    %1262 = vmatpush1.msra.mxu0 %v1241
    %1263 = vmatprep.subr.mxu0 0.0
    %1264 = vmatpush1.msra.mxu0 %v1242
    %1265 = vmatprep.subr.mxu0 0.0
    %1266 = vmatpush1.msra.mxu0 %v1243
    %1267 = vmatprep.subr.mxu0 0.0
    %1268 = vmatpush1.msra.mxu0 %v1244
    %1269 = vmatprep.subr.mxu0 0.0
    %1270 = vmatpush1.msra.mxu0 %v1245
    %1271 = vmatprep.subr.mxu0 0.0
    %1272 = vmatpush1.msra.mxu0 %v1246
    %1273 = vmatprep.subr.mxu0 0.0
    %1274 = vmatpush1.msra.mxu0 %v1247
    %1275 = vmatprep.subr.mxu0 0.0
    %1276 = vmatpush1.msra.mxu0 %v1248
    %1277 = vmatprep.subr.mxu0 0.0
    %1278 = vmatpush1.msra.mxu0 %v1249
    %1279 = vmatprep.subr.mxu0 0.0
    %1280 = vmatpush1.msra.mxu0 %v1250
    %1281 = vmatprep.subr.mxu0 0.0
    %1282 = vmatpush1.msra.mxu0 %v1251
    %1283 = vmatprep.subr.mxu0 0.0
    %1284 = vmatpush1.msra.mxu0 %v1252
    %1285 = vmatprep.subr.mxu0 0.0
    %1286 = vmatpush1.msra.mxu0 0.0
    %1287 = vmatprep.subr.mxu0 0.0
    %1288 = vmatpush1.msra.mxu0 0.0
    %1289 = vmatprep.subr.mxu0 0.0
    %1290 = vmatpush1.msra.mxu0 0.0
    %1291 = vmatprep.subr.mxu0 0.0
    %1292 = vmatpush1.msra.mxu0 0.0
    %1293 = vmatprep.subr.mxu0 0.0
    %1294 = vmatpush1.msra.mxu0 0.0
    %1295 = vmatprep.subr.mxu0 0.0
    %1296 = vmatpush1.msra.mxu0 0.0
    %1297 = vmatprep.subr.mxu0 0.0
    %1298 = vmatpush1.msra.mxu0 0.0
    %1299 = vmatprep.subr.mxu0 0.0
    %1300 = vmatpush1.msra.mxu0 0.0
    %1301 = vmatprep.subr.mxu0 0.0
    %1302 = vmatpush1.msra.mxu0 0.0
    %1303 = vmatprep.subr.mxu0 0.0
    %1304 = vmatpush1.msra.mxu0 0.0
    %1305 = vmatprep.subr.mxu0 0.0
    %1306 = vmatpush1.msra.mxu0 0.0
    %1307 = vmatprep.subr.mxu0 0.0
    %1308 = vmatpush1.msra.mxu0 0.0
    %1309 = vmatprep.subr.mxu0 0.0
    %1310 = vmatpush1.msra.mxu0 0.0
    %1311 = vmatprep.subr.mxu0 0.0
    %1312 = vmatpush1.msra.mxu0 0.0
    %1313 = vmatprep.subr.mxu0 0.0
    %1314 = vmatpush1.msra.mxu0 0.0
    %1315 = vmatprep.subr.mxu0 0.0
    %1316 = vmatpush1.msra.mxu0 0.0
    %1317 = vmatprep.mubr.f32.mxu0 0.0
    %1318 = vmatmul.mubr.f32.gmra.mrb[0].mxu0 %v1135
    %v1319 = vpop.f32.mrb[0].mxu0
    %v1320 = vadd.f32 0.0, %v1319
    %v1321 = vpop.f32.mrb[0].mxu0
    %1322 = vdwg.mxu0
    %v1323 = vadd.f32 %v1236, %v1320
    %v1324 = vxor.u32 %v1323, 2147483648
    %v1325 = vmul.f32 %v1324, 1.442695
    %v1326 = vpow.pop %v1325
    %v1327 = vadd.f32 %v1326, 1.0
    %v1328 = vrcp.pop %v1327
    %v1329 = vmul.f32 1.0, %v1328
    %v1330 = vld [vmem:[%s1140 + $0x10] sm:$0xff]
    %v1331 = vld [vmem:[#allocation6 + $0x10] sm:$0xff]
    %v1332 = vld [vmem:[#allocation6 + $0x30] sm:$0xff]
    %v1333 = vld [vmem:[#allocation6 + $0x50] sm:$0xff]
    %v1334 = vld [vmem:[#allocation6 + $0x70] sm:$0xff]
    %v1335 = vld [vmem:[#allocation6 + $0x90] sm:$0xff]
    %v1336 = vld [vmem:[#allocation6 + $0xb0] sm:$0xff]
    %v1337 = vld [vmem:[#allocation6 + $0xd0] sm:$0xff]
    %v1338 = vld [vmem:[#allocation6 + $0xf0] sm:$0xff]
    %v1339 = vld [vmem:[#allocation6 + $0x110] sm:$0xff]
    %v1340 = vld [vmem:[#allocation6 + $0x130] sm:$0xff]
    %v1341 = vld [vmem:[#allocation6 + $0x150] sm:$0xff]
    %v1342 = vld [vmem:[#allocation6 + $0x170] sm:$0xff]
    %v1343 = vld [vmem:[#allocation6 + $0x190] sm:$0xff]
    %v1344 = vld [vmem:[#allocation6 + $0x1b0] sm:$0xff]
    %v1345 = vld [vmem:[#allocation6 + $0x1d0] sm:$0xff]
    %v1346 = vld [vmem:[#allocation6 + $0x1f0] sm:$0xff]
    %1347 = vmatprep.subr.mxu0 0.0
    %1348 = vmatpush1.msra.mxu0 %v1331
    %1349 = vmatprep.subr.mxu0 0.0
    %1350 = vmatpush1.msra.mxu0 %v1332
    %1351 = vmatprep.subr.mxu0 0.0
    %1352 = vmatpush1.msra.mxu0 %v1333
    %1353 = vmatprep.subr.mxu0 0.0
    %1354 = vmatpush1.msra.mxu0 %v1334
    %1355 = vmatprep.subr.mxu0 0.0
    %1356 = vmatpush1.msra.mxu0 %v1335
    %1357 = vmatprep.subr.mxu0 0.0
    %1358 = vmatpush1.msra.mxu0 %v1336
    %1359 = vmatprep.subr.mxu0 0.0
    %1360 = vmatpush1.msra.mxu0 %v1337
    %1361 = vmatprep.subr.mxu0 0.0
    %1362 = vmatpush1.msra.mxu0 %v1338
    %1363 = vmatprep.subr.mxu0 0.0
    %1364 = vmatpush1.msra.mxu0 %v1339
    %1365 = vmatprep.subr.mxu0 0.0
    %1366 = vmatpush1.msra.mxu0 %v1340
    %1367 = vmatprep.subr.mxu0 0.0
    %1368 = vmatpush1.msra.mxu0 %v1341
    %1369 = vmatprep.subr.mxu0 0.0
    %1370 = vmatpush1.msra.mxu0 %v1342
    %1371 = vmatprep.subr.mxu0 0.0
    %1372 = vmatpush1.msra.mxu0 %v1343
    %1373 = vmatprep.subr.mxu0 0.0
    %1374 = vmatpush1.msra.mxu0 %v1344
    %1375 = vmatprep.subr.mxu0 0.0
    %1376 = vmatpush1.msra.mxu0 %v1345
    %1377 = vmatprep.subr.mxu0 0.0
    %1378 = vmatpush1.msra.mxu0 %v1346
    %1379 = vmatprep.subr.mxu0 0.0
    %1380 = vmatpush1.msra.mxu0 0.0
    %1381 = vmatprep.subr.mxu0 0.0
    %1382 = vmatpush1.msra.mxu0 0.0
    %1383 = vmatprep.subr.mxu0 0.0
    %1384 = vmatpush1.msra.mxu0 0.0
    %1385 = vmatprep.subr.mxu0 0.0
    %1386 = vmatpush1.msra.mxu0 0.0
    %1387 = vmatprep.subr.mxu0 0.0
    %1388 = vmatpush1.msra.mxu0 0.0
    %1389 = vmatprep.subr.mxu0 0.0
    %1390 = vmatpush1.msra.mxu0 0.0
    %1391 = vmatprep.subr.mxu0 0.0
    %1392 = vmatpush1.msra.mxu0 0.0
    %1393 = vmatprep.subr.mxu0 0.0
    %1394 = vmatpush1.msra.mxu0 0.0
    %1395 = vmatprep.subr.mxu0 0.0
    %1396 = vmatpush1.msra.mxu0 0.0
    %1397 = vmatprep.subr.mxu0 0.0
    %1398 = vmatpush1.msra.mxu0 0.0
    %1399 = vmatprep.subr.mxu0 0.0
    %1400 = vmatpush1.msra.mxu0 0.0
    %1401 = vmatprep.subr.mxu0 0.0
    %1402 = vmatpush1.msra.mxu0 0.0
    %1403 = vmatprep.subr.mxu0 0.0
    %1404 = vmatpush1.msra.mxu0 0.0
    %1405 = vmatprep.subr.mxu0 0.0
    %1406 = vmatpush1.msra.mxu0 0.0
    %1407 = vmatprep.subr.mxu0 0.0
    %1408 = vmatpush1.msra.mxu0 0.0
    %1409 = vmatprep.subr.mxu0 0.0
    %1410 = vmatpush1.msra.mxu0 0.0
    %1411 = vmatprep.mubr.f32.mxu0 0.0
    %1412 = vmatmul.mubr.f32.gmra.mrb[0].mxu0 %v1135
    %v1413 = vpop.f32.mrb[0].mxu0
    %v1414 = vadd.f32 0.0, %v1413
    %v1415 = vpop.f32.mrb[0].mxu0
    %1416 = vdwg.mxu0
    %v1417 = vadd.f32 %v1330, %v1414
    %v1418 = vtanh.pop %v1417
    %v1419 = vmul.f32 %v1329, %v1418
    %v1420 = vadd.f32 %v1235, %v1419
    %v1421 = vld [vmem:[%s1140 + $0x18] sm:$0xff]
    %v1422 = vld [vmem:[#allocation6 + $0x18] sm:$0xff]
    %v1423 = vld [vmem:[#allocation6 + $0x38] sm:$0xff]
    %v1424 = vld [vmem:[#allocation6 + $0x58] sm:$0xff]
    %v1425 = vld [vmem:[#allocation6 + $0x78] sm:$0xff]
    %v1426 = vld [vmem:[#allocation6 + $0x98] sm:$0xff]
    %v1427 = vld [vmem:[#allocation6 + $0xb8] sm:$0xff]
    %v1428 = vld [vmem:[#allocation6 + $0xd8] sm:$0xff]
    %v1429 = vld [vmem:[#allocation6 + $0xf8] sm:$0xff]
    %v1430 = vld [vmem:[#allocation6 + $0x118] sm:$0xff]
    %v1431 = vld [vmem:[#allocation6 + $0x138] sm:$0xff]
    %v1432 = vld [vmem:[#allocation6 + $0x158] sm:$0xff]
    %v1433 = vld [vmem:[#allocation6 + $0x178] sm:$0xff]
    %v1434 = vld [vmem:[#allocation6 + $0x198] sm:$0xff]
    %v1435 = vld [vmem:[#allocation6 + $0x1b8] sm:$0xff]
    %v1436 = vld [vmem:[#allocation6 + $0x1d8] sm:$0xff]
    %v1437 = vld [vmem:[#allocation6 + $0x1f8] sm:$0xff]
    %1438 = vmatprep.subr.mxu0 0.0
    %1439 = vmatpush1.msra.mxu0 %v1422
    %1440 = vmatprep.subr.mxu0 0.0
    %1441 = vmatpush1.msra.mxu0 %v1423
    %1442 = vmatprep.subr.mxu0 0.0
    %1443 = vmatpush1.msra.mxu0 %v1424
    %1444 = vmatprep.subr.mxu0 0.0
    %1445 = vmatpush1.msra.mxu0 %v1425
    %1446 = vmatprep.subr.mxu0 0.0
    %1447 = vmatpush1.msra.mxu0 %v1426
    %1448 = vmatprep.subr.mxu0 0.0
    %1449 = vmatpush1.msra.mxu0 %v1427
    %1450 = vmatprep.subr.mxu0 0.0
    %1451 = vmatpush1.msra.mxu0 %v1428
    %1452 = vmatprep.subr.mxu0 0.0
    %1453 = vmatpush1.msra.mxu0 %v1429
    %1454 = vmatprep.subr.mxu0 0.0
    %1455 = vmatpush1.msra.mxu0 %v1430
    %1456 = vmatprep.subr.mxu0 0.0
    %1457 = vmatpush1.msra.mxu0 %v1431
    %1458 = vmatprep.subr.mxu0 0.0
    %1459 = vmatpush1.msra.mxu0 %v1432
    %1460 = vmatprep.subr.mxu0 0.0
    %1461 = vmatpush1.msra.mxu0 %v1433
    %1462 = vmatprep.subr.mxu0 0.0
    %1463 = vmatpush1.msra.mxu0 %v1434
    %1464 = vmatprep.subr.mxu0 0.0
    %1465 = vmatpush1.msra.mxu0 %v1435
    %1466 = vmatprep.subr.mxu0 0.0
    %1467 = vmatpush1.msra.mxu0 %v1436
    %1468 = vmatprep.subr.mxu0 0.0
    %1469 = vmatpush1.msra.mxu0 %v1437
    %1470 = vmatprep.subr.mxu0 0.0
    %1471 = vmatpush1.msra.mxu0 0.0
    %1472 = vmatprep.subr.mxu0 0.0
    %1473 = vmatpush1.msra.mxu0 0.0
    %1474 = vmatprep.subr.mxu0 0.0
    %1475 = vmatpush1.msra.mxu0 0.0
    %1476 = vmatprep.subr.mxu0 0.0
    %1477 = vmatpush1.msra.mxu0 0.0
    %1478 = vmatprep.subr.mxu0 0.0
    %1479 = vmatpush1.msra.mxu0 0.0
    %1480 = vmatprep.subr.mxu0 0.0
    %1481 = vmatpush1.msra.mxu0 0.0
    %1482 = vmatprep.subr.mxu0 0.0
    %1483 = vmatpush1.msra.mxu0 0.0
    %1484 = vmatprep.subr.mxu0 0.0
    %1485 = vmatpush1.msra.mxu0 0.0
    %1486 = vmatprep.subr.mxu0 0.0
    %1487 = vmatpush1.msra.mxu0 0.0
    %1488 = vmatprep.subr.mxu0 0.0
    %1489 = vmatpush1.msra.mxu0 0.0
    %1490 = vmatprep.subr.mxu0 0.0
    %1491 = vmatpush1.msra.mxu0 0.0
    %1492 = vmatprep.subr.mxu0 0.0
    %1493 = vmatpush1.msra.mxu0 0.0
    %1494 = vmatprep.subr.mxu0 0.0
    %1495 = vmatpush1.msra.mxu0 0.0
    %1496 = vmatprep.subr.mxu0 0.0
    %1497 = vmatpush1.msra.mxu0 0.0
    %1498 = vmatprep.subr.mxu0 0.0
    %1499 = vmatpush1.msra.mxu0 0.0
    %1500 = vmatprep.subr.mxu0 0.0
    %1501 = vmatpush1.msra.mxu0 0.0
    %1502 = vmatprep.mubr.f32.mxu0 0.0
    %1503 = vmatmul.mubr.f32.gmra.mrb[0].mxu0 %v1135
    %v1504 = vpop.f32.mrb[0].mxu0
    %v1505 = vadd.f32 0.0, %v1504
    %v1506 = vpop.f32.mrb[0].mxu0
    %1507 = vdwg.mxu0
    %v1508 = vadd.f32 %v1421, %v1505
    %v1509 = vxor.u32 %v1508, 2147483648
    %v1510 = vmul.f32 %v1509, 1.442695
    %v1511 = vpow.pop %v1510
    %v1512 = vadd.f32 %v1511, 1.0
    %v1513 = vrcp.pop %v1512
    %v1514 = vmul.f32 1.0, %v1513
    %v1515 = vtanh.pop %v1420
    %v1516 = vmul.f32 %v1514, %v1515
    %s1517 = scalar_lea.vmem [#allocation3], 16
    %1518 = vst [vmem:[%s1517] sm:$0xff] %v1516
    %s1519 = smul.u32 3, 4
    %s1520 = smul.addr %s1519, 8
    %s1521 = scalar_lea.vmem [#allocation2], %s1520
    %v1522 = vld [vmem:[%s1521 + $0x8] sm:$0xff]
    %v1523 = vld [vmem:[#allocation6 + $0x8] sm:$0xff]
    %v1524 = vld [vmem:[#allocation6 + $0x28] sm:$0xff]
    %v1525 = vld [vmem:[#allocation6 + $0x48] sm:$0xff]
    %v1526 = vld [vmem:[#allocation6 + $0x68] sm:$0xff]
    %v1527 = vld [vmem:[#allocation6 + $0x88] sm:$0xff]
    %v1528 = vld [vmem:[#allocation6 + $0xa8] sm:$0xff]
    %v1529 = vld [vmem:[#allocation6 + $0xc8] sm:$0xff]
    %v1530 = vld [vmem:[#allocation6 + $0xe8] sm:$0xff]
    %v1531 = vld [vmem:[#allocation6 + $0x108] sm:$0xff]
    %v1532 = vld [vmem:[#allocation6 + $0x128] sm:$0xff]
    %v1533 = vld [vmem:[#allocation6 + $0x148] sm:$0xff]
    %v1534 = vld [vmem:[#allocation6 + $0x168] sm:$0xff]
    %v1535 = vld [vmem:[#allocation6 + $0x188] sm:$0xff]
    %v1536 = vld [vmem:[#allocation6 + $0x1a8] sm:$0xff]
    %v1537 = vld [vmem:[#allocation6 + $0x1c8] sm:$0xff]
    %v1538 = vld [vmem:[#allocation6 + $0x1e8] sm:$0xff]
    %1539 = vmatprep.subr.mxu0 0.0
    %1540 = vmatpush1.msra.mxu0 %v1523
    %1541 = vmatprep.subr.mxu0 0.0
    %1542 = vmatpush1.msra.mxu0 %v1524
    %1543 = vmatprep.subr.mxu0 0.0
    %1544 = vmatpush1.msra.mxu0 %v1525
    %1545 = vmatprep.subr.mxu0 0.0
    %1546 = vmatpush1.msra.mxu0 %v1526
    %1547 = vmatprep.subr.mxu0 0.0
    %1548 = vmatpush1.msra.mxu0 %v1527
    %1549 = vmatprep.subr.mxu0 0.0
    %1550 = vmatpush1.msra.mxu0 %v1528
    %1551 = vmatprep.subr.mxu0 0.0
    %1552 = vmatpush1.msra.mxu0 %v1529
    %1553 = vmatprep.subr.mxu0 0.0
    %1554 = vmatpush1.msra.mxu0 %v1530
    %1555 = vmatprep.subr.mxu0 0.0
    %1556 = vmatpush1.msra.mxu0 %v1531
    %1557 = vmatprep.subr.mxu0 0.0
    %1558 = vmatpush1.msra.mxu0 %v1532
    %1559 = vmatprep.subr.mxu0 0.0
    %1560 = vmatpush1.msra.mxu0 %v1533
    %1561 = vmatprep.subr.mxu0 0.0
    %1562 = vmatpush1.msra.mxu0 %v1534
    %1563 = vmatprep.subr.mxu0 0.0
    %1564 = vmatpush1.msra.mxu0 %v1535
    %1565 = vmatprep.subr.mxu0 0.0
    %1566 = vmatpush1.msra.mxu0 %v1536
    %1567 = vmatprep.subr.mxu0 0.0
    %1568 = vmatpush1.msra.mxu0 %v1537
    %1569 = vmatprep.subr.mxu0 0.0
    %1570 = vmatpush1.msra.mxu0 %v1538
    %1571 = vmatprep.subr.mxu0 0.0
    %1572 = vmatpush1.msra.mxu0 0.0
    %1573 = vmatprep.subr.mxu0 0.0
    %1574 = vmatpush1.msra.mxu0 0.0
    %1575 = vmatprep.subr.mxu0 0.0
    %1576 = vmatpush1.msra.mxu0 0.0
    %1577 = vmatprep.subr.mxu0 0.0
    %1578 = vmatpush1.msra.mxu0 0.0
    %1579 = vmatprep.subr.mxu0 0.0
    %1580 = vmatpush1.msra.mxu0 0.0
    %1581 = vmatprep.subr.mxu0 0.0
    %1582 = vmatpush1.msra.mxu0 0.0
    %1583 = vmatprep.subr.mxu0 0.0
    %1584 = vmatpush1.msra.mxu0 0.0
    %1585 = vmatprep.subr.mxu0 0.0
    %1586 = vmatpush1.msra.mxu0 0.0
    %1587 = vmatprep.subr.mxu0 0.0
    %1588 = vmatpush1.msra.mxu0 0.0
    %1589 = vmatprep.subr.mxu0 0.0
    %1590 = vmatpush1.msra.mxu0 0.0
    %1591 = vmatprep.subr.mxu0 0.0
    %1592 = vmatpush1.msra.mxu0 0.0
    %1593 = vmatprep.subr.mxu0 0.0
    %1594 = vmatpush1.msra.mxu0 0.0
    %1595 = vmatprep.subr.mxu0 0.0
    %1596 = vmatpush1.msra.mxu0 0.0
    %1597 = vmatprep.subr.mxu0 0.0
    %1598 = vmatpush1.msra.mxu0 0.0
    %1599 = vmatprep.subr.mxu0 0.0
    %1600 = vmatpush1.msra.mxu0 0.0
    %1601 = vmatprep.subr.mxu0 0.0
    %1602 = vmatpush1.msra.mxu0 0.0
    %1603 = vmatprep.mubr.f32.mxu0 0.0
    %1604 = vmatmul.mubr.f32.gmra.mrb[0].mxu0 %v1516
    %v1605 = vpop.f32.mrb[0].mxu0
    %v1606 = vadd.f32 0.0, %v1605
    %v1607 = vpop.f32.mrb[0].mxu0
    %1608 = vdwg.mxu0
    %v1609 = vadd.f32 %v1522, %v1606
    %v1610 = vxor.u32 %v1609, 2147483648
    %v1611 = vmul.f32 %v1610, 1.442695
    %v1612 = vpow.pop %v1611
    %v1613 = vadd.f32 %v1612, 1.0
    %v1614 = vrcp.pop %v1613
    %v1615 = vmul.f32 1.0, %v1614
    %v1616 = vmul.f32 %v1615, %v1420
    %v1617 = vld [vmem:[%s1521] sm:$0xff]
    %v1618 = vld [vmem:[#allocation6] sm:$0xff]
    %v1619 = vld [vmem:[#allocation6 + $0x20] sm:$0xff]
    %v1620 = vld [vmem:[#allocation6 + $0x40] sm:$0xff]
    %v1621 = vld [vmem:[#allocation6 + $0x60] sm:$0xff]
    %v1622 = vld [vmem:[#allocation6 + $0x80] sm:$0xff]
    %v1623 = vld [vmem:[#allocation6 + $0xa0] sm:$0xff]
    %v1624 = vld [vmem:[#allocation6 + $0xc0] sm:$0xff]
    %v1625 = vld [vmem:[#allocation6 + $0xe0] sm:$0xff]
    %v1626 = vld [vmem:[#allocation6 + $0x100] sm:$0xff]
    %v1627 = vld [vmem:[#allocation6 + $0x120] sm:$0xff]
    %v1628 = vld [vmem:[#allocation6 + $0x140] sm:$0xff]
    %v1629 = vld [vmem:[#allocation6 + $0x160] sm:$0xff]
    %v1630 = vld [vmem:[#allocation6 + $0x180] sm:$0xff]
    %v1631 = vld [vmem:[#allocation6 + $0x1a0] sm:$0xff]
    %v1632 = vld [vmem:[#allocation6 + $0x1c0] sm:$0xff]
    %v1633 = vld [vmem:[#allocation6 + $0x1e0] sm:$0xff]
    %1634 = vmatprep.subr.mxu0 0.0
    %1635 = vmatpush1.msra.mxu0 %v1618
    %1636 = vmatprep.subr.mxu0 0.0
    %1637 = vmatpush1.msra.mxu0 %v1619
    %1638 = vmatprep.subr.mxu0 0.0
    %1639 = vmatpush1.msra.mxu0 %v1620
    %1640 = vmatprep.subr.mxu0 0.0
    %1641 = vmatpush1.msra.mxu0 %v1621
    %1642 = vmatprep.subr.mxu0 0.0
    %1643 = vmatpush1.msra.mxu0 %v1622
    %1644 = vmatprep.subr.mxu0 0.0
    %1645 = vmatpush1.msra.mxu0 %v1623
    %1646 = vmatprep.subr.mxu0 0.0
    %1647 = vmatpush1.msra.mxu0 %v1624
    %1648 = vmatprep.subr.mxu0 0.0
    %1649 = vmatpush1.msra.mxu0 %v1625
    %1650 = vmatprep.subr.mxu0 0.0
    %1651 = vmatpush1.msra.mxu0 %v1626
    %1652 = vmatprep.subr.mxu0 0.0
    %1653 = vmatpush1.msra.mxu0 %v1627
    %1654 = vmatprep.subr.mxu0 0.0
    %1655 = vmatpush1.msra.mxu0 %v1628
    %1656 = vmatprep.subr.mxu0 0.0
    %1657 = vmatpush1.msra.mxu0 %v1629
    %1658 = vmatprep.subr.mxu0 0.0
    %1659 = vmatpush1.msra.mxu0 %v1630
    %1660 = vmatprep.subr.mxu0 0.0
    %1661 = vmatpush1.msra.mxu0 %v1631
    %1662 = vmatprep.subr.mxu0 0.0
    %1663 = vmatpush1.msra.mxu0 %v1632
    %1664 = vmatprep.subr.mxu0 0.0
    %1665 = vmatpush1.msra.mxu0 %v1633
    %1666 = vmatprep.subr.mxu0 0.0
    %1667 = vmatpush1.msra.mxu0 0.0
    %1668 = vmatprep.subr.mxu0 0.0
    %1669 = vmatpush1.msra.mxu0 0.0
    %1670 = vmatprep.subr.mxu0 0.0
    %1671 = vmatpush1.msra.mxu0 0.0
    %1672 = vmatprep.subr.mxu0 0.0
    %1673 = vmatpush1.msra.mxu0 0.0
    %1674 = vmatprep.subr.mxu0 0.0
    %1675 = vmatpush1.msra.mxu0 0.0
    %1676 = vmatprep.subr.mxu0 0.0
    %1677 = vmatpush1.msra.mxu0 0.0
    %1678 = vmatprep.subr.mxu0 0.0
    %1679 = vmatpush1.msra.mxu0 0.0
    %1680 = vmatprep.subr.mxu0 0.0
    %1681 = vmatpush1.msra.mxu0 0.0
    %1682 = vmatprep.subr.mxu0 0.0
    %1683 = vmatpush1.msra.mxu0 0.0
    %1684 = vmatprep.subr.mxu0 0.0
    %1685 = vmatpush1.msra.mxu0 0.0
    %1686 = vmatprep.subr.mxu0 0.0
    %1687 = vmatpush1.msra.mxu0 0.0
    %1688 = vmatprep.subr.mxu0 0.0
    %1689 = vmatpush1.msra.mxu0 0.0
    %1690 = vmatprep.subr.mxu0 0.0
    %1691 = vmatpush1.msra.mxu0 0.0
    %1692 = vmatprep.subr.mxu0 0.0
    %1693 = vmatpush1.msra.mxu0 0.0
    %1694 = vmatprep.subr.mxu0 0.0
    %1695 = vmatpush1.msra.mxu0 0.0
    %1696 = vmatprep.subr.mxu0 0.0
    %1697 = vmatpush1.msra.mxu0 0.0
    %1698 = vmatprep.mubr.f32.mxu0 0.0
    %1699 = vmatmul.mubr.f32.gmra.mrb[0].mxu0 %v1516
    %v1700 = vpop.f32.mrb[0].mxu0
    %v1701 = vadd.f32 0.0, %v1700
    %v1702 = vpop.f32.mrb[0].mxu0
    %1703 = vdwg.mxu0
    %v1704 = vadd.f32 %v1617, %v1701
    %v1705 = vxor.u32 %v1704, 2147483648
    %v1706 = vmul.f32 %v1705, 1.442695
    %v1707 = vpow.pop %v1706
    %v1708 = vadd.f32 %v1707, 1.0
    %v1709 = vrcp.pop %v1708
    %v1710 = vmul.f32 1.0, %v1709
    %v1711 = vld [vmem:[%s1521 + $0x10] sm:$0xff]
    %v1712 = vld [vmem:[#allocation6 + $0x10] sm:$0xff]
    %v1713 = vld [vmem:[#allocation6 + $0x30] sm:$0xff]
    %v1714 = vld [vmem:[#allocation6 + $0x50] sm:$0xff]
    %v1715 = vld [vmem:[#allocation6 + $0x70] sm:$0xff]
    %v1716 = vld [vmem:[#allocation6 + $0x90] sm:$0xff]
    %v1717 = vld [vmem:[#allocation6 + $0xb0] sm:$0xff]
    %v1718 = vld [vmem:[#allocation6 + $0xd0] sm:$0xff]
    %v1719 = vld [vmem:[#allocation6 + $0xf0] sm:$0xff]
    %v1720 = vld [vmem:[#allocation6 + $0x110] sm:$0xff]
    %v1721 = vld [vmem:[#allocation6 + $0x130] sm:$0xff]
    %v1722 = vld [vmem:[#allocation6 + $0x150] sm:$0xff]
    %v1723 = vld [vmem:[#allocation6 + $0x170] sm:$0xff]
    %v1724 = vld [vmem:[#allocation6 + $0x190] sm:$0xff]
    %v1725 = vld [vmem:[#allocation6 + $0x1b0] sm:$0xff]
    %v1726 = vld [vmem:[#allocation6 + $0x1d0] sm:$0xff]
    %v1727 = vld [vmem:[#allocation6 + $0x1f0] sm:$0xff]
    %1728 = vmatprep.subr.mxu0 0.0
    %1729 = vmatpush1.msra.mxu0 %v1712
    %1730 = vmatprep.subr.mxu0 0.0
    %1731 = vmatpush1.msra.mxu0 %v1713
    %1732 = vmatprep.subr.mxu0 0.0
    %1733 = vmatpush1.msra.mxu0 %v1714
    %1734 = vmatprep.subr.mxu0 0.0
    %1735 = vmatpush1.msra.mxu0 %v1715
    %1736 = vmatprep.subr.mxu0 0.0
    %1737 = vmatpush1.msra.mxu0 %v1716
    %1738 = vmatprep.subr.mxu0 0.0
    %1739 = vmatpush1.msra.mxu0 %v1717
    %1740 = vmatprep.subr.mxu0 0.0
    %1741 = vmatpush1.msra.mxu0 %v1718
    %1742 = vmatprep.subr.mxu0 0.0
    %1743 = vmatpush1.msra.mxu0 %v1719
    %1744 = vmatprep.subr.mxu0 0.0
    %1745 = vmatpush1.msra.mxu0 %v1720
    %1746 = vmatprep.subr.mxu0 0.0
    %1747 = vmatpush1.msra.mxu0 %v1721
    %1748 = vmatprep.subr.mxu0 0.0
    %1749 = vmatpush1.msra.mxu0 %v1722
    %1750 = vmatprep.subr.mxu0 0.0
    %1751 = vmatpush1.msra.mxu0 %v1723
    %1752 = vmatprep.subr.mxu0 0.0
    %1753 = vmatpush1.msra.mxu0 %v1724
    %1754 = vmatprep.subr.mxu0 0.0
    %1755 = vmatpush1.msra.mxu0 %v1725
    %1756 = vmatprep.subr.mxu0 0.0
    %1757 = vmatpush1.msra.mxu0 %v1726
    %1758 = vmatprep.subr.mxu0 0.0
    %1759 = vmatpush1.msra.mxu0 %v1727
    %1760 = vmatprep.subr.mxu0 0.0
    %1761 = vmatpush1.msra.mxu0 0.0
    %1762 = vmatprep.subr.mxu0 0.0
    %1763 = vmatpush1.msra.mxu0 0.0
    %1764 = vmatprep.subr.mxu0 0.0
    %1765 = vmatpush1.msra.mxu0 0.0
    %1766 = vmatprep.subr.mxu0 0.0
    %1767 = vmatpush1.msra.mxu0 0.0
    %1768 = vmatprep.subr.mxu0 0.0
    %1769 = vmatpush1.msra.mxu0 0.0
    %1770 = vmatprep.subr.mxu0 0.0
    %1771 = vmatpush1.msra.mxu0 0.0
    %1772 = vmatprep.subr.mxu0 0.0
    %1773 = vmatpush1.msra.mxu0 0.0
    %1774 = vmatprep.subr.mxu0 0.0
    %1775 = vmatpush1.msra.mxu0 0.0
    %1776 = vmatprep.subr.mxu0 0.0
    %1777 = vmatpush1.msra.mxu0 0.0
    %1778 = vmatprep.subr.mxu0 0.0
    %1779 = vmatpush1.msra.mxu0 0.0
    %1780 = vmatprep.subr.mxu0 0.0
    %1781 = vmatpush1.msra.mxu0 0.0
    %1782 = vmatprep.subr.mxu0 0.0
    %1783 = vmatpush1.msra.mxu0 0.0
    %1784 = vmatprep.subr.mxu0 0.0
    %1785 = vmatpush1.msra.mxu0 0.0
    %1786 = vmatprep.subr.mxu0 0.0
    %1787 = vmatpush1.msra.mxu0 0.0
    %1788 = vmatprep.subr.mxu0 0.0
    %1789 = vmatpush1.msra.mxu0 0.0
    %1790 = vmatprep.subr.mxu0 0.0
    %1791 = vmatpush1.msra.mxu0 0.0
    %1792 = vmatprep.mubr.f32.mxu0 0.0
    %1793 = vmatmul.mubr.f32.gmra.mrb[0].mxu0 %v1516
    %v1794 = vpop.f32.mrb[0].mxu0
    %v1795 = vadd.f32 0.0, %v1794
    %v1796 = vpop.f32.mrb[0].mxu0
    %1797 = vdwg.mxu0
    %v1798 = vadd.f32 %v1711, %v1795
    %v1799 = vtanh.pop %v1798
    %v1800 = vmul.f32 %v1710, %v1799
    %v1801 = vadd.f32 %v1616, %v1800
    %v1802 = vld [vmem:[%s1521 + $0x18] sm:$0xff]
    %v1803 = vld [vmem:[#allocation6 + $0x18] sm:$0xff]
    %v1804 = vld [vmem:[#allocation6 + $0x38] sm:$0xff]
    %v1805 = vld [vmem:[#allocation6 + $0x58] sm:$0xff]
    %v1806 = vld [vmem:[#allocation6 + $0x78] sm:$0xff]
    %v1807 = vld [vmem:[#allocation6 + $0x98] sm:$0xff]
    %v1808 = vld [vmem:[#allocation6 + $0xb8] sm:$0xff]
    %v1809 = vld [vmem:[#allocation6 + $0xd8] sm:$0xff]
    %v1810 = vld [vmem:[#allocation6 + $0xf8] sm:$0xff]
    %v1811 = vld [vmem:[#allocation6 + $0x118] sm:$0xff]
    %v1812 = vld [vmem:[#allocation6 + $0x138] sm:$0xff]
    %v1813 = vld [vmem:[#allocation6 + $0x158] sm:$0xff]
    %v1814 = vld [vmem:[#allocation6 + $0x178] sm:$0xff]
    %v1815 = vld [vmem:[#allocation6 + $0x198] sm:$0xff]
    %v1816 = vld [vmem:[#allocation6 + $0x1b8] sm:$0xff]
    %v1817 = vld [vmem:[#allocation6 + $0x1d8] sm:$0xff]
    %v1818 = vld [vmem:[#allocation6 + $0x1f8] sm:$0xff]
    %1819 = vmatprep.subr.mxu0 0.0
    %1820 = vmatpush1.msra.mxu0 %v1803
    %1821 = vmatprep.subr.mxu0 0.0
    %1822 = vmatpush1.msra.mxu0 %v1804
    %1823 = vmatprep.subr.mxu0 0.0
    %1824 = vmatpush1.msra.mxu0 %v1805
    %1825 = vmatprep.subr.mxu0 0.0
    %1826 = vmatpush1.msra.mxu0 %v1806
    %1827 = vmatprep.subr.mxu0 0.0
    %1828 = vmatpush1.msra.mxu0 %v1807
    %1829 = vmatprep.subr.mxu0 0.0
    %1830 = vmatpush1.msra.mxu0 %v1808
    %1831 = vmatprep.subr.mxu0 0.0
    %1832 = vmatpush1.msra.mxu0 %v1809
    %1833 = vmatprep.subr.mxu0 0.0
    %1834 = vmatpush1.msra.mxu0 %v1810
    %1835 = vmatprep.subr.mxu0 0.0
    %1836 = vmatpush1.msra.mxu0 %v1811
    %1837 = vmatprep.subr.mxu0 0.0
    %1838 = vmatpush1.msra.mxu0 %v1812
    %1839 = vmatprep.subr.mxu0 0.0
    %1840 = vmatpush1.msra.mxu0 %v1813
    %1841 = vmatprep.subr.mxu0 0.0
    %1842 = vmatpush1.msra.mxu0 %v1814
    %1843 = vmatprep.subr.mxu0 0.0
    %1844 = vmatpush1.msra.mxu0 %v1815
    %1845 = vmatprep.subr.mxu0 0.0
    %1846 = vmatpush1.msra.mxu0 %v1816
    %1847 = vmatprep.subr.mxu0 0.0
    %1848 = vmatpush1.msra.mxu0 %v1817
    %1849 = vmatprep.subr.mxu0 0.0
    %1850 = vmatpush1.msra.mxu0 %v1818
    %1851 = vmatprep.subr.mxu0 0.0
    %1852 = vmatpush1.msra.mxu0 0.0
    %1853 = vmatprep.subr.mxu0 0.0
    %1854 = vmatpush1.msra.mxu0 0.0
    %1855 = vmatprep.subr.mxu0 0.0
    %1856 = vmatpush1.msra.mxu0 0.0
    %1857 = vmatprep.subr.mxu0 0.0
    %1858 = vmatpush1.msra.mxu0 0.0
    %1859 = vmatprep.subr.mxu0 0.0
    %1860 = vmatpush1.msra.mxu0 0.0
    %1861 = vmatprep.subr.mxu0 0.0
    %1862 = vmatpush1.msra.mxu0 0.0
    %1863 = vmatprep.subr.mxu0 0.0
    %1864 = vmatpush1.msra.mxu0 0.0
    %1865 = vmatprep.subr.mxu0 0.0
    %1866 = vmatpush1.msra.mxu0 0.0
    %1867 = vmatprep.subr.mxu0 0.0
    %1868 = vmatpush1.msra.mxu0 0.0
    %1869 = vmatprep.subr.mxu0 0.0
    %1870 = vmatpush1.msra.mxu0 0.0
    %1871 = vmatprep.subr.mxu0 0.0
    %1872 = vmatpush1.msra.mxu0 0.0
    %1873 = vmatprep.subr.mxu0 0.0
    %1874 = vmatpush1.msra.mxu0 0.0
    %1875 = vmatprep.subr.mxu0 0.0
    %1876 = vmatpush1.msra.mxu0 0.0
    %1877 = vmatprep.subr.mxu0 0.0
    %1878 = vmatpush1.msra.mxu0 0.0
    %1879 = vmatprep.subr.mxu0 0.0
    %1880 = vmatpush1.msra.mxu0 0.0
    %1881 = vmatprep.subr.mxu0 0.0
    %1882 = vmatpush1.msra.mxu0 0.0
    %1883 = vmatprep.mubr.f32.mxu0 0.0
    %1884 = vmatmul.mubr.f32.gmra.mrb[0].mxu0 %v1516
    %v1885 = vpop.f32.mrb[0].mxu0
    %v1886 = vadd.f32 0.0, %v1885
    %v1887 = vpop.f32.mrb[0].mxu0
    %1888 = vdwg.mxu0
    %v1889 = vadd.f32 %v1802, %v1886
    %v1890 = vxor.u32 %v1889, 2147483648
    %v1891 = vmul.f32 %v1890, 1.442695
    %v1892 = vpow.pop %v1891
    %v1893 = vadd.f32 %v1892, 1.0
    %v1894 = vrcp.pop %v1893
    %v1895 = vmul.f32 1.0, %v1894
    %v1896 = vtanh.pop %v1801
    %v1897 = vmul.f32 %v1895, %v1896
    %s1898 = scalar_lea.vmem [#allocation3], 24
    %1899 = vst [vmem:[%s1898] sm:$0xff] %v1897
    %s1900 = smul.u32 4, 4
    %s1901 = smul.addr %s1900, 8
    %s1902 = scalar_lea.vmem [#allocation2], %s1901
    %v1903 = vld [vmem:[%s1902 + $0x8] sm:$0xff]
    %v1904 = vld [vmem:[#allocation6 + $0x8] sm:$0xff]
    %v1905 = vld [vmem:[#allocation6 + $0x28] sm:$0xff]
    %v1906 = vld [vmem:[#allocation6 + $0x48] sm:$0xff]
    %v1907 = vld [vmem:[#allocation6 + $0x68] sm:$0xff]
    %v1908 = vld [vmem:[#allocation6 + $0x88] sm:$0xff]
    %v1909 = vld [vmem:[#allocation6 + $0xa8] sm:$0xff]
    %v1910 = vld [vmem:[#allocation6 + $0xc8] sm:$0xff]
    %v1911 = vld [vmem:[#allocation6 + $0xe8] sm:$0xff]
    %v1912 = vld [vmem:[#allocation6 + $0x108] sm:$0xff]
    %v1913 = vld [vmem:[#allocation6 + $0x128] sm:$0xff]
    %v1914 = vld [vmem:[#allocation6 + $0x148] sm:$0xff]
    %v1915 = vld [vmem:[#allocation6 + $0x168] sm:$0xff]
    %v1916 = vld [vmem:[#allocation6 + $0x188] sm:$0xff]
    %v1917 = vld [vmem:[#allocation6 + $0x1a8] sm:$0xff]
    %v1918 = vld [vmem:[#allocation6 + $0x1c8] sm:$0xff]
    %v1919 = vld [vmem:[#allocation6 + $0x1e8] sm:$0xff]
    %1920 = vmatprep.subr.mxu0 0.0
    %1921 = vmatpush1.msra.mxu0 %v1904
    %1922 = vmatprep.subr.mxu0 0.0
    %1923 = vmatpush1.msra.mxu0 %v1905
    %1924 = vmatprep.subr.mxu0 0.0
    %1925 = vmatpush1.msra.mxu0 %v1906
    %1926 = vmatprep.subr.mxu0 0.0
    %1927 = vmatpush1.msra.mxu0 %v1907
    %1928 = vmatprep.subr.mxu0 0.0
    %1929 = vmatpush1.msra.mxu0 %v1908
    %1930 = vmatprep.subr.mxu0 0.0
    %1931 = vmatpush1.msra.mxu0 %v1909
    %1932 = vmatprep.subr.mxu0 0.0
    %1933 = vmatpush1.msra.mxu0 %v1910
    %1934 = vmatprep.subr.mxu0 0.0
    %1935 = vmatpush1.msra.mxu0 %v1911
    %1936 = vmatprep.subr.mxu0 0.0
    %1937 = vmatpush1.msra.mxu0 %v1912
    %1938 = vmatprep.subr.mxu0 0.0
    %1939 = vmatpush1.msra.mxu0 %v1913
    %1940 = vmatprep.subr.mxu0 0.0
    %1941 = vmatpush1.msra.mxu0 %v1914
    %1942 = vmatprep.subr.mxu0 0.0
    %1943 = vmatpush1.msra.mxu0 %v1915
    %1944 = vmatprep.subr.mxu0 0.0
    %1945 = vmatpush1.msra.mxu0 %v1916
    %1946 = vmatprep.subr.mxu0 0.0
    %1947 = vmatpush1.msra.mxu0 %v1917
    %1948 = vmatprep.subr.mxu0 0.0
    %1949 = vmatpush1.msra.mxu0 %v1918
    %1950 = vmatprep.subr.mxu0 0.0
    %1951 = vmatpush1.msra.mxu0 %v1919
    %1952 = vmatprep.subr.mxu0 0.0
    %1953 = vmatpush1.msra.mxu0 0.0
    %1954 = vmatprep.subr.mxu0 0.0
    %1955 = vmatpush1.msra.mxu0 0.0
    %1956 = vmatprep.subr.mxu0 0.0
    %1957 = vmatpush1.msra.mxu0 0.0
    %1958 = vmatprep.subr.mxu0 0.0
    %1959 = vmatpush1.msra.mxu0 0.0
    %1960 = vmatprep.subr.mxu0 0.0
    %1961 = vmatpush1.msra.mxu0 0.0
    %1962 = vmatprep.subr.mxu0 0.0
    %1963 = vmatpush1.msra.mxu0 0.0
    %1964 = vmatprep.subr.mxu0 0.0
    %1965 = vmatpush1.msra.mxu0 0.0
    %1966 = vmatprep.subr.mxu0 0.0
    %1967 = vmatpush1.msra.mxu0 0.0
    %1968 = vmatprep.subr.mxu0 0.0
    %1969 = vmatpush1.msra.mxu0 0.0
    %1970 = vmatprep.subr.mxu0 0.0
    %1971 = vmatpush1.msra.mxu0 0.0
    %1972 = vmatprep.subr.mxu0 0.0
    %1973 = vmatpush1.msra.mxu0 0.0
    %1974 = vmatprep.subr.mxu0 0.0
    %1975 = vmatpush1.msra.mxu0 0.0
    %1976 = vmatprep.subr.mxu0 0.0
    %1977 = vmatpush1.msra.mxu0 0.0
    %1978 = vmatprep.subr.mxu0 0.0
    %1979 = vmatpush1.msra.mxu0 0.0
    %1980 = vmatprep.subr.mxu0 0.0
    %1981 = vmatpush1.msra.mxu0 0.0
    %1982 = vmatprep.subr.mxu0 0.0
    %1983 = vmatpush1.msra.mxu0 0.0
    %1984 = vmatprep.mubr.f32.mxu0 0.0
    %1985 = vmatmul.mubr.f32.gmra.mrb[0].mxu0 %v1897
    %v1986 = vpop.f32.mrb[0].mxu0
    %v1987 = vadd.f32 0.0, %v1986
    %v1988 = vpop.f32.mrb[0].mxu0
    %1989 = vdwg.mxu0
    %v1990 = vadd.f32 %v1903, %v1987
    %v1991 = vxor.u32 %v1990, 2147483648
    %v1992 = vmul.f32 %v1991, 1.442695
    %v1993 = vpow.pop %v1992
    %v1994 = vadd.f32 %v1993, 1.0
    %v1995 = vrcp.pop %v1994
    %v1996 = vmul.f32 1.0, %v1995
    %v1997 = vmul.f32 %v1996, %v1801
    %v1998 = vld [vmem:[%s1902] sm:$0xff]
    %v1999 = vld [vmem:[#allocation6] sm:$0xff]
    %v2000 = vld [vmem:[#allocation6 + $0x20] sm:$0xff]
    %v2001 = vld [vmem:[#allocation6 + $0x40] sm:$0xff]
    %v2002 = vld [vmem:[#allocation6 + $0x60] sm:$0xff]
    %v2003 = vld [vmem:[#allocation6 + $0x80] sm:$0xff]
    %v2004 = vld [vmem:[#allocation6 + $0xa0] sm:$0xff]
    %v2005 = vld [vmem:[#allocation6 + $0xc0] sm:$0xff]
    %v2006 = vld [vmem:[#allocation6 + $0xe0] sm:$0xff]
    %v2007 = vld [vmem:[#allocation6 + $0x100] sm:$0xff]
    %v2008 = vld [vmem:[#allocation6 + $0x120] sm:$0xff]
    %v2009 = vld [vmem:[#allocation6 + $0x140] sm:$0xff]
    %v2010 = vld [vmem:[#allocation6 + $0x160] sm:$0xff]
    %v2011 = vld [vmem:[#allocation6 + $0x180] sm:$0xff]
    %v2012 = vld [vmem:[#allocation6 + $0x1a0] sm:$0xff]
    %v2013 = vld [vmem:[#allocation6 + $0x1c0] sm:$0xff]
    %v2014 = vld [vmem:[#allocation6 + $0x1e0] sm:$0xff]
    %2015 = vmatprep.subr.mxu0 0.0
    %2016 = vmatpush1.msra.mxu0 %v1999
    %2017 = vmatprep.subr.mxu0 0.0
    %2018 = vmatpush1.msra.mxu0 %v2000
    %2019 = vmatprep.subr.mxu0 0.0
    %2020 = vmatpush1.msra.mxu0 %v2001
    %2021 = vmatprep.subr.mxu0 0.0
    %2022 = vmatpush1.msra.mxu0 %v2002
    %2023 = vmatprep.subr.mxu0 0.0
    %2024 = vmatpush1.msra.mxu0 %v2003
    %2025 = vmatprep.subr.mxu0 0.0
    %2026 = vmatpush1.msra.mxu0 %v2004
    %2027 = vmatprep.subr.mxu0 0.0
    %2028 = vmatpush1.msra.mxu0 %v2005
    %2029 = vmatprep.subr.mxu0 0.0
    %2030 = vmatpush1.msra.mxu0 %v2006
    %2031 = vmatprep.subr.mxu0 0.0
    %2032 = vmatpush1.msra.mxu0 %v2007
    %2033 = vmatprep.subr.mxu0 0.0
    %2034 = vmatpush1.msra.mxu0 %v2008
    %2035 = vmatprep.subr.mxu0 0.0
    %2036 = vmatpush1.msra.mxu0 %v2009
    %2037 = vmatprep.subr.mxu0 0.0
    %2038 = vmatpush1.msra.mxu0 %v2010
    %2039 = vmatprep.subr.mxu0 0.0
    %2040 = vmatpush1.msra.mxu0 %v2011
    %2041 = vmatprep.subr.mxu0 0.0
    %2042 = vmatpush1.msra.mxu0 %v2012
    %2043 = vmatprep.subr.mxu0 0.0
    %2044 = vmatpush1.msra.mxu0 %v2013
    %2045 = vmatprep.subr.mxu0 0.0
    %2046 = vmatpush1.msra.mxu0 %v2014
    %2047 = vmatprep.subr.mxu0 0.0
    %2048 = vmatpush1.msra.mxu0 0.0
    %2049 = vmatprep.subr.mxu0 0.0
    %2050 = vmatpush1.msra.mxu0 0.0
    %2051 = vmatprep.subr.mxu0 0.0
    %2052 = vmatpush1.msra.mxu0 0.0
    %2053 = vmatprep.subr.mxu0 0.0
    %2054 = vmatpush1.msra.mxu0 0.0
    %2055 = vmatprep.subr.mxu0 0.0
    %2056 = vmatpush1.msra.mxu0 0.0
    %2057 = vmatprep.subr.mxu0 0.0
    %2058 = vmatpush1.msra.mxu0 0.0
    %2059 = vmatprep.subr.mxu0 0.0
    %2060 = vmatpush1.msra.mxu0 0.0
    %2061 = vmatprep.subr.mxu0 0.0
    %2062 = vmatpush1.msra.mxu0 0.0
    %2063 = vmatprep.subr.mxu0 0.0
    %2064 = vmatpush1.msra.mxu0 0.0
    %2065 = vmatprep.subr.mxu0 0.0
    %2066 = vmatpush1.msra.mxu0 0.0
    %2067 = vmatprep.subr.mxu0 0.0
    %2068 = vmatpush1.msra.mxu0 0.0
    %2069 = vmatprep.subr.mxu0 0.0
    %2070 = vmatpush1.msra.mxu0 0.0
    %2071 = vmatprep.subr.mxu0 0.0
    %2072 = vmatpush1.msra.mxu0 0.0
    %2073 = vmatprep.subr.mxu0 0.0
    %2074 = vmatpush1.msra.mxu0 0.0
    %2075 = vmatprep.subr.mxu0 0.0
    %2076 = vmatpush1.msra.mxu0 0.0
    %2077 = vmatprep.subr.mxu0 0.0
    %2078 = vmatpush1.msra.mxu0 0.0
    %2079 = vmatprep.mubr.f32.mxu0 0.0
    %2080 = vmatmul.mubr.f32.gmra.mrb[0].mxu0 %v1897
    %v2081 = vpop.f32.mrb[0].mxu0
    %v2082 = vadd.f32 0.0, %v2081
    %v2083 = vpop.f32.mrb[0].mxu0
    %2084 = vdwg.mxu0
    %v2085 = vadd.f32 %v1998, %v2082
    %v2086 = vxor.u32 %v2085, 2147483648
    %v2087 = vmul.f32 %v2086, 1.442695
    %v2088 = vpow.pop %v2087
    %v2089 = vadd.f32 %v2088, 1.0
    %v2090 = vrcp.pop %v2089
    %v2091 = vmul.f32 1.0, %v2090
    %v2092 = vld [vmem:[%s1902 + $0x10] sm:$0xff]
    %v2093 = vld [vmem:[#allocation6 + $0x10] sm:$0xff]
    %v2094 = vld [vmem:[#allocation6 + $0x30] sm:$0xff]
    %v2095 = vld [vmem:[#allocation6 + $0x50] sm:$0xff]
    %v2096 = vld [vmem:[#allocation6 + $0x70] sm:$0xff]
    %v2097 = vld [vmem:[#allocation6 + $0x90] sm:$0xff]
    %v2098 = vld [vmem:[#allocation6 + $0xb0] sm:$0xff]
    %v2099 = vld [vmem:[#allocation6 + $0xd0] sm:$0xff]
    %v2100 = vld [vmem:[#allocation6 + $0xf0] sm:$0xff]
    %v2101 = vld [vmem:[#allocation6 + $0x110] sm:$0xff]
    %v2102 = vld [vmem:[#allocation6 + $0x130] sm:$0xff]
    %v2103 = vld [vmem:[#allocation6 + $0x150] sm:$0xff]
    %v2104 = vld [vmem:[#allocation6 + $0x170] sm:$0xff]
    %v2105 = vld [vmem:[#allocation6 + $0x190] sm:$0xff]
    %v2106 = vld [vmem:[#allocation6 + $0x1b0] sm:$0xff]
    %v2107 = vld [vmem:[#allocation6 + $0x1d0] sm:$0xff]
    %v2108 = vld [vmem:[#allocation6 + $0x1f0] sm:$0xff]
    %2109 = vmatprep.subr.mxu0 0.0
    %2110 = vmatpush1.msra.mxu0 %v2093
    %2111 = vmatprep.subr.mxu0 0.0
    %2112 = vmatpush1.msra.mxu0 %v2094
    %2113 = vmatprep.subr.mxu0 0.0
    %2114 = vmatpush1.msra.mxu0 %v2095
    %2115 = vmatprep.subr.mxu0 0.0
    %2116 = vmatpush1.msra.mxu0 %v2096
    %2117 = vmatprep.subr.mxu0 0.0
    %2118 = vmatpush1.msra.mxu0 %v2097
    %2119 = vmatprep.subr.mxu0 0.0
    %2120 = vmatpush1.msra.mxu0 %v2098
    %2121 = vmatprep.subr.mxu0 0.0
    %2122 = vmatpush1.msra.mxu0 %v2099
    %2123 = vmatprep.subr.mxu0 0.0
    %2124 = vmatpush1.msra.mxu0 %v2100
    %2125 = vmatprep.subr.mxu0 0.0
    %2126 = vmatpush1.msra.mxu0 %v2101
    %2127 = vmatprep.subr.mxu0 0.0
    %2128 = vmatpush1.msra.mxu0 %v2102
    %2129 = vmatprep.subr.mxu0 0.0
    %2130 = vmatpush1.msra.mxu0 %v2103
    %2131 = vmatprep.subr.mxu0 0.0
    %2132 = vmatpush1.msra.mxu0 %v2104
    %2133 = vmatprep.subr.mxu0 0.0
    %2134 = vmatpush1.msra.mxu0 %v2105
    %2135 = vmatprep.subr.mxu0 0.0
    %2136 = vmatpush1.msra.mxu0 %v2106
    %2137 = vmatprep.subr.mxu0 0.0
    %2138 = vmatpush1.msra.mxu0 %v2107
    %2139 = vmatprep.subr.mxu0 0.0
    %2140 = vmatpush1.msra.mxu0 %v2108
    %2141 = vmatprep.subr.mxu0 0.0
    %2142 = vmatpush1.msra.mxu0 0.0
    %2143 = vmatprep.subr.mxu0 0.0
    %2144 = vmatpush1.msra.mxu0 0.0
    %2145 = vmatprep.subr.mxu0 0.0
    %2146 = vmatpush1.msra.mxu0 0.0
    %2147 = vmatprep.subr.mxu0 0.0
    %2148 = vmatpush1.msra.mxu0 0.0
    %2149 = vmatprep.subr.mxu0 0.0
    %2150 = vmatpush1.msra.mxu0 0.0
    %2151 = vmatprep.subr.mxu0 0.0
    %2152 = vmatpush1.msra.mxu0 0.0
    %2153 = vmatprep.subr.mxu0 0.0
    %2154 = vmatpush1.msra.mxu0 0.0
    %2155 = vmatprep.subr.mxu0 0.0
    %2156 = vmatpush1.msra.mxu0 0.0
    %2157 = vmatprep.subr.mxu0 0.0
    %2158 = vmatpush1.msra.mxu0 0.0
    %2159 = vmatprep.subr.mxu0 0.0
    %2160 = vmatpush1.msra.mxu0 0.0
    %2161 = vmatprep.subr.mxu0 0.0
    %2162 = vmatpush1.msra.mxu0 0.0
    %2163 = vmatprep.subr.mxu0 0.0
    %2164 = vmatpush1.msra.mxu0 0.0
    %2165 = vmatprep.subr.mxu0 0.0
    %2166 = vmatpush1.msra.mxu0 0.0
    %2167 = vmatprep.subr.mxu0 0.0
    %2168 = vmatpush1.msra.mxu0 0.0
    %2169 = vmatprep.subr.mxu0 0.0
    %2170 = vmatpush1.msra.mxu0 0.0
    %2171 = vmatprep.subr.mxu0 0.0
    %2172 = vmatpush1.msra.mxu0 0.0
    %2173 = vmatprep.mubr.f32.mxu0 0.0
    %2174 = vmatmul.mubr.f32.gmra.mrb[0].mxu0 %v1897
    %v2175 = vpop.f32.mrb[0].mxu0
    %v2176 = vadd.f32 0.0, %v2175
    %v2177 = vpop.f32.mrb[0].mxu0
    %2178 = vdwg.mxu0
    %v2179 = vadd.f32 %v2092, %v2176
    %v2180 = vtanh.pop %v2179
    %v2181 = vmul.f32 %v2091, %v2180
    %v2182 = vadd.f32 %v1997, %v2181
    %v2183 = vld [vmem:[%s1902 + $0x18] sm:$0xff]
    %v2184 = vld [vmem:[#allocation6 + $0x18] sm:$0xff]
    %v2185 = vld [vmem:[#allocation6 + $0x38] sm:$0xff]
    %v2186 = vld [vmem:[#allocation6 + $0x58] sm:$0xff]
    %v2187 = vld [vmem:[#allocation6 + $0x78] sm:$0xff]
    %v2188 = vld [vmem:[#allocation6 + $0x98] sm:$0xff]
    %v2189 = vld [vmem:[#allocation6 + $0xb8] sm:$0xff]
    %v2190 = vld [vmem:[#allocation6 + $0xd8] sm:$0xff]
    %v2191 = vld [vmem:[#allocation6 + $0xf8] sm:$0xff]
    %v2192 = vld [vmem:[#allocation6 + $0x118] sm:$0xff]
    %v2193 = vld [vmem:[#allocation6 + $0x138] sm:$0xff]
    %v2194 = vld [vmem:[#allocation6 + $0x158] sm:$0xff]
    %v2195 = vld [vmem:[#allocation6 + $0x178] sm:$0xff]
    %v2196 = vld [vmem:[#allocation6 + $0x198] sm:$0xff]
    %v2197 = vld [vmem:[#allocation6 + $0x1b8] sm:$0xff]
    %v2198 = vld [vmem:[#allocation6 + $0x1d8] sm:$0xff]
    %v2199 = vld [vmem:[#allocation6 + $0x1f8] sm:$0xff]
    %2200 = vmatprep.subr.mxu0 0.0
    %2201 = vmatpush1.msra.mxu0 %v2184
    %2202 = vmatprep.subr.mxu0 0.0
    %2203 = vmatpush1.msra.mxu0 %v2185
    %2204 = vmatprep.subr.mxu0 0.0
    %2205 = vmatpush1.msra.mxu0 %v2186
    %2206 = vmatprep.subr.mxu0 0.0
    %2207 = vmatpush1.msra.mxu0 %v2187
    %2208 = vmatprep.subr.mxu0 0.0
    %2209 = vmatpush1.msra.mxu0 %v2188
    %2210 = vmatprep.subr.mxu0 0.0
    %2211 = vmatpush1.msra.mxu0 %v2189
    %2212 = vmatprep.subr.mxu0 0.0
    %2213 = vmatpush1.msra.mxu0 %v2190
    %2214 = vmatprep.subr.mxu0 0.0
    %2215 = vmatpush1.msra.mxu0 %v2191
    %2216 = vmatprep.subr.mxu0 0.0
    %2217 = vmatpush1.msra.mxu0 %v2192
    %2218 = vmatprep.subr.mxu0 0.0
    %2219 = vmatpush1.msra.mxu0 %v2193
    %2220 = vmatprep.subr.mxu0 0.0
    %2221 = vmatpush1.msra.mxu0 %v2194
    %2222 = vmatprep.subr.mxu0 0.0
    %2223 = vmatpush1.msra.mxu0 %v2195
    %2224 = vmatprep.subr.mxu0 0.0
    %2225 = vmatpush1.msra.mxu0 %v2196
    %2226 = vmatprep.subr.mxu0 0.0
    %2227 = vmatpush1.msra.mxu0 %v2197
    %2228 = vmatprep.subr.mxu0 0.0
    %2229 = vmatpush1.msra.mxu0 %v2198
    %2230 = vmatprep.subr.mxu0 0.0
    %2231 = vmatpush1.msra.mxu0 %v2199
    %2232 = vmatprep.subr.mxu0 0.0
    %2233 = vmatpush1.msra.mxu0 0.0
    %2234 = vmatprep.subr.mxu0 0.0
    %2235 = vmatpush1.msra.mxu0 0.0
    %2236 = vmatprep.subr.mxu0 0.0
    %2237 = vmatpush1.msra.mxu0 0.0
    %2238 = vmatprep.subr.mxu0 0.0
    %2239 = vmatpush1.msra.mxu0 0.0
    %2240 = vmatprep.subr.mxu0 0.0
    %2241 = vmatpush1.msra.mxu0 0.0
    %2242 = vmatprep.subr.mxu0 0.0
    %2243 = vmatpush1.msra.mxu0 0.0
    %2244 = vmatprep.subr.mxu0 0.0
    %2245 = vmatpush1.msra.mxu0 0.0
    %2246 = vmatprep.subr.mxu0 0.0
    %2247 = vmatpush1.msra.mxu0 0.0
    %2248 = vmatprep.subr.mxu0 0.0
    %2249 = vmatpush1.msra.mxu0 0.0
    %2250 = vmatprep.subr.mxu0 0.0
    %2251 = vmatpush1.msra.mxu0 0.0
    %2252 = vmatprep.subr.mxu0 0.0
    %2253 = vmatpush1.msra.mxu0 0.0
    %2254 = vmatprep.subr.mxu0 0.0
    %2255 = vmatpush1.msra.mxu0 0.0
    %2256 = vmatprep.subr.mxu0 0.0
    %2257 = vmatpush1.msra.mxu0 0.0
    %2258 = vmatprep.subr.mxu0 0.0
    %2259 = vmatpush1.msra.mxu0 0.0
    %2260 = vmatprep.subr.mxu0 0.0
    %2261 = vmatpush1.msra.mxu0 0.0
    %2262 = vmatprep.subr.mxu0 0.0
    %2263 = vmatpush1.msra.mxu0 0.0
    %2264 = vmatprep.mubr.f32.mxu0 0.0
    %2265 = vmatmul.mubr.f32.gmra.mrb[0].mxu0 %v1897
    %v2266 = vpop.f32.mrb[0].mxu0
    %v2267 = vadd.f32 0.0, %v2266
    %v2268 = vpop.f32.mrb[0].mxu0
    %2269 = vdwg.mxu0
    %v2270 = vadd.f32 %v2183, %v2267
    %v2271 = vxor.u32 %v2270, 2147483648
    %v2272 = vmul.f32 %v2271, 1.442695
    %v2273 = vpow.pop %v2272
    %v2274 = vadd.f32 %v2273, 1.0
    %v2275 = vrcp.pop %v2274
    %v2276 = vmul.f32 1.0, %v2275
    %v2277 = vtanh.pop %v2182
    %v2278 = vmul.f32 %v2276, %v2277
    %s2279 = scalar_lea.vmem [#allocation3], 32
    %2280 = vst [vmem:[%s2279] sm:$0xff] %v2278
    %s2281 = smul.u32 5, 4
    %s2282 = smul.addr %s2281, 8
    %s2283 = scalar_lea.vmem [#allocation2], %s2282
    %v2284 = vld [vmem:[%s2283 + $0x8] sm:$0xff]
    %v2285 = vld [vmem:[#allocation6 + $0x8] sm:$0xff]
    %v2286 = vld [vmem:[#allocation6 + $0x28] sm:$0xff]
    %v2287 = vld [vmem:[#allocation6 + $0x48] sm:$0xff]
    %v2288 = vld [vmem:[#allocation6 + $0x68] sm:$0xff]
    %v2289 = vld [vmem:[#allocation6 + $0x88] sm:$0xff]
    %v2290 = vld [vmem:[#allocation6 + $0xa8] sm:$0xff]
    %v2291 = vld [vmem:[#allocation6 + $0xc8] sm:$0xff]
    %v2292 = vld [vmem:[#allocation6 + $0xe8] sm:$0xff]
    %v2293 = vld [vmem:[#allocation6 + $0x108] sm:$0xff]
    %v2294 = vld [vmem:[#allocation6 + $0x128] sm:$0xff]
    %v2295 = vld [vmem:[#allocation6 + $0x148] sm:$0xff]
    %v2296 = vld [vmem:[#allocation6 + $0x168] sm:$0xff]
    %v2297 = vld [vmem:[#allocation6 + $0x188] sm:$0xff]
    %v2298 = vld [vmem:[#allocation6 + $0x1a8] sm:$0xff]
    %v2299 = vld [vmem:[#allocation6 + $0x1c8] sm:$0xff]
    %v2300 = vld [vmem:[#allocation6 + $0x1e8] sm:$0xff]
    %2301 = vmatprep.subr.mxu0 0.0
    %2302 = vmatpush1.msra.mxu0 %v2285
    %2303 = vmatprep.subr.mxu0 0.0
    %2304 = vmatpush1.msra.mxu0 %v2286
    %2305 = vmatprep.subr.mxu0 0.0
    %2306 = vmatpush1.msra.mxu0 %v2287
    %2307 = vmatprep.subr.mxu0 0.0
    %2308 = vmatpush1.msra.mxu0 %v2288
    %2309 = vmatprep.subr.mxu0 0.0
    %2310 = vmatpush1.msra.mxu0 %v2289
    %2311 = vmatprep.subr.mxu0 0.0
    %2312 = vmatpush1.msra.mxu0 %v2290
    %2313 = vmatprep.subr.mxu0 0.0
    %2314 = vmatpush1.msra.mxu0 %v2291
    %2315 = vmatprep.subr.mxu0 0.0
    %2316 = vmatpush1.msra.mxu0 %v2292
    %2317 = vmatprep.subr.mxu0 0.0
    %2318 = vmatpush1.msra.mxu0 %v2293
    %2319 = vmatprep.subr.mxu0 0.0
    %2320 = vmatpush1.msra.mxu0 %v2294
    %2321 = vmatprep.subr.mxu0 0.0
    %2322 = vmatpush1.msra.mxu0 %v2295
    %2323 = vmatprep.subr.mxu0 0.0
    %2324 = vmatpush1.msra.mxu0 %v2296
    %2325 = vmatprep.subr.mxu0 0.0
    %2326 = vmatpush1.msra.mxu0 %v2297
    %2327 = vmatprep.subr.mxu0 0.0
    %2328 = vmatpush1.msra.mxu0 %v2298
    %2329 = vmatprep.subr.mxu0 0.0
    %2330 = vmatpush1.msra.mxu0 %v2299
    %2331 = vmatprep.subr.mxu0 0.0
    %2332 = vmatpush1.msra.mxu0 %v2300
    %2333 = vmatprep.subr.mxu0 0.0
    %2334 = vmatpush1.msra.mxu0 0.0
    %2335 = vmatprep.subr.mxu0 0.0
    %2336 = vmatpush1.msra.mxu0 0.0
    %2337 = vmatprep.subr.mxu0 0.0
    %2338 = vmatpush1.msra.mxu0 0.0
    %2339 = vmatprep.subr.mxu0 0.0
    %2340 = vmatpush1.msra.mxu0 0.0
    %2341 = vmatprep.subr.mxu0 0.0
    %2342 = vmatpush1.msra.mxu0 0.0
    %2343 = vmatprep.subr.mxu0 0.0
    %2344 = vmatpush1.msra.mxu0 0.0
    %2345 = vmatprep.subr.mxu0 0.0
    %2346 = vmatpush1.msra.mxu0 0.0
    %2347 = vmatprep.subr.mxu0 0.0
    %2348 = vmatpush1.msra.mxu0 0.0
    %2349 = vmatprep.subr.mxu0 0.0
    %2350 = vmatpush1.msra.mxu0 0.0
    %2351 = vmatprep.subr.mxu0 0.0
    %2352 = vmatpush1.msra.mxu0 0.0
    %2353 = vmatprep.subr.mxu0 0.0
    %2354 = vmatpush1.msra.mxu0 0.0
    %2355 = vmatprep.subr.mxu0 0.0
    %2356 = vmatpush1.msra.mxu0 0.0
    %2357 = vmatprep.subr.mxu0 0.0
    %2358 = vmatpush1.msra.mxu0 0.0
    %2359 = vmatprep.subr.mxu0 0.0
    %2360 = vmatpush1.msra.mxu0 0.0
    %2361 = vmatprep.subr.mxu0 0.0
    %2362 = vmatpush1.msra.mxu0 0.0
    %2363 = vmatprep.subr.mxu0 0.0
    %2364 = vmatpush1.msra.mxu0 0.0
    %2365 = vmatprep.mubr.f32.mxu0 0.0
    %2366 = vmatmul.mubr.f32.gmra.mrb[0].mxu0 %v2278
    %v2367 = vpop.f32.mrb[0].mxu0
    %v2368 = vadd.f32 0.0, %v2367
    %v2369 = vpop.f32.mrb[0].mxu0
    %2370 = vdwg.mxu0
    %v2371 = vadd.f32 %v2284, %v2368
    %v2372 = vxor.u32 %v2371, 2147483648
    %v2373 = vmul.f32 %v2372, 1.442695
    %v2374 = vpow.pop %v2373
    %v2375 = vadd.f32 %v2374, 1.0
    %v2376 = vrcp.pop %v2375
    %v2377 = vmul.f32 1.0, %v2376
    %v2378 = vmul.f32 %v2377, %v2182
    %v2379 = vld [vmem:[%s2283] sm:$0xff]
    %v2380 = vld [vmem:[#allocation6] sm:$0xff]
    %v2381 = vld [vmem:[#allocation6 + $0x20] sm:$0xff]
    %v2382 = vld [vmem:[#allocation6 + $0x40] sm:$0xff]
    %v2383 = vld [vmem:[#allocation6 + $0x60] sm:$0xff]
    %v2384 = vld [vmem:[#allocation6 + $0x80] sm:$0xff]
    %v2385 = vld [vmem:[#allocation6 + $0xa0] sm:$0xff]
    %v2386 = vld [vmem:[#allocation6 + $0xc0] sm:$0xff]
    %v2387 = vld [vmem:[#allocation6 + $0xe0] sm:$0xff]
    %v2388 = vld [vmem:[#allocation6 + $0x100] sm:$0xff]
    %v2389 = vld [vmem:[#allocation6 + $0x120] sm:$0xff]
    %v2390 = vld [vmem:[#allocation6 + $0x140] sm:$0xff]
    %v2391 = vld [vmem:[#allocation6 + $0x160] sm:$0xff]
    %v2392 = vld [vmem:[#allocation6 + $0x180] sm:$0xff]
    %v2393 = vld [vmem:[#allocation6 + $0x1a0] sm:$0xff]
    %v2394 = vld [vmem:[#allocation6 + $0x1c0] sm:$0xff]
    %v2395 = vld [vmem:[#allocation6 + $0x1e0] sm:$0xff]
    %2396 = vmatprep.subr.mxu0 0.0
    %2397 = vmatpush1.msra.mxu0 %v2380
    %2398 = vmatprep.subr.mxu0 0.0
    %2399 = vmatpush1.msra.mxu0 %v2381
    %2400 = vmatprep.subr.mxu0 0.0
    %2401 = vmatpush1.msra.mxu0 %v2382
    %2402 = vmatprep.subr.mxu0 0.0
    %2403 = vmatpush1.msra.mxu0 %v2383
    %2404 = vmatprep.subr.mxu0 0.0
    %2405 = vmatpush1.msra.mxu0 %v2384
    %2406 = vmatprep.subr.mxu0 0.0
    %2407 = vmatpush1.msra.mxu0 %v2385
    %2408 = vmatprep.subr.mxu0 0.0
    %2409 = vmatpush1.msra.mxu0 %v2386
    %2410 = vmatprep.subr.mxu0 0.0
    %2411 = vmatpush1.msra.mxu0 %v2387
    %2412 = vmatprep.subr.mxu0 0.0
    %2413 = vmatpush1.msra.mxu0 %v2388
    %2414 = vmatprep.subr.mxu0 0.0
    %2415 = vmatpush1.msra.mxu0 %v2389
    %2416 = vmatprep.subr.mxu0 0.0
    %2417 = vmatpush1.msra.mxu0 %v2390
    %2418 = vmatprep.subr.mxu0 0.0
    %2419 = vmatpush1.msra.mxu0 %v2391
    %2420 = vmatprep.subr.mxu0 0.0
    %2421 = vmatpush1.msra.mxu0 %v2392
    %2422 = vmatprep.subr.mxu0 0.0
    %2423 = vmatpush1.msra.mxu0 %v2393
    %2424 = vmatprep.subr.mxu0 0.0
    %2425 = vmatpush1.msra.mxu0 %v2394
    %2426 = vmatprep.subr.mxu0 0.0
    %2427 = vmatpush1.msra.mxu0 %v2395
    %2428 = vmatprep.subr.mxu0 0.0
    %2429 = vmatpush1.msra.mxu0 0.0
    %2430 = vmatprep.subr.mxu0 0.0
    %2431 = vmatpush1.msra.mxu0 0.0
    %2432 = vmatprep.subr.mxu0 0.0
    %2433 = vmatpush1.msra.mxu0 0.0
    %2434 = vmatprep.subr.mxu0 0.0
    %2435 = vmatpush1.msra.mxu0 0.0
    %2436 = vmatprep.subr.mxu0 0.0
    %2437 = vmatpush1.msra.mxu0 0.0
    %2438 = vmatprep.subr.mxu0 0.0
    %2439 = vmatpush1.msra.mxu0 0.0
    %2440 = vmatprep.subr.mxu0 0.0
    %2441 = vmatpush1.msra.mxu0 0.0
    %2442 = vmatprep.subr.mxu0 0.0
    %2443 = vmatpush1.msra.mxu0 0.0
    %2444 = vmatprep.subr.mxu0 0.0
    %2445 = vmatpush1.msra.mxu0 0.0
    %2446 = vmatprep.subr.mxu0 0.0
    %2447 = vmatpush1.msra.mxu0 0.0
    %2448 = vmatprep.subr.mxu0 0.0
    %2449 = vmatpush1.msra.mxu0 0.0
    %2450 = vmatprep.subr.mxu0 0.0
    %2451 = vmatpush1.msra.mxu0 0.0
    %2452 = vmatprep.subr.mxu0 0.0
    %2453 = vmatpush1.msra.mxu0 0.0
    %2454 = vmatprep.subr.mxu0 0.0
    %2455 = vmatpush1.msra.mxu0 0.0
    %2456 = vmatprep.subr.mxu0 0.0
    %2457 = vmatpush1.msra.mxu0 0.0
    %2458 = vmatprep.subr.mxu0 0.0
    %2459 = vmatpush1.msra.mxu0 0.0
    %2460 = vmatprep.mubr.f32.mxu0 0.0
    %2461 = vmatmul.mubr.f32.gmra.mrb[0].mxu0 %v2278
    %v2462 = vpop.f32.mrb[0].mxu0
    %v2463 = vadd.f32 0.0, %v2462
    %v2464 = vpop.f32.mrb[0].mxu0
    %2465 = vdwg.mxu0
    %v2466 = vadd.f32 %v2379, %v2463
    %v2467 = vxor.u32 %v2466, 2147483648
    %v2468 = vmul.f32 %v2467, 1.442695
    %v2469 = vpow.pop %v2468
    %v2470 = vadd.f32 %v2469, 1.0
    %v2471 = vrcp.pop %v2470
    %v2472 = vmul.f32 1.0, %v2471
    %v2473 = vld [vmem:[%s2283 + $0x10] sm:$0xff]
    %v2474 = vld [vmem:[#allocation6 + $0x10] sm:$0xff]
    %v2475 = vld [vmem:[#allocation6 + $0x30] sm:$0xff]
    %v2476 = vld [vmem:[#allocation6 + $0x50] sm:$0xff]
    %v2477 = vld [vmem:[#allocation6 + $0x70] sm:$0xff]
    %v2478 = vld [vmem:[#allocation6 + $0x90] sm:$0xff]
    %v2479 = vld [vmem:[#allocation6 + $0xb0] sm:$0xff]
    %v2480 = vld [vmem:[#allocation6 + $0xd0] sm:$0xff]
    %v2481 = vld [vmem:[#allocation6 + $0xf0] sm:$0xff]
    %v2482 = vld [vmem:[#allocation6 + $0x110] sm:$0xff]
    %v2483 = vld [vmem:[#allocation6 + $0x130] sm:$0xff]
    %v2484 = vld [vmem:[#allocation6 + $0x150] sm:$0xff]
    %v2485 = vld [vmem:[#allocation6 + $0x170] sm:$0xff]
    %v2486 = vld [vmem:[#allocation6 + $0x190] sm:$0xff]
    %v2487 = vld [vmem:[#allocation6 + $0x1b0] sm:$0xff]
    %v2488 = vld [vmem:[#allocation6 + $0x1d0] sm:$0xff]
    %v2489 = vld [vmem:[#allocation6 + $0x1f0] sm:$0xff]
    %2490 = vmatprep.subr.mxu0 0.0
    %2491 = vmatpush1.msra.mxu0 %v2474
    %2492 = vmatprep.subr.mxu0 0.0
    %2493 = vmatpush1.msra.mxu0 %v2475
    %2494 = vmatprep.subr.mxu0 0.0
    %2495 = vmatpush1.msra.mxu0 %v2476
    %2496 = vmatprep.subr.mxu0 0.0
    %2497 = vmatpush1.msra.mxu0 %v2477
    %2498 = vmatprep.subr.mxu0 0.0
    %2499 = vmatpush1.msra.mxu0 %v2478
    %2500 = vmatprep.subr.mxu0 0.0
    %2501 = vmatpush1.msra.mxu0 %v2479
    %2502 = vmatprep.subr.mxu0 0.0
    %2503 = vmatpush1.msra.mxu0 %v2480
    %2504 = vmatprep.subr.mxu0 0.0
    %2505 = vmatpush1.msra.mxu0 %v2481
    %2506 = vmatprep.subr.mxu0 0.0
    %2507 = vmatpush1.msra.mxu0 %v2482
    %2508 = vmatprep.subr.mxu0 0.0
    %2509 = vmatpush1.msra.mxu0 %v2483
    %2510 = vmatprep.subr.mxu0 0.0
    %2511 = vmatpush1.msra.mxu0 %v2484
    %2512 = vmatprep.subr.mxu0 0.0
    %2513 = vmatpush1.msra.mxu0 %v2485
    %2514 = vmatprep.subr.mxu0 0.0
    %2515 = vmatpush1.msra.mxu0 %v2486
    %2516 = vmatprep.subr.mxu0 0.0
    %2517 = vmatpush1.msra.mxu0 %v2487
    %2518 = vmatprep.subr.mxu0 0.0
    %2519 = vmatpush1.msra.mxu0 %v2488
    %2520 = vmatprep.subr.mxu0 0.0
    %2521 = vmatpush1.msra.mxu0 %v2489
    %2522 = vmatprep.subr.mxu0 0.0
    %2523 = vmatpush1.msra.mxu0 0.0
    %2524 = vmatprep.subr.mxu0 0.0
    %2525 = vmatpush1.msra.mxu0 0.0
    %2526 = vmatprep.subr.mxu0 0.0
    %2527 = vmatpush1.msra.mxu0 0.0
    %2528 = vmatprep.subr.mxu0 0.0
    %2529 = vmatpush1.msra.mxu0 0.0
    %2530 = vmatprep.subr.mxu0 0.0
    %2531 = vmatpush1.msra.mxu0 0.0
    %2532 = vmatprep.subr.mxu0 0.0
    %2533 = vmatpush1.msra.mxu0 0.0
    %2534 = vmatprep.subr.mxu0 0.0
    %2535 = vmatpush1.msra.mxu0 0.0
    %2536 = vmatprep.subr.mxu0 0.0
    %2537 = vmatpush1.msra.mxu0 0.0
    %2538 = vmatprep.subr.mxu0 0.0
    %2539 = vmatpush1.msra.mxu0 0.0
    %2540 = vmatprep.subr.mxu0 0.0
    %2541 = vmatpush1.msra.mxu0 0.0
    %2542 = vmatprep.subr.mxu0 0.0
    %2543 = vmatpush1.msra.mxu0 0.0
    %2544 = vmatprep.subr.mxu0 0.0
    %2545 = vmatpush1.msra.mxu0 0.0
    %2546 = vmatprep.subr.mxu0 0.0
    %2547 = vmatpush1.msra.mxu0 0.0
    %2548 = vmatprep.subr.mxu0 0.0
    %2549 = vmatpush1.msra.mxu0 0.0
    %2550 = vmatprep.subr.mxu0 0.0
    %2551 = vmatpush1.msra.mxu0 0.0
    %2552 = vmatprep.subr.mxu0 0.0
    %2553 = vmatpush1.msra.mxu0 0.0
    %2554 = vmatprep.mubr.f32.mxu0 0.0
    %2555 = vmatmul.mubr.f32.gmra.mrb[0].mxu0 %v2278
    %v2556 = vpop.f32.mrb[0].mxu0
    %v2557 = vadd.f32 0.0, %v2556
    %v2558 = vpop.f32.mrb[0].mxu0
    %2559 = vdwg.mxu0
    %v2560 = vadd.f32 %v2473, %v2557
    %v2561 = vtanh.pop %v2560
    %v2562 = vmul.f32 %v2472, %v2561
    %v2563 = vadd.f32 %v2378, %v2562
    %v2564 = vld [vmem:[%s2283 + $0x18] sm:$0xff]
    %v2565 = vld [vmem:[#allocation6 + $0x18] sm:$0xff]
    %v2566 = vld [vmem:[#allocation6 + $0x38] sm:$0xff]
    %v2567 = vld [vmem:[#allocation6 + $0x58] sm:$0xff]
    %v2568 = vld [vmem:[#allocation6 + $0x78] sm:$0xff]
    %v2569 = vld [vmem:[#allocation6 + $0x98] sm:$0xff]
    %v2570 = vld [vmem:[#allocation6 + $0xb8] sm:$0xff]
    %v2571 = vld [vmem:[#allocation6 + $0xd8] sm:$0xff]
    %v2572 = vld [vmem:[#allocation6 + $0xf8] sm:$0xff]
    %v2573 = vld [vmem:[#allocation6 + $0x118] sm:$0xff]
    %v2574 = vld [vmem:[#allocation6 + $0x138] sm:$0xff]
    %v2575 = vld [vmem:[#allocation6 + $0x158] sm:$0xff]
    %v2576 = vld [vmem:[#allocation6 + $0x178] sm:$0xff]
    %v2577 = vld [vmem:[#allocation6 + $0x198] sm:$0xff]
    %v2578 = vld [vmem:[#allocation6 + $0x1b8] sm:$0xff]
    %v2579 = vld [vmem:[#allocation6 + $0x1d8] sm:$0xff]
    %v2580 = vld [vmem:[#allocation6 + $0x1f8] sm:$0xff]
    %2581 = vmatprep.subr.mxu0 0.0
    %2582 = vmatpush1.msra.mxu0 %v2565
    %2583 = vmatprep.subr.mxu0 0.0
    %2584 = vmatpush1.msra.mxu0 %v2566
    %2585 = vmatprep.subr.mxu0 0.0
    %2586 = vmatpush1.msra.mxu0 %v2567
    %2587 = vmatprep.subr.mxu0 0.0
    %2588 = vmatpush1.msra.mxu0 %v2568
    %2589 = vmatprep.subr.mxu0 0.0
    %2590 = vmatpush1.msra.mxu0 %v2569
    %2591 = vmatprep.subr.mxu0 0.0
    %2592 = vmatpush1.msra.mxu0 %v2570
    %2593 = vmatprep.subr.mxu0 0.0
    %2594 = vmatpush1.msra.mxu0 %v2571
    %2595 = vmatprep.subr.mxu0 0.0
    %2596 = vmatpush1.msra.mxu0 %v2572
    %2597 = vmatprep.subr.mxu0 0.0
    %2598 = vmatpush1.msra.mxu0 %v2573
    %2599 = vmatprep.subr.mxu0 0.0
    %2600 = vmatpush1.msra.mxu0 %v2574
    %2601 = vmatprep.subr.mxu0 0.0
    %2602 = vmatpush1.msra.mxu0 %v2575
    %2603 = vmatprep.subr.mxu0 0.0
    %2604 = vmatpush1.msra.mxu0 %v2576
    %2605 = vmatprep.subr.mxu0 0.0
    %2606 = vmatpush1.msra.mxu0 %v2577
    %2607 = vmatprep.subr.mxu0 0.0
    %2608 = vmatpush1.msra.mxu0 %v2578
    %2609 = vmatprep.subr.mxu0 0.0
    %2610 = vmatpush1.msra.mxu0 %v2579
    %2611 = vmatprep.subr.mxu0 0.0
    %2612 = vmatpush1.msra.mxu0 %v2580
    %2613 = vmatprep.subr.mxu0 0.0
    %2614 = vmatpush1.msra.mxu0 0.0
    %2615 = vmatprep.subr.mxu0 0.0
    %2616 = vmatpush1.msra.mxu0 0.0
    %2617 = vmatprep.subr.mxu0 0.0
    %2618 = vmatpush1.msra.mxu0 0.0
    %2619 = vmatprep.subr.mxu0 0.0
    %2620 = vmatpush1.msra.mxu0 0.0
    %2621 = vmatprep.subr.mxu0 0.0
    %2622 = vmatpush1.msra.mxu0 0.0
    %2623 = vmatprep.subr.mxu0 0.0
    %2624 = vmatpush1.msra.mxu0 0.0
    %2625 = vmatprep.subr.mxu0 0.0
    %2626 = vmatpush1.msra.mxu0 0.0
    %2627 = vmatprep.subr.mxu0 0.0
    %2628 = vmatpush1.msra.mxu0 0.0
    %2629 = vmatprep.subr.mxu0 0.0
    %2630 = vmatpush1.msra.mxu0 0.0
    %2631 = vmatprep.subr.mxu0 0.0
    %2632 = vmatpush1.msra.mxu0 0.0
    %2633 = vmatprep.subr.mxu0 0.0
    %2634 = vmatpush1.msra.mxu0 0.0
    %2635 = vmatprep.subr.mxu0 0.0
    %2636 = vmatpush1.msra.mxu0 0.0
    %2637 = vmatprep.subr.mxu0 0.0
    %2638 = vmatpush1.msra.mxu0 0.0
    %2639 = vmatprep.subr.mxu0 0.0
    %2640 = vmatpush1.msra.mxu0 0.0
    %2641 = vmatprep.subr.mxu0 0.0
    %2642 = vmatpush1.msra.mxu0 0.0
    %2643 = vmatprep.subr.mxu0 0.0
    %2644 = vmatpush1.msra.mxu0 0.0
    %2645 = vmatprep.mubr.f32.mxu0 0.0
    %2646 = vmatmul.mubr.f32.gmra.mrb[0].mxu0 %v2278
    %v2647 = vpop.f32.mrb[0].mxu0
    %v2648 = vadd.f32 0.0, %v2647
    %v2649 = vpop.f32.mrb[0].mxu0
    %2650 = vdwg.mxu0
    %v2651 = vadd.f32 %v2564, %v2648
    %v2652 = vxor.u32 %v2651, 2147483648
    %v2653 = vmul.f32 %v2652, 1.442695
    %v2654 = vpow.pop %v2653
    %v2655 = vadd.f32 %v2654, 1.0
    %v2656 = vrcp.pop %v2655
    %v2657 = vmul.f32 1.0, %v2656
    %v2658 = vtanh.pop %v2563
    %v2659 = vmul.f32 %v2657, %v2658
    %s2660 = scalar_lea.vmem [#allocation3], 40
    %2661 = vst [vmem:[%s2660] sm:$0xff] %v2659
    %s2662 = smul.u32 6, 4
    %s2663 = smul.addr %s2662, 8
    %s2664 = scalar_lea.vmem [#allocation2], %s2663
    %v2665 = vld [vmem:[%s2664 + $0x8] sm:$0xff]
    %v2666 = vld [vmem:[#allocation6 + $0x8] sm:$0xff]
    %v2667 = vld [vmem:[#allocation6 + $0x28] sm:$0xff]
    %v2668 = vld [vmem:[#allocation6 + $0x48] sm:$0xff]
    %v2669 = vld [vmem:[#allocation6 + $0x68] sm:$0xff]
    %v2670 = vld [vmem:[#allocation6 + $0x88] sm:$0xff]
    %v2671 = vld [vmem:[#allocation6 + $0xa8] sm:$0xff]
    %v2672 = vld [vmem:[#allocation6 + $0xc8] sm:$0xff]
    %v2673 = vld [vmem:[#allocation6 + $0xe8] sm:$0xff]
    %v2674 = vld [vmem:[#allocation6 + $0x108] sm:$0xff]
    %v2675 = vld [vmem:[#allocation6 + $0x128] sm:$0xff]
    %v2676 = vld [vmem:[#allocation6 + $0x148] sm:$0xff]
    %v2677 = vld [vmem:[#allocation6 + $0x168] sm:$0xff]
    %v2678 = vld [vmem:[#allocation6 + $0x188] sm:$0xff]
    %v2679 = vld [vmem:[#allocation6 + $0x1a8] sm:$0xff]
    %v2680 = vld [vmem:[#allocation6 + $0x1c8] sm:$0xff]
    %v2681 = vld [vmem:[#allocation6 + $0x1e8] sm:$0xff]
    %2682 = vmatprep.subr.mxu0 0.0
    %2683 = vmatpush1.msra.mxu0 %v2666
    %2684 = vmatprep.subr.mxu0 0.0
    %2685 = vmatpush1.msra.mxu0 %v2667
    %2686 = vmatprep.subr.mxu0 0.0
    %2687 = vmatpush1.msra.mxu0 %v2668
    %2688 = vmatprep.subr.mxu0 0.0
    %2689 = vmatpush1.msra.mxu0 %v2669
    %2690 = vmatprep.subr.mxu0 0.0
    %2691 = vmatpush1.msra.mxu0 %v2670
    %2692 = vmatprep.subr.mxu0 0.0
    %2693 = vmatpush1.msra.mxu0 %v2671
    %2694 = vmatprep.subr.mxu0 0.0
    %2695 = vmatpush1.msra.mxu0 %v2672
    %2696 = vmatprep.subr.mxu0 0.0
    %2697 = vmatpush1.msra.mxu0 %v2673
    %2698 = vmatprep.subr.mxu0 0.0
    %2699 = vmatpush1.msra.mxu0 %v2674
    %2700 = vmatprep.subr.mxu0 0.0
    %2701 = vmatpush1.msra.mxu0 %v2675
    %2702 = vmatprep.subr.mxu0 0.0
    %2703 = vmatpush1.msra.mxu0 %v2676
    %2704 = vmatprep.subr.mxu0 0.0
    %2705 = vmatpush1.msra.mxu0 %v2677
    %2706 = vmatprep.subr.mxu0 0.0
    %2707 = vmatpush1.msra.mxu0 %v2678
    %2708 = vmatprep.subr.mxu0 0.0
    %2709 = vmatpush1.msra.mxu0 %v2679
    %2710 = vmatprep.subr.mxu0 0.0
    %2711 = vmatpush1.msra.mxu0 %v2680
    %2712 = vmatprep.subr.mxu0 0.0
    %2713 = vmatpush1.msra.mxu0 %v2681
    %2714 = vmatprep.subr.mxu0 0.0
    %2715 = vmatpush1.msra.mxu0 0.0
    %2716 = vmatprep.subr.mxu0 0.0
    %2717 = vmatpush1.msra.mxu0 0.0
    %2718 = vmatprep.subr.mxu0 0.0
    %2719 = vmatpush1.msra.mxu0 0.0
    %2720 = vmatprep.subr.mxu0 0.0
    %2721 = vmatpush1.msra.mxu0 0.0
    %2722 = vmatprep.subr.mxu0 0.0
    %2723 = vmatpush1.msra.mxu0 0.0
    %2724 = vmatprep.subr.mxu0 0.0
    %2725 = vmatpush1.msra.mxu0 0.0
    %2726 = vmatprep.subr.mxu0 0.0
    %2727 = vmatpush1.msra.mxu0 0.0
    %2728 = vmatprep.subr.mxu0 0.0
    %2729 = vmatpush1.msra.mxu0 0.0
    %2730 = vmatprep.subr.mxu0 0.0
    %2731 = vmatpush1.msra.mxu0 0.0
    %2732 = vmatprep.subr.mxu0 0.0
    %2733 = vmatpush1.msra.mxu0 0.0
    %2734 = vmatprep.subr.mxu0 0.0
    %2735 = vmatpush1.msra.mxu0 0.0
    %2736 = vmatprep.subr.mxu0 0.0
    %2737 = vmatpush1.msra.mxu0 0.0
    %2738 = vmatprep.subr.mxu0 0.0
    %2739 = vmatpush1.msra.mxu0 0.0
    %2740 = vmatprep.subr.mxu0 0.0
    %2741 = vmatpush1.msra.mxu0 0.0
    %2742 = vmatprep.subr.mxu0 0.0
    %2743 = vmatpush1.msra.mxu0 0.0
    %2744 = vmatprep.subr.mxu0 0.0
    %2745 = vmatpush1.msra.mxu0 0.0
    %2746 = vmatprep.mubr.f32.mxu0 0.0
    %2747 = vmatmul.mubr.f32.gmra.mrb[0].mxu0 %v2659
    %v2748 = vpop.f32.mrb[0].mxu0
    %v2749 = vadd.f32 0.0, %v2748
    %v2750 = vpop.f32.mrb[0].mxu0
    %2751 = vdwg.mxu0
    %v2752 = vadd.f32 %v2665, %v2749
    %v2753 = vxor.u32 %v2752, 2147483648
    %v2754 = vmul.f32 %v2753, 1.442695
    %v2755 = vpow.pop %v2754
    %v2756 = vadd.f32 %v2755, 1.0
    %v2757 = vrcp.pop %v2756
    %v2758 = vmul.f32 1.0, %v2757
    %v2759 = vmul.f32 %v2758, %v2563
    %v2760 = vld [vmem:[%s2664] sm:$0xff]
    %v2761 = vld [vmem:[#allocation6] sm:$0xff]
    %v2762 = vld [vmem:[#allocation6 + $0x20] sm:$0xff]
    %v2763 = vld [vmem:[#allocation6 + $0x40] sm:$0xff]
    %v2764 = vld [vmem:[#allocation6 + $0x60] sm:$0xff]
    %v2765 = vld [vmem:[#allocation6 + $0x80] sm:$0xff]
    %v2766 = vld [vmem:[#allocation6 + $0xa0] sm:$0xff]
    %v2767 = vld [vmem:[#allocation6 + $0xc0] sm:$0xff]
    %v2768 = vld [vmem:[#allocation6 + $0xe0] sm:$0xff]
    %v2769 = vld [vmem:[#allocation6 + $0x100] sm:$0xff]
    %v2770 = vld [vmem:[#allocation6 + $0x120] sm:$0xff]
    %v2771 = vld [vmem:[#allocation6 + $0x140] sm:$0xff]
    %v2772 = vld [vmem:[#allocation6 + $0x160] sm:$0xff]
    %v2773 = vld [vmem:[#allocation6 + $0x180] sm:$0xff]
    %v2774 = vld [vmem:[#allocation6 + $0x1a0] sm:$0xff]
    %v2775 = vld [vmem:[#allocation6 + $0x1c0] sm:$0xff]
    %v2776 = vld [vmem:[#allocation6 + $0x1e0] sm:$0xff]
    %2777 = vmatprep.subr.mxu0 0.0
    %2778 = vmatpush1.msra.mxu0 %v2761
    %2779 = vmatprep.subr.mxu0 0.0
    %2780 = vmatpush1.msra.mxu0 %v2762
    %2781 = vmatprep.subr.mxu0 0.0
    %2782 = vmatpush1.msra.mxu0 %v2763
    %2783 = vmatprep.subr.mxu0 0.0
    %2784 = vmatpush1.msra.mxu0 %v2764
    %2785 = vmatprep.subr.mxu0 0.0
    %2786 = vmatpush1.msra.mxu0 %v2765
    %2787 = vmatprep.subr.mxu0 0.0
    %2788 = vmatpush1.msra.mxu0 %v2766
    %2789 = vmatprep.subr.mxu0 0.0
    %2790 = vmatpush1.msra.mxu0 %v2767
    %2791 = vmatprep.subr.mxu0 0.0
    %2792 = vmatpush1.msra.mxu0 %v2768
    %2793 = vmatprep.subr.mxu0 0.0
    %2794 = vmatpush1.msra.mxu0 %v2769
    %2795 = vmatprep.subr.mxu0 0.0
    %2796 = vmatpush1.msra.mxu0 %v2770
    %2797 = vmatprep.subr.mxu0 0.0
    %2798 = vmatpush1.msra.mxu0 %v2771
    %2799 = vmatprep.subr.mxu0 0.0
    %2800 = vmatpush1.msra.mxu0 %v2772
    %2801 = vmatprep.subr.mxu0 0.0
    %2802 = vmatpush1.msra.mxu0 %v2773
    %2803 = vmatprep.subr.mxu0 0.0
    %2804 = vmatpush1.msra.mxu0 %v2774
    %2805 = vmatprep.subr.mxu0 0.0
    %2806 = vmatpush1.msra.mxu0 %v2775
    %2807 = vmatprep.subr.mxu0 0.0
    %2808 = vmatpush1.msra.mxu0 %v2776
    %2809 = vmatprep.subr.mxu0 0.0
    %2810 = vmatpush1.msra.mxu0 0.0
    %2811 = vmatprep.subr.mxu0 0.0
    %2812 = vmatpush1.msra.mxu0 0.0
    %2813 = vmatprep.subr.mxu0 0.0
    %2814 = vmatpush1.msra.mxu0 0.0
    %2815 = vmatprep.subr.mxu0 0.0
    %2816 = vmatpush1.msra.mxu0 0.0
    %2817 = vmatprep.subr.mxu0 0.0
    %2818 = vmatpush1.msra.mxu0 0.0
    %2819 = vmatprep.subr.mxu0 0.0
    %2820 = vmatpush1.msra.mxu0 0.0
    %2821 = vmatprep.subr.mxu0 0.0
    %2822 = vmatpush1.msra.mxu0 0.0
    %2823 = vmatprep.subr.mxu0 0.0
    %2824 = vmatpush1.msra.mxu0 0.0
    %2825 = vmatprep.subr.mxu0 0.0
    %2826 = vmatpush1.msra.mxu0 0.0
    %2827 = vmatprep.subr.mxu0 0.0
    %2828 = vmatpush1.msra.mxu0 0.0
    %2829 = vmatprep.subr.mxu0 0.0
    %2830 = vmatpush1.msra.mxu0 0.0
    %2831 = vmatprep.subr.mxu0 0.0
    %2832 = vmatpush1.msra.mxu0 0.0
    %2833 = vmatprep.subr.mxu0 0.0
    %2834 = vmatpush1.msra.mxu0 0.0
    %2835 = vmatprep.subr.mxu0 0.0
    %2836 = vmatpush1.msra.mxu0 0.0
    %2837 = vmatprep.subr.mxu0 0.0
    %2838 = vmatpush1.msra.mxu0 0.0
    %2839 = vmatprep.subr.mxu0 0.0
    %2840 = vmatpush1.msra.mxu0 0.0
    %2841 = vmatprep.mubr.f32.mxu0 0.0
    %2842 = vmatmul.mubr.f32.gmra.mrb[0].mxu0 %v2659
    %v2843 = vpop.f32.mrb[0].mxu0
    %v2844 = vadd.f32 0.0, %v2843
    %v2845 = vpop.f32.mrb[0].mxu0
    %2846 = vdwg.mxu0
    %v2847 = vadd.f32 %v2760, %v2844
    %v2848 = vxor.u32 %v2847, 2147483648
    %v2849 = vmul.f32 %v2848, 1.442695
    %v2850 = vpow.pop %v2849
    %v2851 = vadd.f32 %v2850, 1.0
    %v2852 = vrcp.pop %v2851
    %v2853 = vmul.f32 1.0, %v2852
    %v2854 = vld [vmem:[%s2664 + $0x10] sm:$0xff]
    %v2855 = vld [vmem:[#allocation6 + $0x10] sm:$0xff]
    %v2856 = vld [vmem:[#allocation6 + $0x30] sm:$0xff]
    %v2857 = vld [vmem:[#allocation6 + $0x50] sm:$0xff]
    %v2858 = vld [vmem:[#allocation6 + $0x70] sm:$0xff]
    %v2859 = vld [vmem:[#allocation6 + $0x90] sm:$0xff]
    %v2860 = vld [vmem:[#allocation6 + $0xb0] sm:$0xff]
    %v2861 = vld [vmem:[#allocation6 + $0xd0] sm:$0xff]
    %v2862 = vld [vmem:[#allocation6 + $0xf0] sm:$0xff]
    %v2863 = vld [vmem:[#allocation6 + $0x110] sm:$0xff]
    %v2864 = vld [vmem:[#allocation6 + $0x130] sm:$0xff]
    %v2865 = vld [vmem:[#allocation6 + $0x150] sm:$0xff]
    %v2866 = vld [vmem:[#allocation6 + $0x170] sm:$0xff]
    %v2867 = vld [vmem:[#allocation6 + $0x190] sm:$0xff]
    %v2868 = vld [vmem:[#allocation6 + $0x1b0] sm:$0xff]
    %v2869 = vld [vmem:[#allocation6 + $0x1d0] sm:$0xff]
    %v2870 = vld [vmem:[#allocation6 + $0x1f0] sm:$0xff]
    %2871 = vmatprep.subr.mxu0 0.0
    %2872 = vmatpush1.msra.mxu0 %v2855
    %2873 = vmatprep.subr.mxu0 0.0
    %2874 = vmatpush1.msra.mxu0 %v2856
    %2875 = vmatprep.subr.mxu0 0.0
    %2876 = vmatpush1.msra.mxu0 %v2857
    %2877 = vmatprep.subr.mxu0 0.0
    %2878 = vmatpush1.msra.mxu0 %v2858
    %2879 = vmatprep.subr.mxu0 0.0
    %2880 = vmatpush1.msra.mxu0 %v2859
    %2881 = vmatprep.subr.mxu0 0.0
    %2882 = vmatpush1.msra.mxu0 %v2860
    %2883 = vmatprep.subr.mxu0 0.0
    %2884 = vmatpush1.msra.mxu0 %v2861
    %2885 = vmatprep.subr.mxu0 0.0
    %2886 = vmatpush1.msra.mxu0 %v2862
    %2887 = vmatprep.subr.mxu0 0.0
    %2888 = vmatpush1.msra.mxu0 %v2863
    %2889 = vmatprep.subr.mxu0 0.0
    %2890 = vmatpush1.msra.mxu0 %v2864
    %2891 = vmatprep.subr.mxu0 0.0
    %2892 = vmatpush1.msra.mxu0 %v2865
    %2893 = vmatprep.subr.mxu0 0.0
    %2894 = vmatpush1.msra.mxu0 %v2866
    %2895 = vmatprep.subr.mxu0 0.0
    %2896 = vmatpush1.msra.mxu0 %v2867
    %2897 = vmatprep.subr.mxu0 0.0
    %2898 = vmatpush1.msra.mxu0 %v2868
    %2899 = vmatprep.subr.mxu0 0.0
    %2900 = vmatpush1.msra.mxu0 %v2869
    %2901 = vmatprep.subr.mxu0 0.0
    %2902 = vmatpush1.msra.mxu0 %v2870
    %2903 = vmatprep.subr.mxu0 0.0
    %2904 = vmatpush1.msra.mxu0 0.0
    %2905 = vmatprep.subr.mxu0 0.0
    %2906 = vmatpush1.msra.mxu0 0.0
    %2907 = vmatprep.subr.mxu0 0.0
    %2908 = vmatpush1.msra.mxu0 0.0
    %2909 = vmatprep.subr.mxu0 0.0
    %2910 = vmatpush1.msra.mxu0 0.0
    %2911 = vmatprep.subr.mxu0 0.0
    %2912 = vmatpush1.msra.mxu0 0.0
    %2913 = vmatprep.subr.mxu0 0.0
    %2914 = vmatpush1.msra.mxu0 0.0
    %2915 = vmatprep.subr.mxu0 0.0
    %2916 = vmatpush1.msra.mxu0 0.0
    %2917 = vmatprep.subr.mxu0 0.0
    %2918 = vmatpush1.msra.mxu0 0.0
    %2919 = vmatprep.subr.mxu0 0.0
    %2920 = vmatpush1.msra.mxu0 0.0
    %2921 = vmatprep.subr.mxu0 0.0
    %2922 = vmatpush1.msra.mxu0 0.0
    %2923 = vmatprep.subr.mxu0 0.0
    %2924 = vmatpush1.msra.mxu0 0.0
    %2925 = vmatprep.subr.mxu0 0.0
    %2926 = vmatpush1.msra.mxu0 0.0
    %2927 = vmatprep.subr.mxu0 0.0
    %2928 = vmatpush1.msra.mxu0 0.0
    %2929 = vmatprep.subr.mxu0 0.0
    %2930 = vmatpush1.msra.mxu0 0.0
    %2931 = vmatprep.subr.mxu0 0.0
    %2932 = vmatpush1.msra.mxu0 0.0
    %2933 = vmatprep.subr.mxu0 0.0
    %2934 = vmatpush1.msra.mxu0 0.0
    %2935 = vmatprep.mubr.f32.mxu0 0.0
    %2936 = vmatmul.mubr.f32.gmra.mrb[0].mxu0 %v2659
    %v2937 = vpop.f32.mrb[0].mxu0
    %v2938 = vadd.f32 0.0, %v2937
    %v2939 = vpop.f32.mrb[0].mxu0
    %2940 = vdwg.mxu0
    %v2941 = vadd.f32 %v2854, %v2938
    %v2942 = vtanh.pop %v2941
    %v2943 = vmul.f32 %v2853, %v2942
    %v2944 = vadd.f32 %v2759, %v2943
    %v2945 = vld [vmem:[%s2664 + $0x18] sm:$0xff]
    %v2946 = vld [vmem:[#allocation6 + $0x18] sm:$0xff]
    %v2947 = vld [vmem:[#allocation6 + $0x38] sm:$0xff]
    %v2948 = vld [vmem:[#allocation6 + $0x58] sm:$0xff]
    %v2949 = vld [vmem:[#allocation6 + $0x78] sm:$0xff]
    %v2950 = vld [vmem:[#allocation6 + $0x98] sm:$0xff]
    %v2951 = vld [vmem:[#allocation6 + $0xb8] sm:$0xff]
    %v2952 = vld [vmem:[#allocation6 + $0xd8] sm:$0xff]
    %v2953 = vld [vmem:[#allocation6 + $0xf8] sm:$0xff]
    %v2954 = vld [vmem:[#allocation6 + $0x118] sm:$0xff]
    %v2955 = vld [vmem:[#allocation6 + $0x138] sm:$0xff]
    %v2956 = vld [vmem:[#allocation6 + $0x158] sm:$0xff]
    %v2957 = vld [vmem:[#allocation6 + $0x178] sm:$0xff]
    %v2958 = vld [vmem:[#allocation6 + $0x198] sm:$0xff]
    %v2959 = vld [vmem:[#allocation6 + $0x1b8] sm:$0xff]
    %v2960 = vld [vmem:[#allocation6 + $0x1d8] sm:$0xff]
    %v2961 = vld [vmem:[#allocation6 + $0x1f8] sm:$0xff]
    %2962 = vmatprep.subr.mxu0 0.0
    %2963 = vmatpush1.msra.mxu0 %v2946
    %2964 = vmatprep.subr.mxu0 0.0
    %2965 = vmatpush1.msra.mxu0 %v2947
    %2966 = vmatprep.subr.mxu0 0.0
    %2967 = vmatpush1.msra.mxu0 %v2948
    %2968 = vmatprep.subr.mxu0 0.0
    %2969 = vmatpush1.msra.mxu0 %v2949
    %2970 = vmatprep.subr.mxu0 0.0
    %2971 = vmatpush1.msra.mxu0 %v2950
    %2972 = vmatprep.subr.mxu0 0.0
    %2973 = vmatpush1.msra.mxu0 %v2951
    %2974 = vmatprep.subr.mxu0 0.0
    %2975 = vmatpush1.msra.mxu0 %v2952
    %2976 = vmatprep.subr.mxu0 0.0
    %2977 = vmatpush1.msra.mxu0 %v2953
    %2978 = vmatprep.subr.mxu0 0.0
    %2979 = vmatpush1.msra.mxu0 %v2954
    %2980 = vmatprep.subr.mxu0 0.0
    %2981 = vmatpush1.msra.mxu0 %v2955
    %2982 = vmatprep.subr.mxu0 0.0
    %2983 = vmatpush1.msra.mxu0 %v2956
    %2984 = vmatprep.subr.mxu0 0.0
    %2985 = vmatpush1.msra.mxu0 %v2957
    %2986 = vmatprep.subr.mxu0 0.0
    %2987 = vmatpush1.msra.mxu0 %v2958
    %2988 = vmatprep.subr.mxu0 0.0
    %2989 = vmatpush1.msra.mxu0 %v2959
    %2990 = vmatprep.subr.mxu0 0.0
    %2991 = vmatpush1.msra.mxu0 %v2960
    %2992 = vmatprep.subr.mxu0 0.0
    %2993 = vmatpush1.msra.mxu0 %v2961
    %2994 = vmatprep.subr.mxu0 0.0
    %2995 = vmatpush1.msra.mxu0 0.0
    %2996 = vmatprep.subr.mxu0 0.0
    %2997 = vmatpush1.msra.mxu0 0.0
    %2998 = vmatprep.subr.mxu0 0.0
    %2999 = vmatpush1.msra.mxu0 0.0
    %3000 = vmatprep.subr.mxu0 0.0
    %3001 = vmatpush1.msra.mxu0 0.0
    %3002 = vmatprep.subr.mxu0 0.0
    %3003 = vmatpush1.msra.mxu0 0.0
    %3004 = vmatprep.subr.mxu0 0.0
    %3005 = vmatpush1.msra.mxu0 0.0
    %3006 = vmatprep.subr.mxu0 0.0
    %3007 = vmatpush1.msra.mxu0 0.0
    %3008 = vmatprep.subr.mxu0 0.0
    %3009 = vmatpush1.msra.mxu0 0.0
    %3010 = vmatprep.subr.mxu0 0.0
    %3011 = vmatpush1.msra.mxu0 0.0
    %3012 = vmatprep.subr.mxu0 0.0
    %3013 = vmatpush1.msra.mxu0 0.0
    %3014 = vmatprep.subr.mxu0 0.0
    %3015 = vmatpush1.msra.mxu0 0.0
    %3016 = vmatprep.subr.mxu0 0.0
    %3017 = vmatpush1.msra.mxu0 0.0
    %3018 = vmatprep.subr.mxu0 0.0
    %3019 = vmatpush1.msra.mxu0 0.0
    %3020 = vmatprep.subr.mxu0 0.0
    %3021 = vmatpush1.msra.mxu0 0.0
    %3022 = vmatprep.subr.mxu0 0.0
    %3023 = vmatpush1.msra.mxu0 0.0
    %3024 = vmatprep.subr.mxu0 0.0
    %3025 = vmatpush1.msra.mxu0 0.0
    %3026 = vmatprep.mubr.f32.mxu0 0.0
    %3027 = vmatmul.mubr.f32.gmra.mrb[0].mxu0 %v2659
    %v3028 = vpop.f32.mrb[0].mxu0
    %v3029 = vadd.f32 0.0, %v3028
    %v3030 = vpop.f32.mrb[0].mxu0
    %3031 = vdwg.mxu0
    %v3032 = vadd.f32 %v2945, %v3029
    %v3033 = vxor.u32 %v3032, 2147483648
    %v3034 = vmul.f32 %v3033, 1.442695
    %v3035 = vpow.pop %v3034
    %v3036 = vadd.f32 %v3035, 1.0
    %v3037 = vrcp.pop %v3036
    %v3038 = vmul.f32 1.0, %v3037
    %v3039 = vtanh.pop %v2944
    %v3040 = vmul.f32 %v3038, %v3039
    %s3041 = scalar_lea.vmem [#allocation3], 48
    %3042 = vst [vmem:[%s3041] sm:$0xff] %v3040
    %s3043 = smul.u32 7, 4
    %s3044 = smul.addr %s3043, 8
    %s3045 = scalar_lea.vmem [#allocation2], %s3044
    %v3046 = vld [vmem:[%s3045 + $0x8] sm:$0xff]
    %v3047 = vld [vmem:[#allocation6 + $0x8] sm:$0xff]
    %v3048 = vld [vmem:[#allocation6 + $0x28] sm:$0xff]
    %v3049 = vld [vmem:[#allocation6 + $0x48] sm:$0xff]
    %v3050 = vld [vmem:[#allocation6 + $0x68] sm:$0xff]
    %v3051 = vld [vmem:[#allocation6 + $0x88] sm:$0xff]
    %v3052 = vld [vmem:[#allocation6 + $0xa8] sm:$0xff]
    %v3053 = vld [vmem:[#allocation6 + $0xc8] sm:$0xff]
    %v3054 = vld [vmem:[#allocation6 + $0xe8] sm:$0xff]
    %v3055 = vld [vmem:[#allocation6 + $0x108] sm:$0xff]
    %v3056 = vld [vmem:[#allocation6 + $0x128] sm:$0xff]
    %v3057 = vld [vmem:[#allocation6 + $0x148] sm:$0xff]
    %v3058 = vld [vmem:[#allocation6 + $0x168] sm:$0xff]
    %v3059 = vld [vmem:[#allocation6 + $0x188] sm:$0xff]
    %v3060 = vld [vmem:[#allocation6 + $0x1a8] sm:$0xff]
    %v3061 = vld [vmem:[#allocation6 + $0x1c8] sm:$0xff]
    %v3062 = vld [vmem:[#allocation6 + $0x1e8] sm:$0xff]
    %3063 = vmatprep.subr.mxu0 0.0
    %3064 = vmatpush1.msra.mxu0 %v3047
    %3065 = vmatprep.subr.mxu0 0.0
    %3066 = vmatpush1.msra.mxu0 %v3048
    %3067 = vmatprep.subr.mxu0 0.0
    %3068 = vmatpush1.msra.mxu0 %v3049
    %3069 = vmatprep.subr.mxu0 0.0
    %3070 = vmatpush1.msra.mxu0 %v3050
    %3071 = vmatprep.subr.mxu0 0.0
    %3072 = vmatpush1.msra.mxu0 %v3051
    %3073 = vmatprep.subr.mxu0 0.0
    %3074 = vmatpush1.msra.mxu0 %v3052
    %3075 = vmatprep.subr.mxu0 0.0
    %3076 = vmatpush1.msra.mxu0 %v3053
    %3077 = vmatprep.subr.mxu0 0.0
    %3078 = vmatpush1.msra.mxu0 %v3054
    %3079 = vmatprep.subr.mxu0 0.0
    %3080 = vmatpush1.msra.mxu0 %v3055
    %3081 = vmatprep.subr.mxu0 0.0
    %3082 = vmatpush1.msra.mxu0 %v3056
    %3083 = vmatprep.subr.mxu0 0.0
    %3084 = vmatpush1.msra.mxu0 %v3057
    %3085 = vmatprep.subr.mxu0 0.0
    %3086 = vmatpush1.msra.mxu0 %v3058
    %3087 = vmatprep.subr.mxu0 0.0
    %3088 = vmatpush1.msra.mxu0 %v3059
    %3089 = vmatprep.subr.mxu0 0.0
    %3090 = vmatpush1.msra.mxu0 %v3060
    %3091 = vmatprep.subr.mxu0 0.0
    %3092 = vmatpush1.msra.mxu0 %v3061
    %3093 = vmatprep.subr.mxu0 0.0
    %3094 = vmatpush1.msra.mxu0 %v3062
    %3095 = vmatprep.subr.mxu0 0.0
    %3096 = vmatpush1.msra.mxu0 0.0
    %3097 = vmatprep.subr.mxu0 0.0
    %3098 = vmatpush1.msra.mxu0 0.0
    %3099 = vmatprep.subr.mxu0 0.0
    %3100 = vmatpush1.msra.mxu0 0.0
    %3101 = vmatprep.subr.mxu0 0.0
    %3102 = vmatpush1.msra.mxu0 0.0
    %3103 = vmatprep.subr.mxu0 0.0
    %3104 = vmatpush1.msra.mxu0 0.0
    %3105 = vmatprep.subr.mxu0 0.0
    %3106 = vmatpush1.msra.mxu0 0.0
    %3107 = vmatprep.subr.mxu0 0.0
    %3108 = vmatpush1.msra.mxu0 0.0
    %3109 = vmatprep.subr.mxu0 0.0
    %3110 = vmatpush1.msra.mxu0 0.0
    %3111 = vmatprep.subr.mxu0 0.0
    %3112 = vmatpush1.msra.mxu0 0.0
    %3113 = vmatprep.subr.mxu0 0.0
    %3114 = vmatpush1.msra.mxu0 0.0
    %3115 = vmatprep.subr.mxu0 0.0
    %3116 = vmatpush1.msra.mxu0 0.0
    %3117 = vmatprep.subr.mxu0 0.0
    %3118 = vmatpush1.msra.mxu0 0.0
    %3119 = vmatprep.subr.mxu0 0.0
    %3120 = vmatpush1.msra.mxu0 0.0
    %3121 = vmatprep.subr.mxu0 0.0
    %3122 = vmatpush1.msra.mxu0 0.0
    %3123 = vmatprep.subr.mxu0 0.0
    %3124 = vmatpush1.msra.mxu0 0.0
    %3125 = vmatprep.subr.mxu0 0.0
    %3126 = vmatpush1.msra.mxu0 0.0
    %3127 = vmatprep.mubr.f32.mxu0 0.0
    %3128 = vmatmul.mubr.f32.gmra.mrb[0].mxu0 %v3040
    %v3129 = vpop.f32.mrb[0].mxu0
    %v3130 = vadd.f32 0.0, %v3129
    %v3131 = vpop.f32.mrb[0].mxu0
    %3132 = vdwg.mxu0
    %v3133 = vadd.f32 %v3046, %v3130
    %v3134 = vxor.u32 %v3133, 2147483648
    %v3135 = vmul.f32 %v3134, 1.442695
    %v3136 = vpow.pop %v3135
    %v3137 = vadd.f32 %v3136, 1.0
    %v3138 = vrcp.pop %v3137
    %v3139 = vmul.f32 1.0, %v3138
    %v3140 = vmul.f32 %v3139, %v2944
    %v3141 = vld [vmem:[%s3045] sm:$0xff]
    %v3142 = vld [vmem:[#allocation6] sm:$0xff]
    %v3143 = vld [vmem:[#allocation6 + $0x20] sm:$0xff]
    %v3144 = vld [vmem:[#allocation6 + $0x40] sm:$0xff]
    %v3145 = vld [vmem:[#allocation6 + $0x60] sm:$0xff]
    %v3146 = vld [vmem:[#allocation6 + $0x80] sm:$0xff]
    %v3147 = vld [vmem:[#allocation6 + $0xa0] sm:$0xff]
    %v3148 = vld [vmem:[#allocation6 + $0xc0] sm:$0xff]
    %v3149 = vld [vmem:[#allocation6 + $0xe0] sm:$0xff]
    %v3150 = vld [vmem:[#allocation6 + $0x100] sm:$0xff]
    %v3151 = vld [vmem:[#allocation6 + $0x120] sm:$0xff]
    %v3152 = vld [vmem:[#allocation6 + $0x140] sm:$0xff]
    %v3153 = vld [vmem:[#allocation6 + $0x160] sm:$0xff]
    %v3154 = vld [vmem:[#allocation6 + $0x180] sm:$0xff]
    %v3155 = vld [vmem:[#allocation6 + $0x1a0] sm:$0xff]
    %v3156 = vld [vmem:[#allocation6 + $0x1c0] sm:$0xff]
    %v3157 = vld [vmem:[#allocation6 + $0x1e0] sm:$0xff]
    %3158 = vmatprep.subr.mxu0 0.0
    %3159 = vmatpush1.msra.mxu0 %v3142
    %3160 = vmatprep.subr.mxu0 0.0
    %3161 = vmatpush1.msra.mxu0 %v3143
    %3162 = vmatprep.subr.mxu0 0.0
    %3163 = vmatpush1.msra.mxu0 %v3144
    %3164 = vmatprep.subr.mxu0 0.0
    %3165 = vmatpush1.msra.mxu0 %v3145
    %3166 = vmatprep.subr.mxu0 0.0
    %3167 = vmatpush1.msra.mxu0 %v3146
    %3168 = vmatprep.subr.mxu0 0.0
    %3169 = vmatpush1.msra.mxu0 %v3147
    %3170 = vmatprep.subr.mxu0 0.0
    %3171 = vmatpush1.msra.mxu0 %v3148
    %3172 = vmatprep.subr.mxu0 0.0
    %3173 = vmatpush1.msra.mxu0 %v3149
    %3174 = vmatprep.subr.mxu0 0.0
    %3175 = vmatpush1.msra.mxu0 %v3150
    %3176 = vmatprep.subr.mxu0 0.0
    %3177 = vmatpush1.msra.mxu0 %v3151
    %3178 = vmatprep.subr.mxu0 0.0
    %3179 = vmatpush1.msra.mxu0 %v3152
    %3180 = vmatprep.subr.mxu0 0.0
    %3181 = vmatpush1.msra.mxu0 %v3153
    %3182 = vmatprep.subr.mxu0 0.0
    %3183 = vmatpush1.msra.mxu0 %v3154
    %3184 = vmatprep.subr.mxu0 0.0
    %3185 = vmatpush1.msra.mxu0 %v3155
    %3186 = vmatprep.subr.mxu0 0.0
    %3187 = vmatpush1.msra.mxu0 %v3156
    %3188 = vmatprep.subr.mxu0 0.0
    %3189 = vmatpush1.msra.mxu0 %v3157
    %3190 = vmatprep.subr.mxu0 0.0
    %3191 = vmatpush1.msra.mxu0 0.0
    %3192 = vmatprep.subr.mxu0 0.0
    %3193 = vmatpush1.msra.mxu0 0.0
    %3194 = vmatprep.subr.mxu0 0.0
    %3195 = vmatpush1.msra.mxu0 0.0
    %3196 = vmatprep.subr.mxu0 0.0
    %3197 = vmatpush1.msra.mxu0 0.0
    %3198 = vmatprep.subr.mxu0 0.0
    %3199 = vmatpush1.msra.mxu0 0.0
    %3200 = vmatprep.subr.mxu0 0.0
    %3201 = vmatpush1.msra.mxu0 0.0
    %3202 = vmatprep.subr.mxu0 0.0
    %3203 = vmatpush1.msra.mxu0 0.0
    %3204 = vmatprep.subr.mxu0 0.0
    %3205 = vmatpush1.msra.mxu0 0.0
    %3206 = vmatprep.subr.mxu0 0.0
    %3207 = vmatpush1.msra.mxu0 0.0
    %3208 = vmatprep.subr.mxu0 0.0
    %3209 = vmatpush1.msra.mxu0 0.0
    %3210 = vmatprep.subr.mxu0 0.0
    %3211 = vmatpush1.msra.mxu0 0.0
    %3212 = vmatprep.subr.mxu0 0.0
    %3213 = vmatpush1.msra.mxu0 0.0
    %3214 = vmatprep.subr.mxu0 0.0
    %3215 = vmatpush1.msra.mxu0 0.0
    %3216 = vmatprep.subr.mxu0 0.0
    %3217 = vmatpush1.msra.mxu0 0.0
    %3218 = vmatprep.subr.mxu0 0.0
    %3219 = vmatpush1.msra.mxu0 0.0
    %3220 = vmatprep.subr.mxu0 0.0
    %3221 = vmatpush1.msra.mxu0 0.0
    %3222 = vmatprep.mubr.f32.mxu0 0.0
    %3223 = vmatmul.mubr.f32.gmra.mrb[0].mxu0 %v3040
    %v3224 = vpop.f32.mrb[0].mxu0
    %v3225 = vadd.f32 0.0, %v3224
    %v3226 = vpop.f32.mrb[0].mxu0
    %3227 = vdwg.mxu0
    %v3228 = vadd.f32 %v3141, %v3225
    %v3229 = vxor.u32 %v3228, 2147483648
    %v3230 = vmul.f32 %v3229, 1.442695
    %v3231 = vpow.pop %v3230
    %v3232 = vadd.f32 %v3231, 1.0
    %v3233 = vrcp.pop %v3232
    %v3234 = vmul.f32 1.0, %v3233
    %v3235 = vld [vmem:[%s3045 + $0x10] sm:$0xff]
    %v3236 = vld [vmem:[#allocation6 + $0x10] sm:$0xff]
    %v3237 = vld [vmem:[#allocation6 + $0x30] sm:$0xff]
    %v3238 = vld [vmem:[#allocation6 + $0x50] sm:$0xff]
    %v3239 = vld [vmem:[#allocation6 + $0x70] sm:$0xff]
    %v3240 = vld [vmem:[#allocation6 + $0x90] sm:$0xff]
    %v3241 = vld [vmem:[#allocation6 + $0xb0] sm:$0xff]
    %v3242 = vld [vmem:[#allocation6 + $0xd0] sm:$0xff]
    %v3243 = vld [vmem:[#allocation6 + $0xf0] sm:$0xff]
    %v3244 = vld [vmem:[#allocation6 + $0x110] sm:$0xff]
    %v3245 = vld [vmem:[#allocation6 + $0x130] sm:$0xff]
    %v3246 = vld [vmem:[#allocation6 + $0x150] sm:$0xff]
    %v3247 = vld [vmem:[#allocation6 + $0x170] sm:$0xff]
    %v3248 = vld [vmem:[#allocation6 + $0x190] sm:$0xff]
    %v3249 = vld [vmem:[#allocation6 + $0x1b0] sm:$0xff]
    %v3250 = vld [vmem:[#allocation6 + $0x1d0] sm:$0xff]
    %v3251 = vld [vmem:[#allocation6 + $0x1f0] sm:$0xff]
    %3252 = vmatprep.subr.mxu0 0.0
    %3253 = vmatpush1.msra.mxu0 %v3236
    %3254 = vmatprep.subr.mxu0 0.0
    %3255 = vmatpush1.msra.mxu0 %v3237
    %3256 = vmatprep.subr.mxu0 0.0
    %3257 = vmatpush1.msra.mxu0 %v3238
    %3258 = vmatprep.subr.mxu0 0.0
    %3259 = vmatpush1.msra.mxu0 %v3239
    %3260 = vmatprep.subr.mxu0 0.0
    %3261 = vmatpush1.msra.mxu0 %v3240
    %3262 = vmatprep.subr.mxu0 0.0
    %3263 = vmatpush1.msra.mxu0 %v3241
    %3264 = vmatprep.subr.mxu0 0.0
    %3265 = vmatpush1.msra.mxu0 %v3242
    %3266 = vmatprep.subr.mxu0 0.0
    %3267 = vmatpush1.msra.mxu0 %v3243
    %3268 = vmatprep.subr.mxu0 0.0
    %3269 = vmatpush1.msra.mxu0 %v3244
    %3270 = vmatprep.subr.mxu0 0.0
    %3271 = vmatpush1.msra.mxu0 %v3245
    %3272 = vmatprep.subr.mxu0 0.0
    %3273 = vmatpush1.msra.mxu0 %v3246
    %3274 = vmatprep.subr.mxu0 0.0
    %3275 = vmatpush1.msra.mxu0 %v3247
    %3276 = vmatprep.subr.mxu0 0.0
    %3277 = vmatpush1.msra.mxu0 %v3248
    %3278 = vmatprep.subr.mxu0 0.0
    %3279 = vmatpush1.msra.mxu0 %v3249
    %3280 = vmatprep.subr.mxu0 0.0
    %3281 = vmatpush1.msra.mxu0 %v3250
    %3282 = vmatprep.subr.mxu0 0.0
    %3283 = vmatpush1.msra.mxu0 %v3251
    %3284 = vmatprep.subr.mxu0 0.0
    %3285 = vmatpush1.msra.mxu0 0.0
    %3286 = vmatprep.subr.mxu0 0.0
    %3287 = vmatpush1.msra.mxu0 0.0
    %3288 = vmatprep.subr.mxu0 0.0
    %3289 = vmatpush1.msra.mxu0 0.0
    %3290 = vmatprep.subr.mxu0 0.0
    %3291 = vmatpush1.msra.mxu0 0.0
    %3292 = vmatprep.subr.mxu0 0.0
    %3293 = vmatpush1.msra.mxu0 0.0
    %3294 = vmatprep.subr.mxu0 0.0
    %3295 = vmatpush1.msra.mxu0 0.0
    %3296 = vmatprep.subr.mxu0 0.0
    %3297 = vmatpush1.msra.mxu0 0.0
    %3298 = vmatprep.subr.mxu0 0.0
    %3299 = vmatpush1.msra.mxu0 0.0
    %3300 = vmatprep.subr.mxu0 0.0
    %3301 = vmatpush1.msra.mxu0 0.0
    %3302 = vmatprep.subr.mxu0 0.0
    %3303 = vmatpush1.msra.mxu0 0.0
    %3304 = vmatprep.subr.mxu0 0.0
    %3305 = vmatpush1.msra.mxu0 0.0
    %3306 = vmatprep.subr.mxu0 0.0
    %3307 = vmatpush1.msra.mxu0 0.0
    %3308 = vmatprep.subr.mxu0 0.0
    %3309 = vmatpush1.msra.mxu0 0.0
    %3310 = vmatprep.subr.mxu0 0.0
    %3311 = vmatpush1.msra.mxu0 0.0
    %3312 = vmatprep.subr.mxu0 0.0
    %3313 = vmatpush1.msra.mxu0 0.0
    %3314 = vmatprep.subr.mxu0 0.0
    %3315 = vmatpush1.msra.mxu0 0.0
    %3316 = vmatprep.mubr.f32.mxu0 0.0
    %3317 = vmatmul.mubr.f32.gmra.mrb[0].mxu0 %v3040
    %v3318 = vpop.f32.mrb[0].mxu0
    %v3319 = vadd.f32 0.0, %v3318
    %v3320 = vpop.f32.mrb[0].mxu0
    %3321 = vdwg.mxu0
    %v3322 = vadd.f32 %v3235, %v3319
    %v3323 = vtanh.pop %v3322
    %v3324 = vmul.f32 %v3234, %v3323
    %v3325 = vadd.f32 %v3140, %v3324
    %v3326 = vld [vmem:[%s3045 + $0x18] sm:$0xff]
    %v3327 = vld [vmem:[#allocation6 + $0x18] sm:$0xff]
    %v3328 = vld [vmem:[#allocation6 + $0x38] sm:$0xff]
    %v3329 = vld [vmem:[#allocation6 + $0x58] sm:$0xff]
    %v3330 = vld [vmem:[#allocation6 + $0x78] sm:$0xff]
    %v3331 = vld [vmem:[#allocation6 + $0x98] sm:$0xff]
    %v3332 = vld [vmem:[#allocation6 + $0xb8] sm:$0xff]
    %v3333 = vld [vmem:[#allocation6 + $0xd8] sm:$0xff]
    %v3334 = vld [vmem:[#allocation6 + $0xf8] sm:$0xff]
    %v3335 = vld [vmem:[#allocation6 + $0x118] sm:$0xff]
    %v3336 = vld [vmem:[#allocation6 + $0x138] sm:$0xff]
    %v3337 = vld [vmem:[#allocation6 + $0x158] sm:$0xff]
    %v3338 = vld [vmem:[#allocation6 + $0x178] sm:$0xff]
    %v3339 = vld [vmem:[#allocation6 + $0x198] sm:$0xff]
    %v3340 = vld [vmem:[#allocation6 + $0x1b8] sm:$0xff]
    %v3341 = vld [vmem:[#allocation6 + $0x1d8] sm:$0xff]
    %v3342 = vld [vmem:[#allocation6 + $0x1f8] sm:$0xff]
    %3343 = vmatprep.subr.mxu0 0.0
    %3344 = vmatpush1.msra.mxu0 %v3327
    %3345 = vmatprep.subr.mxu0 0.0
    %3346 = vmatpush1.msra.mxu0 %v3328
    %3347 = vmatprep.subr.mxu0 0.0
    %3348 = vmatpush1.msra.mxu0 %v3329
    %3349 = vmatprep.subr.mxu0 0.0
    %3350 = vmatpush1.msra.mxu0 %v3330
    %3351 = vmatprep.subr.mxu0 0.0
    %3352 = vmatpush1.msra.mxu0 %v3331
    %3353 = vmatprep.subr.mxu0 0.0
    %3354 = vmatpush1.msra.mxu0 %v3332
    %3355 = vmatprep.subr.mxu0 0.0
    %3356 = vmatpush1.msra.mxu0 %v3333
    %3357 = vmatprep.subr.mxu0 0.0
    %3358 = vmatpush1.msra.mxu0 %v3334
    %3359 = vmatprep.subr.mxu0 0.0
    %3360 = vmatpush1.msra.mxu0 %v3335
    %3361 = vmatprep.subr.mxu0 0.0
    %3362 = vmatpush1.msra.mxu0 %v3336
    %3363 = vmatprep.subr.mxu0 0.0
    %3364 = vmatpush1.msra.mxu0 %v3337
    %3365 = vmatprep.subr.mxu0 0.0
    %3366 = vmatpush1.msra.mxu0 %v3338
    %3367 = vmatprep.subr.mxu0 0.0
    %3368 = vmatpush1.msra.mxu0 %v3339
    %3369 = vmatprep.subr.mxu0 0.0
    %3370 = vmatpush1.msra.mxu0 %v3340
    %3371 = vmatprep.subr.mxu0 0.0
    %3372 = vmatpush1.msra.mxu0 %v3341
    %3373 = vmatprep.subr.mxu0 0.0
    %3374 = vmatpush1.msra.mxu0 %v3342
    %3375 = vmatprep.subr.mxu0 0.0
    %3376 = vmatpush1.msra.mxu0 0.0
    %3377 = vmatprep.subr.mxu0 0.0
    %3378 = vmatpush1.msra.mxu0 0.0
    %3379 = vmatprep.subr.mxu0 0.0
    %3380 = vmatpush1.msra.mxu0 0.0
    %3381 = vmatprep.subr.mxu0 0.0
    %3382 = vmatpush1.msra.mxu0 0.0
    %3383 = vmatprep.subr.mxu0 0.0
    %3384 = vmatpush1.msra.mxu0 0.0
    %3385 = vmatprep.subr.mxu0 0.0
    %3386 = vmatpush1.msra.mxu0 0.0
    %3387 = vmatprep.subr.mxu0 0.0
    %3388 = vmatpush1.msra.mxu0 0.0
    %3389 = vmatprep.subr.mxu0 0.0
    %3390 = vmatpush1.msra.mxu0 0.0
    %3391 = vmatprep.subr.mxu0 0.0
    %3392 = vmatpush1.msra.mxu0 0.0
    %3393 = vmatprep.subr.mxu0 0.0
    %3394 = vmatpush1.msra.mxu0 0.0
    %3395 = vmatprep.subr.mxu0 0.0
    %3396 = vmatpush1.msra.mxu0 0.0
    %3397 = vmatprep.subr.mxu0 0.0
    %3398 = vmatpush1.msra.mxu0 0.0
    %3399 = vmatprep.subr.mxu0 0.0
    %3400 = vmatpush1.msra.mxu0 0.0
    %3401 = vmatprep.subr.mxu0 0.0
    %3402 = vmatpush1.msra.mxu0 0.0
    %3403 = vmatprep.subr.mxu0 0.0
    %3404 = vmatpush1.msra.mxu0 0.0
    %3405 = vmatprep.subr.mxu0 0.0
    %3406 = vmatpush1.msra.mxu0 0.0
    %3407 = vmatprep.mubr.f32.mxu0 0.0
    %3408 = vmatmul.mubr.f32.gmra.mrb[0].mxu0 %v3040
    %v3409 = vpop.f32.mrb[0].mxu0
    %v3410 = vadd.f32 0.0, %v3409
    %v3411 = vpop.f32.mrb[0].mxu0
    %3412 = vdwg.mxu0
    %v3413 = vadd.f32 %v3326, %v3410
    %v3414 = vxor.u32 %v3413, 2147483648
    %v3415 = vmul.f32 %v3414, 1.442695
    %v3416 = vpow.pop %v3415
    %v3417 = vadd.f32 %v3416, 1.0
    %v3418 = vrcp.pop %v3417
    %v3419 = vmul.f32 1.0, %v3418
    %v3420 = vtanh.pop %v3325
    %v3421 = vmul.f32 %v3419, %v3420
    %s3422 = scalar_lea.vmem [#allocation3], 56
    %3423 = vst [vmem:[%s3422] sm:$0xff] %v3421
    %3424 = vst [vmem:[#allocation4] sm:$0xff] %v3421
    %3425 = vst [vmem:[#allocation5] sm:$0xff] %v3325
    %v3426 = vld [vmem:[#allocation3] sm:$0xff]
    %v3427 = vld [vmem:[#allocation3 + $0x8] sm:$0xff]
    %v3428 = vld [vmem:[#allocation3 + $0x10] sm:$0xff]
    %v3429 = vld [vmem:[#allocation3 + $0x18] sm:$0xff]
    %v3430 = vld [vmem:[#allocation3 + $0x20] sm:$0xff]
    %v3431 = vld [vmem:[#allocation3 + $0x28] sm:$0xff]
    %v3432 = vld [vmem:[#allocation3 + $0x30] sm:$0xff]
    %v3433 = vld [vmem:[#allocation3 + $0x38] sm:$0xff]
    %v3434 = vld [vmem:[#allocation9] sm:$0xff]
    %v3435 = vld [vmem:[#allocation9 + $0x8] sm:$0xff]
    %v3436 = vld [vmem:[#allocation9 + $0x10] sm:$0xff]
    %v3437 = vld [vmem:[#allocation9 + $0x18] sm:$0xff]
    %v3438 = vld [vmem:[#allocation9 + $0x20] sm:$0xff]
    %v3439 = vld [vmem:[#allocation9 + $0x28] sm:$0xff]
    %v3440 = vld [vmem:[#allocation9 + $0x30] sm:$0xff]
    %v3441 = vld [vmem:[#allocation9 + $0x38] sm:$0xff]
    %v3442 = vld [vmem:[#allocation9 + $0x40] sm:$0xff]
    %v3443 = vld [vmem:[#allocation9 + $0x48] sm:$0xff]
    %v3444 = vld [vmem:[#allocation9 + $0x50] sm:$0xff]
    %v3445 = vld [vmem:[#allocation9 + $0x58] sm:$0xff]
    %v3446 = vld [vmem:[#allocation9 + $0x60] sm:$0xff]
    %v3447 = vld [vmem:[#allocation9 + $0x68] sm:$0xff]
    %v3448 = vld [vmem:[#allocation9 + $0x70] sm:$0xff]
    %v3449 = vld [vmem:[#allocation9 + $0x78] sm:$0xff]
    %v3450 = vld [vmem:[%s5] sm:$0x1]
    %v3452 = vlaneseq
    %v3453 = vshrl.u32 %v3452, 7
    %v3454 = vsub.s32 0, %v3453
    %v3455 = vrot.slane %v3450, %v3454
    %3457 = vmatprep.subr.mxu0 0.0
    %3458 = vmatpush1.msra.mxu0 %v3434
    %3459 = vmatprep.subr.mxu0 0.0
    %3460 = vmatpush1.msra.mxu0 %v3435
    %3461 = vmatprep.subr.mxu0 0.0
    %3462 = vmatpush1.msra.mxu0 %v3436
    %3463 = vmatprep.subr.mxu0 0.0
    %3464 = vmatpush1.msra.mxu0 %v3437
    %3465 = vmatprep.subr.mxu0 0.0
    %3466 = vmatpush1.msra.mxu0 %v3438
    %3467 = vmatprep.subr.mxu0 0.0
    %3468 = vmatpush1.msra.mxu0 %v3439
    %3469 = vmatprep.subr.mxu0 0.0
    %3470 = vmatpush1.msra.mxu0 %v3440
    %3471 = vmatprep.subr.mxu0 0.0
    %3472 = vmatpush1.msra.mxu0 %v3441
    %3473 = vmatprep.subr.mxu0 0.0
    %3474 = vmatpush1.msra.mxu0 %v3442
    %3475 = vmatprep.subr.mxu0 0.0
    %3476 = vmatpush1.msra.mxu0 %v3443
    %3477 = vmatprep.subr.mxu0 0.0
    %3478 = vmatpush1.msra.mxu0 %v3444
    %3479 = vmatprep.subr.mxu0 0.0
    %3480 = vmatpush1.msra.mxu0 %v3445
    %3481 = vmatprep.subr.mxu0 0.0
    %3482 = vmatpush1.msra.mxu0 %v3446
    %3483 = vmatprep.subr.mxu0 0.0
    %3484 = vmatpush1.msra.mxu0 %v3447
    %3485 = vmatprep.subr.mxu0 0.0
    %3486 = vmatpush1.msra.mxu0 %v3448
    %3487 = vmatprep.subr.mxu0 0.0
    %3488 = vmatpush1.msra.mxu0 %v3449
    %3489 = vmatprep.subr.mxu0 0.0
    %3490 = vmatpush1.msra.mxu0 0.0
    %3491 = vmatprep.subr.mxu0 0.0
    %3492 = vmatpush1.msra.mxu0 0.0
    %3493 = vmatprep.subr.mxu0 0.0
    %3494 = vmatpush1.msra.mxu0 0.0
    %3495 = vmatprep.subr.mxu0 0.0
    %3496 = vmatpush1.msra.mxu0 0.0
    %3497 = vmatprep.subr.mxu0 0.0
    %3498 = vmatpush1.msra.mxu0 0.0
    %3499 = vmatprep.subr.mxu0 0.0
    %3500 = vmatpush1.msra.mxu0 0.0
    %3501 = vmatprep.subr.mxu0 0.0
    %3502 = vmatpush1.msra.mxu0 0.0
    %3503 = vmatprep.subr.mxu0 0.0
    %3504 = vmatpush1.msra.mxu0 0.0
    %3505 = vmatprep.subr.mxu0 0.0
    %3506 = vmatpush1.msra.mxu0 0.0
    %3507 = vmatprep.subr.mxu0 0.0
    %3508 = vmatpush1.msra.mxu0 0.0
    %3509 = vmatprep.subr.mxu0 0.0
    %3510 = vmatpush1.msra.mxu0 0.0
    %3511 = vmatprep.subr.mxu0 0.0
    %3512 = vmatpush1.msra.mxu0 0.0
    %3513 = vmatprep.subr.mxu0 0.0
    %3514 = vmatpush1.msra.mxu0 0.0
    %3515 = vmatprep.subr.mxu0 0.0
    %3516 = vmatpush1.msra.mxu0 0.0
    %3517 = vmatprep.subr.mxu0 0.0
    %3518 = vmatpush1.msra.mxu0 0.0
    %3519 = vmatprep.subr.mxu0 0.0
    %3520 = vmatpush1.msra.mxu0 0.0
    %3521 = vmatprep.mubr.f32.mxu0 0.0
    %3522 = vmatmul.mubr.f32.gmra.mrb[0].mxu0 %v3426
    %v3523 = vpop.f32.mrb[0].mxu0
    %v3524 = vadd.f32 %v3455, %v3523
    %v3525 = vpop.f32.mrb[0].mxu0
    %3526 = vmatprep.mubr.f32.mxu0 0.0
    %3527 = vmatmul.mubr.f32.gmra.mrb[0].mxu0 %v3427
    %v3528 = vpop.f32.mrb[0].mxu0
    %v3529 = vadd.f32 %v3455, %v3528
    %v3530 = vpop.f32.mrb[0].mxu0
    %3531 = vmatprep.mubr.f32.mxu0 0.0
    %3532 = vmatmul.mubr.f32.gmra.mrb[0].mxu0 %v3428
    %v3533 = vpop.f32.mrb[0].mxu0
    %v3534 = vadd.f32 %v3455, %v3533
    %v3535 = vpop.f32.mrb[0].mxu0
    %3536 = vmatprep.mubr.f32.mxu0 0.0
    %3537 = vmatmul.mubr.f32.gmra.mrb[0].mxu0 %v3429
    %v3538 = vpop.f32.mrb[0].mxu0
    %v3539 = vadd.f32 %v3455, %v3538
    %v3540 = vpop.f32.mrb[0].mxu0
    %3541 = vmatprep.mubr.f32.mxu0 0.0
    %3542 = vmatmul.mubr.f32.gmra.mrb[0].mxu0 %v3430
    %v3543 = vpop.f32.mrb[0].mxu0
    %v3544 = vadd.f32 %v3455, %v3543
    %v3545 = vpop.f32.mrb[0].mxu0
    %3546 = vmatprep.mubr.f32.mxu0 0.0
    %3547 = vmatmul.mubr.f32.gmra.mrb[0].mxu0 %v3431
    %v3548 = vpop.f32.mrb[0].mxu0
    %v3549 = vadd.f32 %v3455, %v3548
    %v3550 = vpop.f32.mrb[0].mxu0
    %3551 = vmatprep.mubr.f32.mxu0 0.0
    %3552 = vmatmul.mubr.f32.gmra.mrb[0].mxu0 %v3432
    %v3553 = vpop.f32.mrb[0].mxu0
    %v3554 = vadd.f32 %v3455, %v3553
    %v3555 = vpop.f32.mrb[0].mxu0
    %3556 = vmatprep.mubr.f32.mxu0 0.0
    %3557 = vmatmul.mubr.f32.gmra.mrb[0].mxu0 %v3433
    %v3558 = vpop.f32.mrb[0].mxu0
    %v3559 = vadd.f32 %v3455, %v3558
    %v3560 = vpop.f32.mrb[0].mxu0
    %3561 = vdwg.mxu0
    %v3562 = vtanh.pop %v3524
    %v3563 = vtanh.pop %v3529
    %v3564 = vtanh.pop %v3534
    %v3565 = vtanh.pop %v3539
    %v3566 = vtanh.pop %v3544
    %v3567 = vtanh.pop %v3549
    %v3568 = vtanh.pop %v3554
    %v3569 = vtanh.pop %v3559
    %3570 = vst [vmem:[#allocation11] sm:$0xff] %v3562
    %3571 = vst [vmem:[#allocation11 + $0x8] sm:$0xff] %v3563
    %3572 = vst [vmem:[#allocation11 + $0x10] sm:$0xff] %v3564
    %3573 = vst [vmem:[#allocation11 + $0x18] sm:$0xff] %v3565
    %3574 = vst [vmem:[#allocation11 + $0x20] sm:$0xff] %v3566
    %3575 = vst [vmem:[#allocation11 + $0x28] sm:$0xff] %v3567
    %3576 = vst [vmem:[#allocation11 + $0x30] sm:$0xff] %v3568
    %3577 = vst [vmem:[#allocation11 + $0x38] sm:$0xff] %v3569
    // Predicated region
    $region38: #{tpu_custom_call.1} parent=1 // pred_check
      _
    $region39: #{tpu_custom_call.1} parent=1 // pred_check_branch
      %3579 = sbr.rel (0) target = $region41
    $region40: #{tpu_custom_call.1} parent=1 // pred_region
      %s3581 = ssub.s32 1024, 1024
      %3582 = vsyncadd [#allocation8], %s3581
      %s3583 = sshll.u32 [#allocation11], 4
      %s3584 = int_to_ptr.vmem [resolvable:$true] %s3583
      %3589 = dma.vmem_to_hbm [thread:$0]  %s3584, 1024, %s6, [#allocation8], 128, 128, 8
    $region41: #{tpu_custom_call.1} parent=1 // pred_fallthru
      _
    // Predicated region
    $region42: #{tpu_custom_call.1} parent=1 // pred_check
      _
    $region43: #{tpu_custom_call.1} parent=1 // pred_check_branch
      %3591 = sbr.rel (0) target = $region45
    $region44: #{tpu_custom_call.1} parent=1 // pred_region
      %3592 = dma.done [#allocation8], 1024
    $region45: #{tpu_custom_call.1} parent=1 // pred_fallthru
      _
    %3593 = vsyncpa [#allocation7], 1
    %3594 = vsyncpa [#allocation10], 1
    %3595 = vsyncpa [#allocation8], 1

</llo_original>
